<compile_context>
chip_gen: v5e
topology: v5e:2x2
jax: 0.10.0
libtpu: 0.0.40
codegen_flags: <defaults>
</compile_context>

<pallas_src>
import jax
import jax.numpy as jnp
from jax import lax
from jax.experimental import pallas as pl
from jax.experimental.pallas import tpu as pltpu


# --------------------------- Pallas kernels --------------------------------

def _fused_conv_kernel(p1_ref, w1_ref, s1_ref, b1_ref, w2_ref, s2_ref, b2_ref,
                       o_ref, ybuf1, ypad, ybuf2):
    """Per-image fused conv1+BN+ReLU+pool -> conv2+BN+ReLU+pool.

    Flat frames (row-major H*W on sublanes, channels on lanes):
      ybuf1: (784, 32) = 28x28 conv1 activations      (flat index p = h*28 + w)
      ypad : (324, 32) = 18x18 zero-padded pooled y1  (flat index q = hp*18 + wp)
      ybuf2: (248, 64) = conv2 activations on the 18-wide frame (p = h*18 + w)
    """
    # ---- layer 1: conv(1->32, k5, pad2) as one im2col matmul + BN + ReLU ----
    y1 = jnp.dot(p1_ref[...], w1_ref[...], preferred_element_type=jnp.float32)
    ybuf1[...] = jnp.maximum(y1 * s1_ref[...] + b1_ref[...], 0.0)

    # ---- 2x2 max-pool on the flat 28-wide frame ----
    # rows h / h+1 (flat offset +28), then cols w / w+1 (flat offset +1)
    t1 = jnp.maximum(ybuf1[0:756, :], ybuf1[28:784, :])
    ybuf1[0:756, :] = t1
    u1 = jnp.maximum(ybuf1[0:755, :], ybuf1[1:756, :])
    ybuf1[0:755, :] = u1
    # pooled(i, j) now lives at flat index 56*i + 2*j of ybuf1.

    # ---- scatter pooled 14x14x32 into the zero-padded 18x18 conv2 frame ----
    ypad[...] = jnp.zeros_like(ypad)
    for i in range(14):
        sel = ybuf1[pl.ds(56 * i, 14, stride=2), :]          # (14, 32), w = 0,2,..,26
        ypad[pl.ds((i + 2) * 18 + 2, 14), :] = sel           # rows (i+2), cols 2..15

    # ---- layer 2: conv(32->64, k5, pad2) as 25 shifted matmuls (no im2col) ----
    # conv2 output at flat p = h*18 + w (h, w in 0..13) =
    #   sum_{dh,dw} ypad[p + dh*18 + dw, :] @ w2[dh*5+dw]
    acc = jnp.zeros((248, 64), jnp.float32)
    for dh in range(5):
        for dw in range(5):
            off = dh * 18 + dw
            acc = acc + jnp.dot(ypad[off:off + 248, :],
                                w2_ref[dh * 5 + dw],
                                preferred_element_type=jnp.float32)
    ybuf2[...] = jnp.maximum(acc * s2_ref[...] + b2_ref[...], 0.0)

    # ---- 2x2 max-pool on the flat 18-wide frame ----
    t2 = jnp.maximum(ybuf2[0:230, :], ybuf2[18:248, :])
    ybuf2[0:230, :] = t2
    u2 = jnp.maximum(ybuf2[0:229, :], ybuf2[1:230, :])
    ybuf2[0:229, :] = u2
    # pooled(i, j) now lives at flat index 36*i + 2*j of ybuf2.

    for i in range(7):
        o_ref[0, i] = ybuf2[pl.ds(36 * i, 7, stride=2), :]   # (7, 64)


def _fc_softmax_kernel(x_ref, w_ref, b_ref, o_ref):
    logits = jnp.dot(x_ref[...], w_ref[...], preferred_element_type=jnp.float32)
    logits = logits + b_ref[...]                 # pad lanes carry bias -1e30
    m = jnp.max(logits, axis=-1, keepdims=True)
    e = jnp.exp(logits - m)                      # pad lanes -> 0
    s = jnp.sum(e, axis=-1, keepdims=True)
    o_ref[...] = e * pl.reciprocal(s, approx=True)


# --------------------------- kernel wrappers --------------------------------

def fused_conv_block(p1, w1r, s1, b1, w2r, s2, b2):
    """p1: (B*784, 25) layer-1 im2col patches; returns pooled y2 (B, 7, 7, 64)."""
    B = p1.shape[0] // 784
    flops = B * (2 * 784 * 25 * 32 + 25 * 2 * 248 * 32 * 64)
    bytes_accessed = 4 * (p1.size + w1r.size + w2r.size +
                          s1.size + b1.size + s2.size + b2.size + B * 7 * 7 * 64)
    return pl.pallas_call(
        _fused_conv_kernel,
        out_shape=jax.ShapeDtypeStruct((B, 7, 7, 64), jnp.float32),
        grid_spec=pltpu.PrefetchScalarGridSpec(
            num_scalar_prefetch=0,
            grid=(B,),
            in_specs=[
                pl.BlockSpec((784, 25), lambda b: (b, 0)),       # per-image patches
                pl.BlockSpec((25, 32), lambda b: (0, 0)),        # w1 (taps, Cout)
                pl.BlockSpec((1, 32), lambda b: (0, 0)),         # BN scale 1
                pl.BlockSpec((1, 32), lambda b: (0, 0)),         # BN bias 1
                pl.BlockSpec((25, 32, 64), lambda b: (0, 0, 0)),  # w2 (taps, Cin, Cout)
                pl.BlockSpec((1, 64), lambda b: (0, 0)),         # BN scale 2
                pl.BlockSpec((1, 64), lambda b: (0, 0)),         # BN bias 2
            ],
            out_specs=pl.BlockSpec((1, 7, 7, 64), lambda b: (b, 0, 0, 0)),
            scratch_shapes=[
                pltpu.VMEM((784, 32), jnp.float32),   # ybuf1
                pltpu.VMEM((324, 32), jnp.float32),   # ypad
                pltpu.VMEM((248, 64), jnp.float32),   # ybuf2
            ],
        ),
        compiler_params=pltpu.CompilerParams(
            dimension_semantics=("parallel",)),
        cost_estimate=pl.CostEstimate(
            flops=int(flops), transcendentals=0,
            bytes_accessed=int(bytes_accessed)),
    )(p1, w1r, s1, b1, w2r, s2, b2)


def fc_softmax(x, w, b):
    """x: (B, 3136), w: (3136, 128) lane-dense, b: (1, 128). Returns (B, 128)."""
    B, K = x.shape
    N = w.shape[1]
    tb = B if B <= 128 else 128
    return pl.pallas_call(
        _fc_softmax_kernel,
        out_shape=jax.ShapeDtypeStruct((B, N), jnp.float32),
        grid_spec=pltpu.PrefetchScalarGridSpec(
            num_scalar_prefetch=0,
            grid=(pl.cdiv(B, tb),),
            in_specs=[
                pl.BlockSpec((tb, K), lambda i: (i, 0)),
                pl.BlockSpec((K, N), lambda i: (0, 0)),
                pl.BlockSpec((1, N), lambda i: (0, 0)),
            ],
            out_specs=pl.BlockSpec((tb, N), lambda i: (i, 0)),
        ),
        compiler_params=pltpu.CompilerParams(
            dimension_semantics=("parallel",)),
    )(x, w, b)


# --------------------------- JAX glue ---------------------------------------

def im2col_same5(x_nhwc):
    """5x5 'same' (pad=2) patch extraction. Returns (B*H*W, 25*C), tap-major.

    Only used for layer 1 (1 input channel -> tiny); layer-2 im2col is done
    implicitly inside the fused kernel via shifted matmuls.
    """
    B, H, W, C = x_nhwc.shape
    xp = jnp.pad(x_nhwc, ((0, 0), (2, 2), (2, 2), (0, 0)))
    cols = []
    for dh in range(5):
        for dw in range(5):
            cols.append(xp[:, dh:dh + H, dw:dw + W, :])
    patches = jnp.concatenate(cols, axis=-1)          # (B, H, W, 25*C)
    return patches.reshape(B * H * W, 25 * C)


def fed_emnist_cnn_pallas(x_nchw, pparams):
    x = jnp.transpose(x_nchw, (0, 2, 3, 1))            # NCHW -> NHWC (C=1)
    B = x.shape[0]

    p1 = im2col_same5(x)                               # (B*784, 25), no K padding
    y2 = fused_conv_block(p1,
                          pparams["w1r"], pparams["s1"], pparams["b1"],
                          pparams["w2r"], pparams["s2"], pparams["b2"])

    # NHWC flatten; wfc rows were pre-permuted to NHWC order (no runtime transpose).
    flat = y2.reshape(B, 7 * 7 * 64)
    probs = fc_softmax(flat, pparams["wfc_p"], pparams["bfc_p"])
    return probs[:, :10]


def fed_emnist_cnn_ref(x_nchw, params):
    """Pure-JAX reference (eval-mode BN) for numerical validation."""
    dn = ("NHWC", "HWIO", "NHWC")
    x = jnp.transpose(x_nchw, (0, 2, 3, 1))
    B = x.shape[0]

    y = lax.conv_general_dilated(x, params["w1"], (1, 1), "SAME",
                                 dimension_numbers=dn,
                                 precision=lax.Precision.HIGHEST)
    y = jnp.maximum(y * params["s1"] + params["b1"], 0.0)
    y = y.reshape(B, 14, 2, 14, 2, 32).max(axis=(2, 4))

    y = lax.conv_general_dilated(y, params["w2"], (1, 1), "SAME",
                                 dimension_numbers=dn,
                                 precision=lax.Precision.HIGHEST)
    y = jnp.maximum(y * params["s2"] + params["b2"], 0.0)
    y = y.reshape(B, 7, 2, 7, 2, 64).max(axis=(2, 4))

    flat = jnp.transpose(y, (0, 3, 1, 2)).reshape(B, 64 * 7 * 7)   # torch NCHW flatten
    logits = jnp.dot(flat, params["wfc"], precision=lax.Precision.HIGHEST) + params["bfc"]
    return jax.nn.softmax(logits, axis=1)


def make_params(key):
    ks = jax.random.split(key, 16)
    f32 = jnp.float32
    # conv1: torch Conv2d(1, 32, 5)  -> HWIO weights (5,5,1,32)
    w1 = 0.10 * jax.random.normal(ks[0], (5, 5, 1, 32), f32)
    cb1 = 0.10 * jax.random.normal(ks[1], (32,), f32)
    g1 = 1.0 + 0.1 * jax.random.normal(ks[2], (32,), f32)
    be1 = 0.1 * jax.random.normal(ks[3], (32,), f32)
    m1 = 0.1 * jax.random.normal(ks[4], (32,), f32)
    v1 = 1.0 + 0.5 * jax.random.uniform(ks[5], (32,), f32)
    # conv2: torch Conv2d(32, 64, 5) -> HWIO weights (5,5,32,64)
    w2 = 0.02 * jax.random.normal(ks[6], (5, 5, 32, 64), f32)
    cb2 = 0.10 * jax.random.normal(ks[7], (64,), f32)
    g2 = 1.0 + 0.1 * jax.random.normal(ks[8], (64,), f32)
    be2 = 0.1 * jax.random.normal(ks[9], (64,), f32)
    m2 = 0.1 * jax.random.normal(ks[10], (64,), f32)
    v2 = 1.0 + 0.5 * jax.random.uniform(ks[11], (64,), f32)
    # fc: torch Linear(3136, 10) -> stored as (3136, 10) in torch (NCHW-flatten) order
    wfc = 0.01 * jax.random.normal(ks[12], (3136, 10), f32)
    bfc = 0.01 * jax.random.normal(ks[13], (10,), f32)

    eps = 1e-5
    s1 = g1 / jnp.sqrt(v1 + eps)
    b1 = be1 + (cb1 - m1) * s1          # conv bias + BN folded (eval mode)
    s2 = g2 / jnp.sqrt(v2 + eps)
    b2 = be2 + (cb2 - m2) * s2
    return dict(w1=w1, s1=s1, b1=b1, w2=w2, s2=s2, b2=b2, wfc=wfc, bfc=bfc)


def prep_pallas_params(params):
    """One-time (offline) parameter re-layout for the Pallas kernels."""
    f32 = jnp.float32
    w1r = params["w1"].reshape(25, 32)            # (taps, Cout)
    w2r = params["w2"].reshape(25, 32, 64)        # (taps, Cin, Cout)
    # Permute FC rows from torch NCHW-flatten order (c*49+h*7+w) to NHWC order
    # (h*448+w*64+c), then pad 10 -> 128 output lanes (lane-dense store).
    wfc_nhwc = (params["wfc"].reshape(64, 7, 7, 10)
                .transpose(1, 2, 0, 3).reshape(3136, 10))
    wfc_p = jnp.zeros((3136, 128), f32).at[:, :10].set(wfc_nhwc)
    bfc_p = jnp.full((128,), -1e30, f32).at[:10].set(params["bfc"])[None, :]
    return dict(
        w1r=w1r, s1=params["s1"][None, :], b1=params["b1"][None, :],
        w2r=w2r, s2=params["s2"][None, :], b2=params["b2"][None, :],
        wfc_p=wfc_p, bfc_p=bfc_p)


if __name__ == "__main__":
    key = jax.random.PRNGKey(0)
    pkey, xkey = jax.random.split(key)
    params = make_params(pkey)
    pparams = prep_pallas_params(params)

    # EMNIST-style input: batch=2, 1 channel, 28x28 (FC dim 3136 = 64*7*7 fixes it)
    x = jax.random.normal(xkey, (2, 1, 28, 28), jnp.float32)

    out = jax.jit(fed_emnist_cnn_pallas)(x, pparams)
    out = jax.block_until_ready(out)

    ref = fed_emnist_cnn_ref(x, params)
    assert out.shape == (2, 10) and out.dtype == jnp.float32
    row_sum_err = float(jnp.max(jnp.abs(jnp.sum(out, axis=1) - 1.0)))
    max_err = float(jnp.max(jnp.abs(out - ref)))
    assert row_sum_err < 1e-3, f"softmax rows do not sum to 1 (err={row_sum_err})"
    assert max_err < 1e-3, f"mismatch vs JAX reference (max abs err={max_err})"

    print("KERNEL_OK")
</pallas_src>

<mosaic_0001>
module attributes {stable_mosaic.version = 11 : i64} {
  func.func @_fused_conv_kernel(%arg0: i32, %arg1: memref<784x25xf32, #tpu.memory_space<vmem>>, %arg2: memref<25x32xf32, #tpu.memory_space<vmem>>, %arg3: memref<1x32xf32, #tpu.memory_space<vmem>>, %arg4: memref<1x32xf32, #tpu.memory_space<vmem>>, %arg5: memref<25x32x64xf32, #tpu.memory_space<vmem>>, %arg6: memref<1x64xf32, #tpu.memory_space<vmem>>, %arg7: memref<1x64xf32, #tpu.memory_space<vmem>>, %arg8: memref<1x7x7x64xf32, #tpu.memory_space<vmem>>, %arg9: memref<784x32xf32, #tpu.memory_space<vmem>>, %arg10: memref<324x32xf32, #tpu.memory_space<vmem>>, %arg11: memref<248x64xf32, #tpu.memory_space<vmem>>) attributes {dimension_semantics = [#tpu.dimension_semantics<parallel>], iteration_bounds = array<i64: 2>, scalar_prefetch = 0 : i64, scratch_operands = 3 : i64, tpu.core_type = #tpu.core_type<tc>, window_params = [{transform_indices = @transform_0, window_bounds = array<i64: 784, 25>}, {pipeline_mode = #tpu.pipeline_mode<synchronous>, transform_indices = @transform_1, window_bounds = array<i64: 25, 32>}, {pipeline_mode = #tpu.pipeline_mode<synchronous>, transform_indices = @transform_2, window_bounds = array<i64: 1, 32>}, {pipeline_mode = #tpu.pipeline_mode<synchronous>, transform_indices = @transform_3, window_bounds = array<i64: 1, 32>}, {pipeline_mode = #tpu.pipeline_mode<synchronous>, transform_indices = @transform_4, window_bounds = array<i64: 25, 32, 64>}, {pipeline_mode = #tpu.pipeline_mode<synchronous>, transform_indices = @transform_5, window_bounds = array<i64: 1, 64>}, {pipeline_mode = #tpu.pipeline_mode<synchronous>, transform_indices = @transform_6, window_bounds = array<i64: 1, 64>}, {transform_indices = @transform_7, window_bounds = array<i64: 1, 7, 7, 64>}]} {
    %c0 = arith.constant 0 : index
    %c0_0 = arith.constant 0 : index
    %0 = vector.load %arg1[%c0, %c0_0] : memref<784x25xf32, #tpu.memory_space<vmem>>, vector<784x25xf32>
    %c0_1 = arith.constant 0 : index
    %c0_2 = arith.constant 0 : index
    %1 = vector.load %arg2[%c0_1, %c0_2] : memref<25x32xf32, #tpu.memory_space<vmem>>, vector<25x32xf32>
    %cst = arith.constant dense<0.000000e+00> : vector<784x32xf32>
    %2 = tpu.matmul %0, %1, %cst {dimension_numbers = #tpu.dot_dimension_numbers<[1], [0], [0], [1], [0, 0, 1, 1], [], []>} : vector<784x25xf32>, vector<25x32xf32>, vector<784x32xf32> -> vector<784x32xf32>
    %c0_3 = arith.constant 0 : index
    %c0_4 = arith.constant 0 : index
    %3 = vector.load %arg3[%c0_3, %c0_4] : memref<1x32xf32, #tpu.memory_space<vmem>>, vector<1x32xf32>
    %4 = vector.broadcast %3 : vector<1x32xf32> to vector<784x32xf32>
    %5 = arith.mulf %2, %4 : vector<784x32xf32>
    %c0_5 = arith.constant 0 : index
    %c0_6 = arith.constant 0 : index
    %6 = vector.load %arg4[%c0_5, %c0_6] : memref<1x32xf32, #tpu.memory_space<vmem>>, vector<1x32xf32>
    %7 = vector.broadcast %6 : vector<1x32xf32> to vector<784x32xf32>
    %8 = arith.addf %5, %7 : vector<784x32xf32>
    %cst_7 = arith.constant 0.000000e+00 : f32
    %9 = vector.broadcast %cst_7 : f32 to vector<784x32xf32>
    %10 = arith.maximumf %8, %9 : vector<784x32xf32>
    %c0_8 = arith.constant 0 : index
    %c0_9 = arith.constant 0 : index
    %11 = vector.load %arg9[%c0_8, %c0_9] : memref<784x32xf32, #tpu.memory_space<vmem>>, vector<784x32xf32>
    tpu.vector_store %arg9[%c0_8, %c0_9], %10 {strides = array<i32>} : memref<784x32xf32, #tpu.memory_space<vmem>>, vector<784x32xf32>,
    %c0_10 = arith.constant 0 : index
    %c0_11 = arith.constant 0 : index
    %12 = vector.load %arg9[%c0_10, %c0_11] : memref<784x32xf32, #tpu.memory_space<vmem>>, vector<756x32xf32>
    %c28 = arith.constant 28 : index
    %c0_12 = arith.constant 0 : index
    %13 = vector.load %arg9[%c28, %c0_12] : memref<784x32xf32, #tpu.memory_space<vmem>>, vector<756x32xf32>
    %14 = arith.maximumf %12, %13 : vector<756x32xf32>
    %c0_13 = arith.constant 0 : index
    %c0_14 = arith.constant 0 : index
    %15 = vector.load %arg9[%c0_13, %c0_14] : memref<784x32xf32, #tpu.memory_space<vmem>>, vector<756x32xf32>
    tpu.vector_store %arg9[%c0_13, %c0_14], %14 {strides = array<i32>} : memref<784x32xf32, #tpu.memory_space<vmem>>, vector<756x32xf32>,
    %c0_15 = arith.constant 0 : index
    %c0_16 = arith.constant 0 : index
    %16 = vector.load %arg9[%c0_15, %c0_16] : memref<784x32xf32, #tpu.memory_space<vmem>>, vector<755x32xf32>
    %c1 = arith.constant 1 : index
    %c0_17 = arith.constant 0 : index
    %17 = vector.load %arg9[%c1, %c0_17] : memref<784x32xf32, #tpu.memory_space<vmem>>, vector<755x32xf32>
    %18 = arith.maximumf %16, %17 : vector<755x32xf32>
    %c0_18 = arith.constant 0 : index
    %c0_19 = arith.constant 0 : index
    %19 = vector.load %arg9[%c0_18, %c0_19] : memref<784x32xf32, #tpu.memory_space<vmem>>, vector<755x32xf32>
    tpu.vector_store %arg9[%c0_18, %c0_19], %18 {strides = array<i32>} : memref<784x32xf32, #tpu.memory_space<vmem>>, vector<755x32xf32>,
    %cst_20 = arith.constant 0.000000e+00 : f32
    %20 = vector.broadcast %cst_20 : f32 to vector<324x32xf32>
    %c0_21 = arith.constant 0 : index
    %c0_22 = arith.constant 0 : index
    %21 = vector.load %arg10[%c0_21, %c0_22] : memref<324x32xf32, #tpu.memory_space<vmem>>, vector<324x32xf32>
    tpu.vector_store %arg10[%c0_21, %c0_22], %20 {strides = array<i32>} : memref<324x32xf32, #tpu.memory_space<vmem>>, vector<324x32xf32>,
    %c0_23 = arith.constant 0 : index
    %c0_24 = arith.constant 0 : index
    %22 = tpu.strided_load %arg9[%c0_23, %c0_24] {strides = array<i32: 2, 1>} : memref<784x32xf32, #tpu.memory_space<vmem>>, vector<14x32xf32>
    %c38 = arith.constant 38 : index
    %c0_25 = arith.constant 0 : index
    %23 = vector.load %arg10[%c38, %c0_25] : memref<324x32xf32, #tpu.memory_space<vmem>>, vector<14x32xf32>
    tpu.vector_store %arg10[%c38, %c0_25], %22 {strides = array<i32>} : memref<324x32xf32, #tpu.memory_space<vmem>>, vector<14x32xf32>,
    %c56 = arith.constant 56 : index
    %c0_26 = arith.constant 0 : index
    %24 = tpu.strided_load %arg9[%c56, %c0_26] {strides = array<i32: 2, 1>} : memref<784x32xf32, #tpu.memory_space<vmem>>, vector<14x32xf32>
    %c56_27 = arith.constant 56 : index
    %c0_28 = arith.constant 0 : index
    %25 = vector.load %arg10[%c56_27, %c0_28] : memref<324x32xf32, #tpu.memory_space<vmem>>, vector<14x32xf32>
    tpu.vector_store %arg10[%c56_27, %c0_28], %24 {strides = array<i32>} : memref<324x32xf32, #tpu.memory_space<vmem>>, vector<14x32xf32>,
    %c112 = arith.constant 112 : index
    %c0_29 = arith.constant 0 : index
    %26 = tpu.strided_load %arg9[%c112, %c0_29] {strides = array<i32: 2, 1>} : memref<784x32xf32, #tpu.memory_space<vmem>>, vector<14x32xf32>
    %c74 = arith.constant 74 : index
    %c0_30 = arith.constant 0 : index
    %27 = vector.load %arg10[%c74, %c0_30] : memref<324x32xf32, #tpu.memory_space<vmem>>, vector<14x32xf32>
    tpu.vector_store %arg10[%c74, %c0_30], %26 {strides = array<i32>} : memref<324x32xf32, #tpu.memory_space<vmem>>, vector<14x32xf32>,
    %c168 = arith.constant 168 : index
    %c0_31 = arith.constant 0 : index
    %28 = tpu.strided_load %arg9[%c168, %c0_31] {strides = array<i32: 2, 1>} : memref<784x32xf32, #tpu.memory_space<vmem>>, vector<14x32xf32>
    %c92 = arith.constant 92 : index
    %c0_32 = arith.constant 0 : index
    %29 = vector.load %arg10[%c92, %c0_32] : memref<324x32xf32, #tpu.memory_space<vmem>>, vector<14x32xf32>
    tpu.vector_store %arg10[%c92, %c0_32], %28 {strides = array<i32>} : memref<324x32xf32, #tpu.memory_space<vmem>>, vector<14x32xf32>,
    %c224 = arith.constant 224 : index
    %c0_33 = arith.constant 0 : index
    %30 = tpu.strided_load %arg9[%c224, %c0_33] {strides = array<i32: 2, 1>} : memref<784x32xf32, #tpu.memory_space<vmem>>, vector<14x32xf32>
    %c110 = arith.constant 110 : index
    %c0_34 = arith.constant 0 : index
    %31 = vector.load %arg10[%c110, %c0_34] : memref<324x32xf32, #tpu.memory_space<vmem>>, vector<14x32xf32>
    tpu.vector_store %arg10[%c110, %c0_34], %30 {strides = array<i32>} : memref<324x32xf32, #tpu.memory_space<vmem>>, vector<14x32xf32>,
    %c280 = arith.constant 280 : index
    %c0_35 = arith.constant 0 : index
    %32 = tpu.strided_load %arg9[%c280, %c0_35] {strides = array<i32: 2, 1>} : memref<784x32xf32, #tpu.memory_space<vmem>>, vector<14x32xf32>
    %c128 = arith.constant 128 : index
    %c0_36 = arith.constant 0 : index
    %33 = vector.load %arg10[%c128, %c0_36] : memref<324x32xf32, #tpu.memory_space<vmem>>, vector<14x32xf32>
    tpu.vector_store %arg10[%c128, %c0_36], %32 {strides = array<i32>} : memref<324x32xf32, #tpu.memory_space<vmem>>, vector<14x32xf32>,
    %c336 = arith.constant 336 : index
    %c0_37 = arith.constant 0 : index
    %34 = tpu.strided_load %arg9[%c336, %c0_37] {strides = array<i32: 2, 1>} : memref<784x32xf32, #tpu.memory_space<vmem>>, vector<14x32xf32>
    %c146 = arith.constant 146 : index
    %c0_38 = arith.constant 0 : index
    %35 = vector.load %arg10[%c146, %c0_38] : memref<324x32xf32, #tpu.memory_space<vmem>>, vector<14x32xf32>
    tpu.vector_store %arg10[%c146, %c0_38], %34 {strides = array<i32>} : memref<324x32xf32, #tpu.memory_space<vmem>>, vector<14x32xf32>,
    %c392 = arith.constant 392 : index
    %c0_39 = arith.constant 0 : index
    %36 = tpu.strided_load %arg9[%c392, %c0_39] {strides = array<i32: 2, 1>} : memref<784x32xf32, #tpu.memory_space<vmem>>, vector<14x32xf32>
    %c164 = arith.constant 164 : index
    %c0_40 = arith.constant 0 : index
    %37 = vector.load %arg10[%c164, %c0_40] : memref<324x32xf32, #tpu.memory_space<vmem>>, vector<14x32xf32>
    tpu.vector_store %arg10[%c164, %c0_40], %36 {strides = array<i32>} : memref<324x32xf32, #tpu.memory_space<vmem>>, vector<14x32xf32>,
    %c448 = arith.constant 448 : index
    %c0_41 = arith.constant 0 : index
    %38 = tpu.strided_load %arg9[%c448, %c0_41] {strides = array<i32: 2, 1>} : memref<784x32xf32, #tpu.memory_space<vmem>>, vector<14x32xf32>
    %c182 = arith.constant 182 : index
    %c0_42 = arith.constant 0 : index
    %39 = vector.load %arg10[%c182, %c0_42] : memref<324x32xf32, #tpu.memory_space<vmem>>, vector<14x32xf32>
    tpu.vector_store %arg10[%c182, %c0_42], %38 {strides = array<i32>} : memref<324x32xf32, #tpu.memory_space<vmem>>, vector<14x32xf32>,
    %c504 = arith.constant 504 : index
    %c0_43 = arith.constant 0 : index
    %40 = tpu.strided_load %arg9[%c504, %c0_43] {strides = array<i32: 2, 1>} : memref<784x32xf32, #tpu.memory_space<vmem>>, vector<14x32xf32>
    %c200 = arith.constant 200 : index
    %c0_44 = arith.constant 0 : index
    %41 = vector.load %arg10[%c200, %c0_44] : memref<324x32xf32, #tpu.memory_space<vmem>>, vector<14x32xf32>
    tpu.vector_store %arg10[%c200, %c0_44], %40 {strides = array<i32>} : memref<324x32xf32, #tpu.memory_space<vmem>>, vector<14x32xf32>,
    %c560 = arith.constant 560 : index
    %c0_45 = arith.constant 0 : index
    %42 = tpu.strided_load %arg9[%c560, %c0_45] {strides = array<i32: 2, 1>} : memref<784x32xf32, #tpu.memory_space<vmem>>, vector<14x32xf32>
    %c218 = arith.constant 218 : index
    %c0_46 = arith.constant 0 : index
    %43 = vector.load %arg10[%c218, %c0_46] : memref<324x32xf32, #tpu.memory_space<vmem>>, vector<14x32xf32>
    tpu.vector_store %arg10[%c218, %c0_46], %42 {strides = array<i32>} : memref<324x32xf32, #tpu.memory_space<vmem>>, vector<14x32xf32>,
    %c616 = arith.constant 616 : index
    %c0_47 = arith.constant 0 : index
    %44 = tpu.strided_load %arg9[%c616, %c0_47] {strides = array<i32: 2, 1>} : memref<784x32xf32, #tpu.memory_space<vmem>>, vector<14x32xf32>
    %c236 = arith.constant 236 : index
    %c0_48 = arith.constant 0 : index
    %45 = vector.load %arg10[%c236, %c0_48] : memref<324x32xf32, #tpu.memory_space<vmem>>, vector<14x32xf32>
    tpu.vector_store %arg10[%c236, %c0_48], %44 {strides = array<i32>} : memref<324x32xf32, #tpu.memory_space<vmem>>, vector<14x32xf32>,
    %c672 = arith.constant 672 : index
    %c0_49 = arith.constant 0 : index
    %46 = tpu.strided_load %arg9[%c672, %c0_49] {strides = array<i32: 2, 1>} : memref<784x32xf32, #tpu.memory_space<vmem>>, vector<14x32xf32>
    %c254 = arith.constant 254 : index
    %c0_50 = arith.constant 0 : index
    %47 = vector.load %arg10[%c254, %c0_50] : memref<324x32xf32, #tpu.memory_space<vmem>>, vector<14x32xf32>
    tpu.vector_store %arg10[%c254, %c0_50], %46 {strides = array<i32>} : memref<324x32xf32, #tpu.memory_space<vmem>>, vector<14x32xf32>,
    %c728 = arith.constant 728 : index
    %c0_51 = arith.constant 0 : index
    %48 = tpu.strided_load %arg9[%c728, %c0_51] {strides = array<i32: 2, 1>} : memref<784x32xf32, #tpu.memory_space<vmem>>, vector<14x32xf32>
    %c272 = arith.constant 272 : index
    %c0_52 = arith.constant 0 : index
    %49 = vector.load %arg10[%c272, %c0_52] : memref<324x32xf32, #tpu.memory_space<vmem>>, vector<14x32xf32>
    tpu.vector_store %arg10[%c272, %c0_52], %48 {strides = array<i32>} : memref<324x32xf32, #tpu.memory_space<vmem>>, vector<14x32xf32>,
    %cst_53 = arith.constant 0.000000e+00 : f32
    %50 = vector.broadcast %cst_53 : f32 to vector<248x64xf32>
    %c0_54 = arith.constant 0 : index
    %c0_55 = arith.constant 0 : index
    %51 = vector.load %arg10[%c0_54, %c0_55] : memref<324x32xf32, #tpu.memory_space<vmem>>, vector<248x32xf32>
    %c0_56 = arith.constant 0 : index
    %c0_57 = arith.constant 0 : index
    %c0_58 = arith.constant 0 : index
    %52 = vector.load %arg5[%c0_56, %c0_57, %c0_58] : memref<25x32x64xf32, #tpu.memory_space<vmem>>, vector<1x32x64xf32>
    %53 = vector.shape_cast %52 : vector<1x32x64xf32> to vector<32x64xf32>
    %cst_59 = arith.constant dense<0.000000e+00> : vector<248x64xf32>
    %54 = tpu.matmul %51, %53, %cst_59 {dimension_numbers = #tpu.dot_dimension_numbers<[1], [0], [0], [1], [0, 0, 1, 1], [], []>} : vector<248x32xf32>, vector<32x64xf32>, vector<248x64xf32> -> vector<248x64xf32>
    %55 = arith.addf %50, %54 : vector<248x64xf32>
    %c1_60 = arith.constant 1 : index
    %c0_61 = arith.constant 0 : index
    %56 = vector.load %arg10[%c1_60, %c0_61] : memref<324x32xf32, #tpu.memory_space<vmem>>, vector<248x32xf32>
    %c1_62 = arith.constant 1 : index
    %c0_63 = arith.constant 0 : index
    %c0_64 = arith.constant 0 : index
    %57 = vector.load %arg5[%c1_62, %c0_63, %c0_64] : memref<25x32x64xf32, #tpu.memory_space<vmem>>, vector<1x32x64xf32>
    %58 = vector.shape_cast %57 : vector<1x32x64xf32> to vector<32x64xf32>
    %cst_65 = arith.constant dense<0.000000e+00> : vector<248x64xf32>
    %59 = tpu.matmul %56, %58, %cst_65 {dimension_numbers = #tpu.dot_dimension_numbers<[1], [0], [0], [1], [0, 0, 1, 1], [], []>} : vector<248x32xf32>, vector<32x64xf32>, vector<248x64xf32> -> vector<248x64xf32>
    %60 = arith.addf %55, %59 : vector<248x64xf32>
    %c2 = arith.constant 2 : index
    %c0_66 = arith.constant 0 : index
    %61 = vector.load %arg10[%c2, %c0_66] : memref<324x32xf32, #tpu.memory_space<vmem>>, vector<248x32xf32>
    %c2_67 = arith.constant 2 : index
    %c0_68 = arith.constant 0 : index
    %c0_69 = arith.constant 0 : index
    %62 = vector.load %arg5[%c2_67, %c0_68, %c0_69] : memref<25x32x64xf32, #tpu.memory_space<vmem>>, vector<1x32x64xf32>
    %63 = vector.shape_cast %62 : vector<1x32x64xf32> to vector<32x64xf32>
    %cst_70 = arith.constant dense<0.000000e+00> : vector<248x64xf32>
    %64 = tpu.matmul %61, %63, %cst_70 {dimension_numbers = #tpu.dot_dimension_numbers<[1], [0], [0], [1], [0, 0, 1, 1], [], []>} : vector<248x32xf32>, vector<32x64xf32>, vector<248x64xf32> -> vector<248x64xf32>
    %65 = arith.addf %60, %64 : vector<248x64xf32>
    %c3 = arith.constant 3 : index
    %c0_71 = arith.constant 0 : index
    %66 = vector.load %arg10[%c3, %c0_71] : memref<324x32xf32, #tpu.memory_space<vmem>>, vector<248x32xf32>
    %c3_72 = arith.constant 3 : index
    %c0_73 = arith.constant 0 : index
    %c0_74 = arith.constant 0 : index
    %67 = vector.load %arg5[%c3_72, %c0_73, %c0_74] : memref<25x32x64xf32, #tpu.memory_space<vmem>>, vector<1x32x64xf32>
    %68 = vector.shape_cast %67 : vector<1x32x64xf32> to vector<32x64xf32>
    %cst_75 = arith.constant dense<0.000000e+00> : vector<248x64xf32>
    %69 = tpu.matmul %66, %68, %cst_75 {dimension_numbers = #tpu.dot_dimension_numbers<[1], [0], [0], [1], [0, 0, 1, 1], [], []>} : vector<248x32xf32>, vector<32x64xf32>, vector<248x64xf32> -> vector<248x64xf32>
    %70 = arith.addf %65, %69 : vector<248x64xf32>
    %c4 = arith.constant 4 : index
    %c0_76 = arith.constant 0 : index
    %71 = vector.load %arg10[%c4, %c0_76] : memref<324x32xf32, #tpu.memory_space<vmem>>, vector<248x32xf32>
    %c4_77 = arith.constant 4 : index
    %c0_78 = arith.constant 0 : index
    %c0_79 = arith.constant 0 : index
    %72 = vector.load %arg5[%c4_77, %c0_78, %c0_79] : memref<25x32x64xf32, #tpu.memory_space<vmem>>, vector<1x32x64xf32>
    %73 = vector.shape_cast %72 : vector<1x32x64xf32> to vector<32x64xf32>
    %cst_80 = arith.constant dense<0.000000e+00> : vector<248x64xf32>
    %74 = tpu.matmul %71, %73, %cst_80 {dimension_numbers = #tpu.dot_dimension_numbers<[1], [0], [0], [1], [0, 0, 1, 1], [], []>} : vector<248x32xf32>, vector<32x64xf32>, vector<248x64xf32> -> vector<248x64xf32>
    %75 = arith.addf %70, %74 : vector<248x64xf32>
    %c18 = arith.constant 18 : index
    %c0_81 = arith.constant 0 : index
    %76 = vector.load %arg10[%c18, %c0_81] : memref<324x32xf32, #tpu.memory_space<vmem>>, vector<248x32xf32>
    %c5 = arith.constant 5 : index
    %c0_82 = arith.constant 0 : index
    %c0_83 = arith.constant 0 : index
    %77 = vector.load %arg5[%c5, %c0_82, %c0_83] : memref<25x32x64xf32, #tpu.memory_space<vmem>>, vector<1x32x64xf32>
    %78 = vector.shape_cast %77 : vector<1x32x64xf32> to vector<32x64xf32>
    %cst_84 = arith.constant dense<0.000000e+00> : vector<248x64xf32>
    %79 = tpu.matmul %76, %78, %cst_84 {dimension_numbers = #tpu.dot_dimension_numbers<[1], [0], [0], [1], [0, 0, 1, 1], [], []>} : vector<248x32xf32>, vector<32x64xf32>, vector<248x64xf32> -> vector<248x64xf32>
    %80 = arith.addf %75, %79 : vector<248x64xf32>
    %c19 = arith.constant 19 : index
    %c0_85 = arith.constant 0 : index
    %81 = vector.load %arg10[%c19, %c0_85] : memref<324x32xf32, #tpu.memory_space<vmem>>, vector<248x32xf32>
    %c6 = arith.constant 6 : index
    %c0_86 = arith.constant 0 : index
    %c0_87 = arith.constant 0 : index
    %82 = vector.load %arg5[%c6, %c0_86, %c0_87] : memref<25x32x64xf32, #tpu.memory_space<vmem>>, vector<1x32x64xf32>
    %83 = vector.shape_cast %82 : vector<1x32x64xf32> to vector<32x64xf32>
    %cst_88 = arith.constant dense<0.000000e+00> : vector<248x64xf32>
    %84 = tpu.matmul %81, %83, %cst_88 {dimension_numbers = #tpu.dot_dimension_numbers<[1], [0], [0], [1], [0, 0, 1, 1], [], []>} : vector<248x32xf32>, vector<32x64xf32>, vector<248x64xf32> -> vector<248x64xf32>
    %85 = arith.addf %80, %84 : vector<248x64xf32>
    %c20 = arith.constant 20 : index
    %c0_89 = arith.constant 0 : index
    %86 = vector.load %arg10[%c20, %c0_89] : memref<324x32xf32, #tpu.memory_space<vmem>>, vector<248x32xf32>
    %c7 = arith.constant 7 : index
    %c0_90 = arith.constant 0 : index
    %c0_91 = arith.constant 0 : index
    %87 = vector.load %arg5[%c7, %c0_90, %c0_91] : memref<25x32x64xf32, #tpu.memory_space<vmem>>, vector<1x32x64xf32>
    %88 = vector.shape_cast %87 : vector<1x32x64xf32> to vector<32x64xf32>
    %cst_92 = arith.constant dense<0.000000e+00> : vector<248x64xf32>
    %89 = tpu.matmul %86, %88, %cst_92 {dimension_numbers = #tpu.dot_dimension_numbers<[1], [0], [0], [1], [0, 0, 1, 1], [], []>} : vector<248x32xf32>, vector<32x64xf32>, vector<248x64xf32> -> vector<248x64xf32>
    %90 = arith.addf %85, %89 : vector<248x64xf32>
    %c21 = arith.constant 21 : index
    %c0_93 = arith.constant 0 : index
    %91 = vector.load %arg10[%c21, %c0_93] : memref<324x32xf32, #tpu.memory_space<vmem>>, vector<248x32xf32>
    %c8 = arith.constant 8 : index
    %c0_94 = arith.constant 0 : index
    %c0_95 = arith.constant 0 : index
    %92 = vector.load %arg5[%c8, %c0_94, %c0_95] : memref<25x32x64xf32, #tpu.memory_space<vmem>>, vector<1x32x64xf32>
    %93 = vector.shape_cast %92 : vector<1x32x64xf32> to vector<32x64xf32>
    %cst_96 = arith.constant dense<0.000000e+00> : vector<248x64xf32>
    %94 = tpu.matmul %91, %93, %cst_96 {dimension_numbers = #tpu.dot_dimension_numbers<[1], [0], [0], [1], [0, 0, 1, 1], [], []>} : vector<248x32xf32>, vector<32x64xf32>, vector<248x64xf32> -> vector<248x64xf32>
    %95 = arith.addf %90, %94 : vector<248x64xf32>
    %c22 = arith.constant 22 : index
    %c0_97 = arith.constant 0 : index
    %96 = vector.load %arg10[%c22, %c0_97] : memref<324x32xf32, #tpu.memory_space<vmem>>, vector<248x32xf32>
    %c9 = arith.constant 9 : index
    %c0_98 = arith.constant 0 : index
    %c0_99 = arith.constant 0 : index
    %97 = vector.load %arg5[%c9, %c0_98, %c0_99] : memref<25x32x64xf32, #tpu.memory_space<vmem>>, vector<1x32x64xf32>
    %98 = vector.shape_cast %97 : vector<1x32x64xf32> to vector<32x64xf32>
    %cst_100 = arith.constant dense<0.000000e+00> : vector<248x64xf32>
    %99 = tpu.matmul %96, %98, %cst_100 {dimension_numbers = #tpu.dot_dimension_numbers<[1], [0], [0], [1], [0, 0, 1, 1], [], []>} : vector<248x32xf32>, vector<32x64xf32>, vector<248x64xf32> -> vector<248x64xf32>
    %100 = arith.addf %95, %99 : vector<248x64xf32>
    %c36 = arith.constant 36 : index
    %c0_101 = arith.constant 0 : index
    %101 = vector.load %arg10[%c36, %c0_101] : memref<324x32xf32, #tpu.memory_space<vmem>>, vector<248x32xf32>
    %c10 = arith.constant 10 : index
    %c0_102 = arith.constant 0 : index
    %c0_103 = arith.constant 0 : index
    %102 = vector.load %arg5[%c10, %c0_102, %c0_103] : memref<25x32x64xf32, #tpu.memory_space<vmem>>, vector<1x32x64xf32>
    %103 = vector.shape_cast %102 : vector<1x32x64xf32> to vector<32x64xf32>
    %cst_104 = arith.constant dense<0.000000e+00> : vector<248x64xf32>
    %104 = tpu.matmul %101, %103, %cst_104 {dimension_numbers = #tpu.dot_dimension_numbers<[1], [0], [0], [1], [0, 0, 1, 1], [], []>} : vector<248x32xf32>, vector<32x64xf32>, vector<248x64xf32> -> vector<248x64xf32>
    %105 = arith.addf %100, %104 : vector<248x64xf32>
    %c37 = arith.constant 37 : index
    %c0_105 = arith.constant 0 : index
    %106 = vector.load %arg10[%c37, %c0_105] : memref<324x32xf32, #tpu.memory_space<vmem>>, vector<248x32xf32>
    %c11 = arith.constant 11 : index
    %c0_106 = arith.constant 0 : index
    %c0_107 = arith.constant 0 : index
    %107 = vector.load %arg5[%c11, %c0_106, %c0_107] : memref<25x32x64xf32, #tpu.memory_space<vmem>>, vector<1x32x64xf32>
    %108 = vector.shape_cast %107 : vector<1x32x64xf32> to vector<32x64xf32>
    %cst_108 = arith.constant dense<0.000000e+00> : vector<248x64xf32>
    %109 = tpu.matmul %106, %108, %cst_108 {dimension_numbers = #tpu.dot_dimension_numbers<[1], [0], [0], [1], [0, 0, 1, 1], [], []>} : vector<248x32xf32>, vector<32x64xf32>, vector<248x64xf32> -> vector<248x64xf32>
    %110 = arith.addf %105, %109 : vector<248x64xf32>
    %c38_109 = arith.constant 38 : index
    %c0_110 = arith.constant 0 : index
    %111 = vector.load %arg10[%c38_109, %c0_110] : memref<324x32xf32, #tpu.memory_space<vmem>>, vector<248x32xf32>
    %c12 = arith.constant 12 : index
    %c0_111 = arith.constant 0 : index
    %c0_112 = arith.constant 0 : index
    %112 = vector.load %arg5[%c12, %c0_111, %c0_112] : memref<25x32x64xf32, #tpu.memory_space<vmem>>, vector<1x32x64xf32>
    %113 = vector.shape_cast %112 : vector<1x32x64xf32> to vector<32x64xf32>
    %cst_113 = arith.constant dense<0.000000e+00> : vector<248x64xf32>
    %114 = tpu.matmul %111, %113, %cst_113 {dimension_numbers = #tpu.dot_dimension_numbers<[1], [0], [0], [1], [0, 0, 1, 1], [], []>} : vector<248x32xf32>, vector<32x64xf32>, vector<248x64xf32> -> vector<248x64xf32>
    %115 = arith.addf %110, %114 : vector<248x64xf32>
    %c39 = arith.constant 39 : index
    %c0_114 = arith.constant 0 : index
    %116 = vector.load %arg10[%c39, %c0_114] : memref<324x32xf32, #tpu.memory_space<vmem>>, vector<248x32xf32>
    %c13 = arith.constant 13 : index
    %c0_115 = arith.constant 0 : index
    %c0_116 = arith.constant 0 : index
    %117 = vector.load %arg5[%c13, %c0_115, %c0_116] : memref<25x32x64xf32, #tpu.memory_space<vmem>>, vector<1x32x64xf32>
    %118 = vector.shape_cast %117 : vector<1x32x64xf32> to vector<32x64xf32>
    %cst_117 = arith.constant dense<0.000000e+00> : vector<248x64xf32>
    %119 = tpu.matmul %116, %118, %cst_117 {dimension_numbers = #tpu.dot_dimension_numbers<[1], [0], [0], [1], [0, 0, 1, 1], [], []>} : vector<248x32xf32>, vector<32x64xf32>, vector<248x64xf32> -> vector<248x64xf32>
    %120 = arith.addf %115, %119 : vector<248x64xf32>
    %c40 = arith.constant 40 : index
    %c0_118 = arith.constant 0 : index
    %121 = vector.load %arg10[%c40, %c0_118] : memref<324x32xf32, #tpu.memory_space<vmem>>, vector<248x32xf32>
    %c14 = arith.constant 14 : index
    %c0_119 = arith.constant 0 : index
    %c0_120 = arith.constant 0 : index
    %122 = vector.load %arg5[%c14, %c0_119, %c0_120] : memref<25x32x64xf32, #tpu.memory_space<vmem>>, vector<1x32x64xf32>
    %123 = vector.shape_cast %122 : vector<1x32x64xf32> to vector<32x64xf32>
    %cst_121 = arith.constant dense<0.000000e+00> : vector<248x64xf32>
    %124 = tpu.matmul %121, %123, %cst_121 {dimension_numbers = #tpu.dot_dimension_numbers<[1], [0], [0], [1], [0, 0, 1, 1], [], []>} : vector<248x32xf32>, vector<32x64xf32>, vector<248x64xf32> -> vector<248x64xf32>
    %125 = arith.addf %120, %124 : vector<248x64xf32>
    %c54 = arith.constant 54 : index
    %c0_122 = arith.constant 0 : index
    %126 = vector.load %arg10[%c54, %c0_122] : memref<324x32xf32, #tpu.memory_space<vmem>>, vector<248x32xf32>
    %c15 = arith.constant 15 : index
    %c0_123 = arith.constant 0 : index
    %c0_124 = arith.constant 0 : index
    %127 = vector.load %arg5[%c15, %c0_123, %c0_124] : memref<25x32x64xf32, #tpu.memory_space<vmem>>, vector<1x32x64xf32>
    %128 = vector.shape_cast %127 : vector<1x32x64xf32> to vector<32x64xf32>
    %cst_125 = arith.constant dense<0.000000e+00> : vector<248x64xf32>
    %129 = tpu.matmul %126, %128, %cst_125 {dimension_numbers = #tpu.dot_dimension_numbers<[1], [0], [0], [1], [0, 0, 1, 1], [], []>} : vector<248x32xf32>, vector<32x64xf32>, vector<248x64xf32> -> vector<248x64xf32>
    %130 = arith.addf %125, %129 : vector<248x64xf32>
    %c55 = arith.constant 55 : index
    %c0_126 = arith.constant 0 : index
    %131 = vector.load %arg10[%c55, %c0_126] : memref<324x32xf32, #tpu.memory_space<vmem>>, vector<248x32xf32>
    %c16 = arith.constant 16 : index
    %c0_127 = arith.constant 0 : index
    %c0_128 = arith.constant 0 : index
    %132 = vector.load %arg5[%c16, %c0_127, %c0_128] : memref<25x32x64xf32, #tpu.memory_space<vmem>>, vector<1x32x64xf32>
    %133 = vector.shape_cast %132 : vector<1x32x64xf32> to vector<32x64xf32>
    %cst_129 = arith.constant dense<0.000000e+00> : vector<248x64xf32>
    %134 = tpu.matmul %131, %133, %cst_129 {dimension_numbers = #tpu.dot_dimension_numbers<[1], [0], [0], [1], [0, 0, 1, 1], [], []>} : vector<248x32xf32>, vector<32x64xf32>, vector<248x64xf32> -> vector<248x64xf32>
    %135 = arith.addf %130, %134 : vector<248x64xf32>
    %c56_130 = arith.constant 56 : index
    %c0_131 = arith.constant 0 : index
    %136 = vector.load %arg10[%c56_130, %c0_131] : memref<324x32xf32, #tpu.memory_space<vmem>>, vector<248x32xf32>
    %c17 = arith.constant 17 : index
    %c0_132 = arith.constant 0 : index
    %c0_133 = arith.constant 0 : index
    %137 = vector.load %arg5[%c17, %c0_132, %c0_133] : memref<25x32x64xf32, #tpu.memory_space<vmem>>, vector<1x32x64xf32>
    %138 = vector.shape_cast %137 : vector<1x32x64xf32> to vector<32x64xf32>
    %cst_134 = arith.constant dense<0.000000e+00> : vector<248x64xf32>
    %139 = tpu.matmul %136, %138, %cst_134 {dimension_numbers = #tpu.dot_dimension_numbers<[1], [0], [0], [1], [0, 0, 1, 1], [], []>} : vector<248x32xf32>, vector<32x64xf32>, vector<248x64xf32> -> vector<248x64xf32>
    %140 = arith.addf %135, %139 : vector<248x64xf32>
    %c57 = arith.constant 57 : index
    %c0_135 = arith.constant 0 : index
    %141 = vector.load %arg10[%c57, %c0_135] : memref<324x32xf32, #tpu.memory_space<vmem>>, vector<248x32xf32>
    %c18_136 = arith.constant 18 : index
    %c0_137 = arith.constant 0 : index
    %c0_138 = arith.constant 0 : index
    %142 = vector.load %arg5[%c18_136, %c0_137, %c0_138] : memref<25x32x64xf32, #tpu.memory_space<vmem>>, vector<1x32x64xf32>
    %143 = vector.shape_cast %142 : vector<1x32x64xf32> to vector<32x64xf32>
    %cst_139 = arith.constant dense<0.000000e+00> : vector<248x64xf32>
    %144 = tpu.matmul %141, %143, %cst_139 {dimension_numbers = #tpu.dot_dimension_numbers<[1], [0], [0], [1], [0, 0, 1, 1], [], []>} : vector<248x32xf32>, vector<32x64xf32>, vector<248x64xf32> -> vector<248x64xf32>
    %145 = arith.addf %140, %144 : vector<248x64xf32>
    %c58 = arith.constant 58 : index
    %c0_140 = arith.constant 0 : index
    %146 = vector.load %arg10[%c58, %c0_140] : memref<324x32xf32, #tpu.memory_space<vmem>>, vector<248x32xf32>
    %c19_141 = arith.constant 19 : index
    %c0_142 = arith.constant 0 : index
    %c0_143 = arith.constant 0 : index
    %147 = vector.load %arg5[%c19_141, %c0_142, %c0_143] : memref<25x32x64xf32, #tpu.memory_space<vmem>>, vector<1x32x64xf32>
    %148 = vector.shape_cast %147 : vector<1x32x64xf32> to vector<32x64xf32>
    %cst_144 = arith.constant dense<0.000000e+00> : vector<248x64xf32>
    %149 = tpu.matmul %146, %148, %cst_144 {dimension_numbers = #tpu.dot_dimension_numbers<[1], [0], [0], [1], [0, 0, 1, 1], [], []>} : vector<248x32xf32>, vector<32x64xf32>, vector<248x64xf32> -> vector<248x64xf32>
    %150 = arith.addf %145, %149 : vector<248x64xf32>
    %c72 = arith.constant 72 : index
    %c0_145 = arith.constant 0 : index
    %151 = vector.load %arg10[%c72, %c0_145] : memref<324x32xf32, #tpu.memory_space<vmem>>, vector<248x32xf32>
    %c20_146 = arith.constant 20 : index
    %c0_147 = arith.constant 0 : index
    %c0_148 = arith.constant 0 : index
    %152 = vector.load %arg5[%c20_146, %c0_147, %c0_148] : memref<25x32x64xf32, #tpu.memory_space<vmem>>, vector<1x32x64xf32>
    %153 = vector.shape_cast %152 : vector<1x32x64xf32> to vector<32x64xf32>
    %cst_149 = arith.constant dense<0.000000e+00> : vector<248x64xf32>
    %154 = tpu.matmul %151, %153, %cst_149 {dimension_numbers = #tpu.dot_dimension_numbers<[1], [0], [0], [1], [0, 0, 1, 1], [], []>} : vector<248x32xf32>, vector<32x64xf32>, vector<248x64xf32> -> vector<248x64xf32>
    %155 = arith.addf %150, %154 : vector<248x64xf32>
    %c73 = arith.constant 73 : index
    %c0_150 = arith.constant 0 : index
    %156 = vector.load %arg10[%c73, %c0_150] : memref<324x32xf32, #tpu.memory_space<vmem>>, vector<248x32xf32>
    %c21_151 = arith.constant 21 : index
    %c0_152 = arith.constant 0 : index
    %c0_153 = arith.constant 0 : index
    %157 = vector.load %arg5[%c21_151, %c0_152, %c0_153] : memref<25x32x64xf32, #tpu.memory_space<vmem>>, vector<1x32x64xf32>
    %158 = vector.shape_cast %157 : vector<1x32x64xf32> to vector<32x64xf32>
    %cst_154 = arith.constant dense<0.000000e+00> : vector<248x64xf32>
    %159 = tpu.matmul %156, %158, %cst_154 {dimension_numbers = #tpu.dot_dimension_numbers<[1], [0], [0], [1], [0, 0, 1, 1], [], []>} : vector<248x32xf32>, vector<32x64xf32>, vector<248x64xf32> -> vector<248x64xf32>
    %160 = arith.addf %155, %159 : vector<248x64xf32>
    %c74_155 = arith.constant 74 : index
    %c0_156 = arith.constant 0 : index
    %161 = vector.load %arg10[%c74_155, %c0_156] : memref<324x32xf32, #tpu.memory_space<vmem>>, vector<248x32xf32>
    %c22_157 = arith.constant 22 : index
    %c0_158 = arith.constant 0 : index
    %c0_159 = arith.constant 0 : index
    %162 = vector.load %arg5[%c22_157, %c0_158, %c0_159] : memref<25x32x64xf32, #tpu.memory_space<vmem>>, vector<1x32x64xf32>
    %163 = vector.shape_cast %162 : vector<1x32x64xf32> to vector<32x64xf32>
    %cst_160 = arith.constant dense<0.000000e+00> : vector<248x64xf32>
    %164 = tpu.matmul %161, %163, %cst_160 {dimension_numbers = #tpu.dot_dimension_numbers<[1], [0], [0], [1], [0, 0, 1, 1], [], []>} : vector<248x32xf32>, vector<32x64xf32>, vector<248x64xf32> -> vector<248x64xf32>
    %165 = arith.addf %160, %164 : vector<248x64xf32>
    %c75 = arith.constant 75 : index
    %c0_161 = arith.constant 0 : index
    %166 = vector.load %arg10[%c75, %c0_161] : memref<324x32xf32, #tpu.memory_space<vmem>>, vector<248x32xf32>
    %c23 = arith.constant 23 : index
    %c0_162 = arith.constant 0 : index
    %c0_163 = arith.constant 0 : index
    %167 = vector.load %arg5[%c23, %c0_162, %c0_163] : memref<25x32x64xf32, #tpu.memory_space<vmem>>, vector<1x32x64xf32>
    %168 = vector.shape_cast %167 : vector<1x32x64xf32> to vector<32x64xf32>
    %cst_164 = arith.constant dense<0.000000e+00> : vector<248x64xf32>
    %169 = tpu.matmul %166, %168, %cst_164 {dimension_numbers = #tpu.dot_dimension_numbers<[1], [0], [0], [1], [0, 0, 1, 1], [], []>} : vector<248x32xf32>, vector<32x64xf32>, vector<248x64xf32> -> vector<248x64xf32>
    %170 = arith.addf %165, %169 : vector<248x64xf32>
    %c76 = arith.constant 76 : index
    %c0_165 = arith.constant 0 : index
    %171 = vector.load %arg10[%c76, %c0_165] : memref<324x32xf32, #tpu.memory_space<vmem>>, vector<248x32xf32>
    %c24 = arith.constant 24 : index
    %c0_166 = arith.constant 0 : index
    %c0_167 = arith.constant 0 : index
    %172 = vector.load %arg5[%c24, %c0_166, %c0_167] : memref<25x32x64xf32, #tpu.memory_space<vmem>>, vector<1x32x64xf32>
    %173 = vector.shape_cast %172 : vector<1x32x64xf32> to vector<32x64xf32>
    %cst_168 = arith.constant dense<0.000000e+00> : vector<248x64xf32>
    %174 = tpu.matmul %171, %173, %cst_168 {dimension_numbers = #tpu.dot_dimension_numbers<[1], [0], [0], [1], [0, 0, 1, 1], [], []>} : vector<248x32xf32>, vector<32x64xf32>, vector<248x64xf32> -> vector<248x64xf32>
    %175 = arith.addf %170, %174 : vector<248x64xf32>
    %c0_169 = arith.constant 0 : index
    %c0_170 = arith.constant 0 : index
    %176 = vector.load %arg6[%c0_169, %c0_170] : memref<1x64xf32, #tpu.memory_space<vmem>>, vector<1x64xf32>
    %177 = vector.broadcast %176 : vector<1x64xf32> to vector<248x64xf32>
    %178 = arith.mulf %175, %177 : vector<248x64xf32>
    %c0_171 = arith.constant 0 : index
    %c0_172 = arith.constant 0 : index
    %179 = vector.load %arg7[%c0_171, %c0_172] : memref<1x64xf32, #tpu.memory_space<vmem>>, vector<1x64xf32>
    %180 = vector.broadcast %179 : vector<1x64xf32> to vector<248x64xf32>
    %181 = arith.addf %178, %180 : vector<248x64xf32>
    %cst_173 = arith.constant 0.000000e+00 : f32
    %182 = vector.broadcast %cst_173 : f32 to vector<248x64xf32>
    %183 = arith.maximumf %181, %182 : vector<248x64xf32>
    %c0_174 = arith.constant 0 : index
    %c0_175 = arith.constant 0 : index
    %184 = vector.load %arg11[%c0_174, %c0_175] : memref<248x64xf32, #tpu.memory_space<vmem>>, vector<248x64xf32>
    tpu.vector_store %arg11[%c0_174, %c0_175], %183 {strides = array<i32>} : memref<248x64xf32, #tpu.memory_space<vmem>>, vector<248x64xf32>,
    %c0_176 = arith.constant 0 : index
    %c0_177 = arith.constant 0 : index
    %185 = vector.load %arg11[%c0_176, %c0_177] : memref<248x64xf32, #tpu.memory_space<vmem>>, vector<230x64xf32>
    %c18_178 = arith.constant 18 : index
    %c0_179 = arith.constant 0 : index
    %186 = vector.load %arg11[%c18_178, %c0_179] : memref<248x64xf32, #tpu.memory_space<vmem>>, vector<230x64xf32>
    %187 = arith.maximumf %185, %186 : vector<230x64xf32>
    %c0_180 = arith.constant 0 : index
    %c0_181 = arith.constant 0 : index
    %188 = vector.load %arg11[%c0_180, %c0_181] : memref<248x64xf32, #tpu.memory_space<vmem>>, vector<230x64xf32>
    tpu.vector_store %arg11[%c0_180, %c0_181], %187 {strides = array<i32>} : memref<248x64xf32, #tpu.memory_space<vmem>>, vector<230x64xf32>,
    %c0_182 = arith.constant 0 : index
    %c0_183 = arith.constant 0 : index
    %189 = vector.load %arg11[%c0_182, %c0_183] : memref<248x64xf32, #tpu.memory_space<vmem>>, vector<229x64xf32>
    %c1_184 = arith.constant 1 : index
    %c0_185 = arith.constant 0 : index
    %190 = vector.load %arg11[%c1_184, %c0_185] : memref<248x64xf32, #tpu.memory_space<vmem>>, vector<229x64xf32>
    %191 = arith.maximumf %189, %190 : vector<229x64xf32>
    %c0_186 = arith.constant 0 : index
    %c0_187 = arith.constant 0 : index
    %192 = vector.load %arg11[%c0_186, %c0_187] : memref<248x64xf32, #tpu.memory_space<vmem>>, vector<229x64xf32>
    tpu.vector_store %arg11[%c0_186, %c0_187], %191 {strides = array<i32>} : memref<248x64xf32, #tpu.memory_space<vmem>>, vector<229x64xf32>,
    %c0_188 = arith.constant 0 : index
    %c0_189 = arith.constant 0 : index
    %193 = tpu.strided_load %arg11[%c0_188, %c0_189] {strides = array<i32: 2, 1>} : memref<248x64xf32, #tpu.memory_space<vmem>>, vector<7x64xf32>
    %c0_190 = arith.constant 0 : index
    %c0_191 = arith.constant 0 : index
    %c0_192 = arith.constant 0 : index
    %c0_193 = arith.constant 0 : index
    %194 = vector.load %arg8[%c0_190, %c0_191, %c0_192, %c0_193] : memref<1x7x7x64xf32, #tpu.memory_space<vmem>>, vector<1x1x7x64xf32>
    %195 = vector.shape_cast %194 : vector<1x1x7x64xf32> to vector<7x64xf32>
    %196 = vector.shape_cast %193 : vector<7x64xf32> to vector<1x1x7x64xf32>
    tpu.vector_store %arg8[%c0_190, %c0_191, %c0_192, %c0_193], %196 {strides = array<i32>} : memref<1x7x7x64xf32, #tpu.memory_space<vmem>>, vector<1x1x7x64xf32>,
    %c36_194 = arith.constant 36 : index
    %c0_195 = arith.constant 0 : index
    %197 = tpu.strided_load %arg11[%c36_194, %c0_195] {strides = array<i32: 2, 1>} : memref<248x64xf32, #tpu.memory_space<vmem>>, vector<7x64xf32>
    %c0_196 = arith.constant 0 : index
    %c1_197 = arith.constant 1 : index
    %c0_198 = arith.constant 0 : index
    %c0_199 = arith.constant 0 : index
    %198 = vector.load %arg8[%c0_196, %c1_197, %c0_198, %c0_199] : memref<1x7x7x64xf32, #tpu.memory_space<vmem>>, vector<1x1x7x64xf32>
    %199 = vector.shape_cast %198 : vector<1x1x7x64xf32> to vector<7x64xf32>
    %200 = vector.shape_cast %197 : vector<7x64xf32> to vector<1x1x7x64xf32>
    tpu.vector_store %arg8[%c0_196, %c1_197, %c0_198, %c0_199], %200 {strides = array<i32>} : memref<1x7x7x64xf32, #tpu.memory_space<vmem>>, vector<1x1x7x64xf32>,
    %c72_200 = arith.constant 72 : index
    %c0_201 = arith.constant 0 : index
    %201 = tpu.strided_load %arg11[%c72_200, %c0_201] {strides = array<i32: 2, 1>} : memref<248x64xf32, #tpu.memory_space<vmem>>, vector<7x64xf32>
    %c0_202 = arith.constant 0 : index
    %c2_203 = arith.constant 2 : index
    %c0_204 = arith.constant 0 : index
    %c0_205 = arith.constant 0 : index
    %202 = vector.load %arg8[%c0_202, %c2_203, %c0_204, %c0_205] : memref<1x7x7x64xf32, #tpu.memory_space<vmem>>, vector<1x1x7x64xf32>
    %203 = vector.shape_cast %202 : vector<1x1x7x64xf32> to vector<7x64xf32>
    %204 = vector.shape_cast %201 : vector<7x64xf32> to vector<1x1x7x64xf32>
    tpu.vector_store %arg8[%c0_202, %c2_203, %c0_204, %c0_205], %204 {strides = array<i32>} : memref<1x7x7x64xf32, #tpu.memory_space<vmem>>, vector<1x1x7x64xf32>,
    %c108 = arith.constant 108 : index
    %c0_206 = arith.constant 0 : index
    %205 = tpu.strided_load %arg11[%c108, %c0_206] {strides = array<i32: 2, 1>} : memref<248x64xf32, #tpu.memory_space<vmem>>, vector<7x64xf32>
    %c0_207 = arith.constant 0 : index
    %c3_208 = arith.constant 3 : index
    %c0_209 = arith.constant 0 : index
    %c0_210 = arith.constant 0 : index
    %206 = vector.load %arg8[%c0_207, %c3_208, %c0_209, %c0_210] : memref<1x7x7x64xf32, #tpu.memory_space<vmem>>, vector<1x1x7x64xf32>
    %207 = vector.shape_cast %206 : vector<1x1x7x64xf32> to vector<7x64xf32>
    %208 = vector.shape_cast %205 : vector<7x64xf32> to vector<1x1x7x64xf32>
    tpu.vector_store %arg8[%c0_207, %c3_208, %c0_209, %c0_210], %208 {strides = array<i32>} : memref<1x7x7x64xf32, #tpu.memory_space<vmem>>, vector<1x1x7x64xf32>,
    %c144 = arith.constant 144 : index
    %c0_211 = arith.constant 0 : index
    %209 = tpu.strided_load %arg11[%c144, %c0_211] {strides = array<i32: 2, 1>} : memref<248x64xf32, #tpu.memory_space<vmem>>, vector<7x64xf32>
    %c0_212 = arith.constant 0 : index
    %c4_213 = arith.constant 4 : index
    %c0_214 = arith.constant 0 : index
    %c0_215 = arith.constant 0 : index
    %210 = vector.load %arg8[%c0_212, %c4_213, %c0_214, %c0_215] : memref<1x7x7x64xf32, #tpu.memory_space<vmem>>, vector<1x1x7x64xf32>
    %211 = vector.shape_cast %210 : vector<1x1x7x64xf32> to vector<7x64xf32>
    %212 = vector.shape_cast %209 : vector<7x64xf32> to vector<1x1x7x64xf32>
    tpu.vector_store %arg8[%c0_212, %c4_213, %c0_214, %c0_215], %212 {strides = array<i32>} : memref<1x7x7x64xf32, #tpu.memory_space<vmem>>, vector<1x1x7x64xf32>,
    %c180 = arith.constant 180 : index
    %c0_216 = arith.constant 0 : index
    %213 = tpu.strided_load %arg11[%c180, %c0_216] {strides = array<i32: 2, 1>} : memref<248x64xf32, #tpu.memory_space<vmem>>, vector<7x64xf32>
    %c0_217 = arith.constant 0 : index
    %c5_218 = arith.constant 5 : index
    %c0_219 = arith.constant 0 : index
    %c0_220 = arith.constant 0 : index
    %214 = vector.load %arg8[%c0_217, %c5_218, %c0_219, %c0_220] : memref<1x7x7x64xf32, #tpu.memory_space<vmem>>, vector<1x1x7x64xf32>
    %215 = vector.shape_cast %214 : vector<1x1x7x64xf32> to vector<7x64xf32>
    %216 = vector.shape_cast %213 : vector<7x64xf32> to vector<1x1x7x64xf32>
    tpu.vector_store %arg8[%c0_217, %c5_218, %c0_219, %c0_220], %216 {strides = array<i32>} : memref<1x7x7x64xf32, #tpu.memory_space<vmem>>, vector<1x1x7x64xf32>,
    %c216 = arith.constant 216 : index
    %c0_221 = arith.constant 0 : index
    %217 = tpu.strided_load %arg11[%c216, %c0_221] {strides = array<i32: 2, 1>} : memref<248x64xf32, #tpu.memory_space<vmem>>, vector<7x64xf32>
    %c0_222 = arith.constant 0 : index
    %c6_223 = arith.constant 6 : index
    %c0_224 = arith.constant 0 : index
    %c0_225 = arith.constant 0 : index
    %218 = vector.load %arg8[%c0_222, %c6_223, %c0_224, %c0_225] : memref<1x7x7x64xf32, #tpu.memory_space<vmem>>, vector<1x1x7x64xf32>
    %219 = vector.shape_cast %218 : vector<1x1x7x64xf32> to vector<7x64xf32>
    %220 = vector.shape_cast %217 : vector<7x64xf32> to vector<1x1x7x64xf32>
    tpu.vector_store %arg8[%c0_222, %c6_223, %c0_224, %c0_225], %220 {strides = array<i32>} : memref<1x7x7x64xf32, #tpu.memory_space<vmem>>, vector<1x1x7x64xf32>,
    return
  }
  func.func @transform_0(%arg0: i32) -> (i32, i32) {
    %c0_i32 = arith.constant 0 : i32
    %c0_i32_0 = arith.constant 0 : i32
    return %arg0, %c0_i32 : i32, i32
  }
  func.func @transform_1(%arg0: i32) -> (i32, i32) {
    %c0_i32 = arith.constant 0 : i32
    %c0_i32_0 = arith.constant 0 : i32
    %c0_i32_1 = arith.constant 0 : i32
    return %c0_i32, %c0_i32_0 : i32, i32
  }
  func.func @transform_2(%arg0: i32) -> (i32, i32) {
    %c0_i32 = arith.constant 0 : i32
    %c0_i32_0 = arith.constant 0 : i32
    %c0_i32_1 = arith.constant 0 : i32
    return %c0_i32, %c0_i32_0 : i32, i32
  }
  func.func @transform_3(%arg0: i32) -> (i32, i32) {
    %c0_i32 = arith.constant 0 : i32
    %c0_i32_0 = arith.constant 0 : i32
    %c0_i32_1 = arith.constant 0 : i32
    return %c0_i32, %c0_i32_0 : i32, i32
  }
  func.func @transform_4(%arg0: i32) -> (i32, i32, i32) {
    %c0_i32 = arith.constant 0 : i32
    %c0_i32_0 = arith.constant 0 : i32
    %c0_i32_1 = arith.constant 0 : i32
    %c0_i32_2 = arith.constant 0 : i32
    return %c0_i32, %c0_i32_0, %c0_i32_1 : i32, i32, i32
  }
  func.func @transform_5(%arg0: i32) -> (i32, i32) {
    %c0_i32 = arith.constant 0 : i32
    %c0_i32_0 = arith.constant 0 : i32
    %c0_i32_1 = arith.constant 0 : i32
    return %c0_i32, %c0_i32_0 : i32, i32
  }
  func.func @transform_6(%arg0: i32) -> (i32, i32) {
    %c0_i32 = arith.constant 0 : i32
    %c0_i32_0 = arith.constant 0 : i32
    %c0_i32_1 = arith.constant 0 : i32
    return %c0_i32, %c0_i32_0 : i32, i32
  }
  func.func @transform_7(%arg0: i32) -> (i32, i32, i32, i32) {
    %c0_i32 = arith.constant 0 : i32
    %c0_i32_0 = arith.constant 0 : i32
    %c0_i32_1 = arith.constant 0 : i32
    %c0_i32_2 = arith.constant 0 : i32
    return %arg0, %c0_i32, %c0_i32_0, %c0_i32_1 : i32, i32, i32, i32
  }
}

module attributes {stable_mosaic.version = 11 : i64} {
  func.func @_fc_softmax_kernel(%arg0: i32, %arg1: memref<2x3136xf32, #tpu.memory_space<vmem>>, %arg2: memref<3136x128xf32, #tpu.memory_space<vmem>>, %arg3: memref<1x128xf32, #tpu.memory_space<vmem>>, %arg4: memref<2x128xf32, #tpu.memory_space<vmem>>) attributes {dimension_semantics = [#tpu.dimension_semantics<parallel>], iteration_bounds = array<i64: 1>, scalar_prefetch = 0 : i64, scratch_operands = 0 : i64, tpu.core_type = #tpu.core_type<tc>, window_params = [{transform_indices = @transform_0, window_bounds = array<i64: 2, 3136>}, {pipeline_mode = #tpu.pipeline_mode<synchronous>, transform_indices = @transform_1, window_bounds = array<i64: 3136, 128>}, {pipeline_mode = #tpu.pipeline_mode<synchronous>, transform_indices = @transform_2, window_bounds = array<i64: 1, 128>}, {transform_indices = @transform_3, window_bounds = array<i64: 2, 128>}]} {
    %c0 = arith.constant 0 : index
    %c0_0 = arith.constant 0 : index
    %0 = vector.load %arg1[%c0, %c0_0] : memref<2x3136xf32, #tpu.memory_space<vmem>>, vector<2x3136xf32>
    %c0_1 = arith.constant 0 : index
    %c0_2 = arith.constant 0 : index
    %1 = vector.load %arg2[%c0_1, %c0_2] : memref<3136x128xf32, #tpu.memory_space<vmem>>, vector<3136x128xf32>
    %cst = arith.constant dense<0.000000e+00> : vector<2x128xf32>
    %2 = tpu.matmul %0, %1, %cst {dimension_numbers = #tpu.dot_dimension_numbers<[1], [0], [0], [1], [0, 0, 1, 1], [], []>} : vector<2x3136xf32>, vector<3136x128xf32>, vector<2x128xf32> -> vector<2x128xf32>
    %c0_3 = arith.constant 0 : index
    %c0_4 = arith.constant 0 : index
    %3 = vector.load %arg3[%c0_3, %c0_4] : memref<1x128xf32, #tpu.memory_space<vmem>>, vector<1x128xf32>
    %4 = vector.broadcast %3 : vector<1x128xf32> to vector<2x128xf32>
    %5 = arith.addf %2, %4 : vector<2x128xf32>
    %cst_5 = arith.constant dense<0xFF800000> : vector<2xf32>
    %6 = vector.multi_reduction <maximumf>, %5, %cst_5 [1] : vector<2x128xf32> to vector<2xf32>
    %7 = vector.shape_cast %6 : vector<2xf32> to vector<2x1xf32>
    %8 = vector.broadcast %7 : vector<2x1xf32> to vector<2x128xf32>
    %9 = arith.subf %5, %8 : vector<2x128xf32>
    %10 = math.exp %9 : vector<2x128xf32>
    %cst_6 = arith.constant dense<0.000000e+00> : vector<2xf32>
    %11 = vector.multi_reduction <add>, %10, %cst_6 [1] : vector<2x128xf32> to vector<2xf32>
    %12 = vector.shape_cast %11 : vector<2xf32> to vector<2x1xf32>
    %13 = tpu.reciprocal %12 {approx = true} : vector<2x1xf32> -> vector<2x1xf32>
    %14 = vector.broadcast %13 : vector<2x1xf32> to vector<2x128xf32>
    %15 = arith.mulf %10, %14 : vector<2x128xf32>
    %c0_7 = arith.constant 0 : index
    %c0_8 = arith.constant 0 : index
    %16 = vector.load %arg4[%c0_7, %c0_8] : memref<2x128xf32, #tpu.memory_space<vmem>>, vector<2x128xf32>
    tpu.vector_store %arg4[%c0_7, %c0_8], %15 {strides = array<i32>} : memref<2x128xf32, #tpu.memory_space<vmem>>, vector<2x128xf32>,
    return
  }
  func.func @transform_0(%arg0: i32) -> (i32, i32) {
    %c0_i32 = arith.constant 0 : i32
    %c0_i32_0 = arith.constant 0 : i32
    return %arg0, %c0_i32 : i32, i32
  }
  func.func @transform_1(%arg0: i32) -> (i32, i32) {
    %c0_i32 = arith.constant 0 : i32
    %c0_i32_0 = arith.constant 0 : i32
    %c0_i32_1 = arith.constant 0 : i32
    return %c0_i32, %c0_i32_0 : i32, i32
  }
  func.func @transform_2(%arg0: i32) -> (i32, i32) {
    %c0_i32 = arith.constant 0 : i32
    %c0_i32_0 = arith.constant 0 : i32
    %c0_i32_1 = arith.constant 0 : i32
    return %c0_i32, %c0_i32_0 : i32, i32
  }
  func.func @transform_3(%arg0: i32) -> (i32, i32) {
    %c0_i32 = arith.constant 0 : i32
    %c0_i32_0 = arith.constant 0 : i32
    return %arg0, %c0_i32 : i32, i32
  }
}

</mosaic_0001>

<llo_original>
// kernel: fed_emnist_cnn_pallas.3
$region0: #{fed_emnist_cnn_pallas.3}
  #allocation0 [shape = 'u32[]', space=smem, size = 0x4, offset = 0x4, fixed_abs, tag = 'smem constant byte address 0x4 - core index']
  #allocation1 [shape = 'u32[72,128]{1,0:T(1,128)}', space=vmem, size = 0x9000, scoped, tag = 'internal scratch']
  %s0 = inlined_call_operand.vmem [shape: f32[2,3136], index: 0, kind: input, shape index: {}]
  %s1 = inlined_call_operand.vmem [shape: f32[3136,128], index: 1, kind: input, shape index: {}]
  %s2 = inlined_call_operand.vmem [shape: f32[1,128], index: 2, kind: input, shape index: {}]
  %s3 = inlined_call_operand.hbm [shape: f32[2,128], index: 3, kind: output, shape index: {}]
  %s4 = sld [smem:[#allocation0]]
  $region22: #{fed_emnist_cnn_pallas.3} parent=0
    _
  %s6 = ssub.s32 1, %s4
  %s7 = scalar_select 0, %s6, %s4
  $region1: #{fed_emnist_cnn_pallas.3} parent=0
    #allocation2 [shape = 'u8[1024]{0}', space=vmem, size = 0x400, scoped, tag = 'output window, operand 0, single buffered']
    #allocation3 [shape = 's32[1]{0}', space=sflag, size = 0x4, scoped, tag = 'scoped memory for fed_emnist_cnn_pallas.3']
    %8 = vsyncpa [#allocation3], 0
    // Predicated region
    $region2: #{fed_emnist_cnn_pallas.3} parent=1 // pred_check
      _
    $region3: #{fed_emnist_cnn_pallas.3} parent=1 // pred_check_branch
      %10 = sbr.rel (0) target = $region5
    $region4: #{fed_emnist_cnn_pallas.3} parent=1 // pred_region
      _
    $region5: #{fed_emnist_cnn_pallas.3} parent=1 // pred_fallthru
      _
    // Predicated region
    $region6: #{fed_emnist_cnn_pallas.3} parent=1 // pred_check
      _
    $region7: #{fed_emnist_cnn_pallas.3} parent=1 // pred_check_branch
      %12 = sbr.rel (0) target = $region9
    $region8: #{fed_emnist_cnn_pallas.3} parent=1 // pred_region
      _
    $region9: #{fed_emnist_cnn_pallas.3} parent=1 // pred_fallthru
      _
    // Predicated region
    $region10: #{fed_emnist_cnn_pallas.3} parent=1 // pred_check
      _
    $region11: #{fed_emnist_cnn_pallas.3} parent=1 // pred_check_branch
      %14 = sbr.rel (0) target = $region13
    $region12: #{fed_emnist_cnn_pallas.3} parent=1 // pred_region
      _
    $region13: #{fed_emnist_cnn_pallas.3} parent=1 // pred_fallthru
      _
    %v15 = vld [vmem:[%s0] sm:$0xff]
    %v16 = vld [vmem:[%s0 + $0x8] sm:$0xff]
    %v17 = vld [vmem:[%s0 + $0x10] sm:$0xff]
    %v18 = vld [vmem:[%s0 + $0x18] sm:$0xff]
    %v19 = vld [vmem:[%s0 + $0x20] sm:$0xff]
    %v20 = vld [vmem:[%s0 + $0x28] sm:$0xff]
    %v21 = vld [vmem:[%s0 + $0x30] sm:$0x3]
    %v22 = vld [vmem:[%s1] sm:$0xff]
    %v23 = vld [vmem:[%s1 + $0x8] sm:$0xff]
    %v24 = vld [vmem:[%s1 + $0x10] sm:$0xff]
    %v25 = vld [vmem:[%s1 + $0x18] sm:$0xff]
    %v26 = vld [vmem:[%s1 + $0x20] sm:$0xff]
    %v27 = vld [vmem:[%s1 + $0x28] sm:$0xff]
    %v28 = vld [vmem:[%s1 + $0x30] sm:$0xff]
    %v29 = vld [vmem:[%s1 + $0x38] sm:$0xff]
    %v30 = vld [vmem:[%s1 + $0x40] sm:$0xff]
    %v31 = vld [vmem:[%s1 + $0x48] sm:$0xff]
    %v32 = vld [vmem:[%s1 + $0x50] sm:$0xff]
    %v33 = vld [vmem:[%s1 + $0x58] sm:$0xff]
    %v34 = vld [vmem:[%s1 + $0x60] sm:$0xff]
    %v35 = vld [vmem:[%s1 + $0x68] sm:$0xff]
    %v36 = vld [vmem:[%s1 + $0x70] sm:$0xff]
    %v37 = vld [vmem:[%s1 + $0x78] sm:$0xff]
    %v38 = vld [vmem:[%s1 + $0x80] sm:$0xff]
    %v39 = vld [vmem:[%s1 + $0x88] sm:$0xff]
    %v40 = vld [vmem:[%s1 + $0x90] sm:$0xff]
    %v41 = vld [vmem:[%s1 + $0x98] sm:$0xff]
    %v42 = vld [vmem:[%s1 + $0xa0] sm:$0xff]
    %v43 = vld [vmem:[%s1 + $0xa8] sm:$0xff]
    %v44 = vld [vmem:[%s1 + $0xb0] sm:$0xff]
    %v45 = vld [vmem:[%s1 + $0xb8] sm:$0xff]
    %v46 = vld [vmem:[%s1 + $0xc0] sm:$0xff]
    %v47 = vld [vmem:[%s1 + $0xc8] sm:$0xff]
    %v48 = vld [vmem:[%s1 + $0xd0] sm:$0xff]
    %v49 = vld [vmem:[%s1 + $0xd8] sm:$0xff]
    %v50 = vld [vmem:[%s1 + $0xe0] sm:$0xff]
    %v51 = vld [vmem:[%s1 + $0xe8] sm:$0xff]
    %v52 = vld [vmem:[%s1 + $0xf0] sm:$0xff]
    %v53 = vld [vmem:[%s1 + $0xf8] sm:$0xff]
    %v54 = vld [vmem:[%s1 + $0x100] sm:$0xff]
    %v55 = vld [vmem:[%s1 + $0x108] sm:$0xff]
    %v56 = vld [vmem:[%s1 + $0x110] sm:$0xff]
    %v57 = vld [vmem:[%s1 + $0x118] sm:$0xff]
    %v58 = vld [vmem:[%s1 + $0x120] sm:$0xff]
    %v59 = vld [vmem:[%s1 + $0x128] sm:$0xff]
    %v60 = vld [vmem:[%s1 + $0x130] sm:$0xff]
    %v61 = vld [vmem:[%s1 + $0x138] sm:$0xff]
    %v62 = vld [vmem:[%s1 + $0x140] sm:$0xff]
    %v63 = vld [vmem:[%s1 + $0x148] sm:$0xff]
    %v64 = vld [vmem:[%s1 + $0x150] sm:$0xff]
    %v65 = vld [vmem:[%s1 + $0x158] sm:$0xff]
    %v66 = vld [vmem:[%s1 + $0x160] sm:$0xff]
    %v67 = vld [vmem:[%s1 + $0x168] sm:$0xff]
    %v68 = vld [vmem:[%s1 + $0x170] sm:$0xff]
    %v69 = vld [vmem:[%s1 + $0x178] sm:$0xff]
    %v70 = vld [vmem:[%s1 + $0x180] sm:$0xff]
    %v71 = vld [vmem:[%s1 + $0x188] sm:$0xff]
    %v72 = vld [vmem:[%s1 + $0x190] sm:$0xff]
    %v73 = vld [vmem:[%s1 + $0x198] sm:$0xff]
    %v74 = vld [vmem:[%s1 + $0x1a0] sm:$0xff]
    %v75 = vld [vmem:[%s1 + $0x1a8] sm:$0xff]
    %v76 = vld [vmem:[%s1 + $0x1b0] sm:$0xff]
    %v77 = vld [vmem:[%s1 + $0x1b8] sm:$0xff]
    %v78 = vld [vmem:[%s1 + $0x1c0] sm:$0xff]
    %v79 = vld [vmem:[%s1 + $0x1c8] sm:$0xff]
    %v80 = vld [vmem:[%s1 + $0x1d0] sm:$0xff]
    %v81 = vld [vmem:[%s1 + $0x1d8] sm:$0xff]
    %v82 = vld [vmem:[%s1 + $0x1e0] sm:$0xff]
    %v83 = vld [vmem:[%s1 + $0x1e8] sm:$0xff]
    %v84 = vld [vmem:[%s1 + $0x1f0] sm:$0xff]
    %v85 = vld [vmem:[%s1 + $0x1f8] sm:$0xff]
    %v86 = vld [vmem:[%s1 + $0x200] sm:$0xff]
    %v87 = vld [vmem:[%s1 + $0x208] sm:$0xff]
    %v88 = vld [vmem:[%s1 + $0x210] sm:$0xff]
    %v89 = vld [vmem:[%s1 + $0x218] sm:$0xff]
    %v90 = vld [vmem:[%s1 + $0x220] sm:$0xff]
    %v91 = vld [vmem:[%s1 + $0x228] sm:$0xff]
    %v92 = vld [vmem:[%s1 + $0x230] sm:$0xff]
    %v93 = vld [vmem:[%s1 + $0x238] sm:$0xff]
    %v94 = vld [vmem:[%s1 + $0x240] sm:$0xff]
    %v95 = vld [vmem:[%s1 + $0x248] sm:$0xff]
    %v96 = vld [vmem:[%s1 + $0x250] sm:$0xff]
    %v97 = vld [vmem:[%s1 + $0x258] sm:$0xff]
    %v98 = vld [vmem:[%s1 + $0x260] sm:$0xff]
    %v99 = vld [vmem:[%s1 + $0x268] sm:$0xff]
    %v100 = vld [vmem:[%s1 + $0x270] sm:$0xff]
    %v101 = vld [vmem:[%s1 + $0x278] sm:$0xff]
    %v102 = vld [vmem:[%s1 + $0x280] sm:$0xff]
    %v103 = vld [vmem:[%s1 + $0x288] sm:$0xff]
    %v104 = vld [vmem:[%s1 + $0x290] sm:$0xff]
    %v105 = vld [vmem:[%s1 + $0x298] sm:$0xff]
    %v106 = vld [vmem:[%s1 + $0x2a0] sm:$0xff]
    %v107 = vld [vmem:[%s1 + $0x2a8] sm:$0xff]
    %v108 = vld [vmem:[%s1 + $0x2b0] sm:$0xff]
    %v109 = vld [vmem:[%s1 + $0x2b8] sm:$0xff]
    %v110 = vld [vmem:[%s1 + $0x2c0] sm:$0xff]
    %v111 = vld [vmem:[%s1 + $0x2c8] sm:$0xff]
    %v112 = vld [vmem:[%s1 + $0x2d0] sm:$0xff]
    %v113 = vld [vmem:[%s1 + $0x2d8] sm:$0xff]
    %v114 = vld [vmem:[%s1 + $0x2e0] sm:$0xff]
    %v115 = vld [vmem:[%s1 + $0x2e8] sm:$0xff]
    %v116 = vld [vmem:[%s1 + $0x2f0] sm:$0xff]
    %v117 = vld [vmem:[%s1 + $0x2f8] sm:$0xff]
    %v118 = vld [vmem:[%s1 + $0x300] sm:$0xff]
    %v119 = vld [vmem:[%s1 + $0x308] sm:$0xff]
    %v120 = vld [vmem:[%s1 + $0x310] sm:$0xff]
    %v121 = vld [vmem:[%s1 + $0x318] sm:$0xff]
    %v122 = vld [vmem:[%s1 + $0x320] sm:$0xff]
    %v123 = vld [vmem:[%s1 + $0x328] sm:$0xff]
    %v124 = vld [vmem:[%s1 + $0x330] sm:$0xff]
    %v125 = vld [vmem:[%s1 + $0x338] sm:$0xff]
    %v126 = vld [vmem:[%s1 + $0x340] sm:$0xff]
    %v127 = vld [vmem:[%s1 + $0x348] sm:$0xff]
    %v128 = vld [vmem:[%s1 + $0x350] sm:$0xff]
    %v129 = vld [vmem:[%s1 + $0x358] sm:$0xff]
    %v130 = vld [vmem:[%s1 + $0x360] sm:$0xff]
    %v131 = vld [vmem:[%s1 + $0x368] sm:$0xff]
    %v132 = vld [vmem:[%s1 + $0x370] sm:$0xff]
    %v133 = vld [vmem:[%s1 + $0x378] sm:$0xff]
    %v134 = vld [vmem:[%s1 + $0x380] sm:$0xff]
    %v135 = vld [vmem:[%s1 + $0x388] sm:$0xff]
    %v136 = vld [vmem:[%s1 + $0x390] sm:$0xff]
    %v137 = vld [vmem:[%s1 + $0x398] sm:$0xff]
    %v138 = vld [vmem:[%s1 + $0x3a0] sm:$0xff]
    %v139 = vld [vmem:[%s1 + $0x3a8] sm:$0xff]
    %v140 = vld [vmem:[%s1 + $0x3b0] sm:$0xff]
    %v141 = vld [vmem:[%s1 + $0x3b8] sm:$0xff]
    %v142 = vld [vmem:[%s1 + $0x3c0] sm:$0xff]
    %v143 = vld [vmem:[%s1 + $0x3c8] sm:$0xff]
    %v144 = vld [vmem:[%s1 + $0x3d0] sm:$0xff]
    %v145 = vld [vmem:[%s1 + $0x3d8] sm:$0xff]
    %v146 = vld [vmem:[%s1 + $0x3e0] sm:$0xff]
    %v147 = vld [vmem:[%s1 + $0x3e8] sm:$0xff]
    %v148 = vld [vmem:[%s1 + $0x3f0] sm:$0xff]
    %v149 = vld [vmem:[%s1 + $0x3f8] sm:$0xff]
    %v150 = vld [vmem:[%s1 + $0x400] sm:$0xff]
    %v151 = vld [vmem:[%s1 + $0x408] sm:$0xff]
    %v152 = vld [vmem:[%s1 + $0x410] sm:$0xff]
    %v153 = vld [vmem:[%s1 + $0x418] sm:$0xff]
    %v154 = vld [vmem:[%s1 + $0x420] sm:$0xff]
    %v155 = vld [vmem:[%s1 + $0x428] sm:$0xff]
    %v156 = vld [vmem:[%s1 + $0x430] sm:$0xff]
    %v157 = vld [vmem:[%s1 + $0x438] sm:$0xff]
    %v158 = vld [vmem:[%s1 + $0x440] sm:$0xff]
    %v159 = vld [vmem:[%s1 + $0x448] sm:$0xff]
    %v160 = vld [vmem:[%s1 + $0x450] sm:$0xff]
    %v161 = vld [vmem:[%s1 + $0x458] sm:$0xff]
    %v162 = vld [vmem:[%s1 + $0x460] sm:$0xff]
    %v163 = vld [vmem:[%s1 + $0x468] sm:$0xff]
    %v164 = vld [vmem:[%s1 + $0x470] sm:$0xff]
    %v165 = vld [vmem:[%s1 + $0x478] sm:$0xff]
    %v166 = vld [vmem:[%s1 + $0x480] sm:$0xff]
    %v167 = vld [vmem:[%s1 + $0x488] sm:$0xff]
    %v168 = vld [vmem:[%s1 + $0x490] sm:$0xff]
    %v169 = vld [vmem:[%s1 + $0x498] sm:$0xff]
    %v170 = vld [vmem:[%s1 + $0x4a0] sm:$0xff]
    %v171 = vld [vmem:[%s1 + $0x4a8] sm:$0xff]
    %v172 = vld [vmem:[%s1 + $0x4b0] sm:$0xff]
    %v173 = vld [vmem:[%s1 + $0x4b8] sm:$0xff]
    %v174 = vld [vmem:[%s1 + $0x4c0] sm:$0xff]
    %v175 = vld [vmem:[%s1 + $0x4c8] sm:$0xff]
    %v176 = vld [vmem:[%s1 + $0x4d0] sm:$0xff]
    %v177 = vld [vmem:[%s1 + $0x4d8] sm:$0xff]
    %v178 = vld [vmem:[%s1 + $0x4e0] sm:$0xff]
    %v179 = vld [vmem:[%s1 + $0x4e8] sm:$0xff]
    %v180 = vld [vmem:[%s1 + $0x4f0] sm:$0xff]
    %v181 = vld [vmem:[%s1 + $0x4f8] sm:$0xff]
    %v182 = vld [vmem:[%s1 + $0x500] sm:$0xff]
    %v183 = vld [vmem:[%s1 + $0x508] sm:$0xff]
    %v184 = vld [vmem:[%s1 + $0x510] sm:$0xff]
    %v185 = vld [vmem:[%s1 + $0x518] sm:$0xff]
    %v186 = vld [vmem:[%s1 + $0x520] sm:$0xff]
    %v187 = vld [vmem:[%s1 + $0x528] sm:$0xff]
    %v188 = vld [vmem:[%s1 + $0x530] sm:$0xff]
    %v189 = vld [vmem:[%s1 + $0x538] sm:$0xff]
    %v190 = vld [vmem:[%s1 + $0x540] sm:$0xff]
    %v191 = vld [vmem:[%s1 + $0x548] sm:$0xff]
    %v192 = vld [vmem:[%s1 + $0x550] sm:$0xff]
    %v193 = vld [vmem:[%s1 + $0x558] sm:$0xff]
    %v194 = vld [vmem:[%s1 + $0x560] sm:$0xff]
    %v195 = vld [vmem:[%s1 + $0x568] sm:$0xff]
    %v196 = vld [vmem:[%s1 + $0x570] sm:$0xff]
    %v197 = vld [vmem:[%s1 + $0x578] sm:$0xff]
    %v198 = vld [vmem:[%s1 + $0x580] sm:$0xff]
    %v199 = vld [vmem:[%s1 + $0x588] sm:$0xff]
    %v200 = vld [vmem:[%s1 + $0x590] sm:$0xff]
    %v201 = vld [vmem:[%s1 + $0x598] sm:$0xff]
    %v202 = vld [vmem:[%s1 + $0x5a0] sm:$0xff]
    %v203 = vld [vmem:[%s1 + $0x5a8] sm:$0xff]
    %v204 = vld [vmem:[%s1 + $0x5b0] sm:$0xff]
    %v205 = vld [vmem:[%s1 + $0x5b8] sm:$0xff]
    %v206 = vld [vmem:[%s1 + $0x5c0] sm:$0xff]
    %v207 = vld [vmem:[%s1 + $0x5c8] sm:$0xff]
    %v208 = vld [vmem:[%s1 + $0x5d0] sm:$0xff]
    %v209 = vld [vmem:[%s1 + $0x5d8] sm:$0xff]
    %v210 = vld [vmem:[%s1 + $0x5e0] sm:$0xff]
    %v211 = vld [vmem:[%s1 + $0x5e8] sm:$0xff]
    %v212 = vld [vmem:[%s1 + $0x5f0] sm:$0xff]
    %v213 = vld [vmem:[%s1 + $0x5f8] sm:$0xff]
    %v214 = vld [vmem:[%s1 + $0x600] sm:$0xff]
    %v215 = vld [vmem:[%s1 + $0x608] sm:$0xff]
    %v216 = vld [vmem:[%s1 + $0x610] sm:$0xff]
    %v217 = vld [vmem:[%s1 + $0x618] sm:$0xff]
    %v218 = vld [vmem:[%s1 + $0x620] sm:$0xff]
    %v219 = vld [vmem:[%s1 + $0x628] sm:$0xff]
    %v220 = vld [vmem:[%s1 + $0x630] sm:$0xff]
    %v221 = vld [vmem:[%s1 + $0x638] sm:$0xff]
    %v222 = vld [vmem:[%s1 + $0x640] sm:$0xff]
    %v223 = vld [vmem:[%s1 + $0x648] sm:$0xff]
    %v224 = vld [vmem:[%s1 + $0x650] sm:$0xff]
    %v225 = vld [vmem:[%s1 + $0x658] sm:$0xff]
    %v226 = vld [vmem:[%s1 + $0x660] sm:$0xff]
    %v227 = vld [vmem:[%s1 + $0x668] sm:$0xff]
    %v228 = vld [vmem:[%s1 + $0x670] sm:$0xff]
    %v229 = vld [vmem:[%s1 + $0x678] sm:$0xff]
    %v230 = vld [vmem:[%s1 + $0x680] sm:$0xff]
    %v231 = vld [vmem:[%s1 + $0x688] sm:$0xff]
    %v232 = vld [vmem:[%s1 + $0x690] sm:$0xff]
    %v233 = vld [vmem:[%s1 + $0x698] sm:$0xff]
    %v234 = vld [vmem:[%s1 + $0x6a0] sm:$0xff]
    %v235 = vld [vmem:[%s1 + $0x6a8] sm:$0xff]
    %v236 = vld [vmem:[%s1 + $0x6b0] sm:$0xff]
    %v237 = vld [vmem:[%s1 + $0x6b8] sm:$0xff]
    %v238 = vld [vmem:[%s1 + $0x6c0] sm:$0xff]
    %v239 = vld [vmem:[%s1 + $0x6c8] sm:$0xff]
    %v240 = vld [vmem:[%s1 + $0x6d0] sm:$0xff]
    %v241 = vld [vmem:[%s1 + $0x6d8] sm:$0xff]
    %v242 = vld [vmem:[%s1 + $0x6e0] sm:$0xff]
    %v243 = vld [vmem:[%s1 + $0x6e8] sm:$0xff]
    %v244 = vld [vmem:[%s1 + $0x6f0] sm:$0xff]
    %v245 = vld [vmem:[%s1 + $0x6f8] sm:$0xff]
    %v246 = vld [vmem:[%s1 + $0x700] sm:$0xff]
    %v247 = vld [vmem:[%s1 + $0x708] sm:$0xff]
    %v248 = vld [vmem:[%s1 + $0x710] sm:$0xff]
    %v249 = vld [vmem:[%s1 + $0x718] sm:$0xff]
    %v250 = vld [vmem:[%s1 + $0x720] sm:$0xff]
    %v251 = vld [vmem:[%s1 + $0x728] sm:$0xff]
    %v252 = vld [vmem:[%s1 + $0x730] sm:$0xff]
    %v253 = vld [vmem:[%s1 + $0x738] sm:$0xff]
    %v254 = vld [vmem:[%s1 + $0x740] sm:$0xff]
    %v255 = vld [vmem:[%s1 + $0x748] sm:$0xff]
    %v256 = vld [vmem:[%s1 + $0x750] sm:$0xff]
    %v257 = vld [vmem:[%s1 + $0x758] sm:$0xff]
    %v258 = vld [vmem:[%s1 + $0x760] sm:$0xff]
    %v259 = vld [vmem:[%s1 + $0x768] sm:$0xff]
    %v260 = vld [vmem:[%s1 + $0x770] sm:$0xff]
    %v261 = vld [vmem:[%s1 + $0x778] sm:$0xff]
    %v262 = vld [vmem:[%s1 + $0x780] sm:$0xff]
    %v263 = vld [vmem:[%s1 + $0x788] sm:$0xff]
    %v264 = vld [vmem:[%s1 + $0x790] sm:$0xff]
    %v265 = vld [vmem:[%s1 + $0x798] sm:$0xff]
    %v266 = vld [vmem:[%s1 + $0x7a0] sm:$0xff]
    %v267 = vld [vmem:[%s1 + $0x7a8] sm:$0xff]
    %v268 = vld [vmem:[%s1 + $0x7b0] sm:$0xff]
    %v269 = vld [vmem:[%s1 + $0x7b8] sm:$0xff]
    %v270 = vld [vmem:[%s1 + $0x7c0] sm:$0xff]
    %v271 = vld [vmem:[%s1 + $0x7c8] sm:$0xff]
    %v272 = vld [vmem:[%s1 + $0x7d0] sm:$0xff]
    %v273 = vld [vmem:[%s1 + $0x7d8] sm:$0xff]
    %v274 = vld [vmem:[%s1 + $0x7e0] sm:$0xff]
    %v275 = vld [vmem:[%s1 + $0x7e8] sm:$0xff]
    %v276 = vld [vmem:[%s1 + $0x7f0] sm:$0xff]
    %v277 = vld [vmem:[%s1 + $0x7f8] sm:$0xff]
    %v278 = vld [vmem:[%s1 + $0x800] sm:$0xff]
    %v279 = vld [vmem:[%s1 + $0x808] sm:$0xff]
    %v280 = vld [vmem:[%s1 + $0x810] sm:$0xff]
    %v281 = vld [vmem:[%s1 + $0x818] sm:$0xff]
    %v282 = vld [vmem:[%s1 + $0x820] sm:$0xff]
    %v283 = vld [vmem:[%s1 + $0x828] sm:$0xff]
    %v284 = vld [vmem:[%s1 + $0x830] sm:$0xff]
    %v285 = vld [vmem:[%s1 + $0x838] sm:$0xff]
    %v286 = vld [vmem:[%s1 + $0x840] sm:$0xff]
    %v287 = vld [vmem:[%s1 + $0x848] sm:$0xff]
    %v288 = vld [vmem:[%s1 + $0x850] sm:$0xff]
    %v289 = vld [vmem:[%s1 + $0x858] sm:$0xff]
    %v290 = vld [vmem:[%s1 + $0x860] sm:$0xff]
    %v291 = vld [vmem:[%s1 + $0x868] sm:$0xff]
    %v292 = vld [vmem:[%s1 + $0x870] sm:$0xff]
    %v293 = vld [vmem:[%s1 + $0x878] sm:$0xff]
    %v294 = vld [vmem:[%s1 + $0x880] sm:$0xff]
    %v295 = vld [vmem:[%s1 + $0x888] sm:$0xff]
    %v296 = vld [vmem:[%s1 + $0x890] sm:$0xff]
    %v297 = vld [vmem:[%s1 + $0x898] sm:$0xff]
    %v298 = vld [vmem:[%s1 + $0x8a0] sm:$0xff]
    %v299 = vld [vmem:[%s1 + $0x8a8] sm:$0xff]
    %v300 = vld [vmem:[%s1 + $0x8b0] sm:$0xff]
    %v301 = vld [vmem:[%s1 + $0x8b8] sm:$0xff]
    %v302 = vld [vmem:[%s1 + $0x8c0] sm:$0xff]
    %v303 = vld [vmem:[%s1 + $0x8c8] sm:$0xff]
    %v304 = vld [vmem:[%s1 + $0x8d0] sm:$0xff]
    %v305 = vld [vmem:[%s1 + $0x8d8] sm:$0xff]
    %v306 = vld [vmem:[%s1 + $0x8e0] sm:$0xff]
    %v307 = vld [vmem:[%s1 + $0x8e8] sm:$0xff]
    %v308 = vld [vmem:[%s1 + $0x8f0] sm:$0xff]
    %v309 = vld [vmem:[%s1 + $0x8f8] sm:$0xff]
    %v310 = vld [vmem:[%s1 + $0x900] sm:$0xff]
    %v311 = vld [vmem:[%s1 + $0x908] sm:$0xff]
    %v312 = vld [vmem:[%s1 + $0x910] sm:$0xff]
    %v313 = vld [vmem:[%s1 + $0x918] sm:$0xff]
    %v314 = vld [vmem:[%s1 + $0x920] sm:$0xff]
    %v315 = vld [vmem:[%s1 + $0x928] sm:$0xff]
    %v316 = vld [vmem:[%s1 + $0x930] sm:$0xff]
    %v317 = vld [vmem:[%s1 + $0x938] sm:$0xff]
    %v318 = vld [vmem:[%s1 + $0x940] sm:$0xff]
    %v319 = vld [vmem:[%s1 + $0x948] sm:$0xff]
    %v320 = vld [vmem:[%s1 + $0x950] sm:$0xff]
    %v321 = vld [vmem:[%s1 + $0x958] sm:$0xff]
    %v322 = vld [vmem:[%s1 + $0x960] sm:$0xff]
    %v323 = vld [vmem:[%s1 + $0x968] sm:$0xff]
    %v324 = vld [vmem:[%s1 + $0x970] sm:$0xff]
    %v325 = vld [vmem:[%s1 + $0x978] sm:$0xff]
    %v326 = vld [vmem:[%s1 + $0x980] sm:$0xff]
    %v327 = vld [vmem:[%s1 + $0x988] sm:$0xff]
    %v328 = vld [vmem:[%s1 + $0x990] sm:$0xff]
    %v329 = vld [vmem:[%s1 + $0x998] sm:$0xff]
    %v330 = vld [vmem:[%s1 + $0x9a0] sm:$0xff]
    %v331 = vld [vmem:[%s1 + $0x9a8] sm:$0xff]
    %v332 = vld [vmem:[%s1 + $0x9b0] sm:$0xff]
    %v333 = vld [vmem:[%s1 + $0x9b8] sm:$0xff]
    %v334 = vld [vmem:[%s1 + $0x9c0] sm:$0xff]
    %v335 = vld [vmem:[%s1 + $0x9c8] sm:$0xff]
    %v336 = vld [vmem:[%s1 + $0x9d0] sm:$0xff]
    %v337 = vld [vmem:[%s1 + $0x9d8] sm:$0xff]
    %v338 = vld [vmem:[%s1 + $0x9e0] sm:$0xff]
    %v339 = vld [vmem:[%s1 + $0x9e8] sm:$0xff]
    %v340 = vld [vmem:[%s1 + $0x9f0] sm:$0xff]
    %v341 = vld [vmem:[%s1 + $0x9f8] sm:$0xff]
    %v342 = vld [vmem:[%s1 + $0xa00] sm:$0xff]
    %v343 = vld [vmem:[%s1 + $0xa08] sm:$0xff]
    %v344 = vld [vmem:[%s1 + $0xa10] sm:$0xff]
    %v345 = vld [vmem:[%s1 + $0xa18] sm:$0xff]
    %v346 = vld [vmem:[%s1 + $0xa20] sm:$0xff]
    %v347 = vld [vmem:[%s1 + $0xa28] sm:$0xff]
    %v348 = vld [vmem:[%s1 + $0xa30] sm:$0xff]
    %v349 = vld [vmem:[%s1 + $0xa38] sm:$0xff]
    %v350 = vld [vmem:[%s1 + $0xa40] sm:$0xff]
    %v351 = vld [vmem:[%s1 + $0xa48] sm:$0xff]
    %v352 = vld [vmem:[%s1 + $0xa50] sm:$0xff]
    %v353 = vld [vmem:[%s1 + $0xa58] sm:$0xff]
    %v354 = vld [vmem:[%s1 + $0xa60] sm:$0xff]
    %v355 = vld [vmem:[%s1 + $0xa68] sm:$0xff]
    %v356 = vld [vmem:[%s1 + $0xa70] sm:$0xff]
    %v357 = vld [vmem:[%s1 + $0xa78] sm:$0xff]
    %v358 = vld [vmem:[%s1 + $0xa80] sm:$0xff]
    %v359 = vld [vmem:[%s1 + $0xa88] sm:$0xff]
    %v360 = vld [vmem:[%s1 + $0xa90] sm:$0xff]
    %v361 = vld [vmem:[%s1 + $0xa98] sm:$0xff]
    %v362 = vld [vmem:[%s1 + $0xaa0] sm:$0xff]
    %v363 = vld [vmem:[%s1 + $0xaa8] sm:$0xff]
    %v364 = vld [vmem:[%s1 + $0xab0] sm:$0xff]
    %v365 = vld [vmem:[%s1 + $0xab8] sm:$0xff]
    %v366 = vld [vmem:[%s1 + $0xac0] sm:$0xff]
    %v367 = vld [vmem:[%s1 + $0xac8] sm:$0xff]
    %v368 = vld [vmem:[%s1 + $0xad0] sm:$0xff]
    %v369 = vld [vmem:[%s1 + $0xad8] sm:$0xff]
    %v370 = vld [vmem:[%s1 + $0xae0] sm:$0xff]
    %v371 = vld [vmem:[%s1 + $0xae8] sm:$0xff]
    %v372 = vld [vmem:[%s1 + $0xaf0] sm:$0xff]
    %v373 = vld [vmem:[%s1 + $0xaf8] sm:$0xff]
    %v374 = vld [vmem:[%s1 + $0xb00] sm:$0xff]
    %v375 = vld [vmem:[%s1 + $0xb08] sm:$0xff]
    %v376 = vld [vmem:[%s1 + $0xb10] sm:$0xff]
    %v377 = vld [vmem:[%s1 + $0xb18] sm:$0xff]
    %v378 = vld [vmem:[%s1 + $0xb20] sm:$0xff]
    %v379 = vld [vmem:[%s1 + $0xb28] sm:$0xff]
    %v380 = vld [vmem:[%s1 + $0xb30] sm:$0xff]
    %v381 = vld [vmem:[%s1 + $0xb38] sm:$0xff]
    %v382 = vld [vmem:[%s1 + $0xb40] sm:$0xff]
    %v383 = vld [vmem:[%s1 + $0xb48] sm:$0xff]
    %v384 = vld [vmem:[%s1 + $0xb50] sm:$0xff]
    %v385 = vld [vmem:[%s1 + $0xb58] sm:$0xff]
    %v386 = vld [vmem:[%s1 + $0xb60] sm:$0xff]
    %v387 = vld [vmem:[%s1 + $0xb68] sm:$0xff]
    %v388 = vld [vmem:[%s1 + $0xb70] sm:$0xff]
    %v389 = vld [vmem:[%s1 + $0xb78] sm:$0xff]
    %v390 = vld [vmem:[%s1 + $0xb80] sm:$0xff]
    %v391 = vld [vmem:[%s1 + $0xb88] sm:$0xff]
    %v392 = vld [vmem:[%s1 + $0xb90] sm:$0xff]
    %v393 = vld [vmem:[%s1 + $0xb98] sm:$0xff]
    %v394 = vld [vmem:[%s1 + $0xba0] sm:$0xff]
    %v395 = vld [vmem:[%s1 + $0xba8] sm:$0xff]
    %v396 = vld [vmem:[%s1 + $0xbb0] sm:$0xff]
    %v397 = vld [vmem:[%s1 + $0xbb8] sm:$0xff]
    %v398 = vld [vmem:[%s1 + $0xbc0] sm:$0xff]
    %v399 = vld [vmem:[%s1 + $0xbc8] sm:$0xff]
    %v400 = vld [vmem:[%s1 + $0xbd0] sm:$0xff]
    %v401 = vld [vmem:[%s1 + $0xbd8] sm:$0xff]
    %v402 = vld [vmem:[%s1 + $0xbe0] sm:$0xff]
    %v403 = vld [vmem:[%s1 + $0xbe8] sm:$0xff]
    %v404 = vld [vmem:[%s1 + $0xbf0] sm:$0xff]
    %v405 = vld [vmem:[%s1 + $0xbf8] sm:$0xff]
    %v406 = vld [vmem:[%s1 + $0xc00] sm:$0xff]
    %v407 = vld [vmem:[%s1 + $0xc08] sm:$0xff]
    %v408 = vld [vmem:[%s1 + $0xc10] sm:$0xff]
    %v409 = vld [vmem:[%s1 + $0xc18] sm:$0xff]
    %v410 = vld [vmem:[%s1 + $0xc20] sm:$0xff]
    %v411 = vld [vmem:[%s1 + $0xc28] sm:$0xff]
    %v412 = vld [vmem:[%s1 + $0xc30] sm:$0xff]
    %v413 = vld [vmem:[%s1 + $0xc38] sm:$0xff]
    %v414 = vld [vmem:[%s2] sm:$0x1]
    %v416 = vperm.slane %v414, 0
    %425 = vst [vmem:[#allocation1] ss:$4 sm:$0xff] %v15
    %s426 = scalar_lea.vmem [#allocation1], 32
    %427 = vst [vmem:[%s426] ss:$4 sm:$0xff] %v16
    %v428 = vld.sshfl [vmem:[#allocation1] sm:$0xff pattern:$0x73625140]
    %v429 = vld.sshfl [vmem:[#allocation1 + $0x8] sm:$0xff pattern:$0x73625140]
    %v430 = vld.sshfl [vmem:[#allocation1 + $0x10] sm:$0xff pattern:$0x73625140]
    %v431 = vld.sshfl [vmem:[#allocation1 + $0x18] sm:$0xff pattern:$0x73625140]
    %v432 = vld.sshfl [vmem:[#allocation1 + $0x20] sm:$0xff pattern:$0x73625140]
    %v433 = vld.sshfl [vmem:[#allocation1 + $0x28] sm:$0xff pattern:$0x73625140]
    %v434 = vld.sshfl [vmem:[#allocation1 + $0x30] sm:$0xff pattern:$0x73625140]
    %v435 = vld.sshfl [vmem:[#allocation1 + $0x38] sm:$0xff pattern:$0x73625140]
    %436 = vst [vmem:[#allocation1] ss:$4 sm:$0xff] %v17
    %437 = vst [vmem:[%s426] ss:$4 sm:$0xff] %v18
    %v438 = vld.sshfl [vmem:[#allocation1] sm:$0xff pattern:$0x73625140]
    %v439 = vld.sshfl [vmem:[#allocation1 + $0x8] sm:$0xff pattern:$0x73625140]
    %v440 = vld.sshfl [vmem:[#allocation1 + $0x10] sm:$0xff pattern:$0x73625140]
    %v441 = vld.sshfl [vmem:[#allocation1 + $0x18] sm:$0xff pattern:$0x73625140]
    %v442 = vld.sshfl [vmem:[#allocation1 + $0x20] sm:$0xff pattern:$0x73625140]
    %v443 = vld.sshfl [vmem:[#allocation1 + $0x28] sm:$0xff pattern:$0x73625140]
    %v444 = vld.sshfl [vmem:[#allocation1 + $0x30] sm:$0xff pattern:$0x73625140]
    %v445 = vld.sshfl [vmem:[#allocation1 + $0x38] sm:$0xff pattern:$0x73625140]
    %446 = vst [vmem:[#allocation1] ss:$4 sm:$0xff] %v19
    %447 = vst [vmem:[%s426] ss:$4 sm:$0xff] %v20
    %v448 = vld.sshfl [vmem:[#allocation1] sm:$0xff pattern:$0x73625140]
    %v449 = vld.sshfl [vmem:[#allocation1 + $0x8] sm:$0xff pattern:$0x73625140]
    %v450 = vld.sshfl [vmem:[#allocation1 + $0x10] sm:$0xff pattern:$0x73625140]
    %v451 = vld.sshfl [vmem:[#allocation1 + $0x18] sm:$0xff pattern:$0x73625140]
    %v452 = vld.sshfl [vmem:[#allocation1 + $0x20] sm:$0xff pattern:$0x73625140]
    %v453 = vld.sshfl [vmem:[#allocation1 + $0x28] sm:$0xff pattern:$0x73625140]
    %v454 = vld.sshfl [vmem:[#allocation1 + $0x30] sm:$0xff pattern:$0x73625140]
    %v455 = vld.sshfl [vmem:[#allocation1 + $0x38] sm:$0xff pattern:$0x73625140]
    %456 = vst [vmem:[#allocation1] ss:$4 sm:$0xff] %v21
    %v457 = vld.sshfl [vmem:[#allocation1] sm:$0xff pattern:$0x73625140]
    %vm482 = vcmask 523264
    %v483 = vsel %vm482, %v457, 0
    %485 = vmatpush.msra.mxu0 %v37
    %486 = vmatpush.msra.mxu0 %v36
    %487 = vmatpush.msra.mxu0 %v35
    %488 = vmatpush.msra.mxu0 %v34
    %489 = vmatpush.msra.mxu0 %v33
    %490 = vmatpush.msra.mxu0 %v32
    %491 = vmatpush.msra.mxu0 %v31
    %492 = vmatpush.msra.mxu0 %v30
    %493 = vmatpush.msra.mxu0 %v29
    %494 = vmatpush.msra.mxu0 %v28
    %495 = vmatpush.msra.mxu0 %v27
    %496 = vmatpush.msra.mxu0 %v26
    %497 = vmatpush.msra.mxu0 %v25
    %498 = vmatpush.msra.mxu0 %v24
    %499 = vmatpush.msra.mxu0 %v23
    %500 = vmatpush.msra.mxu0 %v22
    %501 = vmatmul.f32.gmra.mxu0 %v428
    %v502 = vpop.f32.mrf.mxu0
    %v503 = vadd.f32 %v416, %v502
    %504 = vdwg.mxu0
    %505 = vmatpush.msra.mxu0 %v53
    %506 = vmatpush.msra.mxu0 %v52
    %507 = vmatpush.msra.mxu0 %v51
    %508 = vmatpush.msra.mxu0 %v50
    %509 = vmatpush.msra.mxu0 %v49
    %510 = vmatpush.msra.mxu0 %v48
    %511 = vmatpush.msra.mxu0 %v47
    %512 = vmatpush.msra.mxu0 %v46
    %513 = vmatpush.msra.mxu0 %v45
    %514 = vmatpush.msra.mxu0 %v44
    %515 = vmatpush.msra.mxu0 %v43
    %516 = vmatpush.msra.mxu0 %v42
    %517 = vmatpush.msra.mxu0 %v41
    %518 = vmatpush.msra.mxu0 %v40
    %519 = vmatpush.msra.mxu0 %v39
    %520 = vmatpush.msra.mxu0 %v38
    %521 = vmatmul.f32.gmra.mxu0 %v429
    %v522 = vpop.f32.mrf.mxu0
    %v523 = vadd.f32 %v503, %v522
    %524 = vdwg.mxu0
    %525 = vmatpush.msra.mxu0 %v69
    %526 = vmatpush.msra.mxu0 %v68
    %527 = vmatpush.msra.mxu0 %v67
    %528 = vmatpush.msra.mxu0 %v66
    %529 = vmatpush.msra.mxu0 %v65
    %530 = vmatpush.msra.mxu0 %v64
    %531 = vmatpush.msra.mxu0 %v63
    %532 = vmatpush.msra.mxu0 %v62
    %533 = vmatpush.msra.mxu0 %v61
    %534 = vmatpush.msra.mxu0 %v60
    %535 = vmatpush.msra.mxu0 %v59
    %536 = vmatpush.msra.mxu0 %v58
    %537 = vmatpush.msra.mxu0 %v57
    %538 = vmatpush.msra.mxu0 %v56
    %539 = vmatpush.msra.mxu0 %v55
    %540 = vmatpush.msra.mxu0 %v54
    %541 = vmatmul.f32.gmra.mxu0 %v430
    %v542 = vpop.f32.mrf.mxu0
    %v543 = vadd.f32 %v523, %v542
    %544 = vdwg.mxu0
    %545 = vmatpush.msra.mxu0 %v85
    %546 = vmatpush.msra.mxu0 %v84
    %547 = vmatpush.msra.mxu0 %v83
    %548 = vmatpush.msra.mxu0 %v82
    %549 = vmatpush.msra.mxu0 %v81
    %550 = vmatpush.msra.mxu0 %v80
    %551 = vmatpush.msra.mxu0 %v79
    %552 = vmatpush.msra.mxu0 %v78
    %553 = vmatpush.msra.mxu0 %v77
    %554 = vmatpush.msra.mxu0 %v76
    %555 = vmatpush.msra.mxu0 %v75
    %556 = vmatpush.msra.mxu0 %v74
    %557 = vmatpush.msra.mxu0 %v73
    %558 = vmatpush.msra.mxu0 %v72
    %559 = vmatpush.msra.mxu0 %v71
    %560 = vmatpush.msra.mxu0 %v70
    %561 = vmatmul.f32.gmra.mxu0 %v431
    %v562 = vpop.f32.mrf.mxu0
    %v563 = vadd.f32 %v543, %v562
    %564 = vdwg.mxu0
    %565 = vmatpush.msra.mxu0 %v101
    %566 = vmatpush.msra.mxu0 %v100
    %567 = vmatpush.msra.mxu0 %v99
    %568 = vmatpush.msra.mxu0 %v98
    %569 = vmatpush.msra.mxu0 %v97
    %570 = vmatpush.msra.mxu0 %v96
    %571 = vmatpush.msra.mxu0 %v95
    %572 = vmatpush.msra.mxu0 %v94
    %573 = vmatpush.msra.mxu0 %v93
    %574 = vmatpush.msra.mxu0 %v92
    %575 = vmatpush.msra.mxu0 %v91
    %576 = vmatpush.msra.mxu0 %v90
    %577 = vmatpush.msra.mxu0 %v89
    %578 = vmatpush.msra.mxu0 %v88
    %579 = vmatpush.msra.mxu0 %v87
    %580 = vmatpush.msra.mxu0 %v86
    %581 = vmatmul.f32.gmra.mxu0 %v432
    %v582 = vpop.f32.mrf.mxu0
    %v583 = vadd.f32 %v563, %v582
    %584 = vdwg.mxu0
    %585 = vmatpush.msra.mxu0 %v117
    %586 = vmatpush.msra.mxu0 %v116
    %587 = vmatpush.msra.mxu0 %v115
    %588 = vmatpush.msra.mxu0 %v114
    %589 = vmatpush.msra.mxu0 %v113
    %590 = vmatpush.msra.mxu0 %v112
    %591 = vmatpush.msra.mxu0 %v111
    %592 = vmatpush.msra.mxu0 %v110
    %593 = vmatpush.msra.mxu0 %v109
    %594 = vmatpush.msra.mxu0 %v108
    %595 = vmatpush.msra.mxu0 %v107
    %596 = vmatpush.msra.mxu0 %v106
    %597 = vmatpush.msra.mxu0 %v105
    %598 = vmatpush.msra.mxu0 %v104
    %599 = vmatpush.msra.mxu0 %v103
    %600 = vmatpush.msra.mxu0 %v102
    %601 = vmatmul.f32.gmra.mxu0 %v433
    %v602 = vpop.f32.mrf.mxu0
    %v603 = vadd.f32 %v583, %v602
    %604 = vdwg.mxu0
    %605 = vmatpush.msra.mxu0 %v133
    %606 = vmatpush.msra.mxu0 %v132
    %607 = vmatpush.msra.mxu0 %v131
    %608 = vmatpush.msra.mxu0 %v130
    %609 = vmatpush.msra.mxu0 %v129
    %610 = vmatpush.msra.mxu0 %v128
    %611 = vmatpush.msra.mxu0 %v127
    %612 = vmatpush.msra.mxu0 %v126
    %613 = vmatpush.msra.mxu0 %v125
    %614 = vmatpush.msra.mxu0 %v124
    %615 = vmatpush.msra.mxu0 %v123
    %616 = vmatpush.msra.mxu0 %v122
    %617 = vmatpush.msra.mxu0 %v121
    %618 = vmatpush.msra.mxu0 %v120
    %619 = vmatpush.msra.mxu0 %v119
    %620 = vmatpush.msra.mxu0 %v118
    %621 = vmatmul.f32.gmra.mxu0 %v434
    %v622 = vpop.f32.mrf.mxu0
    %v623 = vadd.f32 %v603, %v622
    %624 = vdwg.mxu0
    %625 = vmatpush.msra.mxu0 %v149
    %626 = vmatpush.msra.mxu0 %v148
    %627 = vmatpush.msra.mxu0 %v147
    %628 = vmatpush.msra.mxu0 %v146
    %629 = vmatpush.msra.mxu0 %v145
    %630 = vmatpush.msra.mxu0 %v144
    %631 = vmatpush.msra.mxu0 %v143
    %632 = vmatpush.msra.mxu0 %v142
    %633 = vmatpush.msra.mxu0 %v141
    %634 = vmatpush.msra.mxu0 %v140
    %635 = vmatpush.msra.mxu0 %v139
    %636 = vmatpush.msra.mxu0 %v138
    %637 = vmatpush.msra.mxu0 %v137
    %638 = vmatpush.msra.mxu0 %v136
    %639 = vmatpush.msra.mxu0 %v135
    %640 = vmatpush.msra.mxu0 %v134
    %641 = vmatmul.f32.gmra.mxu0 %v435
    %v642 = vpop.f32.mrf.mxu0
    %v643 = vadd.f32 %v623, %v642
    %644 = vdwg.mxu0
    %645 = vmatpush.msra.mxu0 %v165
    %646 = vmatpush.msra.mxu0 %v164
    %647 = vmatpush.msra.mxu0 %v163
    %648 = vmatpush.msra.mxu0 %v162
    %649 = vmatpush.msra.mxu0 %v161
    %650 = vmatpush.msra.mxu0 %v160
    %651 = vmatpush.msra.mxu0 %v159
    %652 = vmatpush.msra.mxu0 %v158
    %653 = vmatpush.msra.mxu0 %v157
    %654 = vmatpush.msra.mxu0 %v156
    %655 = vmatpush.msra.mxu0 %v155
    %656 = vmatpush.msra.mxu0 %v154
    %657 = vmatpush.msra.mxu0 %v153
    %658 = vmatpush.msra.mxu0 %v152
    %659 = vmatpush.msra.mxu0 %v151
    %660 = vmatpush.msra.mxu0 %v150
    %661 = vmatmul.f32.gmra.mxu0 %v438
    %v662 = vpop.f32.mrf.mxu0
    %v663 = vadd.f32 %v643, %v662
    %664 = vdwg.mxu0
    %665 = vmatpush.msra.mxu0 %v181
    %666 = vmatpush.msra.mxu0 %v180
    %667 = vmatpush.msra.mxu0 %v179
    %668 = vmatpush.msra.mxu0 %v178
    %669 = vmatpush.msra.mxu0 %v177
    %670 = vmatpush.msra.mxu0 %v176
    %671 = vmatpush.msra.mxu0 %v175
    %672 = vmatpush.msra.mxu0 %v174
    %673 = vmatpush.msra.mxu0 %v173
    %674 = vmatpush.msra.mxu0 %v172
    %675 = vmatpush.msra.mxu0 %v171
    %676 = vmatpush.msra.mxu0 %v170
    %677 = vmatpush.msra.mxu0 %v169
    %678 = vmatpush.msra.mxu0 %v168
    %679 = vmatpush.msra.mxu0 %v167
    %680 = vmatpush.msra.mxu0 %v166
    %681 = vmatmul.f32.gmra.mxu0 %v439
    %v682 = vpop.f32.mrf.mxu0
    %v683 = vadd.f32 %v663, %v682
    %684 = vdwg.mxu0
    %685 = vmatpush.msra.mxu0 %v197
    %686 = vmatpush.msra.mxu0 %v196
    %687 = vmatpush.msra.mxu0 %v195
    %688 = vmatpush.msra.mxu0 %v194
    %689 = vmatpush.msra.mxu0 %v193
    %690 = vmatpush.msra.mxu0 %v192
    %691 = vmatpush.msra.mxu0 %v191
    %692 = vmatpush.msra.mxu0 %v190
    %693 = vmatpush.msra.mxu0 %v189
    %694 = vmatpush.msra.mxu0 %v188
    %695 = vmatpush.msra.mxu0 %v187
    %696 = vmatpush.msra.mxu0 %v186
    %697 = vmatpush.msra.mxu0 %v185
    %698 = vmatpush.msra.mxu0 %v184
    %699 = vmatpush.msra.mxu0 %v183
    %700 = vmatpush.msra.mxu0 %v182
    %701 = vmatmul.f32.gmra.mxu0 %v440
    %v702 = vpop.f32.mrf.mxu0
    %v703 = vadd.f32 %v683, %v702
    %704 = vdwg.mxu0
    %705 = vmatpush.msra.mxu0 %v213
    %706 = vmatpush.msra.mxu0 %v212
    %707 = vmatpush.msra.mxu0 %v211
    %708 = vmatpush.msra.mxu0 %v210
    %709 = vmatpush.msra.mxu0 %v209
    %710 = vmatpush.msra.mxu0 %v208
    %711 = vmatpush.msra.mxu0 %v207
    %712 = vmatpush.msra.mxu0 %v206
    %713 = vmatpush.msra.mxu0 %v205
    %714 = vmatpush.msra.mxu0 %v204
    %715 = vmatpush.msra.mxu0 %v203
    %716 = vmatpush.msra.mxu0 %v202
    %717 = vmatpush.msra.mxu0 %v201
    %718 = vmatpush.msra.mxu0 %v200
    %719 = vmatpush.msra.mxu0 %v199
    %720 = vmatpush.msra.mxu0 %v198
    %721 = vmatmul.f32.gmra.mxu0 %v441
    %v722 = vpop.f32.mrf.mxu0
    %v723 = vadd.f32 %v703, %v722
    %724 = vdwg.mxu0
    %725 = vmatpush.msra.mxu0 %v229
    %726 = vmatpush.msra.mxu0 %v228
    %727 = vmatpush.msra.mxu0 %v227
    %728 = vmatpush.msra.mxu0 %v226
    %729 = vmatpush.msra.mxu0 %v225
    %730 = vmatpush.msra.mxu0 %v224
    %731 = vmatpush.msra.mxu0 %v223
    %732 = vmatpush.msra.mxu0 %v222
    %733 = vmatpush.msra.mxu0 %v221
    %734 = vmatpush.msra.mxu0 %v220
    %735 = vmatpush.msra.mxu0 %v219
    %736 = vmatpush.msra.mxu0 %v218
    %737 = vmatpush.msra.mxu0 %v217
    %738 = vmatpush.msra.mxu0 %v216
    %739 = vmatpush.msra.mxu0 %v215
    %740 = vmatpush.msra.mxu0 %v214
    %741 = vmatmul.f32.gmra.mxu0 %v442
    %v742 = vpop.f32.mrf.mxu0
    %v743 = vadd.f32 %v723, %v742
    %744 = vdwg.mxu0
    %745 = vmatpush.msra.mxu0 %v245
    %746 = vmatpush.msra.mxu0 %v244
    %747 = vmatpush.msra.mxu0 %v243
    %748 = vmatpush.msra.mxu0 %v242
    %749 = vmatpush.msra.mxu0 %v241
    %750 = vmatpush.msra.mxu0 %v240
    %751 = vmatpush.msra.mxu0 %v239
    %752 = vmatpush.msra.mxu0 %v238
    %753 = vmatpush.msra.mxu0 %v237
    %754 = vmatpush.msra.mxu0 %v236
    %755 = vmatpush.msra.mxu0 %v235
    %756 = vmatpush.msra.mxu0 %v234
    %757 = vmatpush.msra.mxu0 %v233
    %758 = vmatpush.msra.mxu0 %v232
    %759 = vmatpush.msra.mxu0 %v231
    %760 = vmatpush.msra.mxu0 %v230
    %761 = vmatmul.f32.gmra.mxu0 %v443
    %v762 = vpop.f32.mrf.mxu0
    %v763 = vadd.f32 %v743, %v762
    %764 = vdwg.mxu0
    %765 = vmatpush.msra.mxu0 %v261
    %766 = vmatpush.msra.mxu0 %v260
    %767 = vmatpush.msra.mxu0 %v259
    %768 = vmatpush.msra.mxu0 %v258
    %769 = vmatpush.msra.mxu0 %v257
    %770 = vmatpush.msra.mxu0 %v256
    %771 = vmatpush.msra.mxu0 %v255
    %772 = vmatpush.msra.mxu0 %v254
    %773 = vmatpush.msra.mxu0 %v253
    %774 = vmatpush.msra.mxu0 %v252
    %775 = vmatpush.msra.mxu0 %v251
    %776 = vmatpush.msra.mxu0 %v250
    %777 = vmatpush.msra.mxu0 %v249
    %778 = vmatpush.msra.mxu0 %v248
    %779 = vmatpush.msra.mxu0 %v247
    %780 = vmatpush.msra.mxu0 %v246
    %781 = vmatmul.f32.gmra.mxu0 %v444
    %v782 = vpop.f32.mrf.mxu0
    %v783 = vadd.f32 %v763, %v782
    %784 = vdwg.mxu0
    %785 = vmatpush.msra.mxu0 %v277
    %786 = vmatpush.msra.mxu0 %v276
    %787 = vmatpush.msra.mxu0 %v275
    %788 = vmatpush.msra.mxu0 %v274
    %789 = vmatpush.msra.mxu0 %v273
    %790 = vmatpush.msra.mxu0 %v272
    %791 = vmatpush.msra.mxu0 %v271
    %792 = vmatpush.msra.mxu0 %v270
    %793 = vmatpush.msra.mxu0 %v269
    %794 = vmatpush.msra.mxu0 %v268
    %795 = vmatpush.msra.mxu0 %v267
    %796 = vmatpush.msra.mxu0 %v266
    %797 = vmatpush.msra.mxu0 %v265
    %798 = vmatpush.msra.mxu0 %v264
    %799 = vmatpush.msra.mxu0 %v263
    %800 = vmatpush.msra.mxu0 %v262
    %801 = vmatmul.f32.gmra.mxu0 %v445
    %v802 = vpop.f32.mrf.mxu0
    %v803 = vadd.f32 %v783, %v802
    %804 = vdwg.mxu0
    %805 = vmatpush.msra.mxu0 %v293
    %806 = vmatpush.msra.mxu0 %v292
    %807 = vmatpush.msra.mxu0 %v291
    %808 = vmatpush.msra.mxu0 %v290
    %809 = vmatpush.msra.mxu0 %v289
    %810 = vmatpush.msra.mxu0 %v288
    %811 = vmatpush.msra.mxu0 %v287
    %812 = vmatpush.msra.mxu0 %v286
    %813 = vmatpush.msra.mxu0 %v285
    %814 = vmatpush.msra.mxu0 %v284
    %815 = vmatpush.msra.mxu0 %v283
    %816 = vmatpush.msra.mxu0 %v282
    %817 = vmatpush.msra.mxu0 %v281
    %818 = vmatpush.msra.mxu0 %v280
    %819 = vmatpush.msra.mxu0 %v279
    %820 = vmatpush.msra.mxu0 %v278
    %821 = vmatmul.f32.gmra.mxu0 %v448
    %v822 = vpop.f32.mrf.mxu0
    %v823 = vadd.f32 %v803, %v822
    %824 = vdwg.mxu0
    %825 = vmatpush.msra.mxu0 %v309
    %826 = vmatpush.msra.mxu0 %v308
    %827 = vmatpush.msra.mxu0 %v307
    %828 = vmatpush.msra.mxu0 %v306
    %829 = vmatpush.msra.mxu0 %v305
    %830 = vmatpush.msra.mxu0 %v304
    %831 = vmatpush.msra.mxu0 %v303
    %832 = vmatpush.msra.mxu0 %v302
    %833 = vmatpush.msra.mxu0 %v301
    %834 = vmatpush.msra.mxu0 %v300
    %835 = vmatpush.msra.mxu0 %v299
    %836 = vmatpush.msra.mxu0 %v298
    %837 = vmatpush.msra.mxu0 %v297
    %838 = vmatpush.msra.mxu0 %v296
    %839 = vmatpush.msra.mxu0 %v295
    %840 = vmatpush.msra.mxu0 %v294
    %841 = vmatmul.f32.gmra.mxu0 %v449
    %v842 = vpop.f32.mrf.mxu0
    %v843 = vadd.f32 %v823, %v842
    %844 = vdwg.mxu0
    %845 = vmatpush.msra.mxu0 %v325
    %846 = vmatpush.msra.mxu0 %v324
    %847 = vmatpush.msra.mxu0 %v323
    %848 = vmatpush.msra.mxu0 %v322
    %849 = vmatpush.msra.mxu0 %v321
    %850 = vmatpush.msra.mxu0 %v320
    %851 = vmatpush.msra.mxu0 %v319
    %852 = vmatpush.msra.mxu0 %v318
    %853 = vmatpush.msra.mxu0 %v317
    %854 = vmatpush.msra.mxu0 %v316
    %855 = vmatpush.msra.mxu0 %v315
    %856 = vmatpush.msra.mxu0 %v314
    %857 = vmatpush.msra.mxu0 %v313
    %858 = vmatpush.msra.mxu0 %v312
    %859 = vmatpush.msra.mxu0 %v311
    %860 = vmatpush.msra.mxu0 %v310
    %861 = vmatmul.f32.gmra.mxu0 %v450
    %v862 = vpop.f32.mrf.mxu0
    %v863 = vadd.f32 %v843, %v862
    %864 = vdwg.mxu0
    %865 = vmatpush.msra.mxu0 %v341
    %866 = vmatpush.msra.mxu0 %v340
    %867 = vmatpush.msra.mxu0 %v339
    %868 = vmatpush.msra.mxu0 %v338
    %869 = vmatpush.msra.mxu0 %v337
    %870 = vmatpush.msra.mxu0 %v336
    %871 = vmatpush.msra.mxu0 %v335
    %872 = vmatpush.msra.mxu0 %v334
    %873 = vmatpush.msra.mxu0 %v333
    %874 = vmatpush.msra.mxu0 %v332
    %875 = vmatpush.msra.mxu0 %v331
    %876 = vmatpush.msra.mxu0 %v330
    %877 = vmatpush.msra.mxu0 %v329
    %878 = vmatpush.msra.mxu0 %v328
    %879 = vmatpush.msra.mxu0 %v327
    %880 = vmatpush.msra.mxu0 %v326
    %881 = vmatmul.f32.gmra.mxu0 %v451
    %v882 = vpop.f32.mrf.mxu0
    %v883 = vadd.f32 %v863, %v882
    %884 = vdwg.mxu0
    %885 = vmatpush.msra.mxu0 %v357
    %886 = vmatpush.msra.mxu0 %v356
    %887 = vmatpush.msra.mxu0 %v355
    %888 = vmatpush.msra.mxu0 %v354
    %889 = vmatpush.msra.mxu0 %v353
    %890 = vmatpush.msra.mxu0 %v352
    %891 = vmatpush.msra.mxu0 %v351
    %892 = vmatpush.msra.mxu0 %v350
    %893 = vmatpush.msra.mxu0 %v349
    %894 = vmatpush.msra.mxu0 %v348
    %895 = vmatpush.msra.mxu0 %v347
    %896 = vmatpush.msra.mxu0 %v346
    %897 = vmatpush.msra.mxu0 %v345
    %898 = vmatpush.msra.mxu0 %v344
    %899 = vmatpush.msra.mxu0 %v343
    %900 = vmatpush.msra.mxu0 %v342
    %901 = vmatmul.f32.gmra.mxu0 %v452
    %v902 = vpop.f32.mrf.mxu0
    %v903 = vadd.f32 %v883, %v902
    %904 = vdwg.mxu0
    %905 = vmatpush.msra.mxu0 %v373
    %906 = vmatpush.msra.mxu0 %v372
    %907 = vmatpush.msra.mxu0 %v371
    %908 = vmatpush.msra.mxu0 %v370
    %909 = vmatpush.msra.mxu0 %v369
    %910 = vmatpush.msra.mxu0 %v368
    %911 = vmatpush.msra.mxu0 %v367
    %912 = vmatpush.msra.mxu0 %v366
    %913 = vmatpush.msra.mxu0 %v365
    %914 = vmatpush.msra.mxu0 %v364
    %915 = vmatpush.msra.mxu0 %v363
    %916 = vmatpush.msra.mxu0 %v362
    %917 = vmatpush.msra.mxu0 %v361
    %918 = vmatpush.msra.mxu0 %v360
    %919 = vmatpush.msra.mxu0 %v359
    %920 = vmatpush.msra.mxu0 %v358
    %921 = vmatmul.f32.gmra.mxu0 %v453
    %v922 = vpop.f32.mrf.mxu0
    %v923 = vadd.f32 %v903, %v922
    %924 = vdwg.mxu0
    %925 = vmatpush.msra.mxu0 %v389
    %926 = vmatpush.msra.mxu0 %v388
    %927 = vmatpush.msra.mxu0 %v387
    %928 = vmatpush.msra.mxu0 %v386
    %929 = vmatpush.msra.mxu0 %v385
    %930 = vmatpush.msra.mxu0 %v384
    %931 = vmatpush.msra.mxu0 %v383
    %932 = vmatpush.msra.mxu0 %v382
    %933 = vmatpush.msra.mxu0 %v381
    %934 = vmatpush.msra.mxu0 %v380
    %935 = vmatpush.msra.mxu0 %v379
    %936 = vmatpush.msra.mxu0 %v378
    %937 = vmatpush.msra.mxu0 %v377
    %938 = vmatpush.msra.mxu0 %v376
    %939 = vmatpush.msra.mxu0 %v375
    %940 = vmatpush.msra.mxu0 %v374
    %941 = vmatmul.f32.gmra.mxu0 %v454
    %v942 = vpop.f32.mrf.mxu0
    %v943 = vadd.f32 %v923, %v942
    %944 = vdwg.mxu0
    %945 = vmatpush.msra.mxu0 %v405
    %946 = vmatpush.msra.mxu0 %v404
    %947 = vmatpush.msra.mxu0 %v403
    %948 = vmatpush.msra.mxu0 %v402
    %949 = vmatpush.msra.mxu0 %v401
    %950 = vmatpush.msra.mxu0 %v400
    %951 = vmatpush.msra.mxu0 %v399
    %952 = vmatpush.msra.mxu0 %v398
    %953 = vmatpush.msra.mxu0 %v397
    %954 = vmatpush.msra.mxu0 %v396
    %955 = vmatpush.msra.mxu0 %v395
    %956 = vmatpush.msra.mxu0 %v394
    %957 = vmatpush.msra.mxu0 %v393
    %958 = vmatpush.msra.mxu0 %v392
    %959 = vmatpush.msra.mxu0 %v391
    %960 = vmatpush.msra.mxu0 %v390
    %961 = vmatmul.f32.gmra.mxu0 %v455
    %v962 = vpop.f32.mrf.mxu0
    %v963 = vadd.f32 %v943, %v962
    %964 = vdwg.mxu0
    %965 = vmatpush.msra.mxu0 0.0
    %966 = vmatpush.msra.mxu0 0.0
    %967 = vmatpush.msra.mxu0 0.0
    %968 = vmatpush.msra.mxu0 0.0
    %969 = vmatpush.msra.mxu0 0.0
    %970 = vmatpush.msra.mxu0 0.0
    %971 = vmatpush.msra.mxu0 0.0
    %972 = vmatpush.msra.mxu0 0.0
    %973 = vmatpush.msra.mxu0 %v413
    %974 = vmatpush.msra.mxu0 %v412
    %975 = vmatpush.msra.mxu0 %v411
    %976 = vmatpush.msra.mxu0 %v410
    %977 = vmatpush.msra.mxu0 %v409
    %978 = vmatpush.msra.mxu0 %v408
    %979 = vmatpush.msra.mxu0 %v407
    %980 = vmatpush.msra.mxu0 %v406
    %981 = vmatmul.f32.gmra.mxu0 %v483
    %v982 = vpop.f32.mrf.mxu0
    %v983 = vadd.f32 %v963, %v982
    %984 = vdwg.mxu0
    %vm985 = vcmask 1041408
    %v986 = vsel %vm985, %v983, -inf
    %987 = vmax.xlane.f32.xlu0 %v986
    %v988 = vpop.xlane.xlu0 %987
    %v989 = vsub.f32 %v983, %v988
    %v990 = vmul.f32 %v989, 1.442695
    %v991 = vpow.pop %v990
    %v992 = vsel %vm985, %v991, 0.0
    %993 = vadd.xlane.f32.xlu0 %v992
    %v994 = vpop.xlane.xlu0 %993
    %v995 = vrcp.pop %v994
    %v996 = vmul.f32 %v991, %v995
    %997 = vst [vmem:[#allocation2] sm:$0x3] %v996
    // Predicated region
    $region14: #{fed_emnist_cnn_pallas.3} parent=1 // pred_check
      _
    $region15: #{fed_emnist_cnn_pallas.3} parent=1 // pred_check_branch
      %999 = sbr.rel (0) target = $region17
    $region16: #{fed_emnist_cnn_pallas.3} parent=1 // pred_region
      %1001 = vsyncadd [#allocation3], 0
      %s1003 = sshll.u32 [#allocation2], 4
      %s1004 = int_to_ptr.vmem [resolvable:$true] %s1003
      %s1005 = sshll.u32 %s3, 4
      %s1006 = int_to_ptr.hbm [resolvable:$true] %s1005
      %1008 = dma.vmem_to_hbm [thread:$0]  %s1004, 32, %s1006, [#allocation3]
    $region17: #{fed_emnist_cnn_pallas.3} parent=1 // pred_fallthru
      _
    // Predicated region
    $region18: #{fed_emnist_cnn_pallas.3} parent=1 // pred_check
      _
    $region19: #{fed_emnist_cnn_pallas.3} parent=1 // pred_check_branch
      %1010 = sbr.rel (0) target = $region21
    $region20: #{fed_emnist_cnn_pallas.3} parent=1 // pred_region
      %1012 = dma.done [#allocation3], 32
    $region21: #{fed_emnist_cnn_pallas.3} parent=1 // pred_fallthru
      _
    %1013 = vsyncpa [#allocation3], 1

// kernel: fed_emnist_cnn_pallas.2
$region0: #{fed_emnist_cnn_pallas.2}
  #allocation0 [shape = 'u32[]', space=smem, size = 0x4, offset = 0x4, fixed_abs, tag = 'smem constant byte address 0x4 - core index']
  #allocation1 [shape = 'u32[72,128]{1,0:T(1,128)}', space=vmem, size = 0x9000, scoped, tag = 'internal scratch']
  #allocation2 [shape = 'f32[784,32]{1,0:T(8,128)}', space=vmem, size = 0x62000, scoped, tag = 'scratch operand']
  #allocation3 [shape = 'f32[324,32]{1,0:T(8,128)}', space=vmem, size = 0x29000, scoped, tag = 'scratch operand']
  #allocation4 [shape = 'f32[248,64]{1,0:T(8,128)}', space=vmem, size = 0x1f000, scoped, tag = 'scratch operand']
  %s0 = inlined_call_operand.vmem [shape: f32[1568,25], index: 0, kind: input, shape index: {}]
  %s1 = inlined_call_operand.vmem [shape: f32[25,32], index: 1, kind: input, shape index: {}]
  %s2 = inlined_call_operand.vmem [shape: f32[1,32], index: 2, kind: input, shape index: {}]
  %s3 = inlined_call_operand.vmem [shape: f32[1,32], index: 3, kind: input, shape index: {}]
  %s4 = inlined_call_operand.vmem [shape: f32[25,32,64], index: 4, kind: input, shape index: {}]
  %s5 = inlined_call_operand.vmem [shape: f32[1,64], index: 5, kind: input, shape index: {}]
  %s6 = inlined_call_operand.vmem [shape: f32[1,64], index: 6, kind: input, shape index: {}]
  %s7 = inlined_call_operand.vmem [shape: f32[2,7,7,64], index: 7, kind: output, shape index: {}]
  %s8 = sld [smem:[#allocation0]]
  $region61: #{fed_emnist_cnn_pallas.2} parent=0
    _
  %s10 = ssub.s32 1, %s8
  %s11 = scalar_select 0, %s10, %s8
  loop: start=0, step=1, limit=4
  $region2: #{fed_emnist_cnn_pallas.2} parent=0 // loop_pre_header
    _
  $region3: #{fed_emnist_cnn_pallas.2} parent=0 // loop_header
    %s13 = sphi 0, %s17
    %p14 = scmp.ge.s32.totalorder %s13, 4
    %s23 = sphi 0, %s25
    %s26 = sphi 0, %s23
    %s27 = sphi 0, %s26
    %s43 = sphi 0, %s27
    %s47 = sphi 0, %s47
    %s49 = sphi 0, %s47
    %s50 = sphi 0, %s49
    %s64 = sphi 0, %s50
    %s68 = sphi 0, %s68
    %s70 = sphi 0, %s68
    %s71 = sphi 0, %s70
    %s85 = sphi 0, %s71
    %s89 = sphi 0, %s89
    %s91 = sphi 0, %s89
    %s92 = sphi 0, %s91
    %s106 = sphi 0, %s92
    %s110 = sphi 0, %s110
    %s112 = sphi 0, %s110
    %s113 = sphi 0, %s112
    %s127 = sphi 0, %s113
    %s131 = sphi 0, %s131
    %s133 = sphi 0, %s131
    %s134 = sphi 0, %s133
    %s148 = sphi 0, %s134
    %s152 = sphi 0, %s152
    %s154 = sphi 0, %s152
    %s155 = sphi 0, %s154
    %s169 = sphi 0, %s155
    %s175 = sphi 0, %s177
    %s178 = sphi 0, %s175
    %s179 = sphi 0, %s178
    %s195 = sphi 0, %s179
  $region4: #{fed_emnist_cnn_pallas.2} parent=0 // loop_header_branch
    %16 = sbr.rel (%p14) target = $region8
  $region5: #{fed_emnist_cnn_pallas.2} parent=0 // loop_body
    %s18 = ssub.s32 %s13, 1
    %s19 = ssub.s32 %s13, 2
    %s20 = sadd.s32 %s13, 1
    %s21 = ssub.s32 %s13, %s20
    %p22 = scmp.eq.s32.totalorder %s21, 0
    %s24 = sadd.s32 %s23, 1
    %s25 = scalar_select %p22, %s23, %s24
    %p28 = pneg %p22
    %p29 = scmp.eq.s32.totalorder %s13, 1
    %p30 = por %p28, %p29
    %p31 = scmp.ne.s32.totalorder %s23, %s26
    %p32 = scmp.eq.s32.totalorder %s13, 0
    %p33 = por %p31, %p32
    %p34 = scmp.ne.s32.totalorder %s23, %s26
    %p35 = scmp.eq.s32.totalorder %s18, 1
    %p36 = por %p34, %p35
    %p37 = scmp.ne.s32.totalorder %s26, %s27
    %p38 = scmp.eq.s32.totalorder %s18, 0
    %p39 = por %p37, %p38
    %p40 = scmp.ne.s32.totalorder %s26, %s27
    %p41 = scmp.eq.s32.totalorder %s19, 1
    %p42 = por %p40, %p41
    %p44 = scmp.ne.s32.totalorder %s27, %s43
    %p45 = scmp.eq.s32.totalorder %s19, 0
    %p46 = por %p44, %p45
    %s48 = sadd.s32 %s47, 1
    %p51 = scmp.eq.s32.totalorder %s13, 1
    %p52 = scmp.ne.s32.totalorder %s47, %s49
    %p53 = scmp.eq.s32.totalorder %s13, 0
    %p54 = por %p52, %p53
    %p55 = scmp.ne.s32.totalorder %s47, %s49
    %p56 = scmp.eq.s32.totalorder %s18, 1
    %p57 = por %p55, %p56
    %p58 = scmp.ne.s32.totalorder %s49, %s50
    %p59 = scmp.eq.s32.totalorder %s18, 0
    %p60 = por %p58, %p59
    %p61 = scmp.ne.s32.totalorder %s49, %s50
    %p62 = scmp.eq.s32.totalorder %s19, 1
    %p63 = por %p61, %p62
    %p65 = scmp.ne.s32.totalorder %s50, %s64
    %p66 = scmp.eq.s32.totalorder %s19, 0
    %p67 = por %p65, %p66
    %s69 = sadd.s32 %s68, 1
    %p72 = scmp.eq.s32.totalorder %s13, 1
    %p73 = scmp.ne.s32.totalorder %s68, %s70
    %p74 = scmp.eq.s32.totalorder %s13, 0
    %p75 = por %p73, %p74
    %p76 = scmp.ne.s32.totalorder %s68, %s70
    %p77 = scmp.eq.s32.totalorder %s18, 1
    %p78 = por %p76, %p77
    %p79 = scmp.ne.s32.totalorder %s70, %s71
    %p80 = scmp.eq.s32.totalorder %s18, 0
    %p81 = por %p79, %p80
    %p82 = scmp.ne.s32.totalorder %s70, %s71
    %p83 = scmp.eq.s32.totalorder %s19, 1
    %p84 = por %p82, %p83
    %p86 = scmp.ne.s32.totalorder %s71, %s85
    %p87 = scmp.eq.s32.totalorder %s19, 0
    %p88 = por %p86, %p87
    %s90 = sadd.s32 %s89, 1
    %p93 = scmp.eq.s32.totalorder %s13, 1
    %p94 = scmp.ne.s32.totalorder %s89, %s91
    %p95 = scmp.eq.s32.totalorder %s13, 0
    %p96 = por %p94, %p95
    %p97 = scmp.ne.s32.totalorder %s89, %s91
    %p98 = scmp.eq.s32.totalorder %s18, 1
    %p99 = por %p97, %p98
    %p100 = scmp.ne.s32.totalorder %s91, %s92
    %p101 = scmp.eq.s32.totalorder %s18, 0
    %p102 = por %p100, %p101
    %p103 = scmp.ne.s32.totalorder %s91, %s92
    %p104 = scmp.eq.s32.totalorder %s19, 1
    %p105 = por %p103, %p104
    %p107 = scmp.ne.s32.totalorder %s92, %s106
    %p108 = scmp.eq.s32.totalorder %s19, 0
    %p109 = por %p107, %p108
    %s111 = sadd.s32 %s110, 1
    %p114 = scmp.eq.s32.totalorder %s13, 1
    %p115 = scmp.ne.s32.totalorder %s110, %s112
    %p116 = scmp.eq.s32.totalorder %s13, 0
    %p117 = por %p115, %p116
    %p118 = scmp.ne.s32.totalorder %s110, %s112
    %p119 = scmp.eq.s32.totalorder %s18, 1
    %p120 = por %p118, %p119
    %p121 = scmp.ne.s32.totalorder %s112, %s113
    %p122 = scmp.eq.s32.totalorder %s18, 0
    %p123 = por %p121, %p122
    %p124 = scmp.ne.s32.totalorder %s112, %s113
    %p125 = scmp.eq.s32.totalorder %s19, 1
    %p126 = por %p124, %p125
    %p128 = scmp.ne.s32.totalorder %s113, %s127
    %p129 = scmp.eq.s32.totalorder %s19, 0
    %p130 = por %p128, %p129
    %s132 = sadd.s32 %s131, 1
    %p135 = scmp.eq.s32.totalorder %s13, 1
    %p136 = scmp.ne.s32.totalorder %s131, %s133
    %p137 = scmp.eq.s32.totalorder %s13, 0
    %p138 = por %p136, %p137
    %p139 = scmp.ne.s32.totalorder %s131, %s133
    %p140 = scmp.eq.s32.totalorder %s18, 1
    %p141 = por %p139, %p140
    %p142 = scmp.ne.s32.totalorder %s133, %s134
    %p143 = scmp.eq.s32.totalorder %s18, 0
    %p144 = por %p142, %p143
    %p145 = scmp.ne.s32.totalorder %s133, %s134
    %p146 = scmp.eq.s32.totalorder %s19, 1
    %p147 = por %p145, %p146
    %p149 = scmp.ne.s32.totalorder %s134, %s148
    %p150 = scmp.eq.s32.totalorder %s19, 0
    %p151 = por %p149, %p150
    %s153 = sadd.s32 %s152, 1
    %p156 = scmp.eq.s32.totalorder %s13, 1
    %p157 = scmp.ne.s32.totalorder %s152, %s154
    %p158 = scmp.eq.s32.totalorder %s13, 0
    %p159 = por %p157, %p158
    %p160 = scmp.ne.s32.totalorder %s152, %s154
    %p161 = scmp.eq.s32.totalorder %s18, 1
    %p162 = por %p160, %p161
    %p163 = scmp.ne.s32.totalorder %s154, %s155
    %p164 = scmp.eq.s32.totalorder %s18, 0
    %p165 = por %p163, %p164
    %p166 = scmp.ne.s32.totalorder %s154, %s155
    %p167 = scmp.eq.s32.totalorder %s19, 1
    %p168 = por %p166, %p167
    %p170 = scmp.ne.s32.totalorder %s155, %s169
    %p171 = scmp.eq.s32.totalorder %s19, 0
    %p172 = por %p170, %p171
    %s173 = ssub.s32 %s13, %s20
    %p174 = scmp.eq.s32.totalorder %s173, 0
    %s176 = sadd.s32 %s175, 1
    %s177 = scalar_select %p174, %s175, %s176
    %p180 = pneg %p174
    %p181 = scmp.eq.s32.totalorder %s13, 1
    %p182 = por %p180, %p181
    %p183 = scmp.ne.s32.totalorder %s175, %s178
    %p184 = scmp.eq.s32.totalorder %s13, 0
    %p185 = por %p183, %p184
    %p186 = scmp.ne.s32.totalorder %s175, %s178
    %p187 = scmp.eq.s32.totalorder %s18, 1
    %p188 = por %p186, %p187
    %p189 = scmp.ne.s32.totalorder %s178, %s179
    %p190 = scmp.eq.s32.totalorder %s18, 0
    %p191 = por %p189, %p190
    %p192 = scmp.ne.s32.totalorder %s178, %s179
    %p193 = scmp.eq.s32.totalorder %s19, 1
    %p194 = por %p192, %p193
    %p196 = scmp.ne.s32.totalorder %s179, %s195
    %p197 = scmp.eq.s32.totalorder %s19, 0
    %p198 = por %p196, %p197
    %p199 = scmp.le.s32.totalorder 1, %s13
    %p200 = scmp.lt.s32.totalorder %s13, 3
    %p201 = pnand %p199, %p200
    %p202 = pneg %p201
    // Predicated region
    $region9: #{fed_emnist_cnn_pallas.2} parent=5 // pred_check
      _
    $region10: #{fed_emnist_cnn_pallas.2} parent=5 // pred_check_branch
      %204 = sbr.rel (%p201) target = $region12
    $region11: #{fed_emnist_cnn_pallas.2} parent=5 // pred_region
      %s205 = ssub.s32 %s13, 1
      // Predicated region
      $region13: #{fed_emnist_cnn_pallas.2} parent=11 // pred_check
        %p206 = pneg %p60
      $region14: #{fed_emnist_cnn_pallas.2} parent=11 // pred_check_branch
        %208 = sbr.rel (%p206) target = $region16
      $region15: #{fed_emnist_cnn_pallas.2} parent=11 // pred_region
        _
      $region16: #{fed_emnist_cnn_pallas.2} parent=11 // pred_fallthru
        _
      // Predicated region
      $region17: #{fed_emnist_cnn_pallas.2} parent=11 // pred_check
        %p209 = pneg %p81
      $region18: #{fed_emnist_cnn_pallas.2} parent=11 // pred_check_branch
        %211 = sbr.rel (%p209) target = $region20
      $region19: #{fed_emnist_cnn_pallas.2} parent=11 // pred_region
        _
      $region20: #{fed_emnist_cnn_pallas.2} parent=11 // pred_fallthru
        _
      // Predicated region
      $region21: #{fed_emnist_cnn_pallas.2} parent=11 // pred_check
        %p212 = pneg %p102
      $region22: #{fed_emnist_cnn_pallas.2} parent=11 // pred_check_branch
        %214 = sbr.rel (%p212) target = $region24
      $region23: #{fed_emnist_cnn_pallas.2} parent=11 // pred_region
        _
      $region24: #{fed_emnist_cnn_pallas.2} parent=11 // pred_fallthru
        _
      // Predicated region
      $region25: #{fed_emnist_cnn_pallas.2} parent=11 // pred_check
        %p215 = pneg %p123
      $region26: #{fed_emnist_cnn_pallas.2} parent=11 // pred_check_branch
        %217 = sbr.rel (%p215) target = $region28
      $region27: #{fed_emnist_cnn_pallas.2} parent=11 // pred_region
        _
      $region28: #{fed_emnist_cnn_pallas.2} parent=11 // pred_fallthru
        _
      // Predicated region
      $region29: #{fed_emnist_cnn_pallas.2} parent=11 // pred_check
        %p218 = pneg %p144
      $region30: #{fed_emnist_cnn_pallas.2} parent=11 // pred_check_branch
        %220 = sbr.rel (%p218) target = $region32
      $region31: #{fed_emnist_cnn_pallas.2} parent=11 // pred_region
        _
      $region32: #{fed_emnist_cnn_pallas.2} parent=11 // pred_fallthru
        _
      // Predicated region
      $region33: #{fed_emnist_cnn_pallas.2} parent=11 // pred_check
        %p221 = pneg %p165
      $region34: #{fed_emnist_cnn_pallas.2} parent=11 // pred_check_branch
        %223 = sbr.rel (%p221) target = $region36
      $region35: #{fed_emnist_cnn_pallas.2} parent=11 // pred_region
        _
      $region36: #{fed_emnist_cnn_pallas.2} parent=11 // pred_fallthru
        _
    $region12: #{fed_emnist_cnn_pallas.2} parent=5 // pred_fallthru
      _
    %p224 = scmp.lt.s32.totalorder %s13, 2
    // Predicated region
    $region37: #{fed_emnist_cnn_pallas.2} parent=5 // pred_check
      %p225 = pneg %p224
    $region38: #{fed_emnist_cnn_pallas.2} parent=5 // pred_check_branch
      %227 = sbr.rel (%p225) target = $region40
    $region39: #{fed_emnist_cnn_pallas.2} parent=5 // pred_region
      // Predicated region
      $region41: #{fed_emnist_cnn_pallas.2} parent=39 // pred_check
        %p228 = pneg %p33
      $region42: #{fed_emnist_cnn_pallas.2} parent=39 // pred_check_branch
        %230 = sbr.rel (%p228) target = $region44
      $region43: #{fed_emnist_cnn_pallas.2} parent=39 // pred_region
        %s231 = smul.u32 98, %s13
        %p232 = scmp.lt.s32.totalorder %s231, 195
        %s233 = scalar_select %p232, %s231, 195
        %s234 = smul.addr %s233, 8
        %s235 = scalar_lea.vmem %s0, %s234
        %s236 = smul.u32 98, %s13
      $region44: #{fed_emnist_cnn_pallas.2} parent=39 // pred_fallthru
        _
    $region40: #{fed_emnist_cnn_pallas.2} parent=5 // pred_fallthru
      _
    %p237 = scmp.le.s32.totalorder 1, %s13
    %p238 = scmp.lt.s32.totalorder %s13, 3
    %p239 = pnand %p237, %p238
    %p240 = pneg %p239
    // Predicated region
    $region45: #{fed_emnist_cnn_pallas.2} parent=5 // pred_check
      _
    $region46: #{fed_emnist_cnn_pallas.2} parent=5 // pred_check_branch
      %242 = sbr.rel (%p239) target = $region48
    $region47: #{fed_emnist_cnn_pallas.2} parent=5 // pred_region
      %s243 = ssub.s32 %s13, 1
      %s244 = smul.u32 98, %s18
      %p245 = scmp.lt.s32.totalorder %s244, 195
      %s246 = scalar_select %p245, %s244, 195
      %s247 = smul.addr %s246, 8
      %s248 = scalar_lea.vmem %s0, %s247
      %p249 = pneg %p39
      %p250 = pneg %p36
      %p251 = pneg %p60
      %p252 = pneg %p57
      %p253 = pneg %p81
      %p254 = pneg %p78
      %p255 = pneg %p102
      %p256 = pneg %p99
      %p257 = pneg %p123
      %p258 = pneg %p120
      %p259 = pneg %p144
      %p260 = pneg %p141
      %p261 = pneg %p165
      %p262 = pneg %p162
      %p263 = pneg %p191
      %p264 = pneg %p188
      %p265 = scmp.lt.s32.totalorder %s18, 1
      %s266 = scalar_select %p265, %s18, 1
      %s267 = smul.addr %s266, 7
      %s268 = smul.addr %s267, 8
      %s269 = scalar_lea.vmem %s7, %s268
      %s270 = smul.u32 98, %s18
      %p271 = scmp.lt.s32.totalorder %s270, 195
      %s272 = scalar_select %p271, %s270, 195
      %s273 = smul.addr %s272, 8
      %s274 = scalar_lea.vmem %s0, %s273
      %s275 = smul.u32 98, %s18
      %p276 = scmp.lt.s32.totalorder %s18, 1
      %s277 = scalar_select %p276, %s18, 1
      %s278 = smul.addr %s277, 7
      %s279 = smul.addr %s278, 8
      %s280 = scalar_lea.vmem %s7, %s279
      %v281 = vld [vmem:[%s274] sm:$0xff]
      %v282 = vld [vmem:[%s274 + $0x8] sm:$0xff]
      %v283 = vld [vmem:[%s274 + $0x10] sm:$0xff]
      %v284 = vld [vmem:[%s274 + $0x18] sm:$0xff]
      %v285 = vld [vmem:[%s274 + $0x20] sm:$0xff]
      %v286 = vld [vmem:[%s274 + $0x28] sm:$0xff]
      %v287 = vld [vmem:[%s274 + $0x30] sm:$0xff]
      %v288 = vld [vmem:[%s274 + $0x38] sm:$0xff]
      %v289 = vld [vmem:[%s274 + $0x40] sm:$0xff]
      %v290 = vld [vmem:[%s274 + $0x48] sm:$0xff]
      %v291 = vld [vmem:[%s274 + $0x50] sm:$0xff]
      %v292 = vld [vmem:[%s274 + $0x58] sm:$0xff]
      %v293 = vld [vmem:[%s274 + $0x60] sm:$0xff]
      %v294 = vld [vmem:[%s274 + $0x68] sm:$0xff]
      %v295 = vld [vmem:[%s274 + $0x70] sm:$0xff]
      %v296 = vld [vmem:[%s274 + $0x78] sm:$0xff]
      %v297 = vld [vmem:[%s274 + $0x80] sm:$0xff]
      %v298 = vld [vmem:[%s274 + $0x88] sm:$0xff]
      %v299 = vld [vmem:[%s274 + $0x90] sm:$0xff]
      %v300 = vld [vmem:[%s274 + $0x98] sm:$0xff]
      %v301 = vld [vmem:[%s274 + $0xa0] sm:$0xff]
      %v302 = vld [vmem:[%s274 + $0xa8] sm:$0xff]
      %v303 = vld [vmem:[%s274 + $0xb0] sm:$0xff]
      %v304 = vld [vmem:[%s274 + $0xb8] sm:$0xff]
      %v305 = vld [vmem:[%s274 + $0xc0] sm:$0xff]
      %v306 = vld [vmem:[%s274 + $0xc8] sm:$0xff]
      %v307 = vld [vmem:[%s274 + $0xd0] sm:$0xff]
      %v308 = vld [vmem:[%s274 + $0xd8] sm:$0xff]
      %v309 = vld [vmem:[%s274 + $0xe0] sm:$0xff]
      %v310 = vld [vmem:[%s274 + $0xe8] sm:$0xff]
      %v311 = vld [vmem:[%s274 + $0xf0] sm:$0xff]
      %v312 = vld [vmem:[%s274 + $0xf8] sm:$0xff]
      %v313 = vld [vmem:[%s274 + $0x100] sm:$0xff]
      %v314 = vld [vmem:[%s274 + $0x108] sm:$0xff]
      %v315 = vld [vmem:[%s274 + $0x110] sm:$0xff]
      %v316 = vld [vmem:[%s274 + $0x118] sm:$0xff]
      %v317 = vld [vmem:[%s274 + $0x120] sm:$0xff]
      %v318 = vld [vmem:[%s274 + $0x128] sm:$0xff]
      %v319 = vld [vmem:[%s274 + $0x130] sm:$0xff]
      %v320 = vld [vmem:[%s274 + $0x138] sm:$0xff]
      %v321 = vld [vmem:[%s274 + $0x140] sm:$0xff]
      %v322 = vld [vmem:[%s274 + $0x148] sm:$0xff]
      %v323 = vld [vmem:[%s274 + $0x150] sm:$0xff]
      %v324 = vld [vmem:[%s274 + $0x158] sm:$0xff]
      %v325 = vld [vmem:[%s274 + $0x160] sm:$0xff]
      %v326 = vld [vmem:[%s274 + $0x168] sm:$0xff]
      %v327 = vld [vmem:[%s274 + $0x170] sm:$0xff]
      %v328 = vld [vmem:[%s274 + $0x178] sm:$0xff]
      %v329 = vld [vmem:[%s274 + $0x180] sm:$0xff]
      %v330 = vld [vmem:[%s274 + $0x188] sm:$0xff]
      %v331 = vld [vmem:[%s274 + $0x190] sm:$0xff]
      %v332 = vld [vmem:[%s274 + $0x198] sm:$0xff]
      %v333 = vld [vmem:[%s274 + $0x1a0] sm:$0xff]
      %v334 = vld [vmem:[%s274 + $0x1a8] sm:$0xff]
      %v335 = vld [vmem:[%s274 + $0x1b0] sm:$0xff]
      %v336 = vld [vmem:[%s274 + $0x1b8] sm:$0xff]
      %v337 = vld [vmem:[%s274 + $0x1c0] sm:$0xff]
      %v338 = vld [vmem:[%s274 + $0x1c8] sm:$0xff]
      %v339 = vld [vmem:[%s274 + $0x1d0] sm:$0xff]
      %v340 = vld [vmem:[%s274 + $0x1d8] sm:$0xff]
      %v341 = vld [vmem:[%s274 + $0x1e0] sm:$0xff]
      %v342 = vld [vmem:[%s274 + $0x1e8] sm:$0xff]
      %v343 = vld [vmem:[%s274 + $0x1f0] sm:$0xff]
      %v344 = vld [vmem:[%s274 + $0x1f8] sm:$0xff]
      %v345 = vld [vmem:[%s274 + $0x200] sm:$0xff]
      %v346 = vld [vmem:[%s274 + $0x208] sm:$0xff]
      %v347 = vld [vmem:[%s274 + $0x210] sm:$0xff]
      %v348 = vld [vmem:[%s274 + $0x218] sm:$0xff]
      %v349 = vld [vmem:[%s274 + $0x220] sm:$0xff]
      %v350 = vld [vmem:[%s274 + $0x228] sm:$0xff]
      %v351 = vld [vmem:[%s274 + $0x230] sm:$0xff]
      %v352 = vld [vmem:[%s274 + $0x238] sm:$0xff]
      %v353 = vld [vmem:[%s274 + $0x240] sm:$0xff]
      %v354 = vld [vmem:[%s274 + $0x248] sm:$0xff]
      %v355 = vld [vmem:[%s274 + $0x250] sm:$0xff]
      %v356 = vld [vmem:[%s274 + $0x258] sm:$0xff]
      %v357 = vld [vmem:[%s274 + $0x260] sm:$0xff]
      %v358 = vld [vmem:[%s274 + $0x268] sm:$0xff]
      %v359 = vld [vmem:[%s274 + $0x270] sm:$0xff]
      %v360 = vld [vmem:[%s274 + $0x278] sm:$0xff]
      %v361 = vld [vmem:[%s274 + $0x280] sm:$0xff]
      %v362 = vld [vmem:[%s274 + $0x288] sm:$0xff]
      %v363 = vld [vmem:[%s274 + $0x290] sm:$0xff]
      %v364 = vld [vmem:[%s274 + $0x298] sm:$0xff]
      %v365 = vld [vmem:[%s274 + $0x2a0] sm:$0xff]
      %v366 = vld [vmem:[%s274 + $0x2a8] sm:$0xff]
      %v367 = vld [vmem:[%s274 + $0x2b0] sm:$0xff]
      %v368 = vld [vmem:[%s274 + $0x2b8] sm:$0xff]
      %v369 = vld [vmem:[%s274 + $0x2c0] sm:$0xff]
      %v370 = vld [vmem:[%s274 + $0x2c8] sm:$0xff]
      %v371 = vld [vmem:[%s274 + $0x2d0] sm:$0xff]
      %v372 = vld [vmem:[%s274 + $0x2d8] sm:$0xff]
      %v373 = vld [vmem:[%s274 + $0x2e0] sm:$0xff]
      %v374 = vld [vmem:[%s274 + $0x2e8] sm:$0xff]
      %v375 = vld [vmem:[%s274 + $0x2f0] sm:$0xff]
      %v376 = vld [vmem:[%s274 + $0x2f8] sm:$0xff]
      %v377 = vld [vmem:[%s274 + $0x300] sm:$0xff]
      %v378 = vld [vmem:[%s274 + $0x308] sm:$0xff]
      %v379 = vld [vmem:[%s1] sm:$0xff]
      %v380 = vld [vmem:[%s1 + $0x8] sm:$0xff]
      %v381 = vld [vmem:[%s1 + $0x10] sm:$0xff]
      %v382 = vld [vmem:[%s1 + $0x18] sm:$0x1]
      %vm383 = vcmask 203776
      %v385 = vsel %vm383, %v281, 0
      %v388 = vsel %vm383, %v282, 0
      %v391 = vsel %vm383, %v283, 0
      %v394 = vsel %vm383, %v284, 0
      %v397 = vsel %vm383, %v285, 0
      %v400 = vsel %vm383, %v286, 0
      %v403 = vsel %vm383, %v287, 0
      %v406 = vsel %vm383, %v288, 0
      %v409 = vsel %vm383, %v289, 0
      %v412 = vsel %vm383, %v290, 0
      %v415 = vsel %vm383, %v291, 0
      %v418 = vsel %vm383, %v292, 0
      %v421 = vsel %vm383, %v293, 0
      %v424 = vsel %vm383, %v294, 0
      %v427 = vsel %vm383, %v295, 0
      %v430 = vsel %vm383, %v296, 0
      %v433 = vsel %vm383, %v297, 0
      %v436 = vsel %vm383, %v298, 0
      %v439 = vsel %vm383, %v299, 0
      %v442 = vsel %vm383, %v300, 0
      %v445 = vsel %vm383, %v301, 0
      %v448 = vsel %vm383, %v302, 0
      %v451 = vsel %vm383, %v303, 0
      %v454 = vsel %vm383, %v304, 0
      %v457 = vsel %vm383, %v305, 0
      %v460 = vsel %vm383, %v306, 0
      %v463 = vsel %vm383, %v307, 0
      %v466 = vsel %vm383, %v308, 0
      %v469 = vsel %vm383, %v309, 0
      %v472 = vsel %vm383, %v310, 0
      %v475 = vsel %vm383, %v311, 0
      %v478 = vsel %vm383, %v312, 0
      %v481 = vsel %vm383, %v313, 0
      %v484 = vsel %vm383, %v314, 0
      %v487 = vsel %vm383, %v315, 0
      %v490 = vsel %vm383, %v316, 0
      %v493 = vsel %vm383, %v317, 0
      %v496 = vsel %vm383, %v318, 0
      %v499 = vsel %vm383, %v319, 0
      %v502 = vsel %vm383, %v320, 0
      %v505 = vsel %vm383, %v321, 0
      %v508 = vsel %vm383, %v322, 0
      %v511 = vsel %vm383, %v323, 0
      %v514 = vsel %vm383, %v324, 0
      %v517 = vsel %vm383, %v325, 0
      %v520 = vsel %vm383, %v326, 0
      %v523 = vsel %vm383, %v327, 0
      %v526 = vsel %vm383, %v328, 0
      %v529 = vsel %vm383, %v329, 0
      %v532 = vsel %vm383, %v330, 0
      %v535 = vsel %vm383, %v331, 0
      %v538 = vsel %vm383, %v332, 0
      %v541 = vsel %vm383, %v333, 0
      %v544 = vsel %vm383, %v334, 0
      %v547 = vsel %vm383, %v335, 0
      %v550 = vsel %vm383, %v336, 0
      %v553 = vsel %vm383, %v337, 0
      %v556 = vsel %vm383, %v338, 0
      %v559 = vsel %vm383, %v339, 0
      %v562 = vsel %vm383, %v340, 0
      %v565 = vsel %vm383, %v341, 0
      %v568 = vsel %vm383, %v342, 0
      %v571 = vsel %vm383, %v343, 0
      %v574 = vsel %vm383, %v344, 0
      %v577 = vsel %vm383, %v345, 0
      %v580 = vsel %vm383, %v346, 0
      %v583 = vsel %vm383, %v347, 0
      %v586 = vsel %vm383, %v348, 0
      %v589 = vsel %vm383, %v349, 0
      %v592 = vsel %vm383, %v350, 0
      %v595 = vsel %vm383, %v351, 0
      %v598 = vsel %vm383, %v352, 0
      %v601 = vsel %vm383, %v353, 0
      %v604 = vsel %vm383, %v354, 0
      %v607 = vsel %vm383, %v355, 0
      %v610 = vsel %vm383, %v356, 0
      %v613 = vsel %vm383, %v357, 0
      %v616 = vsel %vm383, %v358, 0
      %v619 = vsel %vm383, %v359, 0
      %v622 = vsel %vm383, %v360, 0
      %v625 = vsel %vm383, %v361, 0
      %v628 = vsel %vm383, %v362, 0
      %v631 = vsel %vm383, %v363, 0
      %v634 = vsel %vm383, %v364, 0
      %v637 = vsel %vm383, %v365, 0
      %v640 = vsel %vm383, %v366, 0
      %v643 = vsel %vm383, %v367, 0
      %v646 = vsel %vm383, %v368, 0
      %v649 = vsel %vm383, %v369, 0
      %v652 = vsel %vm383, %v370, 0
      %v655 = vsel %vm383, %v371, 0
      %v658 = vsel %vm383, %v372, 0
      %v661 = vsel %vm383, %v373, 0
      %v664 = vsel %vm383, %v374, 0
      %v667 = vsel %vm383, %v375, 0
      %v670 = vsel %vm383, %v376, 0
      %v673 = vsel %vm383, %v377, 0
      %v676 = vsel %vm383, %v378, 0
      %vm678 = vcmask 1040384
      %v680 = vsel %vm678, %v382, 0
      %682 = vmatpush.msra.mxu0 0.0
      %683 = vmatpush.msra.mxu0 0.0
      %684 = vmatpush.msra.mxu0 0.0
      %685 = vmatpush.msra.mxu0 0.0
      %686 = vmatpush.msra.mxu0 0.0
      %687 = vmatpush.msra.mxu0 0.0
      %688 = vmatpush.msra.mxu0 0.0
      %689 = vmatpush.msra.mxu0 0.0
      %690 = vmatpush.msra.mxu0 0.0
      %691 = vmatpush.msra.mxu0 0.0
      %692 = vmatpush.msra.mxu0 0.0
      %693 = vmatpush.msra.mxu0 0.0
      %694 = vmatpush.msra.mxu0 %v680
      %695 = vmatpush.msra.mxu0 %v381
      %696 = vmatpush.msra.mxu0 %v380
      %697 = vmatpush.msra.mxu0 %v379
      %698 = vmatmul.f32.gmra.mxu0 %v385
      %v699 = vpop.f32.mrf.mxu0
      %v700 = vadd.f32 0.0, %v699
      %701 = vmatmul.f32.gmra.mxu0 %v388
      %v702 = vpop.f32.mrf.mxu0
      %v703 = vadd.f32 0.0, %v702
      %704 = vmatmul.f32.gmra.mxu0 %v391
      %v705 = vpop.f32.mrf.mxu0
      %v706 = vadd.f32 0.0, %v705
      %707 = vmatmul.f32.gmra.mxu0 %v394
      %v708 = vpop.f32.mrf.mxu0
      %v709 = vadd.f32 0.0, %v708
      %710 = vmatmul.f32.gmra.mxu0 %v397
      %v711 = vpop.f32.mrf.mxu0
      %v712 = vadd.f32 0.0, %v711
      %713 = vmatmul.f32.gmra.mxu0 %v400
      %v714 = vpop.f32.mrf.mxu0
      %v715 = vadd.f32 0.0, %v714
      %716 = vmatmul.f32.gmra.mxu0 %v403
      %v717 = vpop.f32.mrf.mxu0
      %v718 = vadd.f32 0.0, %v717
      %719 = vmatmul.f32.gmra.mxu0 %v406
      %v720 = vpop.f32.mrf.mxu0
      %v721 = vadd.f32 0.0, %v720
      %722 = vmatmul.f32.gmra.mxu0 %v409
      %v723 = vpop.f32.mrf.mxu0
      %v724 = vadd.f32 0.0, %v723
      %725 = vmatmul.f32.gmra.mxu0 %v412
      %v726 = vpop.f32.mrf.mxu0
      %v727 = vadd.f32 0.0, %v726
      %728 = vmatmul.f32.gmra.mxu0 %v415
      %v729 = vpop.f32.mrf.mxu0
      %v730 = vadd.f32 0.0, %v729
      %731 = vmatmul.f32.gmra.mxu0 %v418
      %v732 = vpop.f32.mrf.mxu0
      %v733 = vadd.f32 0.0, %v732
      %734 = vmatmul.f32.gmra.mxu0 %v421
      %v735 = vpop.f32.mrf.mxu0
      %v736 = vadd.f32 0.0, %v735
      %737 = vmatmul.f32.gmra.mxu0 %v424
      %v738 = vpop.f32.mrf.mxu0
      %v739 = vadd.f32 0.0, %v738
      %740 = vmatmul.f32.gmra.mxu0 %v427
      %v741 = vpop.f32.mrf.mxu0
      %v742 = vadd.f32 0.0, %v741
      %743 = vmatmul.f32.gmra.mxu0 %v430
      %v744 = vpop.f32.mrf.mxu0
      %v745 = vadd.f32 0.0, %v744
      %746 = vmatmul.f32.gmra.mxu0 %v433
      %v747 = vpop.f32.mrf.mxu0
      %v748 = vadd.f32 0.0, %v747
      %749 = vmatmul.f32.gmra.mxu0 %v436
      %v750 = vpop.f32.mrf.mxu0
      %v751 = vadd.f32 0.0, %v750
      %752 = vmatmul.f32.gmra.mxu0 %v439
      %v753 = vpop.f32.mrf.mxu0
      %v754 = vadd.f32 0.0, %v753
      %755 = vmatmul.f32.gmra.mxu0 %v442
      %v756 = vpop.f32.mrf.mxu0
      %v757 = vadd.f32 0.0, %v756
      %758 = vmatmul.f32.gmra.mxu0 %v445
      %v759 = vpop.f32.mrf.mxu0
      %v760 = vadd.f32 0.0, %v759
      %761 = vmatmul.f32.gmra.mxu0 %v448
      %v762 = vpop.f32.mrf.mxu0
      %v763 = vadd.f32 0.0, %v762
      %764 = vmatmul.f32.gmra.mxu0 %v451
      %v765 = vpop.f32.mrf.mxu0
      %v766 = vadd.f32 0.0, %v765
      %767 = vmatmul.f32.gmra.mxu0 %v454
      %v768 = vpop.f32.mrf.mxu0
      %v769 = vadd.f32 0.0, %v768
      %770 = vmatmul.f32.gmra.mxu0 %v457
      %v771 = vpop.f32.mrf.mxu0
      %v772 = vadd.f32 0.0, %v771
      %773 = vmatmul.f32.gmra.mxu0 %v460
      %v774 = vpop.f32.mrf.mxu0
      %v775 = vadd.f32 0.0, %v774
      %776 = vmatmul.f32.gmra.mxu0 %v463
      %v777 = vpop.f32.mrf.mxu0
      %v778 = vadd.f32 0.0, %v777
      %779 = vmatmul.f32.gmra.mxu0 %v466
      %v780 = vpop.f32.mrf.mxu0
      %v781 = vadd.f32 0.0, %v780
      %782 = vmatmul.f32.gmra.mxu0 %v469
      %v783 = vpop.f32.mrf.mxu0
      %v784 = vadd.f32 0.0, %v783
      %785 = vmatmul.f32.gmra.mxu0 %v472
      %v786 = vpop.f32.mrf.mxu0
      %v787 = vadd.f32 0.0, %v786
      %788 = vmatmul.f32.gmra.mxu0 %v475
      %v789 = vpop.f32.mrf.mxu0
      %v790 = vadd.f32 0.0, %v789
      %791 = vmatmul.f32.gmra.mxu0 %v478
      %v792 = vpop.f32.mrf.mxu0
      %v793 = vadd.f32 0.0, %v792
      %794 = vmatmul.f32.gmra.mxu0 %v481
      %v795 = vpop.f32.mrf.mxu0
      %v796 = vadd.f32 0.0, %v795
      %797 = vmatmul.f32.gmra.mxu0 %v484
      %v798 = vpop.f32.mrf.mxu0
      %v799 = vadd.f32 0.0, %v798
      %800 = vmatmul.f32.gmra.mxu0 %v487
      %v801 = vpop.f32.mrf.mxu0
      %v802 = vadd.f32 0.0, %v801
      %803 = vmatmul.f32.gmra.mxu0 %v490
      %v804 = vpop.f32.mrf.mxu0
      %v805 = vadd.f32 0.0, %v804
      %806 = vmatmul.f32.gmra.mxu0 %v493
      %v807 = vpop.f32.mrf.mxu0
      %v808 = vadd.f32 0.0, %v807
      %809 = vmatmul.f32.gmra.mxu0 %v496
      %v810 = vpop.f32.mrf.mxu0
      %v811 = vadd.f32 0.0, %v810
      %812 = vmatmul.f32.gmra.mxu0 %v499
      %v813 = vpop.f32.mrf.mxu0
      %v814 = vadd.f32 0.0, %v813
      %815 = vmatmul.f32.gmra.mxu0 %v502
      %v816 = vpop.f32.mrf.mxu0
      %v817 = vadd.f32 0.0, %v816
      %818 = vmatmul.f32.gmra.mxu0 %v505
      %v819 = vpop.f32.mrf.mxu0
      %v820 = vadd.f32 0.0, %v819
      %821 = vmatmul.f32.gmra.mxu0 %v508
      %v822 = vpop.f32.mrf.mxu0
      %v823 = vadd.f32 0.0, %v822
      %824 = vmatmul.f32.gmra.mxu0 %v511
      %v825 = vpop.f32.mrf.mxu0
      %v826 = vadd.f32 0.0, %v825
      %827 = vmatmul.f32.gmra.mxu0 %v514
      %v828 = vpop.f32.mrf.mxu0
      %v829 = vadd.f32 0.0, %v828
      %830 = vmatmul.f32.gmra.mxu0 %v517
      %v831 = vpop.f32.mrf.mxu0
      %v832 = vadd.f32 0.0, %v831
      %833 = vmatmul.f32.gmra.mxu0 %v520
      %v834 = vpop.f32.mrf.mxu0
      %v835 = vadd.f32 0.0, %v834
      %836 = vmatmul.f32.gmra.mxu0 %v523
      %v837 = vpop.f32.mrf.mxu0
      %v838 = vadd.f32 0.0, %v837
      %839 = vmatmul.f32.gmra.mxu0 %v526
      %v840 = vpop.f32.mrf.mxu0
      %v841 = vadd.f32 0.0, %v840
      %842 = vmatmul.f32.gmra.mxu0 %v529
      %v843 = vpop.f32.mrf.mxu0
      %v844 = vadd.f32 0.0, %v843
      %845 = vmatmul.f32.gmra.mxu0 %v532
      %v846 = vpop.f32.mrf.mxu0
      %v847 = vadd.f32 0.0, %v846
      %848 = vmatmul.f32.gmra.mxu0 %v535
      %v849 = vpop.f32.mrf.mxu0
      %v850 = vadd.f32 0.0, %v849
      %851 = vmatmul.f32.gmra.mxu0 %v538
      %v852 = vpop.f32.mrf.mxu0
      %v853 = vadd.f32 0.0, %v852
      %854 = vmatmul.f32.gmra.mxu0 %v541
      %v855 = vpop.f32.mrf.mxu0
      %v856 = vadd.f32 0.0, %v855
      %857 = vmatmul.f32.gmra.mxu0 %v544
      %v858 = vpop.f32.mrf.mxu0
      %v859 = vadd.f32 0.0, %v858
      %860 = vmatmul.f32.gmra.mxu0 %v547
      %v861 = vpop.f32.mrf.mxu0
      %v862 = vadd.f32 0.0, %v861
      %863 = vmatmul.f32.gmra.mxu0 %v550
      %v864 = vpop.f32.mrf.mxu0
      %v865 = vadd.f32 0.0, %v864
      %866 = vmatmul.f32.gmra.mxu0 %v553
      %v867 = vpop.f32.mrf.mxu0
      %v868 = vadd.f32 0.0, %v867
      %869 = vmatmul.f32.gmra.mxu0 %v556
      %v870 = vpop.f32.mrf.mxu0
      %v871 = vadd.f32 0.0, %v870
      %872 = vmatmul.f32.gmra.mxu0 %v559
      %v873 = vpop.f32.mrf.mxu0
      %v874 = vadd.f32 0.0, %v873
      %875 = vmatmul.f32.gmra.mxu0 %v562
      %v876 = vpop.f32.mrf.mxu0
      %v877 = vadd.f32 0.0, %v876
      %878 = vmatmul.f32.gmra.mxu0 %v565
      %v879 = vpop.f32.mrf.mxu0
      %v880 = vadd.f32 0.0, %v879
      %881 = vmatmul.f32.gmra.mxu0 %v568
      %v882 = vpop.f32.mrf.mxu0
      %v883 = vadd.f32 0.0, %v882
      %884 = vmatmul.f32.gmra.mxu0 %v571
      %v885 = vpop.f32.mrf.mxu0
      %v886 = vadd.f32 0.0, %v885
      %887 = vmatmul.f32.gmra.mxu0 %v574
      %v888 = vpop.f32.mrf.mxu0
      %v889 = vadd.f32 0.0, %v888
      %890 = vmatmul.f32.gmra.mxu0 %v577
      %v891 = vpop.f32.mrf.mxu0
      %v892 = vadd.f32 0.0, %v891
      %893 = vmatmul.f32.gmra.mxu0 %v580
      %v894 = vpop.f32.mrf.mxu0
      %v895 = vadd.f32 0.0, %v894
      %896 = vmatmul.f32.gmra.mxu0 %v583
      %v897 = vpop.f32.mrf.mxu0
      %v898 = vadd.f32 0.0, %v897
      %899 = vmatmul.f32.gmra.mxu0 %v586
      %v900 = vpop.f32.mrf.mxu0
      %v901 = vadd.f32 0.0, %v900
      %902 = vmatmul.f32.gmra.mxu0 %v589
      %v903 = vpop.f32.mrf.mxu0
      %v904 = vadd.f32 0.0, %v903
      %905 = vmatmul.f32.gmra.mxu0 %v592
      %v906 = vpop.f32.mrf.mxu0
      %v907 = vadd.f32 0.0, %v906
      %908 = vmatmul.f32.gmra.mxu0 %v595
      %v909 = vpop.f32.mrf.mxu0
      %v910 = vadd.f32 0.0, %v909
      %911 = vmatmul.f32.gmra.mxu0 %v598
      %v912 = vpop.f32.mrf.mxu0
      %v913 = vadd.f32 0.0, %v912
      %914 = vmatmul.f32.gmra.mxu0 %v601
      %v915 = vpop.f32.mrf.mxu0
      %v916 = vadd.f32 0.0, %v915
      %917 = vmatmul.f32.gmra.mxu0 %v604
      %v918 = vpop.f32.mrf.mxu0
      %v919 = vadd.f32 0.0, %v918
      %920 = vmatmul.f32.gmra.mxu0 %v607
      %v921 = vpop.f32.mrf.mxu0
      %v922 = vadd.f32 0.0, %v921
      %923 = vmatmul.f32.gmra.mxu0 %v610
      %v924 = vpop.f32.mrf.mxu0
      %v925 = vadd.f32 0.0, %v924
      %926 = vmatmul.f32.gmra.mxu0 %v613
      %v927 = vpop.f32.mrf.mxu0
      %v928 = vadd.f32 0.0, %v927
      %929 = vmatmul.f32.gmra.mxu0 %v616
      %v930 = vpop.f32.mrf.mxu0
      %v931 = vadd.f32 0.0, %v930
      %932 = vmatmul.f32.gmra.mxu0 %v619
      %v933 = vpop.f32.mrf.mxu0
      %v934 = vadd.f32 0.0, %v933
      %935 = vmatmul.f32.gmra.mxu0 %v622
      %v936 = vpop.f32.mrf.mxu0
      %v937 = vadd.f32 0.0, %v936
      %938 = vmatmul.f32.gmra.mxu0 %v625
      %v939 = vpop.f32.mrf.mxu0
      %v940 = vadd.f32 0.0, %v939
      %941 = vmatmul.f32.gmra.mxu0 %v628
      %v942 = vpop.f32.mrf.mxu0
      %v943 = vadd.f32 0.0, %v942
      %944 = vmatmul.f32.gmra.mxu0 %v631
      %v945 = vpop.f32.mrf.mxu0
      %v946 = vadd.f32 0.0, %v945
      %947 = vmatmul.f32.gmra.mxu0 %v634
      %v948 = vpop.f32.mrf.mxu0
      %v949 = vadd.f32 0.0, %v948
      %950 = vmatmul.f32.gmra.mxu0 %v637
      %v951 = vpop.f32.mrf.mxu0
      %v952 = vadd.f32 0.0, %v951
      %953 = vmatmul.f32.gmra.mxu0 %v640
      %v954 = vpop.f32.mrf.mxu0
      %v955 = vadd.f32 0.0, %v954
      %956 = vmatmul.f32.gmra.mxu0 %v643
      %v957 = vpop.f32.mrf.mxu0
      %v958 = vadd.f32 0.0, %v957
      %959 = vmatmul.f32.gmra.mxu0 %v646
      %v960 = vpop.f32.mrf.mxu0
      %v961 = vadd.f32 0.0, %v960
      %962 = vmatmul.f32.gmra.mxu0 %v649
      %v963 = vpop.f32.mrf.mxu0
      %v964 = vadd.f32 0.0, %v963
      %965 = vmatmul.f32.gmra.mxu0 %v652
      %v966 = vpop.f32.mrf.mxu0
      %v967 = vadd.f32 0.0, %v966
      %968 = vmatmul.f32.gmra.mxu0 %v655
      %v969 = vpop.f32.mrf.mxu0
      %v970 = vadd.f32 0.0, %v969
      %971 = vmatmul.f32.gmra.mxu0 %v658
      %v972 = vpop.f32.mrf.mxu0
      %v973 = vadd.f32 0.0, %v972
      %974 = vmatmul.f32.gmra.mxu0 %v661
      %v975 = vpop.f32.mrf.mxu0
      %v976 = vadd.f32 0.0, %v975
      %977 = vmatmul.f32.gmra.mxu0 %v664
      %v978 = vpop.f32.mrf.mxu0
      %v979 = vadd.f32 0.0, %v978
      %980 = vmatmul.f32.gmra.mxu0 %v667
      %v981 = vpop.f32.mrf.mxu0
      %v982 = vadd.f32 0.0, %v981
      %983 = vmatmul.f32.gmra.mxu0 %v670
      %v984 = vpop.f32.mrf.mxu0
      %v985 = vadd.f32 0.0, %v984
      %986 = vmatmul.f32.gmra.mxu0 %v673
      %v987 = vpop.f32.mrf.mxu0
      %v988 = vadd.f32 0.0, %v987
      %989 = vmatmul.f32.gmra.mxu0 %v676
      %v990 = vpop.f32.mrf.mxu0
      %v991 = vadd.f32 0.0, %v990
      %992 = vdwg.mxu0
      %v993 = vld [vmem:[%s2] sm:$0x1]
      %v995 = vperm.slane %v993, 0
      %v997 = vmul.f32 %v700, %v995
      %v998 = vmul.f32 %v703, %v995
      %v999 = vmul.f32 %v706, %v995
      %v1000 = vmul.f32 %v709, %v995
      %v1001 = vmul.f32 %v712, %v995
      %v1002 = vmul.f32 %v715, %v995
      %v1003 = vmul.f32 %v718, %v995
      %v1004 = vmul.f32 %v721, %v995
      %v1005 = vmul.f32 %v724, %v995
      %v1006 = vmul.f32 %v727, %v995
      %v1007 = vmul.f32 %v730, %v995
      %v1008 = vmul.f32 %v733, %v995
      %v1009 = vmul.f32 %v736, %v995
      %v1010 = vmul.f32 %v739, %v995
      %v1011 = vmul.f32 %v742, %v995
      %v1012 = vmul.f32 %v745, %v995
      %v1013 = vmul.f32 %v748, %v995
      %v1014 = vmul.f32 %v751, %v995
      %v1015 = vmul.f32 %v754, %v995
      %v1016 = vmul.f32 %v757, %v995
      %v1017 = vmul.f32 %v760, %v995
      %v1018 = vmul.f32 %v763, %v995
      %v1019 = vmul.f32 %v766, %v995
      %v1020 = vmul.f32 %v769, %v995
      %v1021 = vmul.f32 %v772, %v995
      %v1022 = vmul.f32 %v775, %v995
      %v1023 = vmul.f32 %v778, %v995
      %v1024 = vmul.f32 %v781, %v995
      %v1025 = vmul.f32 %v784, %v995
      %v1026 = vmul.f32 %v787, %v995
      %v1027 = vmul.f32 %v790, %v995
      %v1028 = vmul.f32 %v793, %v995
      %v1029 = vmul.f32 %v796, %v995
      %v1030 = vmul.f32 %v799, %v995
      %v1031 = vmul.f32 %v802, %v995
      %v1032 = vmul.f32 %v805, %v995
      %v1033 = vmul.f32 %v808, %v995
      %v1034 = vmul.f32 %v811, %v995
      %v1035 = vmul.f32 %v814, %v995
      %v1036 = vmul.f32 %v817, %v995
      %v1037 = vmul.f32 %v820, %v995
      %v1038 = vmul.f32 %v823, %v995
      %v1039 = vmul.f32 %v826, %v995
      %v1040 = vmul.f32 %v829, %v995
      %v1041 = vmul.f32 %v832, %v995
      %v1042 = vmul.f32 %v835, %v995
      %v1043 = vmul.f32 %v838, %v995
      %v1044 = vmul.f32 %v841, %v995
      %v1045 = vmul.f32 %v844, %v995
      %v1046 = vmul.f32 %v847, %v995
      %v1047 = vmul.f32 %v850, %v995
      %v1048 = vmul.f32 %v853, %v995
      %v1049 = vmul.f32 %v856, %v995
      %v1050 = vmul.f32 %v859, %v995
      %v1051 = vmul.f32 %v862, %v995
      %v1052 = vmul.f32 %v865, %v995
      %v1053 = vmul.f32 %v868, %v995
      %v1054 = vmul.f32 %v871, %v995
      %v1055 = vmul.f32 %v874, %v995
      %v1056 = vmul.f32 %v877, %v995
      %v1057 = vmul.f32 %v880, %v995
      %v1058 = vmul.f32 %v883, %v995
      %v1059 = vmul.f32 %v886, %v995
      %v1060 = vmul.f32 %v889, %v995
      %v1061 = vmul.f32 %v892, %v995
      %v1062 = vmul.f32 %v895, %v995
      %v1063 = vmul.f32 %v898, %v995
      %v1064 = vmul.f32 %v901, %v995
      %v1065 = vmul.f32 %v904, %v995
      %v1066 = vmul.f32 %v907, %v995
      %v1067 = vmul.f32 %v910, %v995
      %v1068 = vmul.f32 %v913, %v995
      %v1069 = vmul.f32 %v916, %v995
      %v1070 = vmul.f32 %v919, %v995
      %v1071 = vmul.f32 %v922, %v995
      %v1072 = vmul.f32 %v925, %v995
      %v1073 = vmul.f32 %v928, %v995
      %v1074 = vmul.f32 %v931, %v995
      %v1075 = vmul.f32 %v934, %v995
      %v1076 = vmul.f32 %v937, %v995
      %v1077 = vmul.f32 %v940, %v995
      %v1078 = vmul.f32 %v943, %v995
      %v1079 = vmul.f32 %v946, %v995
      %v1080 = vmul.f32 %v949, %v995
      %v1081 = vmul.f32 %v952, %v995
      %v1082 = vmul.f32 %v955, %v995
      %v1083 = vmul.f32 %v958, %v995
      %v1084 = vmul.f32 %v961, %v995
      %v1085 = vmul.f32 %v964, %v995
      %v1086 = vmul.f32 %v967, %v995
      %v1087 = vmul.f32 %v970, %v995
      %v1088 = vmul.f32 %v973, %v995
      %v1089 = vmul.f32 %v976, %v995
      %v1090 = vmul.f32 %v979, %v995
      %v1091 = vmul.f32 %v982, %v995
      %v1092 = vmul.f32 %v985, %v995
      %v1093 = vmul.f32 %v988, %v995
      %v1094 = vmul.f32 %v991, %v995
      %v1095 = vld [vmem:[%s3] sm:$0x1]
      %v1097 = vperm.slane %v1095, 0
      %v1099 = vadd.f32 %v997, %v1097
      %v1100 = vadd.f32 %v998, %v1097
      %v1101 = vadd.f32 %v999, %v1097
      %v1102 = vadd.f32 %v1000, %v1097
      %v1103 = vadd.f32 %v1001, %v1097
      %v1104 = vadd.f32 %v1002, %v1097
      %v1105 = vadd.f32 %v1003, %v1097
      %v1106 = vadd.f32 %v1004, %v1097
      %v1107 = vadd.f32 %v1005, %v1097
      %v1108 = vadd.f32 %v1006, %v1097
      %v1109 = vadd.f32 %v1007, %v1097
      %v1110 = vadd.f32 %v1008, %v1097
      %v1111 = vadd.f32 %v1009, %v1097
      %v1112 = vadd.f32 %v1010, %v1097
      %v1113 = vadd.f32 %v1011, %v1097
      %v1114 = vadd.f32 %v1012, %v1097
      %v1115 = vadd.f32 %v1013, %v1097
      %v1116 = vadd.f32 %v1014, %v1097
      %v1117 = vadd.f32 %v1015, %v1097
      %v1118 = vadd.f32 %v1016, %v1097
      %v1119 = vadd.f32 %v1017, %v1097
      %v1120 = vadd.f32 %v1018, %v1097
      %v1121 = vadd.f32 %v1019, %v1097
      %v1122 = vadd.f32 %v1020, %v1097
      %v1123 = vadd.f32 %v1021, %v1097
      %v1124 = vadd.f32 %v1022, %v1097
      %v1125 = vadd.f32 %v1023, %v1097
      %v1126 = vadd.f32 %v1024, %v1097
      %v1127 = vadd.f32 %v1025, %v1097
      %v1128 = vadd.f32 %v1026, %v1097
      %v1129 = vadd.f32 %v1027, %v1097
      %v1130 = vadd.f32 %v1028, %v1097
      %v1131 = vadd.f32 %v1029, %v1097
      %v1132 = vadd.f32 %v1030, %v1097
      %v1133 = vadd.f32 %v1031, %v1097
      %v1134 = vadd.f32 %v1032, %v1097
      %v1135 = vadd.f32 %v1033, %v1097
      %v1136 = vadd.f32 %v1034, %v1097
      %v1137 = vadd.f32 %v1035, %v1097
      %v1138 = vadd.f32 %v1036, %v1097
      %v1139 = vadd.f32 %v1037, %v1097
      %v1140 = vadd.f32 %v1038, %v1097
      %v1141 = vadd.f32 %v1039, %v1097
      %v1142 = vadd.f32 %v1040, %v1097
      %v1143 = vadd.f32 %v1041, %v1097
      %v1144 = vadd.f32 %v1042, %v1097
      %v1145 = vadd.f32 %v1043, %v1097
      %v1146 = vadd.f32 %v1044, %v1097
      %v1147 = vadd.f32 %v1045, %v1097
      %v1148 = vadd.f32 %v1046, %v1097
      %v1149 = vadd.f32 %v1047, %v1097
      %v1150 = vadd.f32 %v1048, %v1097
      %v1151 = vadd.f32 %v1049, %v1097
      %v1152 = vadd.f32 %v1050, %v1097
      %v1153 = vadd.f32 %v1051, %v1097
      %v1154 = vadd.f32 %v1052, %v1097
      %v1155 = vadd.f32 %v1053, %v1097
      %v1156 = vadd.f32 %v1054, %v1097
      %v1157 = vadd.f32 %v1055, %v1097
      %v1158 = vadd.f32 %v1056, %v1097
      %v1159 = vadd.f32 %v1057, %v1097
      %v1160 = vadd.f32 %v1058, %v1097
      %v1161 = vadd.f32 %v1059, %v1097
      %v1162 = vadd.f32 %v1060, %v1097
      %v1163 = vadd.f32 %v1061, %v1097
      %v1164 = vadd.f32 %v1062, %v1097
      %v1165 = vadd.f32 %v1063, %v1097
      %v1166 = vadd.f32 %v1064, %v1097
      %v1167 = vadd.f32 %v1065, %v1097
      %v1168 = vadd.f32 %v1066, %v1097
      %v1169 = vadd.f32 %v1067, %v1097
      %v1170 = vadd.f32 %v1068, %v1097
      %v1171 = vadd.f32 %v1069, %v1097
      %v1172 = vadd.f32 %v1070, %v1097
      %v1173 = vadd.f32 %v1071, %v1097
      %v1174 = vadd.f32 %v1072, %v1097
      %v1175 = vadd.f32 %v1073, %v1097
      %v1176 = vadd.f32 %v1074, %v1097
      %v1177 = vadd.f32 %v1075, %v1097
      %v1178 = vadd.f32 %v1076, %v1097
      %v1179 = vadd.f32 %v1077, %v1097
      %v1180 = vadd.f32 %v1078, %v1097
      %v1181 = vadd.f32 %v1079, %v1097
      %v1182 = vadd.f32 %v1080, %v1097
      %v1183 = vadd.f32 %v1081, %v1097
      %v1184 = vadd.f32 %v1082, %v1097
      %v1185 = vadd.f32 %v1083, %v1097
      %v1186 = vadd.f32 %v1084, %v1097
      %v1187 = vadd.f32 %v1085, %v1097
      %v1188 = vadd.f32 %v1086, %v1097
      %v1189 = vadd.f32 %v1087, %v1097
      %v1190 = vadd.f32 %v1088, %v1097
      %v1191 = vadd.f32 %v1089, %v1097
      %v1192 = vadd.f32 %v1090, %v1097
      %v1193 = vadd.f32 %v1091, %v1097
      %v1194 = vadd.f32 %v1092, %v1097
      %v1195 = vadd.f32 %v1093, %v1097
      %v1196 = vadd.f32 %v1094, %v1097
      %v1197 = vmax.f32 %v1099, 0.0
      %v1198 = vmax.f32 %v1100, 0.0
      %v1199 = vmax.f32 %v1101, 0.0
      %v1200 = vmax.f32 %v1102, 0.0
      %v1201 = vmax.f32 %v1103, 0.0
      %v1202 = vmax.f32 %v1104, 0.0
      %v1203 = vmax.f32 %v1105, 0.0
      %v1204 = vmax.f32 %v1106, 0.0
      %v1205 = vmax.f32 %v1107, 0.0
      %v1206 = vmax.f32 %v1108, 0.0
      %v1207 = vmax.f32 %v1109, 0.0
      %v1208 = vmax.f32 %v1110, 0.0
      %v1209 = vmax.f32 %v1111, 0.0
      %v1210 = vmax.f32 %v1112, 0.0
      %v1211 = vmax.f32 %v1113, 0.0
      %v1212 = vmax.f32 %v1114, 0.0
      %v1213 = vmax.f32 %v1115, 0.0
      %v1214 = vmax.f32 %v1116, 0.0
      %v1215 = vmax.f32 %v1117, 0.0
      %v1216 = vmax.f32 %v1118, 0.0
      %v1217 = vmax.f32 %v1119, 0.0
      %v1218 = vmax.f32 %v1120, 0.0
      %v1219 = vmax.f32 %v1121, 0.0
      %v1220 = vmax.f32 %v1122, 0.0
      %v1221 = vmax.f32 %v1123, 0.0
      %v1222 = vmax.f32 %v1124, 0.0
      %v1223 = vmax.f32 %v1125, 0.0
      %v1224 = vmax.f32 %v1126, 0.0
      %v1225 = vmax.f32 %v1127, 0.0
      %v1226 = vmax.f32 %v1128, 0.0
      %v1227 = vmax.f32 %v1129, 0.0
      %v1228 = vmax.f32 %v1130, 0.0
      %v1229 = vmax.f32 %v1131, 0.0
      %v1230 = vmax.f32 %v1132, 0.0
      %v1231 = vmax.f32 %v1133, 0.0
      %v1232 = vmax.f32 %v1134, 0.0
      %v1233 = vmax.f32 %v1135, 0.0
      %v1234 = vmax.f32 %v1136, 0.0
      %v1235 = vmax.f32 %v1137, 0.0
      %v1236 = vmax.f32 %v1138, 0.0
      %v1237 = vmax.f32 %v1139, 0.0
      %v1238 = vmax.f32 %v1140, 0.0
      %v1239 = vmax.f32 %v1141, 0.0
      %v1240 = vmax.f32 %v1142, 0.0
      %v1241 = vmax.f32 %v1143, 0.0
      %v1242 = vmax.f32 %v1144, 0.0
      %v1243 = vmax.f32 %v1145, 0.0
      %v1244 = vmax.f32 %v1146, 0.0
      %v1245 = vmax.f32 %v1147, 0.0
      %v1246 = vmax.f32 %v1148, 0.0
      %v1247 = vmax.f32 %v1149, 0.0
      %v1248 = vmax.f32 %v1150, 0.0
      %v1249 = vmax.f32 %v1151, 0.0
      %v1250 = vmax.f32 %v1152, 0.0
      %v1251 = vmax.f32 %v1153, 0.0
      %v1252 = vmax.f32 %v1154, 0.0
      %v1253 = vmax.f32 %v1155, 0.0
      %v1254 = vmax.f32 %v1156, 0.0
      %v1255 = vmax.f32 %v1157, 0.0
      %v1256 = vmax.f32 %v1158, 0.0
      %v1257 = vmax.f32 %v1159, 0.0
      %v1258 = vmax.f32 %v1160, 0.0
      %v1259 = vmax.f32 %v1161, 0.0
      %v1260 = vmax.f32 %v1162, 0.0
      %v1261 = vmax.f32 %v1163, 0.0
      %v1262 = vmax.f32 %v1164, 0.0
      %v1263 = vmax.f32 %v1165, 0.0
      %v1264 = vmax.f32 %v1166, 0.0
      %v1265 = vmax.f32 %v1167, 0.0
      %v1266 = vmax.f32 %v1168, 0.0
      %v1267 = vmax.f32 %v1169, 0.0
      %v1268 = vmax.f32 %v1170, 0.0
      %v1269 = vmax.f32 %v1171, 0.0
      %v1270 = vmax.f32 %v1172, 0.0
      %v1271 = vmax.f32 %v1173, 0.0
      %v1272 = vmax.f32 %v1174, 0.0
      %v1273 = vmax.f32 %v1175, 0.0
      %v1274 = vmax.f32 %v1176, 0.0
      %v1275 = vmax.f32 %v1177, 0.0
      %v1276 = vmax.f32 %v1178, 0.0
      %v1277 = vmax.f32 %v1179, 0.0
      %v1278 = vmax.f32 %v1180, 0.0
      %v1279 = vmax.f32 %v1181, 0.0
      %v1280 = vmax.f32 %v1182, 0.0
      %v1281 = vmax.f32 %v1183, 0.0
      %v1282 = vmax.f32 %v1184, 0.0
      %v1283 = vmax.f32 %v1185, 0.0
      %v1284 = vmax.f32 %v1186, 0.0
      %v1285 = vmax.f32 %v1187, 0.0
      %v1286 = vmax.f32 %v1188, 0.0
      %v1287 = vmax.f32 %v1189, 0.0
      %v1288 = vmax.f32 %v1190, 0.0
      %v1289 = vmax.f32 %v1191, 0.0
      %v1290 = vmax.f32 %v1192, 0.0
      %v1291 = vmax.f32 %v1193, 0.0
      %v1292 = vmax.f32 %v1194, 0.0
      %v1293 = vmax.f32 %v1195, 0.0
      %v1294 = vmax.f32 %v1196, 0.0
      %vm1295 = vcmask 261120
      %1296 = vst.msk [vmem:[#allocation2] sm:$0xff] %vm1295, %v1197
      %1297 = vst.msk [vmem:[#allocation2 + $0x8] sm:$0xff] %vm1295, %v1198
      %1298 = vst.msk [vmem:[#allocation2 + $0x10] sm:$0xff] %vm1295, %v1199
      %1299 = vst.msk [vmem:[#allocation2 + $0x18] sm:$0xff] %vm1295, %v1200
      %1300 = vst.msk [vmem:[#allocation2 + $0x20] sm:$0xff] %vm1295, %v1201
      %1301 = vst.msk [vmem:[#allocation2 + $0x28] sm:$0xff] %vm1295, %v1202
      %1302 = vst.msk [vmem:[#allocation2 + $0x30] sm:$0xff] %vm1295, %v1203
      %1303 = vst.msk [vmem:[#allocation2 + $0x38] sm:$0xff] %vm1295, %v1204
      %1304 = vst.msk [vmem:[#allocation2 + $0x40] sm:$0xff] %vm1295, %v1205
      %1305 = vst.msk [vmem:[#allocation2 + $0x48] sm:$0xff] %vm1295, %v1206
      %1306 = vst.msk [vmem:[#allocation2 + $0x50] sm:$0xff] %vm1295, %v1207
      %1307 = vst.msk [vmem:[#allocation2 + $0x58] sm:$0xff] %vm1295, %v1208
      %1308 = vst.msk [vmem:[#allocation2 + $0x60] sm:$0xff] %vm1295, %v1209
      %1309 = vst.msk [vmem:[#allocation2 + $0x68] sm:$0xff] %vm1295, %v1210
      %1310 = vst.msk [vmem:[#allocation2 + $0x70] sm:$0xff] %vm1295, %v1211
      %1311 = vst.msk [vmem:[#allocation2 + $0x78] sm:$0xff] %vm1295, %v1212
      %1312 = vst.msk [vmem:[#allocation2 + $0x80] sm:$0xff] %vm1295, %v1213
      %1313 = vst.msk [vmem:[#allocation2 + $0x88] sm:$0xff] %vm1295, %v1214
      %1314 = vst.msk [vmem:[#allocation2 + $0x90] sm:$0xff] %vm1295, %v1215
      %1315 = vst.msk [vmem:[#allocation2 + $0x98] sm:$0xff] %vm1295, %v1216
      %1316 = vst.msk [vmem:[#allocation2 + $0xa0] sm:$0xff] %vm1295, %v1217
      %1317 = vst.msk [vmem:[#allocation2 + $0xa8] sm:$0xff] %vm1295, %v1218
      %1318 = vst.msk [vmem:[#allocation2 + $0xb0] sm:$0xff] %vm1295, %v1219
      %1319 = vst.msk [vmem:[#allocation2 + $0xb8] sm:$0xff] %vm1295, %v1220
      %1320 = vst.msk [vmem:[#allocation2 + $0xc0] sm:$0xff] %vm1295, %v1221
      %1321 = vst.msk [vmem:[#allocation2 + $0xc8] sm:$0xff] %vm1295, %v1222
      %1322 = vst.msk [vmem:[#allocation2 + $0xd0] sm:$0xff] %vm1295, %v1223
      %1323 = vst.msk [vmem:[#allocation2 + $0xd8] sm:$0xff] %vm1295, %v1224
      %1324 = vst.msk [vmem:[#allocation2 + $0xe0] sm:$0xff] %vm1295, %v1225
      %1325 = vst.msk [vmem:[#allocation2 + $0xe8] sm:$0xff] %vm1295, %v1226
      %1326 = vst.msk [vmem:[#allocation2 + $0xf0] sm:$0xff] %vm1295, %v1227
      %1327 = vst.msk [vmem:[#allocation2 + $0xf8] sm:$0xff] %vm1295, %v1228
      %1328 = vst.msk [vmem:[#allocation2 + $0x100] sm:$0xff] %vm1295, %v1229
      %1329 = vst.msk [vmem:[#allocation2 + $0x108] sm:$0xff] %vm1295, %v1230
      %1330 = vst.msk [vmem:[#allocation2 + $0x110] sm:$0xff] %vm1295, %v1231
      %1331 = vst.msk [vmem:[#allocation2 + $0x118] sm:$0xff] %vm1295, %v1232
      %1332 = vst.msk [vmem:[#allocation2 + $0x120] sm:$0xff] %vm1295, %v1233
      %1333 = vst.msk [vmem:[#allocation2 + $0x128] sm:$0xff] %vm1295, %v1234
      %1334 = vst.msk [vmem:[#allocation2 + $0x130] sm:$0xff] %vm1295, %v1235
      %1335 = vst.msk [vmem:[#allocation2 + $0x138] sm:$0xff] %vm1295, %v1236
      %1336 = vst.msk [vmem:[#allocation2 + $0x140] sm:$0xff] %vm1295, %v1237
      %1337 = vst.msk [vmem:[#allocation2 + $0x148] sm:$0xff] %vm1295, %v1238
      %1338 = vst.msk [vmem:[#allocation2 + $0x150] sm:$0xff] %vm1295, %v1239
      %1339 = vst.msk [vmem:[#allocation2 + $0x158] sm:$0xff] %vm1295, %v1240
      %1340 = vst.msk [vmem:[#allocation2 + $0x160] sm:$0xff] %vm1295, %v1241
      %1341 = vst.msk [vmem:[#allocation2 + $0x168] sm:$0xff] %vm1295, %v1242
      %1342 = vst.msk [vmem:[#allocation2 + $0x170] sm:$0xff] %vm1295, %v1243
      %1343 = vst.msk [vmem:[#allocation2 + $0x178] sm:$0xff] %vm1295, %v1244
      %1344 = vst.msk [vmem:[#allocation2 + $0x180] sm:$0xff] %vm1295, %v1245
      %1345 = vst.msk [vmem:[#allocation2 + $0x188] sm:$0xff] %vm1295, %v1246
      %1346 = vst.msk [vmem:[#allocation2 + $0x190] sm:$0xff] %vm1295, %v1247
      %1347 = vst.msk [vmem:[#allocation2 + $0x198] sm:$0xff] %vm1295, %v1248
      %1348 = vst.msk [vmem:[#allocation2 + $0x1a0] sm:$0xff] %vm1295, %v1249
      %1349 = vst.msk [vmem:[#allocation2 + $0x1a8] sm:$0xff] %vm1295, %v1250
      %1350 = vst.msk [vmem:[#allocation2 + $0x1b0] sm:$0xff] %vm1295, %v1251
      %1351 = vst.msk [vmem:[#allocation2 + $0x1b8] sm:$0xff] %vm1295, %v1252
      %1352 = vst.msk [vmem:[#allocation2 + $0x1c0] sm:$0xff] %vm1295, %v1253
      %1353 = vst.msk [vmem:[#allocation2 + $0x1c8] sm:$0xff] %vm1295, %v1254
      %1354 = vst.msk [vmem:[#allocation2 + $0x1d0] sm:$0xff] %vm1295, %v1255
      %1355 = vst.msk [vmem:[#allocation2 + $0x1d8] sm:$0xff] %vm1295, %v1256
      %1356 = vst.msk [vmem:[#allocation2 + $0x1e0] sm:$0xff] %vm1295, %v1257
      %1357 = vst.msk [vmem:[#allocation2 + $0x1e8] sm:$0xff] %vm1295, %v1258
      %1358 = vst.msk [vmem:[#allocation2 + $0x1f0] sm:$0xff] %vm1295, %v1259
      %1359 = vst.msk [vmem:[#allocation2 + $0x1f8] sm:$0xff] %vm1295, %v1260
      %1360 = vst.msk [vmem:[#allocation2 + $0x200] sm:$0xff] %vm1295, %v1261
      %1361 = vst.msk [vmem:[#allocation2 + $0x208] sm:$0xff] %vm1295, %v1262
      %1362 = vst.msk [vmem:[#allocation2 + $0x210] sm:$0xff] %vm1295, %v1263
      %1363 = vst.msk [vmem:[#allocation2 + $0x218] sm:$0xff] %vm1295, %v1264
      %1364 = vst.msk [vmem:[#allocation2 + $0x220] sm:$0xff] %vm1295, %v1265
      %1365 = vst.msk [vmem:[#allocation2 + $0x228] sm:$0xff] %vm1295, %v1266
      %1366 = vst.msk [vmem:[#allocation2 + $0x230] sm:$0xff] %vm1295, %v1267
      %1367 = vst.msk [vmem:[#allocation2 + $0x238] sm:$0xff] %vm1295, %v1268
      %1368 = vst.msk [vmem:[#allocation2 + $0x240] sm:$0xff] %vm1295, %v1269
      %1369 = vst.msk [vmem:[#allocation2 + $0x248] sm:$0xff] %vm1295, %v1270
      %1370 = vst.msk [vmem:[#allocation2 + $0x250] sm:$0xff] %vm1295, %v1271
      %1371 = vst.msk [vmem:[#allocation2 + $0x258] sm:$0xff] %vm1295, %v1272
      %1372 = vst.msk [vmem:[#allocation2 + $0x260] sm:$0xff] %vm1295, %v1273
      %1373 = vst.msk [vmem:[#allocation2 + $0x268] sm:$0xff] %vm1295, %v1274
      %1374 = vst.msk [vmem:[#allocation2 + $0x270] sm:$0xff] %vm1295, %v1275
      %1375 = vst.msk [vmem:[#allocation2 + $0x278] sm:$0xff] %vm1295, %v1276
      %1376 = vst.msk [vmem:[#allocation2 + $0x280] sm:$0xff] %vm1295, %v1277
      %1377 = vst.msk [vmem:[#allocation2 + $0x288] sm:$0xff] %vm1295, %v1278
      %1378 = vst.msk [vmem:[#allocation2 + $0x290] sm:$0xff] %vm1295, %v1279
      %1379 = vst.msk [vmem:[#allocation2 + $0x298] sm:$0xff] %vm1295, %v1280
      %1380 = vst.msk [vmem:[#allocation2 + $0x2a0] sm:$0xff] %vm1295, %v1281
      %1381 = vst.msk [vmem:[#allocation2 + $0x2a8] sm:$0xff] %vm1295, %v1282
      %1382 = vst.msk [vmem:[#allocation2 + $0x2b0] sm:$0xff] %vm1295, %v1283
      %1383 = vst.msk [vmem:[#allocation2 + $0x2b8] sm:$0xff] %vm1295, %v1284
      %1384 = vst.msk [vmem:[#allocation2 + $0x2c0] sm:$0xff] %vm1295, %v1285
      %1385 = vst.msk [vmem:[#allocation2 + $0x2c8] sm:$0xff] %vm1295, %v1286
      %1386 = vst.msk [vmem:[#allocation2 + $0x2d0] sm:$0xff] %vm1295, %v1287
      %1387 = vst.msk [vmem:[#allocation2 + $0x2d8] sm:$0xff] %vm1295, %v1288
      %1388 = vst.msk [vmem:[#allocation2 + $0x2e0] sm:$0xff] %vm1295, %v1289
      %1389 = vst.msk [vmem:[#allocation2 + $0x2e8] sm:$0xff] %vm1295, %v1290
      %1390 = vst.msk [vmem:[#allocation2 + $0x2f0] sm:$0xff] %vm1295, %v1291
      %1391 = vst.msk [vmem:[#allocation2 + $0x2f8] sm:$0xff] %vm1295, %v1292
      %1392 = vst.msk [vmem:[#allocation2 + $0x300] sm:$0xff] %vm1295, %v1293
      %1393 = vst.msk [vmem:[#allocation2 + $0x308] sm:$0xff] %vm1295, %v1294
      %v1394 = vld [vmem:[#allocation2] sm:$0xff]
      %v1395 = vld [vmem:[#allocation2 + $0x8] sm:$0xff]
      %v1396 = vld [vmem:[#allocation2 + $0x10] sm:$0xff]
      %v1397 = vld [vmem:[#allocation2 + $0x18] sm:$0xff]
      %v1398 = vld [vmem:[#allocation2 + $0x20] sm:$0xff]
      %v1399 = vld [vmem:[#allocation2 + $0x28] sm:$0xff]
      %v1400 = vld [vmem:[#allocation2 + $0x30] sm:$0xff]
      %v1401 = vld [vmem:[#allocation2 + $0x38] sm:$0xff]
      %v1402 = vld [vmem:[#allocation2 + $0x40] sm:$0xff]
      %v1403 = vld [vmem:[#allocation2 + $0x48] sm:$0xff]
      %v1404 = vld [vmem:[#allocation2 + $0x50] sm:$0xff]
      %v1405 = vld [vmem:[#allocation2 + $0x58] sm:$0xff]
      %v1406 = vld [vmem:[#allocation2 + $0x60] sm:$0xff]
      %v1407 = vld [vmem:[#allocation2 + $0x68] sm:$0xff]
      %v1408 = vld [vmem:[#allocation2 + $0x70] sm:$0xff]
      %v1409 = vld [vmem:[#allocation2 + $0x78] sm:$0xff]
      %v1410 = vld [vmem:[#allocation2 + $0x80] sm:$0xff]
      %v1411 = vld [vmem:[#allocation2 + $0x88] sm:$0xff]
      %v1412 = vld [vmem:[#allocation2 + $0x90] sm:$0xff]
      %v1413 = vld [vmem:[#allocation2 + $0x98] sm:$0xff]
      %v1414 = vld [vmem:[#allocation2 + $0xa0] sm:$0xff]
      %v1415 = vld [vmem:[#allocation2 + $0xa8] sm:$0xff]
      %v1416 = vld [vmem:[#allocation2 + $0xb0] sm:$0xff]
      %v1417 = vld [vmem:[#allocation2 + $0xb8] sm:$0xff]
      %v1418 = vld [vmem:[#allocation2 + $0xc0] sm:$0xff]
      %v1419 = vld [vmem:[#allocation2 + $0xc8] sm:$0xff]
      %v1420 = vld [vmem:[#allocation2 + $0xd0] sm:$0xff]
      %v1421 = vld [vmem:[#allocation2 + $0xd8] sm:$0xff]
      %v1422 = vld [vmem:[#allocation2 + $0xe0] sm:$0xff]
      %v1423 = vld [vmem:[#allocation2 + $0xe8] sm:$0xff]
      %v1424 = vld [vmem:[#allocation2 + $0xf0] sm:$0xff]
      %v1425 = vld [vmem:[#allocation2 + $0xf8] sm:$0xff]
      %v1426 = vld [vmem:[#allocation2 + $0x100] sm:$0xff]
      %v1427 = vld [vmem:[#allocation2 + $0x108] sm:$0xff]
      %v1428 = vld [vmem:[#allocation2 + $0x110] sm:$0xff]
      %v1429 = vld [vmem:[#allocation2 + $0x118] sm:$0xff]
      %v1430 = vld [vmem:[#allocation2 + $0x120] sm:$0xff]
      %v1431 = vld [vmem:[#allocation2 + $0x128] sm:$0xff]
      %v1432 = vld [vmem:[#allocation2 + $0x130] sm:$0xff]
      %v1433 = vld [vmem:[#allocation2 + $0x138] sm:$0xff]
      %v1434 = vld [vmem:[#allocation2 + $0x140] sm:$0xff]
      %v1435 = vld [vmem:[#allocation2 + $0x148] sm:$0xff]
      %v1436 = vld [vmem:[#allocation2 + $0x150] sm:$0xff]
      %v1437 = vld [vmem:[#allocation2 + $0x158] sm:$0xff]
      %v1438 = vld [vmem:[#allocation2 + $0x160] sm:$0xff]
      %v1439 = vld [vmem:[#allocation2 + $0x168] sm:$0xff]
      %v1440 = vld [vmem:[#allocation2 + $0x170] sm:$0xff]
      %v1441 = vld [vmem:[#allocation2 + $0x178] sm:$0xff]
      %v1442 = vld [vmem:[#allocation2 + $0x180] sm:$0xff]
      %v1443 = vld [vmem:[#allocation2 + $0x188] sm:$0xff]
      %v1444 = vld [vmem:[#allocation2 + $0x190] sm:$0xff]
      %v1445 = vld [vmem:[#allocation2 + $0x198] sm:$0xff]
      %v1446 = vld [vmem:[#allocation2 + $0x1a0] sm:$0xff]
      %v1447 = vld [vmem:[#allocation2 + $0x1a8] sm:$0xff]
      %v1448 = vld [vmem:[#allocation2 + $0x1b0] sm:$0xff]
      %v1449 = vld [vmem:[#allocation2 + $0x1b8] sm:$0xff]
      %v1450 = vld [vmem:[#allocation2 + $0x1c0] sm:$0xff]
      %v1451 = vld [vmem:[#allocation2 + $0x1c8] sm:$0xff]
      %v1452 = vld [vmem:[#allocation2 + $0x1d0] sm:$0xff]
      %v1453 = vld [vmem:[#allocation2 + $0x1d8] sm:$0xff]
      %v1454 = vld [vmem:[#allocation2 + $0x1e0] sm:$0xff]
      %v1455 = vld [vmem:[#allocation2 + $0x1e8] sm:$0xff]
      %v1456 = vld [vmem:[#allocation2 + $0x1f0] sm:$0xff]
      %v1457 = vld [vmem:[#allocation2 + $0x1f8] sm:$0xff]
      %v1458 = vld [vmem:[#allocation2 + $0x200] sm:$0xff]
      %v1459 = vld [vmem:[#allocation2 + $0x208] sm:$0xff]
      %v1460 = vld [vmem:[#allocation2 + $0x210] sm:$0xff]
      %v1461 = vld [vmem:[#allocation2 + $0x218] sm:$0xff]
      %v1462 = vld [vmem:[#allocation2 + $0x220] sm:$0xff]
      %v1463 = vld [vmem:[#allocation2 + $0x228] sm:$0xff]
      %v1464 = vld [vmem:[#allocation2 + $0x230] sm:$0xff]
      %v1465 = vld [vmem:[#allocation2 + $0x238] sm:$0xff]
      %v1466 = vld [vmem:[#allocation2 + $0x240] sm:$0xff]
      %v1467 = vld [vmem:[#allocation2 + $0x248] sm:$0xff]
      %v1468 = vld [vmem:[#allocation2 + $0x250] sm:$0xff]
      %v1469 = vld [vmem:[#allocation2 + $0x258] sm:$0xff]
      %v1470 = vld [vmem:[#allocation2 + $0x260] sm:$0xff]
      %v1471 = vld [vmem:[#allocation2 + $0x268] sm:$0xff]
      %v1472 = vld [vmem:[#allocation2 + $0x270] sm:$0xff]
      %v1473 = vld [vmem:[#allocation2 + $0x278] sm:$0xff]
      %v1474 = vld [vmem:[#allocation2 + $0x280] sm:$0xff]
      %v1475 = vld [vmem:[#allocation2 + $0x288] sm:$0xff]
      %v1476 = vld [vmem:[#allocation2 + $0x290] sm:$0xff]
      %v1477 = vld [vmem:[#allocation2 + $0x298] sm:$0xff]
      %v1478 = vld [vmem:[#allocation2 + $0x2a0] sm:$0xff]
      %v1479 = vld [vmem:[#allocation2 + $0x2a8] sm:$0xff]
      %v1480 = vld [vmem:[#allocation2 + $0x2b0] sm:$0xff]
      %v1481 = vld [vmem:[#allocation2 + $0x2b8] sm:$0xff]
      %v1482 = vld [vmem:[#allocation2 + $0x2c0] sm:$0xff]
      %v1483 = vld [vmem:[#allocation2 + $0x2c8] sm:$0xff]
      %v1484 = vld [vmem:[#allocation2 + $0x2d0] sm:$0xff]
      %v1485 = vld [vmem:[#allocation2 + $0x2d8] sm:$0xff]
      %v1486 = vld [vmem:[#allocation2 + $0x2e0] sm:$0xff]
      %v1487 = vld [vmem:[#allocation2 + $0x2e8] sm:$0xff]
      %v1488 = vld [vmem:[#allocation2 + $0x2f0] sm:$0xf]
      %v1489 = vld [vmem:[#allocation2 + $0x1c] sm:$0xff]
      %v1490 = vld [vmem:[#allocation2 + $0x24] sm:$0xff]
      %v1491 = vld [vmem:[#allocation2 + $0x2c] sm:$0xff]
      %v1492 = vld [vmem:[#allocation2 + $0x34] sm:$0xff]
      %v1493 = vld [vmem:[#allocation2 + $0x3c] sm:$0xff]
      %v1494 = vld [vmem:[#allocation2 + $0x44] sm:$0xff]
      %v1495 = vld [vmem:[#allocation2 + $0x4c] sm:$0xff]
      %v1496 = vld [vmem:[#allocation2 + $0x54] sm:$0xff]
      %v1497 = vld [vmem:[#allocation2 + $0x5c] sm:$0xff]
      %v1498 = vld [vmem:[#allocation2 + $0x64] sm:$0xff]
      %v1499 = vld [vmem:[#allocation2 + $0x6c] sm:$0xff]
      %v1500 = vld [vmem:[#allocation2 + $0x74] sm:$0xff]
      %v1501 = vld [vmem:[#allocation2 + $0x7c] sm:$0xff]
      %v1502 = vld [vmem:[#allocation2 + $0x84] sm:$0xff]
      %v1503 = vld [vmem:[#allocation2 + $0x8c] sm:$0xff]
      %v1504 = vld [vmem:[#allocation2 + $0x94] sm:$0xff]
      %v1505 = vld [vmem:[#allocation2 + $0x9c] sm:$0xff]
      %v1506 = vld [vmem:[#allocation2 + $0xa4] sm:$0xff]
      %v1507 = vld [vmem:[#allocation2 + $0xac] sm:$0xff]
      %v1508 = vld [vmem:[#allocation2 + $0xb4] sm:$0xff]
      %v1509 = vld [vmem:[#allocation2 + $0xbc] sm:$0xff]
      %v1510 = vld [vmem:[#allocation2 + $0xc4] sm:$0xff]
      %v1511 = vld [vmem:[#allocation2 + $0xcc] sm:$0xff]
      %v1512 = vld [vmem:[#allocation2 + $0xd4] sm:$0xff]
      %v1513 = vld [vmem:[#allocation2 + $0xdc] sm:$0xff]
      %v1514 = vld [vmem:[#allocation2 + $0xe4] sm:$0xff]
      %v1515 = vld [vmem:[#allocation2 + $0xec] sm:$0xff]
      %v1516 = vld [vmem:[#allocation2 + $0xf4] sm:$0xff]
      %v1517 = vld [vmem:[#allocation2 + $0xfc] sm:$0xff]
      %v1518 = vld [vmem:[#allocation2 + $0x104] sm:$0xff]
      %v1519 = vld [vmem:[#allocation2 + $0x10c] sm:$0xff]
      %v1520 = vld [vmem:[#allocation2 + $0x114] sm:$0xff]
      %v1521 = vld [vmem:[#allocation2 + $0x11c] sm:$0xff]
      %v1522 = vld [vmem:[#allocation2 + $0x124] sm:$0xff]
      %v1523 = vld [vmem:[#allocation2 + $0x12c] sm:$0xff]
      %v1524 = vld [vmem:[#allocation2 + $0x134] sm:$0xff]
      %v1525 = vld [vmem:[#allocation2 + $0x13c] sm:$0xff]
      %v1526 = vld [vmem:[#allocation2 + $0x144] sm:$0xff]
      %v1527 = vld [vmem:[#allocation2 + $0x14c] sm:$0xff]
      %v1528 = vld [vmem:[#allocation2 + $0x154] sm:$0xff]
      %v1529 = vld [vmem:[#allocation2 + $0x15c] sm:$0xff]
      %v1530 = vld [vmem:[#allocation2 + $0x164] sm:$0xff]
      %v1531 = vld [vmem:[#allocation2 + $0x16c] sm:$0xff]
      %v1532 = vld [vmem:[#allocation2 + $0x174] sm:$0xff]
      %v1533 = vld [vmem:[#allocation2 + $0x17c] sm:$0xff]
      %v1534 = vld [vmem:[#allocation2 + $0x184] sm:$0xff]
      %v1535 = vld [vmem:[#allocation2 + $0x18c] sm:$0xff]
      %v1536 = vld [vmem:[#allocation2 + $0x194] sm:$0xff]
      %v1537 = vld [vmem:[#allocation2 + $0x19c] sm:$0xff]
      %v1538 = vld [vmem:[#allocation2 + $0x1a4] sm:$0xff]
      %v1539 = vld [vmem:[#allocation2 + $0x1ac] sm:$0xff]
      %v1540 = vld [vmem:[#allocation2 + $0x1b4] sm:$0xff]
      %v1541 = vld [vmem:[#allocation2 + $0x1bc] sm:$0xff]
      %v1542 = vld [vmem:[#allocation2 + $0x1c4] sm:$0xff]
      %v1543 = vld [vmem:[#allocation2 + $0x1cc] sm:$0xff]
      %v1544 = vld [vmem:[#allocation2 + $0x1d4] sm:$0xff]
      %v1545 = vld [vmem:[#allocation2 + $0x1dc] sm:$0xff]
      %v1546 = vld [vmem:[#allocation2 + $0x1e4] sm:$0xff]
      %v1547 = vld [vmem:[#allocation2 + $0x1ec] sm:$0xff]
      %v1548 = vld [vmem:[#allocation2 + $0x1f4] sm:$0xff]
      %v1549 = vld [vmem:[#allocation2 + $0x1fc] sm:$0xff]
      %v1550 = vld [vmem:[#allocation2 + $0x204] sm:$0xff]
      %v1551 = vld [vmem:[#allocation2 + $0x20c] sm:$0xff]
      %v1552 = vld [vmem:[#allocation2 + $0x214] sm:$0xff]
      %v1553 = vld [vmem:[#allocation2 + $0x21c] sm:$0xff]
      %v1554 = vld [vmem:[#allocation2 + $0x224] sm:$0xff]
      %v1555 = vld [vmem:[#allocation2 + $0x22c] sm:$0xff]
      %v1556 = vld [vmem:[#allocation2 + $0x234] sm:$0xff]
      %v1557 = vld [vmem:[#allocation2 + $0x23c] sm:$0xff]
      %v1558 = vld [vmem:[#allocation2 + $0x244] sm:$0xff]
      %v1559 = vld [vmem:[#allocation2 + $0x24c] sm:$0xff]
      %v1560 = vld [vmem:[#allocation2 + $0x254] sm:$0xff]
      %v1561 = vld [vmem:[#allocation2 + $0x25c] sm:$0xff]
      %v1562 = vld [vmem:[#allocation2 + $0x264] sm:$0xff]
      %v1563 = vld [vmem:[#allocation2 + $0x26c] sm:$0xff]
      %v1564 = vld [vmem:[#allocation2 + $0x274] sm:$0xff]
      %v1565 = vld [vmem:[#allocation2 + $0x27c] sm:$0xff]
      %v1566 = vld [vmem:[#allocation2 + $0x284] sm:$0xff]
      %v1567 = vld [vmem:[#allocation2 + $0x28c] sm:$0xff]
      %v1568 = vld [vmem:[#allocation2 + $0x294] sm:$0xff]
      %v1569 = vld [vmem:[#allocation2 + $0x29c] sm:$0xff]
      %v1570 = vld [vmem:[#allocation2 + $0x2a4] sm:$0xff]
      %v1571 = vld [vmem:[#allocation2 + $0x2ac] sm:$0xff]
      %v1572 = vld [vmem:[#allocation2 + $0x2b4] sm:$0xff]
      %v1573 = vld [vmem:[#allocation2 + $0x2bc] sm:$0xff]
      %v1574 = vld [vmem:[#allocation2 + $0x2c4] sm:$0xff]
      %v1575 = vld [vmem:[#allocation2 + $0x2cc] sm:$0xff]
      %v1576 = vld [vmem:[#allocation2 + $0x2d4] sm:$0xff]
      %v1577 = vld [vmem:[#allocation2 + $0x2dc] sm:$0xff]
      %v1578 = vld [vmem:[#allocation2 + $0x2e4] sm:$0xff]
      %v1579 = vld [vmem:[#allocation2 + $0x2ec] sm:$0xff]
      %v1580 = vld [vmem:[#allocation2 + $0x2f4] sm:$0xff]
      %v1581 = vld [vmem:[#allocation2 + $0x2fc] sm:$0xff]
      %v1582 = vld [vmem:[#allocation2 + $0x304] sm:$0xff]
      %v1583 = vld [vmem:[#allocation2 + $0x30c] sm:$0xf]
      %v1584 = vmax.f32 %v1394, %v1489
      %v1585 = vmax.f32 %v1395, %v1490
      %v1586 = vmax.f32 %v1396, %v1491
      %v1587 = vmax.f32 %v1397, %v1492
      %v1588 = vmax.f32 %v1398, %v1493
      %v1589 = vmax.f32 %v1399, %v1494
      %v1590 = vmax.f32 %v1400, %v1495
      %v1591 = vmax.f32 %v1401, %v1496
      %v1592 = vmax.f32 %v1402, %v1497
      %v1593 = vmax.f32 %v1403, %v1498
      %v1594 = vmax.f32 %v1404, %v1499
      %v1595 = vmax.f32 %v1405, %v1500
      %v1596 = vmax.f32 %v1406, %v1501
      %v1597 = vmax.f32 %v1407, %v1502
      %v1598 = vmax.f32 %v1408, %v1503
      %v1599 = vmax.f32 %v1409, %v1504
      %v1600 = vmax.f32 %v1410, %v1505
      %v1601 = vmax.f32 %v1411, %v1506
      %v1602 = vmax.f32 %v1412, %v1507
      %v1603 = vmax.f32 %v1413, %v1508
      %v1604 = vmax.f32 %v1414, %v1509
      %v1605 = vmax.f32 %v1415, %v1510
      %v1606 = vmax.f32 %v1416, %v1511
      %v1607 = vmax.f32 %v1417, %v1512
      %v1608 = vmax.f32 %v1418, %v1513
      %v1609 = vmax.f32 %v1419, %v1514
      %v1610 = vmax.f32 %v1420, %v1515
      %v1611 = vmax.f32 %v1421, %v1516
      %v1612 = vmax.f32 %v1422, %v1517
      %v1613 = vmax.f32 %v1423, %v1518
      %v1614 = vmax.f32 %v1424, %v1519
      %v1615 = vmax.f32 %v1425, %v1520
      %v1616 = vmax.f32 %v1426, %v1521
      %v1617 = vmax.f32 %v1427, %v1522
      %v1618 = vmax.f32 %v1428, %v1523
      %v1619 = vmax.f32 %v1429, %v1524
      %v1620 = vmax.f32 %v1430, %v1525
      %v1621 = vmax.f32 %v1431, %v1526
      %v1622 = vmax.f32 %v1432, %v1527
      %v1623 = vmax.f32 %v1433, %v1528
      %v1624 = vmax.f32 %v1434, %v1529
      %v1625 = vmax.f32 %v1435, %v1530
      %v1626 = vmax.f32 %v1436, %v1531
      %v1627 = vmax.f32 %v1437, %v1532
      %v1628 = vmax.f32 %v1438, %v1533
      %v1629 = vmax.f32 %v1439, %v1534
      %v1630 = vmax.f32 %v1440, %v1535
      %v1631 = vmax.f32 %v1441, %v1536
      %v1632 = vmax.f32 %v1442, %v1537
      %v1633 = vmax.f32 %v1443, %v1538
      %v1634 = vmax.f32 %v1444, %v1539
      %v1635 = vmax.f32 %v1445, %v1540
      %v1636 = vmax.f32 %v1446, %v1541
      %v1637 = vmax.f32 %v1447, %v1542
      %v1638 = vmax.f32 %v1448, %v1543
      %v1639 = vmax.f32 %v1449, %v1544
      %v1640 = vmax.f32 %v1450, %v1545
      %v1641 = vmax.f32 %v1451, %v1546
      %v1642 = vmax.f32 %v1452, %v1547
      %v1643 = vmax.f32 %v1453, %v1548
      %v1644 = vmax.f32 %v1454, %v1549
      %v1645 = vmax.f32 %v1455, %v1550
      %v1646 = vmax.f32 %v1456, %v1551
      %v1647 = vmax.f32 %v1457, %v1552
      %v1648 = vmax.f32 %v1458, %v1553
      %v1649 = vmax.f32 %v1459, %v1554
      %v1650 = vmax.f32 %v1460, %v1555
      %v1651 = vmax.f32 %v1461, %v1556
      %v1652 = vmax.f32 %v1462, %v1557
      %v1653 = vmax.f32 %v1463, %v1558
      %v1654 = vmax.f32 %v1464, %v1559
      %v1655 = vmax.f32 %v1465, %v1560
      %v1656 = vmax.f32 %v1466, %v1561
      %v1657 = vmax.f32 %v1467, %v1562
      %v1658 = vmax.f32 %v1468, %v1563
      %v1659 = vmax.f32 %v1469, %v1564
      %v1660 = vmax.f32 %v1470, %v1565
      %v1661 = vmax.f32 %v1471, %v1566
      %v1662 = vmax.f32 %v1472, %v1567
      %v1663 = vmax.f32 %v1473, %v1568
      %v1664 = vmax.f32 %v1474, %v1569
      %v1665 = vmax.f32 %v1475, %v1570
      %v1666 = vmax.f32 %v1476, %v1571
      %v1667 = vmax.f32 %v1477, %v1572
      %v1668 = vmax.f32 %v1478, %v1573
      %v1669 = vmax.f32 %v1479, %v1574
      %v1670 = vmax.f32 %v1480, %v1575
      %v1671 = vmax.f32 %v1481, %v1576
      %v1672 = vmax.f32 %v1482, %v1577
      %v1673 = vmax.f32 %v1483, %v1578
      %v1674 = vmax.f32 %v1484, %v1579
      %v1675 = vmax.f32 %v1485, %v1580
      %v1676 = vmax.f32 %v1486, %v1581
      %v1677 = vmax.f32 %v1487, %v1582
      %v1678 = vmax.f32 %v1488, %v1583
      %1679 = vst.msk [vmem:[#allocation2] sm:$0xff] %vm1295, %v1584
      %1680 = vst.msk [vmem:[#allocation2 + $0x8] sm:$0xff] %vm1295, %v1585
      %1681 = vst.msk [vmem:[#allocation2 + $0x10] sm:$0xff] %vm1295, %v1586
      %1682 = vst.msk [vmem:[#allocation2 + $0x18] sm:$0xff] %vm1295, %v1587
      %1683 = vst.msk [vmem:[#allocation2 + $0x20] sm:$0xff] %vm1295, %v1588
      %1684 = vst.msk [vmem:[#allocation2 + $0x28] sm:$0xff] %vm1295, %v1589
      %1685 = vst.msk [vmem:[#allocation2 + $0x30] sm:$0xff] %vm1295, %v1590
      %1686 = vst.msk [vmem:[#allocation2 + $0x38] sm:$0xff] %vm1295, %v1591
      %1687 = vst.msk [vmem:[#allocation2 + $0x40] sm:$0xff] %vm1295, %v1592
      %1688 = vst.msk [vmem:[#allocation2 + $0x48] sm:$0xff] %vm1295, %v1593
      %1689 = vst.msk [vmem:[#allocation2 + $0x50] sm:$0xff] %vm1295, %v1594
      %1690 = vst.msk [vmem:[#allocation2 + $0x58] sm:$0xff] %vm1295, %v1595
      %1691 = vst.msk [vmem:[#allocation2 + $0x60] sm:$0xff] %vm1295, %v1596
      %1692 = vst.msk [vmem:[#allocation2 + $0x68] sm:$0xff] %vm1295, %v1597
      %1693 = vst.msk [vmem:[#allocation2 + $0x70] sm:$0xff] %vm1295, %v1598
      %1694 = vst.msk [vmem:[#allocation2 + $0x78] sm:$0xff] %vm1295, %v1599
      %1695 = vst.msk [vmem:[#allocation2 + $0x80] sm:$0xff] %vm1295, %v1600
      %1696 = vst.msk [vmem:[#allocation2 + $0x88] sm:$0xff] %vm1295, %v1601
      %1697 = vst.msk [vmem:[#allocation2 + $0x90] sm:$0xff] %vm1295, %v1602
      %1698 = vst.msk [vmem:[#allocation2 + $0x98] sm:$0xff] %vm1295, %v1603
      %1699 = vst.msk [vmem:[#allocation2 + $0xa0] sm:$0xff] %vm1295, %v1604
      %1700 = vst.msk [vmem:[#allocation2 + $0xa8] sm:$0xff] %vm1295, %v1605
      %1701 = vst.msk [vmem:[#allocation2 + $0xb0] sm:$0xff] %vm1295, %v1606
      %1702 = vst.msk [vmem:[#allocation2 + $0xb8] sm:$0xff] %vm1295, %v1607
      %1703 = vst.msk [vmem:[#allocation2 + $0xc0] sm:$0xff] %vm1295, %v1608
      %1704 = vst.msk [vmem:[#allocation2 + $0xc8] sm:$0xff] %vm1295, %v1609
      %1705 = vst.msk [vmem:[#allocation2 + $0xd0] sm:$0xff] %vm1295, %v1610
      %1706 = vst.msk [vmem:[#allocation2 + $0xd8] sm:$0xff] %vm1295, %v1611
      %1707 = vst.msk [vmem:[#allocation2 + $0xe0] sm:$0xff] %vm1295, %v1612
      %1708 = vst.msk [vmem:[#allocation2 + $0xe8] sm:$0xff] %vm1295, %v1613
      %1709 = vst.msk [vmem:[#allocation2 + $0xf0] sm:$0xff] %vm1295, %v1614
      %1710 = vst.msk [vmem:[#allocation2 + $0xf8] sm:$0xff] %vm1295, %v1615
      %1711 = vst.msk [vmem:[#allocation2 + $0x100] sm:$0xff] %vm1295, %v1616
      %1712 = vst.msk [vmem:[#allocation2 + $0x108] sm:$0xff] %vm1295, %v1617
      %1713 = vst.msk [vmem:[#allocation2 + $0x110] sm:$0xff] %vm1295, %v1618
      %1714 = vst.msk [vmem:[#allocation2 + $0x118] sm:$0xff] %vm1295, %v1619
      %1715 = vst.msk [vmem:[#allocation2 + $0x120] sm:$0xff] %vm1295, %v1620
      %1716 = vst.msk [vmem:[#allocation2 + $0x128] sm:$0xff] %vm1295, %v1621
      %1717 = vst.msk [vmem:[#allocation2 + $0x130] sm:$0xff] %vm1295, %v1622
      %1718 = vst.msk [vmem:[#allocation2 + $0x138] sm:$0xff] %vm1295, %v1623
      %1719 = vst.msk [vmem:[#allocation2 + $0x140] sm:$0xff] %vm1295, %v1624
      %1720 = vst.msk [vmem:[#allocation2 + $0x148] sm:$0xff] %vm1295, %v1625
      %1721 = vst.msk [vmem:[#allocation2 + $0x150] sm:$0xff] %vm1295, %v1626
      %1722 = vst.msk [vmem:[#allocation2 + $0x158] sm:$0xff] %vm1295, %v1627
      %1723 = vst.msk [vmem:[#allocation2 + $0x160] sm:$0xff] %vm1295, %v1628
      %1724 = vst.msk [vmem:[#allocation2 + $0x168] sm:$0xff] %vm1295, %v1629
      %1725 = vst.msk [vmem:[#allocation2 + $0x170] sm:$0xff] %vm1295, %v1630
      %1726 = vst.msk [vmem:[#allocation2 + $0x178] sm:$0xff] %vm1295, %v1631
      %1727 = vst.msk [vmem:[#allocation2 + $0x180] sm:$0xff] %vm1295, %v1632
      %1728 = vst.msk [vmem:[#allocation2 + $0x188] sm:$0xff] %vm1295, %v1633
      %1729 = vst.msk [vmem:[#allocation2 + $0x190] sm:$0xff] %vm1295, %v1634
      %1730 = vst.msk [vmem:[#allocation2 + $0x198] sm:$0xff] %vm1295, %v1635
      %1731 = vst.msk [vmem:[#allocation2 + $0x1a0] sm:$0xff] %vm1295, %v1636
      %1732 = vst.msk [vmem:[#allocation2 + $0x1a8] sm:$0xff] %vm1295, %v1637
      %1733 = vst.msk [vmem:[#allocation2 + $0x1b0] sm:$0xff] %vm1295, %v1638
      %1734 = vst.msk [vmem:[#allocation2 + $0x1b8] sm:$0xff] %vm1295, %v1639
      %1735 = vst.msk [vmem:[#allocation2 + $0x1c0] sm:$0xff] %vm1295, %v1640
      %1736 = vst.msk [vmem:[#allocation2 + $0x1c8] sm:$0xff] %vm1295, %v1641
      %1737 = vst.msk [vmem:[#allocation2 + $0x1d0] sm:$0xff] %vm1295, %v1642
      %1738 = vst.msk [vmem:[#allocation2 + $0x1d8] sm:$0xff] %vm1295, %v1643
      %1739 = vst.msk [vmem:[#allocation2 + $0x1e0] sm:$0xff] %vm1295, %v1644
      %1740 = vst.msk [vmem:[#allocation2 + $0x1e8] sm:$0xff] %vm1295, %v1645
      %1741 = vst.msk [vmem:[#allocation2 + $0x1f0] sm:$0xff] %vm1295, %v1646
      %1742 = vst.msk [vmem:[#allocation2 + $0x1f8] sm:$0xff] %vm1295, %v1647
      %1743 = vst.msk [vmem:[#allocation2 + $0x200] sm:$0xff] %vm1295, %v1648
      %1744 = vst.msk [vmem:[#allocation2 + $0x208] sm:$0xff] %vm1295, %v1649
      %1745 = vst.msk [vmem:[#allocation2 + $0x210] sm:$0xff] %vm1295, %v1650
      %1746 = vst.msk [vmem:[#allocation2 + $0x218] sm:$0xff] %vm1295, %v1651
      %1747 = vst.msk [vmem:[#allocation2 + $0x220] sm:$0xff] %vm1295, %v1652
      %1748 = vst.msk [vmem:[#allocation2 + $0x228] sm:$0xff] %vm1295, %v1653
      %1749 = vst.msk [vmem:[#allocation2 + $0x230] sm:$0xff] %vm1295, %v1654
      %1750 = vst.msk [vmem:[#allocation2 + $0x238] sm:$0xff] %vm1295, %v1655
      %1751 = vst.msk [vmem:[#allocation2 + $0x240] sm:$0xff] %vm1295, %v1656
      %1752 = vst.msk [vmem:[#allocation2 + $0x248] sm:$0xff] %vm1295, %v1657
      %1753 = vst.msk [vmem:[#allocation2 + $0x250] sm:$0xff] %vm1295, %v1658
      %1754 = vst.msk [vmem:[#allocation2 + $0x258] sm:$0xff] %vm1295, %v1659
      %1755 = vst.msk [vmem:[#allocation2 + $0x260] sm:$0xff] %vm1295, %v1660
      %1756 = vst.msk [vmem:[#allocation2 + $0x268] sm:$0xff] %vm1295, %v1661
      %1757 = vst.msk [vmem:[#allocation2 + $0x270] sm:$0xff] %vm1295, %v1662
      %1758 = vst.msk [vmem:[#allocation2 + $0x278] sm:$0xff] %vm1295, %v1663
      %1759 = vst.msk [vmem:[#allocation2 + $0x280] sm:$0xff] %vm1295, %v1664
      %1760 = vst.msk [vmem:[#allocation2 + $0x288] sm:$0xff] %vm1295, %v1665
      %1761 = vst.msk [vmem:[#allocation2 + $0x290] sm:$0xff] %vm1295, %v1666
      %1762 = vst.msk [vmem:[#allocation2 + $0x298] sm:$0xff] %vm1295, %v1667
      %1763 = vst.msk [vmem:[#allocation2 + $0x2a0] sm:$0xff] %vm1295, %v1668
      %1764 = vst.msk [vmem:[#allocation2 + $0x2a8] sm:$0xff] %vm1295, %v1669
      %1765 = vst.msk [vmem:[#allocation2 + $0x2b0] sm:$0xff] %vm1295, %v1670
      %1766 = vst.msk [vmem:[#allocation2 + $0x2b8] sm:$0xff] %vm1295, %v1671
      %1767 = vst.msk [vmem:[#allocation2 + $0x2c0] sm:$0xff] %vm1295, %v1672
      %1768 = vst.msk [vmem:[#allocation2 + $0x2c8] sm:$0xff] %vm1295, %v1673
      %1769 = vst.msk [vmem:[#allocation2 + $0x2d0] sm:$0xff] %vm1295, %v1674
      %1770 = vst.msk [vmem:[#allocation2 + $0x2d8] sm:$0xff] %vm1295, %v1675
      %1771 = vst.msk [vmem:[#allocation2 + $0x2e0] sm:$0xff] %vm1295, %v1676
      %1772 = vst.msk [vmem:[#allocation2 + $0x2e8] sm:$0xff] %vm1295, %v1677
      %vm1773 = vcmask 257024
      %1774 = vst.msk [vmem:[#allocation2 + $0x2f0] sm:$0xf] %vm1773, %v1678
      %v1775 = vld [vmem:[#allocation2] sm:$0xff]
      %v1776 = vld [vmem:[#allocation2 + $0x8] sm:$0xff]
      %v1777 = vld [vmem:[#allocation2 + $0x10] sm:$0xff]
      %v1778 = vld [vmem:[#allocation2 + $0x18] sm:$0xff]
      %v1779 = vld [vmem:[#allocation2 + $0x20] sm:$0xff]
      %v1780 = vld [vmem:[#allocation2 + $0x28] sm:$0xff]
      %v1781 = vld [vmem:[#allocation2 + $0x30] sm:$0xff]
      %v1782 = vld [vmem:[#allocation2 + $0x38] sm:$0xff]
      %v1783 = vld [vmem:[#allocation2 + $0x40] sm:$0xff]
      %v1784 = vld [vmem:[#allocation2 + $0x48] sm:$0xff]
      %v1785 = vld [vmem:[#allocation2 + $0x50] sm:$0xff]
      %v1786 = vld [vmem:[#allocation2 + $0x58] sm:$0xff]
      %v1787 = vld [vmem:[#allocation2 + $0x60] sm:$0xff]
      %v1788 = vld [vmem:[#allocation2 + $0x68] sm:$0xff]
      %v1789 = vld [vmem:[#allocation2 + $0x70] sm:$0xff]
      %v1790 = vld [vmem:[#allocation2 + $0x78] sm:$0xff]
      %v1791 = vld [vmem:[#allocation2 + $0x80] sm:$0xff]
      %v1792 = vld [vmem:[#allocation2 + $0x88] sm:$0xff]
      %v1793 = vld [vmem:[#allocation2 + $0x90] sm:$0xff]
      %v1794 = vld [vmem:[#allocation2 + $0x98] sm:$0xff]
      %v1795 = vld [vmem:[#allocation2 + $0xa0] sm:$0xff]
      %v1796 = vld [vmem:[#allocation2 + $0xa8] sm:$0xff]
      %v1797 = vld [vmem:[#allocation2 + $0xb0] sm:$0xff]
      %v1798 = vld [vmem:[#allocation2 + $0xb8] sm:$0xff]
      %v1799 = vld [vmem:[#allocation2 + $0xc0] sm:$0xff]
      %v1800 = vld [vmem:[#allocation2 + $0xc8] sm:$0xff]
      %v1801 = vld [vmem:[#allocation2 + $0xd0] sm:$0xff]
      %v1802 = vld [vmem:[#allocation2 + $0xd8] sm:$0xff]
      %v1803 = vld [vmem:[#allocation2 + $0xe0] sm:$0xff]
      %v1804 = vld [vmem:[#allocation2 + $0xe8] sm:$0xff]
      %v1805 = vld [vmem:[#allocation2 + $0xf0] sm:$0xff]
      %v1806 = vld [vmem:[#allocation2 + $0xf8] sm:$0xff]
      %v1807 = vld [vmem:[#allocation2 + $0x100] sm:$0xff]
      %v1808 = vld [vmem:[#allocation2 + $0x108] sm:$0xff]
      %v1809 = vld [vmem:[#allocation2 + $0x110] sm:$0xff]
      %v1810 = vld [vmem:[#allocation2 + $0x118] sm:$0xff]
      %v1811 = vld [vmem:[#allocation2 + $0x120] sm:$0xff]
      %v1812 = vld [vmem:[#allocation2 + $0x128] sm:$0xff]
      %v1813 = vld [vmem:[#allocation2 + $0x130] sm:$0xff]
      %v1814 = vld [vmem:[#allocation2 + $0x138] sm:$0xff]
      %v1815 = vld [vmem:[#allocation2 + $0x140] sm:$0xff]
      %v1816 = vld [vmem:[#allocation2 + $0x148] sm:$0xff]
      %v1817 = vld [vmem:[#allocation2 + $0x150] sm:$0xff]
      %v1818 = vld [vmem:[#allocation2 + $0x158] sm:$0xff]
      %v1819 = vld [vmem:[#allocation2 + $0x160] sm:$0xff]
      %v1820 = vld [vmem:[#allocation2 + $0x168] sm:$0xff]
      %v1821 = vld [vmem:[#allocation2 + $0x170] sm:$0xff]
      %v1822 = vld [vmem:[#allocation2 + $0x178] sm:$0xff]
      %v1823 = vld [vmem:[#allocation2 + $0x180] sm:$0xff]
      %v1824 = vld [vmem:[#allocation2 + $0x188] sm:$0xff]
      %v1825 = vld [vmem:[#allocation2 + $0x190] sm:$0xff]
      %v1826 = vld [vmem:[#allocation2 + $0x198] sm:$0xff]
      %v1827 = vld [vmem:[#allocation2 + $0x1a0] sm:$0xff]
      %v1828 = vld [vmem:[#allocation2 + $0x1a8] sm:$0xff]
      %v1829 = vld [vmem:[#allocation2 + $0x1b0] sm:$0xff]
      %v1830 = vld [vmem:[#allocation2 + $0x1b8] sm:$0xff]
      %v1831 = vld [vmem:[#allocation2 + $0x1c0] sm:$0xff]
      %v1832 = vld [vmem:[#allocation2 + $0x1c8] sm:$0xff]
      %v1833 = vld [vmem:[#allocation2 + $0x1d0] sm:$0xff]
      %v1834 = vld [vmem:[#allocation2 + $0x1d8] sm:$0xff]
      %v1835 = vld [vmem:[#allocation2 + $0x1e0] sm:$0xff]
      %v1836 = vld [vmem:[#allocation2 + $0x1e8] sm:$0xff]
      %v1837 = vld [vmem:[#allocation2 + $0x1f0] sm:$0xff]
      %v1838 = vld [vmem:[#allocation2 + $0x1f8] sm:$0xff]
      %v1839 = vld [vmem:[#allocation2 + $0x200] sm:$0xff]
      %v1840 = vld [vmem:[#allocation2 + $0x208] sm:$0xff]
      %v1841 = vld [vmem:[#allocation2 + $0x210] sm:$0xff]
      %v1842 = vld [vmem:[#allocation2 + $0x218] sm:$0xff]
      %v1843 = vld [vmem:[#allocation2 + $0x220] sm:$0xff]
      %v1844 = vld [vmem:[#allocation2 + $0x228] sm:$0xff]
      %v1845 = vld [vmem:[#allocation2 + $0x230] sm:$0xff]
      %v1846 = vld [vmem:[#allocation2 + $0x238] sm:$0xff]
      %v1847 = vld [vmem:[#allocation2 + $0x240] sm:$0xff]
      %v1848 = vld [vmem:[#allocation2 + $0x248] sm:$0xff]
      %v1849 = vld [vmem:[#allocation2 + $0x250] sm:$0xff]
      %v1850 = vld [vmem:[#allocation2 + $0x258] sm:$0xff]
      %v1851 = vld [vmem:[#allocation2 + $0x260] sm:$0xff]
      %v1852 = vld [vmem:[#allocation2 + $0x268] sm:$0xff]
      %v1853 = vld [vmem:[#allocation2 + $0x270] sm:$0xff]
      %v1854 = vld [vmem:[#allocation2 + $0x278] sm:$0xff]
      %v1855 = vld [vmem:[#allocation2 + $0x280] sm:$0xff]
      %v1856 = vld [vmem:[#allocation2 + $0x288] sm:$0xff]
      %v1857 = vld [vmem:[#allocation2 + $0x290] sm:$0xff]
      %v1858 = vld [vmem:[#allocation2 + $0x298] sm:$0xff]
      %v1859 = vld [vmem:[#allocation2 + $0x2a0] sm:$0xff]
      %v1860 = vld [vmem:[#allocation2 + $0x2a8] sm:$0xff]
      %v1861 = vld [vmem:[#allocation2 + $0x2b0] sm:$0xff]
      %v1862 = vld [vmem:[#allocation2 + $0x2b8] sm:$0xff]
      %v1863 = vld [vmem:[#allocation2 + $0x2c0] sm:$0xff]
      %v1864 = vld [vmem:[#allocation2 + $0x2c8] sm:$0xff]
      %v1865 = vld [vmem:[#allocation2 + $0x2d0] sm:$0xff]
      %v1866 = vld [vmem:[#allocation2 + $0x2d8] sm:$0xff]
      %v1867 = vld [vmem:[#allocation2 + $0x2e0] sm:$0xff]
      %v1868 = vld [vmem:[#allocation2 + $0x2e8] sm:$0xff]
      %v1869 = vld [vmem:[#allocation2 + $0x2f0] sm:$0x7]
      %v1870 = vld [vmem:[#allocation2 + $0x1] sm:$0xff]
      %v1871 = vld [vmem:[#allocation2 + $0x9] sm:$0xff]
      %v1872 = vld [vmem:[#allocation2 + $0x11] sm:$0xff]
      %v1873 = vld [vmem:[#allocation2 + $0x19] sm:$0xff]
      %v1874 = vld [vmem:[#allocation2 + $0x21] sm:$0xff]
      %v1875 = vld [vmem:[#allocation2 + $0x29] sm:$0xff]
      %v1876 = vld [vmem:[#allocation2 + $0x31] sm:$0xff]
      %v1877 = vld [vmem:[#allocation2 + $0x39] sm:$0xff]
      %v1878 = vld [vmem:[#allocation2 + $0x41] sm:$0xff]
      %v1879 = vld [vmem:[#allocation2 + $0x49] sm:$0xff]
      %v1880 = vld [vmem:[#allocation2 + $0x51] sm:$0xff]
      %v1881 = vld [vmem:[#allocation2 + $0x59] sm:$0xff]
      %v1882 = vld [vmem:[#allocation2 + $0x61] sm:$0xff]
      %v1883 = vld [vmem:[#allocation2 + $0x69] sm:$0xff]
      %v1884 = vld [vmem:[#allocation2 + $0x71] sm:$0xff]
      %v1885 = vld [vmem:[#allocation2 + $0x79] sm:$0xff]
      %v1886 = vld [vmem:[#allocation2 + $0x81] sm:$0xff]
      %v1887 = vld [vmem:[#allocation2 + $0x89] sm:$0xff]
      %v1888 = vld [vmem:[#allocation2 + $0x91] sm:$0xff]
      %v1889 = vld [vmem:[#allocation2 + $0x99] sm:$0xff]
      %v1890 = vld [vmem:[#allocation2 + $0xa1] sm:$0xff]
      %v1891 = vld [vmem:[#allocation2 + $0xa9] sm:$0xff]
      %v1892 = vld [vmem:[#allocation2 + $0xb1] sm:$0xff]
      %v1893 = vld [vmem:[#allocation2 + $0xb9] sm:$0xff]
      %v1894 = vld [vmem:[#allocation2 + $0xc1] sm:$0xff]
      %v1895 = vld [vmem:[#allocation2 + $0xc9] sm:$0xff]
      %v1896 = vld [vmem:[#allocation2 + $0xd1] sm:$0xff]
      %v1897 = vld [vmem:[#allocation2 + $0xd9] sm:$0xff]
      %v1898 = vld [vmem:[#allocation2 + $0xe1] sm:$0xff]
      %v1899 = vld [vmem:[#allocation2 + $0xe9] sm:$0xff]
      %v1900 = vld [vmem:[#allocation2 + $0xf1] sm:$0xff]
      %v1901 = vld [vmem:[#allocation2 + $0xf9] sm:$0xff]
      %v1902 = vld [vmem:[#allocation2 + $0x101] sm:$0xff]
      %v1903 = vld [vmem:[#allocation2 + $0x109] sm:$0xff]
      %v1904 = vld [vmem:[#allocation2 + $0x111] sm:$0xff]
      %v1905 = vld [vmem:[#allocation2 + $0x119] sm:$0xff]
      %v1906 = vld [vmem:[#allocation2 + $0x121] sm:$0xff]
      %v1907 = vld [vmem:[#allocation2 + $0x129] sm:$0xff]
      %v1908 = vld [vmem:[#allocation2 + $0x131] sm:$0xff]
      %v1909 = vld [vmem:[#allocation2 + $0x139] sm:$0xff]
      %v1910 = vld [vmem:[#allocation2 + $0x141] sm:$0xff]
      %v1911 = vld [vmem:[#allocation2 + $0x149] sm:$0xff]
      %v1912 = vld [vmem:[#allocation2 + $0x151] sm:$0xff]
      %v1913 = vld [vmem:[#allocation2 + $0x159] sm:$0xff]
      %v1914 = vld [vmem:[#allocation2 + $0x161] sm:$0xff]
      %v1915 = vld [vmem:[#allocation2 + $0x169] sm:$0xff]
      %v1916 = vld [vmem:[#allocation2 + $0x171] sm:$0xff]
      %v1917 = vld [vmem:[#allocation2 + $0x179] sm:$0xff]
      %v1918 = vld [vmem:[#allocation2 + $0x181] sm:$0xff]
      %v1919 = vld [vmem:[#allocation2 + $0x189] sm:$0xff]
      %v1920 = vld [vmem:[#allocation2 + $0x191] sm:$0xff]
      %v1921 = vld [vmem:[#allocation2 + $0x199] sm:$0xff]
      %v1922 = vld [vmem:[#allocation2 + $0x1a1] sm:$0xff]
      %v1923 = vld [vmem:[#allocation2 + $0x1a9] sm:$0xff]
      %v1924 = vld [vmem:[#allocation2 + $0x1b1] sm:$0xff]
      %v1925 = vld [vmem:[#allocation2 + $0x1b9] sm:$0xff]
      %v1926 = vld [vmem:[#allocation2 + $0x1c1] sm:$0xff]
      %v1927 = vld [vmem:[#allocation2 + $0x1c9] sm:$0xff]
      %v1928 = vld [vmem:[#allocation2 + $0x1d1] sm:$0xff]
      %v1929 = vld [vmem:[#allocation2 + $0x1d9] sm:$0xff]
      %v1930 = vld [vmem:[#allocation2 + $0x1e1] sm:$0xff]
      %v1931 = vld [vmem:[#allocation2 + $0x1e9] sm:$0xff]
      %v1932 = vld [vmem:[#allocation2 + $0x1f1] sm:$0xff]
      %v1933 = vld [vmem:[#allocation2 + $0x1f9] sm:$0xff]
      %v1934 = vld [vmem:[#allocation2 + $0x201] sm:$0xff]
      %v1935 = vld [vmem:[#allocation2 + $0x209] sm:$0xff]
      %v1936 = vld [vmem:[#allocation2 + $0x211] sm:$0xff]
      %v1937 = vld [vmem:[#allocation2 + $0x219] sm:$0xff]
      %v1938 = vld [vmem:[#allocation2 + $0x221] sm:$0xff]
      %v1939 = vld [vmem:[#allocation2 + $0x229] sm:$0xff]
      %v1940 = vld [vmem:[#allocation2 + $0x231] sm:$0xff]
      %v1941 = vld [vmem:[#allocation2 + $0x239] sm:$0xff]
      %v1942 = vld [vmem:[#allocation2 + $0x241] sm:$0xff]
      %v1943 = vld [vmem:[#allocation2 + $0x249] sm:$0xff]
      %v1944 = vld [vmem:[#allocation2 + $0x251] sm:$0xff]
      %v1945 = vld [vmem:[#allocation2 + $0x259] sm:$0xff]
      %v1946 = vld [vmem:[#allocation2 + $0x261] sm:$0xff]
      %v1947 = vld [vmem:[#allocation2 + $0x269] sm:$0xff]
      %v1948 = vld [vmem:[#allocation2 + $0x271] sm:$0xff]
      %v1949 = vld [vmem:[#allocation2 + $0x279] sm:$0xff]
      %v1950 = vld [vmem:[#allocation2 + $0x281] sm:$0xff]
      %v1951 = vld [vmem:[#allocation2 + $0x289] sm:$0xff]
      %v1952 = vld [vmem:[#allocation2 + $0x291] sm:$0xff]
      %v1953 = vld [vmem:[#allocation2 + $0x299] sm:$0xff]
      %v1954 = vld [vmem:[#allocation2 + $0x2a1] sm:$0xff]
      %v1955 = vld [vmem:[#allocation2 + $0x2a9] sm:$0xff]
      %v1956 = vld [vmem:[#allocation2 + $0x2b1] sm:$0xff]
      %v1957 = vld [vmem:[#allocation2 + $0x2b9] sm:$0xff]
      %v1958 = vld [vmem:[#allocation2 + $0x2c1] sm:$0xff]
      %v1959 = vld [vmem:[#allocation2 + $0x2c9] sm:$0xff]
      %v1960 = vld [vmem:[#allocation2 + $0x2d1] sm:$0xff]
      %v1961 = vld [vmem:[#allocation2 + $0x2d9] sm:$0xff]
      %v1962 = vld [vmem:[#allocation2 + $0x2e1] sm:$0xff]
      %v1963 = vld [vmem:[#allocation2 + $0x2e9] sm:$0xff]
      %v1964 = vld [vmem:[#allocation2 + $0x2f1] sm:$0x7]
      %v1965 = vmax.f32 %v1775, %v1870
      %v1966 = vmax.f32 %v1776, %v1871
      %v1967 = vmax.f32 %v1777, %v1872
      %v1968 = vmax.f32 %v1778, %v1873
      %v1969 = vmax.f32 %v1779, %v1874
      %v1970 = vmax.f32 %v1780, %v1875
      %v1971 = vmax.f32 %v1781, %v1876
      %v1972 = vmax.f32 %v1782, %v1877
      %v1973 = vmax.f32 %v1783, %v1878
      %v1974 = vmax.f32 %v1784, %v1879
      %v1975 = vmax.f32 %v1785, %v1880
      %v1976 = vmax.f32 %v1786, %v1881
      %v1977 = vmax.f32 %v1787, %v1882
      %v1978 = vmax.f32 %v1788, %v1883
      %v1979 = vmax.f32 %v1789, %v1884
      %v1980 = vmax.f32 %v1790, %v1885
      %v1981 = vmax.f32 %v1791, %v1886
      %v1982 = vmax.f32 %v1792, %v1887
      %v1983 = vmax.f32 %v1793, %v1888
      %v1984 = vmax.f32 %v1794, %v1889
      %v1985 = vmax.f32 %v1795, %v1890
      %v1986 = vmax.f32 %v1796, %v1891
      %v1987 = vmax.f32 %v1797, %v1892
      %v1988 = vmax.f32 %v1798, %v1893
      %v1989 = vmax.f32 %v1799, %v1894
      %v1990 = vmax.f32 %v1800, %v1895
      %v1991 = vmax.f32 %v1801, %v1896
      %v1992 = vmax.f32 %v1802, %v1897
      %v1993 = vmax.f32 %v1803, %v1898
      %v1994 = vmax.f32 %v1804, %v1899
      %v1995 = vmax.f32 %v1805, %v1900
      %v1996 = vmax.f32 %v1806, %v1901
      %v1997 = vmax.f32 %v1807, %v1902
      %v1998 = vmax.f32 %v1808, %v1903
      %v1999 = vmax.f32 %v1809, %v1904
      %v2000 = vmax.f32 %v1810, %v1905
      %v2001 = vmax.f32 %v1811, %v1906
      %v2002 = vmax.f32 %v1812, %v1907
      %v2003 = vmax.f32 %v1813, %v1908
      %v2004 = vmax.f32 %v1814, %v1909
      %v2005 = vmax.f32 %v1815, %v1910
      %v2006 = vmax.f32 %v1816, %v1911
      %v2007 = vmax.f32 %v1817, %v1912
      %v2008 = vmax.f32 %v1818, %v1913
      %v2009 = vmax.f32 %v1819, %v1914
      %v2010 = vmax.f32 %v1820, %v1915
      %v2011 = vmax.f32 %v1821, %v1916
      %v2012 = vmax.f32 %v1822, %v1917
      %v2013 = vmax.f32 %v1823, %v1918
      %v2014 = vmax.f32 %v1824, %v1919
      %v2015 = vmax.f32 %v1825, %v1920
      %v2016 = vmax.f32 %v1826, %v1921
      %v2017 = vmax.f32 %v1827, %v1922
      %v2018 = vmax.f32 %v1828, %v1923
      %v2019 = vmax.f32 %v1829, %v1924
      %v2020 = vmax.f32 %v1830, %v1925
      %v2021 = vmax.f32 %v1831, %v1926
      %v2022 = vmax.f32 %v1832, %v1927
      %v2023 = vmax.f32 %v1833, %v1928
      %v2024 = vmax.f32 %v1834, %v1929
      %v2025 = vmax.f32 %v1835, %v1930
      %v2026 = vmax.f32 %v1836, %v1931
      %v2027 = vmax.f32 %v1837, %v1932
      %v2028 = vmax.f32 %v1838, %v1933
      %v2029 = vmax.f32 %v1839, %v1934
      %v2030 = vmax.f32 %v1840, %v1935
      %v2031 = vmax.f32 %v1841, %v1936
      %v2032 = vmax.f32 %v1842, %v1937
      %v2033 = vmax.f32 %v1843, %v1938
      %v2034 = vmax.f32 %v1844, %v1939
      %v2035 = vmax.f32 %v1845, %v1940
      %v2036 = vmax.f32 %v1846, %v1941
      %v2037 = vmax.f32 %v1847, %v1942
      %v2038 = vmax.f32 %v1848, %v1943
      %v2039 = vmax.f32 %v1849, %v1944
      %v2040 = vmax.f32 %v1850, %v1945
      %v2041 = vmax.f32 %v1851, %v1946
      %v2042 = vmax.f32 %v1852, %v1947
      %v2043 = vmax.f32 %v1853, %v1948
      %v2044 = vmax.f32 %v1854, %v1949
      %v2045 = vmax.f32 %v1855, %v1950
      %v2046 = vmax.f32 %v1856, %v1951
      %v2047 = vmax.f32 %v1857, %v1952
      %v2048 = vmax.f32 %v1858, %v1953
      %v2049 = vmax.f32 %v1859, %v1954
      %v2050 = vmax.f32 %v1860, %v1955
      %v2051 = vmax.f32 %v1861, %v1956
      %v2052 = vmax.f32 %v1862, %v1957
      %v2053 = vmax.f32 %v1863, %v1958
      %v2054 = vmax.f32 %v1864, %v1959
      %v2055 = vmax.f32 %v1865, %v1960
      %v2056 = vmax.f32 %v1866, %v1961
      %v2057 = vmax.f32 %v1867, %v1962
      %v2058 = vmax.f32 %v1868, %v1963
      %v2059 = vmax.f32 %v1869, %v1964
      %2060 = vst.msk [vmem:[#allocation2] sm:$0xff] %vm1295, %v1965
      %2061 = vst.msk [vmem:[#allocation2 + $0x8] sm:$0xff] %vm1295, %v1966
      %2062 = vst.msk [vmem:[#allocation2 + $0x10] sm:$0xff] %vm1295, %v1967
      %2063 = vst.msk [vmem:[#allocation2 + $0x18] sm:$0xff] %vm1295, %v1968
      %2064 = vst.msk [vmem:[#allocation2 + $0x20] sm:$0xff] %vm1295, %v1969
      %2065 = vst.msk [vmem:[#allocation2 + $0x28] sm:$0xff] %vm1295, %v1970
      %2066 = vst.msk [vmem:[#allocation2 + $0x30] sm:$0xff] %vm1295, %v1971
      %2067 = vst.msk [vmem:[#allocation2 + $0x38] sm:$0xff] %vm1295, %v1972
      %2068 = vst.msk [vmem:[#allocation2 + $0x40] sm:$0xff] %vm1295, %v1973
      %2069 = vst.msk [vmem:[#allocation2 + $0x48] sm:$0xff] %vm1295, %v1974
      %2070 = vst.msk [vmem:[#allocation2 + $0x50] sm:$0xff] %vm1295, %v1975
      %2071 = vst.msk [vmem:[#allocation2 + $0x58] sm:$0xff] %vm1295, %v1976
      %2072 = vst.msk [vmem:[#allocation2 + $0x60] sm:$0xff] %vm1295, %v1977
      %2073 = vst.msk [vmem:[#allocation2 + $0x68] sm:$0xff] %vm1295, %v1978
      %2074 = vst.msk [vmem:[#allocation2 + $0x70] sm:$0xff] %vm1295, %v1979
      %2075 = vst.msk [vmem:[#allocation2 + $0x78] sm:$0xff] %vm1295, %v1980
      %2076 = vst.msk [vmem:[#allocation2 + $0x80] sm:$0xff] %vm1295, %v1981
      %2077 = vst.msk [vmem:[#allocation2 + $0x88] sm:$0xff] %vm1295, %v1982
      %2078 = vst.msk [vmem:[#allocation2 + $0x90] sm:$0xff] %vm1295, %v1983
      %2079 = vst.msk [vmem:[#allocation2 + $0x98] sm:$0xff] %vm1295, %v1984
      %2080 = vst.msk [vmem:[#allocation2 + $0xa0] sm:$0xff] %vm1295, %v1985
      %2081 = vst.msk [vmem:[#allocation2 + $0xa8] sm:$0xff] %vm1295, %v1986
      %2082 = vst.msk [vmem:[#allocation2 + $0xb0] sm:$0xff] %vm1295, %v1987
      %2083 = vst.msk [vmem:[#allocation2 + $0xb8] sm:$0xff] %vm1295, %v1988
      %2084 = vst.msk [vmem:[#allocation2 + $0xc0] sm:$0xff] %vm1295, %v1989
      %2085 = vst.msk [vmem:[#allocation2 + $0xc8] sm:$0xff] %vm1295, %v1990
      %2086 = vst.msk [vmem:[#allocation2 + $0xd0] sm:$0xff] %vm1295, %v1991
      %2087 = vst.msk [vmem:[#allocation2 + $0xd8] sm:$0xff] %vm1295, %v1992
      %2088 = vst.msk [vmem:[#allocation2 + $0xe0] sm:$0xff] %vm1295, %v1993
      %2089 = vst.msk [vmem:[#allocation2 + $0xe8] sm:$0xff] %vm1295, %v1994
      %2090 = vst.msk [vmem:[#allocation2 + $0xf0] sm:$0xff] %vm1295, %v1995
      %2091 = vst.msk [vmem:[#allocation2 + $0xf8] sm:$0xff] %vm1295, %v1996
      %2092 = vst.msk [vmem:[#allocation2 + $0x100] sm:$0xff] %vm1295, %v1997
      %2093 = vst.msk [vmem:[#allocation2 + $0x108] sm:$0xff] %vm1295, %v1998
      %2094 = vst.msk [vmem:[#allocation2 + $0x110] sm:$0xff] %vm1295, %v1999
      %2095 = vst.msk [vmem:[#allocation2 + $0x118] sm:$0xff] %vm1295, %v2000
      %2096 = vst.msk [vmem:[#allocation2 + $0x120] sm:$0xff] %vm1295, %v2001
      %2097 = vst.msk [vmem:[#allocation2 + $0x128] sm:$0xff] %vm1295, %v2002
      %2098 = vst.msk [vmem:[#allocation2 + $0x130] sm:$0xff] %vm1295, %v2003
      %2099 = vst.msk [vmem:[#allocation2 + $0x138] sm:$0xff] %vm1295, %v2004
      %2100 = vst.msk [vmem:[#allocation2 + $0x140] sm:$0xff] %vm1295, %v2005
      %2101 = vst.msk [vmem:[#allocation2 + $0x148] sm:$0xff] %vm1295, %v2006
      %2102 = vst.msk [vmem:[#allocation2 + $0x150] sm:$0xff] %vm1295, %v2007
      %2103 = vst.msk [vmem:[#allocation2 + $0x158] sm:$0xff] %vm1295, %v2008
      %2104 = vst.msk [vmem:[#allocation2 + $0x160] sm:$0xff] %vm1295, %v2009
      %2105 = vst.msk [vmem:[#allocation2 + $0x168] sm:$0xff] %vm1295, %v2010
      %2106 = vst.msk [vmem:[#allocation2 + $0x170] sm:$0xff] %vm1295, %v2011
      %2107 = vst.msk [vmem:[#allocation2 + $0x178] sm:$0xff] %vm1295, %v2012
      %2108 = vst.msk [vmem:[#allocation2 + $0x180] sm:$0xff] %vm1295, %v2013
      %2109 = vst.msk [vmem:[#allocation2 + $0x188] sm:$0xff] %vm1295, %v2014
      %2110 = vst.msk [vmem:[#allocation2 + $0x190] sm:$0xff] %vm1295, %v2015
      %2111 = vst.msk [vmem:[#allocation2 + $0x198] sm:$0xff] %vm1295, %v2016
      %2112 = vst.msk [vmem:[#allocation2 + $0x1a0] sm:$0xff] %vm1295, %v2017
      %2113 = vst.msk [vmem:[#allocation2 + $0x1a8] sm:$0xff] %vm1295, %v2018
      %2114 = vst.msk [vmem:[#allocation2 + $0x1b0] sm:$0xff] %vm1295, %v2019
      %2115 = vst.msk [vmem:[#allocation2 + $0x1b8] sm:$0xff] %vm1295, %v2020
      %2116 = vst.msk [vmem:[#allocation2 + $0x1c0] sm:$0xff] %vm1295, %v2021
      %2117 = vst.msk [vmem:[#allocation2 + $0x1c8] sm:$0xff] %vm1295, %v2022
      %2118 = vst.msk [vmem:[#allocation2 + $0x1d0] sm:$0xff] %vm1295, %v2023
      %2119 = vst.msk [vmem:[#allocation2 + $0x1d8] sm:$0xff] %vm1295, %v2024
      %2120 = vst.msk [vmem:[#allocation2 + $0x1e0] sm:$0xff] %vm1295, %v2025
      %2121 = vst.msk [vmem:[#allocation2 + $0x1e8] sm:$0xff] %vm1295, %v2026
      %2122 = vst.msk [vmem:[#allocation2 + $0x1f0] sm:$0xff] %vm1295, %v2027
      %2123 = vst.msk [vmem:[#allocation2 + $0x1f8] sm:$0xff] %vm1295, %v2028
      %2124 = vst.msk [vmem:[#allocation2 + $0x200] sm:$0xff] %vm1295, %v2029
      %2125 = vst.msk [vmem:[#allocation2 + $0x208] sm:$0xff] %vm1295, %v2030
      %2126 = vst.msk [vmem:[#allocation2 + $0x210] sm:$0xff] %vm1295, %v2031
      %2127 = vst.msk [vmem:[#allocation2 + $0x218] sm:$0xff] %vm1295, %v2032
      %2128 = vst.msk [vmem:[#allocation2 + $0x220] sm:$0xff] %vm1295, %v2033
      %2129 = vst.msk [vmem:[#allocation2 + $0x228] sm:$0xff] %vm1295, %v2034
      %2130 = vst.msk [vmem:[#allocation2 + $0x230] sm:$0xff] %vm1295, %v2035
      %2131 = vst.msk [vmem:[#allocation2 + $0x238] sm:$0xff] %vm1295, %v2036
      %2132 = vst.msk [vmem:[#allocation2 + $0x240] sm:$0xff] %vm1295, %v2037
      %2133 = vst.msk [vmem:[#allocation2 + $0x248] sm:$0xff] %vm1295, %v2038
      %2134 = vst.msk [vmem:[#allocation2 + $0x250] sm:$0xff] %vm1295, %v2039
      %2135 = vst.msk [vmem:[#allocation2 + $0x258] sm:$0xff] %vm1295, %v2040
      %2136 = vst.msk [vmem:[#allocation2 + $0x260] sm:$0xff] %vm1295, %v2041
      %2137 = vst.msk [vmem:[#allocation2 + $0x268] sm:$0xff] %vm1295, %v2042
      %2138 = vst.msk [vmem:[#allocation2 + $0x270] sm:$0xff] %vm1295, %v2043
      %2139 = vst.msk [vmem:[#allocation2 + $0x278] sm:$0xff] %vm1295, %v2044
      %2140 = vst.msk [vmem:[#allocation2 + $0x280] sm:$0xff] %vm1295, %v2045
      %2141 = vst.msk [vmem:[#allocation2 + $0x288] sm:$0xff] %vm1295, %v2046
      %2142 = vst.msk [vmem:[#allocation2 + $0x290] sm:$0xff] %vm1295, %v2047
      %2143 = vst.msk [vmem:[#allocation2 + $0x298] sm:$0xff] %vm1295, %v2048
      %2144 = vst.msk [vmem:[#allocation2 + $0x2a0] sm:$0xff] %vm1295, %v2049
      %2145 = vst.msk [vmem:[#allocation2 + $0x2a8] sm:$0xff] %vm1295, %v2050
      %2146 = vst.msk [vmem:[#allocation2 + $0x2b0] sm:$0xff] %vm1295, %v2051
      %2147 = vst.msk [vmem:[#allocation2 + $0x2b8] sm:$0xff] %vm1295, %v2052
      %2148 = vst.msk [vmem:[#allocation2 + $0x2c0] sm:$0xff] %vm1295, %v2053
      %2149 = vst.msk [vmem:[#allocation2 + $0x2c8] sm:$0xff] %vm1295, %v2054
      %2150 = vst.msk [vmem:[#allocation2 + $0x2d0] sm:$0xff] %vm1295, %v2055
      %2151 = vst.msk [vmem:[#allocation2 + $0x2d8] sm:$0xff] %vm1295, %v2056
      %2152 = vst.msk [vmem:[#allocation2 + $0x2e0] sm:$0xff] %vm1295, %v2057
      %2153 = vst.msk [vmem:[#allocation2 + $0x2e8] sm:$0xff] %vm1295, %v2058
      %vm2154 = vcmask 256000
      %2155 = vst.msk [vmem:[#allocation2 + $0x2f0] sm:$0x7] %vm2154, %v2059
      %2156 = vst.msk [vmem:[#allocation3] sm:$0xff] %vm1295, 0.0
      %2157 = vst.msk [vmem:[#allocation3 + $0x8] sm:$0xff] %vm1295, 0.0
      %2158 = vst.msk [vmem:[#allocation3 + $0x10] sm:$0xff] %vm1295, 0.0
      %2159 = vst.msk [vmem:[#allocation3 + $0x18] sm:$0xff] %vm1295, 0.0
      %2160 = vst.msk [vmem:[#allocation3 + $0x20] sm:$0xff] %vm1295, 0.0
      %2161 = vst.msk [vmem:[#allocation3 + $0x28] sm:$0xff] %vm1295, 0.0
      %2162 = vst.msk [vmem:[#allocation3 + $0x30] sm:$0xff] %vm1295, 0.0
      %2163 = vst.msk [vmem:[#allocation3 + $0x38] sm:$0xff] %vm1295, 0.0
      %2164 = vst.msk [vmem:[#allocation3 + $0x40] sm:$0xff] %vm1295, 0.0
      %2165 = vst.msk [vmem:[#allocation3 + $0x48] sm:$0xff] %vm1295, 0.0
      %2166 = vst.msk [vmem:[#allocation3 + $0x50] sm:$0xff] %vm1295, 0.0
      %2167 = vst.msk [vmem:[#allocation3 + $0x58] sm:$0xff] %vm1295, 0.0
      %2168 = vst.msk [vmem:[#allocation3 + $0x60] sm:$0xff] %vm1295, 0.0
      %2169 = vst.msk [vmem:[#allocation3 + $0x68] sm:$0xff] %vm1295, 0.0
      %2170 = vst.msk [vmem:[#allocation3 + $0x70] sm:$0xff] %vm1295, 0.0
      %2171 = vst.msk [vmem:[#allocation3 + $0x78] sm:$0xff] %vm1295, 0.0
      %2172 = vst.msk [vmem:[#allocation3 + $0x80] sm:$0xff] %vm1295, 0.0
      %2173 = vst.msk [vmem:[#allocation3 + $0x88] sm:$0xff] %vm1295, 0.0
      %2174 = vst.msk [vmem:[#allocation3 + $0x90] sm:$0xff] %vm1295, 0.0
      %2175 = vst.msk [vmem:[#allocation3 + $0x98] sm:$0xff] %vm1295, 0.0
      %2176 = vst.msk [vmem:[#allocation3 + $0xa0] sm:$0xff] %vm1295, 0.0
      %2177 = vst.msk [vmem:[#allocation3 + $0xa8] sm:$0xff] %vm1295, 0.0
      %2178 = vst.msk [vmem:[#allocation3 + $0xb0] sm:$0xff] %vm1295, 0.0
      %2179 = vst.msk [vmem:[#allocation3 + $0xb8] sm:$0xff] %vm1295, 0.0
      %2180 = vst.msk [vmem:[#allocation3 + $0xc0] sm:$0xff] %vm1295, 0.0
      %2181 = vst.msk [vmem:[#allocation3 + $0xc8] sm:$0xff] %vm1295, 0.0
      %2182 = vst.msk [vmem:[#allocation3 + $0xd0] sm:$0xff] %vm1295, 0.0
      %2183 = vst.msk [vmem:[#allocation3 + $0xd8] sm:$0xff] %vm1295, 0.0
      %2184 = vst.msk [vmem:[#allocation3 + $0xe0] sm:$0xff] %vm1295, 0.0
      %2185 = vst.msk [vmem:[#allocation3 + $0xe8] sm:$0xff] %vm1295, 0.0
      %2186 = vst.msk [vmem:[#allocation3 + $0xf0] sm:$0xff] %vm1295, 0.0
      %2187 = vst.msk [vmem:[#allocation3 + $0xf8] sm:$0xff] %vm1295, 0.0
      %2188 = vst.msk [vmem:[#allocation3 + $0x100] sm:$0xff] %vm1295, 0.0
      %2189 = vst.msk [vmem:[#allocation3 + $0x108] sm:$0xff] %vm1295, 0.0
      %2190 = vst.msk [vmem:[#allocation3 + $0x110] sm:$0xff] %vm1295, 0.0
      %2191 = vst.msk [vmem:[#allocation3 + $0x118] sm:$0xff] %vm1295, 0.0
      %2192 = vst.msk [vmem:[#allocation3 + $0x120] sm:$0xff] %vm1295, 0.0
      %2193 = vst.msk [vmem:[#allocation3 + $0x128] sm:$0xff] %vm1295, 0.0
      %2194 = vst.msk [vmem:[#allocation3 + $0x130] sm:$0xff] %vm1295, 0.0
      %2195 = vst.msk [vmem:[#allocation3 + $0x138] sm:$0xff] %vm1295, 0.0
      %2196 = vst.msk [vmem:[#allocation3 + $0x140] sm:$0xf] %vm1773, 0.0
      %v2197 = vld [vmem:[#allocation2] ss:$2 sm:$0xff]
      %s2198 = scalar_lea.vmem [#allocation2], 16
      %v2199 = vld [vmem:[%s2198] ss:$2 sm:$0x3f]
      %2200 = vst.msk [vmem:[#allocation3 + $0x26] sm:$0xff] %vm1295, %v2197
      %vm2201 = vcmask 259072
      %2202 = vst.msk [vmem:[#allocation3 + $0x2e] sm:$0x3f] %vm2201, %v2199
      %s2203 = scalar_lea.vmem [#allocation2], 56
      %v2204 = vld [vmem:[%s2203] ss:$2 sm:$0xff]
      %s2205 = scalar_lea.vmem [#allocation2], 72
      %v2206 = vld [vmem:[%s2205] ss:$2 sm:$0x3f]
      %2207 = vst.msk [vmem:[#allocation3 + $0x38] sm:$0xff] %vm1295, %v2204
      %2208 = vst.msk [vmem:[#allocation3 + $0x40] sm:$0x3f] %vm2201, %v2206
      %s2209 = scalar_lea.vmem [#allocation2], 112
      %v2210 = vld [vmem:[%s2209] ss:$2 sm:$0xff]
      %s2211 = scalar_lea.vmem [#allocation2], 128
      %v2212 = vld [vmem:[%s2211] ss:$2 sm:$0x3f]
      %2213 = vst.msk [vmem:[#allocation3 + $0x4a] sm:$0xff] %vm1295, %v2210
      %2214 = vst.msk [vmem:[#allocation3 + $0x52] sm:$0x3f] %vm2201, %v2212
      %s2215 = scalar_lea.vmem [#allocation2], 168
      %v2216 = vld [vmem:[%s2215] ss:$2 sm:$0xff]
      %s2217 = scalar_lea.vmem [#allocation2], 184
      %v2218 = vld [vmem:[%s2217] ss:$2 sm:$0x3f]
      %2219 = vst.msk [vmem:[#allocation3 + $0x5c] sm:$0xff] %vm1295, %v2216
      %2220 = vst.msk [vmem:[#allocation3 + $0x64] sm:$0x3f] %vm2201, %v2218
      %s2221 = scalar_lea.vmem [#allocation2], 224
      %v2222 = vld [vmem:[%s2221] ss:$2 sm:$0xff]
      %s2223 = scalar_lea.vmem [#allocation2], 240
      %v2224 = vld [vmem:[%s2223] ss:$2 sm:$0x3f]
      %2225 = vst.msk [vmem:[#allocation3 + $0x6e] sm:$0xff] %vm1295, %v2222
      %2226 = vst.msk [vmem:[#allocation3 + $0x76] sm:$0x3f] %vm2201, %v2224
      %s2227 = scalar_lea.vmem [#allocation2], 280
      %v2228 = vld [vmem:[%s2227] ss:$2 sm:$0xff]
      %s2229 = scalar_lea.vmem [#allocation2], 296
      %v2230 = vld [vmem:[%s2229] ss:$2 sm:$0x3f]
      %2231 = vst.msk [vmem:[#allocation3 + $0x80] sm:$0xff] %vm1295, %v2228
      %2232 = vst.msk [vmem:[#allocation3 + $0x88] sm:$0x3f] %vm2201, %v2230
      %s2233 = scalar_lea.vmem [#allocation2], 336
      %v2234 = vld [vmem:[%s2233] ss:$2 sm:$0xff]
      %s2235 = scalar_lea.vmem [#allocation2], 352
      %v2236 = vld [vmem:[%s2235] ss:$2 sm:$0x3f]
      %2237 = vst.msk [vmem:[#allocation3 + $0x92] sm:$0xff] %vm1295, %v2234
      %2238 = vst.msk [vmem:[#allocation3 + $0x9a] sm:$0x3f] %vm2201, %v2236
      %s2239 = scalar_lea.vmem [#allocation2], 392
      %v2240 = vld [vmem:[%s2239] ss:$2 sm:$0xff]
      %s2241 = scalar_lea.vmem [#allocation2], 408
      %v2242 = vld [vmem:[%s2241] ss:$2 sm:$0x3f]
      %2243 = vst.msk [vmem:[#allocation3 + $0xa4] sm:$0xff] %vm1295, %v2240
      %2244 = vst.msk [vmem:[#allocation3 + $0xac] sm:$0x3f] %vm2201, %v2242
      %s2245 = scalar_lea.vmem [#allocation2], 448
      %v2246 = vld [vmem:[%s2245] ss:$2 sm:$0xff]
      %s2247 = scalar_lea.vmem [#allocation2], 464
      %v2248 = vld [vmem:[%s2247] ss:$2 sm:$0x3f]
      %2249 = vst.msk [vmem:[#allocation3 + $0xb6] sm:$0xff] %vm1295, %v2246
      %2250 = vst.msk [vmem:[#allocation3 + $0xbe] sm:$0x3f] %vm2201, %v2248
      %s2251 = scalar_lea.vmem [#allocation2], 504
      %v2252 = vld [vmem:[%s2251] ss:$2 sm:$0xff]
      %s2253 = scalar_lea.vmem [#allocation2], 520
      %v2254 = vld [vmem:[%s2253] ss:$2 sm:$0x3f]
      %2255 = vst.msk [vmem:[#allocation3 + $0xc8] sm:$0xff] %vm1295, %v2252
      %2256 = vst.msk [vmem:[#allocation3 + $0xd0] sm:$0x3f] %vm2201, %v2254
      %s2257 = scalar_lea.vmem [#allocation2], 560
      %v2258 = vld [vmem:[%s2257] ss:$2 sm:$0xff]
      %s2259 = scalar_lea.vmem [#allocation2], 576
      %v2260 = vld [vmem:[%s2259] ss:$2 sm:$0x3f]
      %2261 = vst.msk [vmem:[#allocation3 + $0xda] sm:$0xff] %vm1295, %v2258
      %2262 = vst.msk [vmem:[#allocation3 + $0xe2] sm:$0x3f] %vm2201, %v2260
      %s2263 = scalar_lea.vmem [#allocation2], 616
      %v2264 = vld [vmem:[%s2263] ss:$2 sm:$0xff]
      %s2265 = scalar_lea.vmem [#allocation2], 632
      %v2266 = vld [vmem:[%s2265] ss:$2 sm:$0x3f]
      %2267 = vst.msk [vmem:[#allocation3 + $0xec] sm:$0xff] %vm1295, %v2264
      %2268 = vst.msk [vmem:[#allocation3 + $0xf4] sm:$0x3f] %vm2201, %v2266
      %s2269 = scalar_lea.vmem [#allocation2], 672
      %v2270 = vld [vmem:[%s2269] ss:$2 sm:$0xff]
      %s2271 = scalar_lea.vmem [#allocation2], 688
      %v2272 = vld [vmem:[%s2271] ss:$2 sm:$0x3f]
      %2273 = vst.msk [vmem:[#allocation3 + $0xfe] sm:$0xff] %vm1295, %v2270
      %2274 = vst.msk [vmem:[#allocation3 + $0x106] sm:$0x3f] %vm2201, %v2272
      %s2275 = scalar_lea.vmem [#allocation2], 728
      %v2276 = vld [vmem:[%s2275] ss:$2 sm:$0xff]
      %s2277 = scalar_lea.vmem [#allocation2], 744
      %v2278 = vld [vmem:[%s2277] ss:$2 sm:$0x3f]
      %2279 = vst.msk [vmem:[#allocation3 + $0x110] sm:$0xff] %vm1295, %v2276
      %2280 = vst.msk [vmem:[#allocation3 + $0x118] sm:$0x3f] %vm2201, %v2278
      %v2281 = vld [vmem:[#allocation3] sm:$0xff]
      %v2282 = vld [vmem:[#allocation3 + $0x8] sm:$0xff]
      %v2283 = vld [vmem:[#allocation3 + $0x10] sm:$0xff]
      %v2284 = vld [vmem:[#allocation3 + $0x18] sm:$0xff]
      %v2285 = vld [vmem:[#allocation3 + $0x20] sm:$0xff]
      %v2286 = vld [vmem:[#allocation3 + $0x28] sm:$0xff]
      %v2287 = vld [vmem:[#allocation3 + $0x30] sm:$0xff]
      %v2288 = vld [vmem:[#allocation3 + $0x38] sm:$0xff]
      %v2289 = vld [vmem:[#allocation3 + $0x40] sm:$0xff]
      %v2290 = vld [vmem:[#allocation3 + $0x48] sm:$0xff]
      %v2291 = vld [vmem:[#allocation3 + $0x50] sm:$0xff]
      %v2292 = vld [vmem:[#allocation3 + $0x58] sm:$0xff]
      %v2293 = vld [vmem:[#allocation3 + $0x60] sm:$0xff]
      %v2294 = vld [vmem:[#allocation3 + $0x68] sm:$0xff]
      %v2295 = vld [vmem:[#allocation3 + $0x70] sm:$0xff]
      %v2296 = vld [vmem:[#allocation3 + $0x78] sm:$0xff]
      %v2297 = vld [vmem:[#allocation3 + $0x80] sm:$0xff]
      %v2298 = vld [vmem:[#allocation3 + $0x88] sm:$0xff]
      %v2299 = vld [vmem:[#allocation3 + $0x90] sm:$0xff]
      %v2300 = vld [vmem:[#allocation3 + $0x98] sm:$0xff]
      %v2301 = vld [vmem:[#allocation3 + $0xa0] sm:$0xff]
      %v2302 = vld [vmem:[#allocation3 + $0xa8] sm:$0xff]
      %v2303 = vld [vmem:[#allocation3 + $0xb0] sm:$0xff]
      %v2304 = vld [vmem:[#allocation3 + $0xb8] sm:$0xff]
      %v2305 = vld [vmem:[#allocation3 + $0xc0] sm:$0xff]
      %v2306 = vld [vmem:[#allocation3 + $0xc8] sm:$0xff]
      %v2307 = vld [vmem:[#allocation3 + $0xd0] sm:$0xff]
      %v2308 = vld [vmem:[#allocation3 + $0xd8] sm:$0xff]
      %v2309 = vld [vmem:[#allocation3 + $0xe0] sm:$0xff]
      %v2310 = vld [vmem:[#allocation3 + $0xe8] sm:$0xff]
      %v2311 = vld [vmem:[#allocation3 + $0xf0] sm:$0xff]
      %v2312 = vld [vmem:[%s4] sm:$0xff]
      %v2313 = vld [vmem:[%s4 + $0x8] sm:$0xff]
      %v2314 = vld [vmem:[%s4 + $0x10] sm:$0xff]
      %v2315 = vld [vmem:[%s4 + $0x18] sm:$0xff]
      %v2316 = vld [vmem:[#allocation3 + $0x1] sm:$0xff]
      %v2317 = vld [vmem:[#allocation3 + $0x9] sm:$0xff]
      %v2318 = vld [vmem:[#allocation3 + $0x11] sm:$0xff]
      %v2319 = vld [vmem:[#allocation3 + $0x19] sm:$0xff]
      %v2320 = vld [vmem:[#allocation3 + $0x21] sm:$0xff]
      %v2321 = vld [vmem:[#allocation3 + $0x29] sm:$0xff]
      %v2322 = vld [vmem:[#allocation3 + $0x31] sm:$0xff]
      %v2323 = vld [vmem:[#allocation3 + $0x39] sm:$0xff]
      %v2324 = vld [vmem:[#allocation3 + $0x41] sm:$0xff]
      %v2325 = vld [vmem:[#allocation3 + $0x49] sm:$0xff]
      %v2326 = vld [vmem:[#allocation3 + $0x51] sm:$0xff]
      %v2327 = vld [vmem:[#allocation3 + $0x59] sm:$0xff]
      %v2328 = vld [vmem:[#allocation3 + $0x61] sm:$0xff]
      %v2329 = vld [vmem:[#allocation3 + $0x69] sm:$0xff]
      %v2330 = vld [vmem:[#allocation3 + $0x71] sm:$0xff]
      %v2331 = vld [vmem:[#allocation3 + $0x79] sm:$0xff]
      %v2332 = vld [vmem:[#allocation3 + $0x81] sm:$0xff]
      %v2333 = vld [vmem:[#allocation3 + $0x89] sm:$0xff]
      %v2334 = vld [vmem:[#allocation3 + $0x91] sm:$0xff]
      %v2335 = vld [vmem:[#allocation3 + $0x99] sm:$0xff]
      %v2336 = vld [vmem:[#allocation3 + $0xa1] sm:$0xff]
      %v2337 = vld [vmem:[#allocation3 + $0xa9] sm:$0xff]
      %v2338 = vld [vmem:[#allocation3 + $0xb1] sm:$0xff]
      %v2339 = vld [vmem:[#allocation3 + $0xb9] sm:$0xff]
      %v2340 = vld [vmem:[#allocation3 + $0xc1] sm:$0xff]
      %v2341 = vld [vmem:[#allocation3 + $0xc9] sm:$0xff]
      %v2342 = vld [vmem:[#allocation3 + $0xd1] sm:$0xff]
      %v2343 = vld [vmem:[#allocation3 + $0xd9] sm:$0xff]
      %v2344 = vld [vmem:[#allocation3 + $0xe1] sm:$0xff]
      %v2345 = vld [vmem:[#allocation3 + $0xe9] sm:$0xff]
      %v2346 = vld [vmem:[#allocation3 + $0xf1] sm:$0xff]
      %s2347 = scalar_lea.vmem %s4, 32
      %v2348 = vld [vmem:[%s2347] sm:$0xff]
      %v2349 = vld [vmem:[%s2347 + $0x8] sm:$0xff]
      %v2350 = vld [vmem:[%s2347 + $0x10] sm:$0xff]
      %v2351 = vld [vmem:[%s2347 + $0x18] sm:$0xff]
      %v2353 = vsel %vm1295, %v2316, 0
      %v2356 = vsel %vm1295, %v2317, 0
      %v2359 = vsel %vm1295, %v2318, 0
      %v2362 = vsel %vm1295, %v2319, 0
      %v2365 = vsel %vm1295, %v2320, 0
      %v2368 = vsel %vm1295, %v2321, 0
      %v2371 = vsel %vm1295, %v2322, 0
      %v2374 = vsel %vm1295, %v2323, 0
      %v2377 = vsel %vm1295, %v2324, 0
      %v2380 = vsel %vm1295, %v2325, 0
      %v2383 = vsel %vm1295, %v2326, 0
      %v2386 = vsel %vm1295, %v2327, 0
      %v2389 = vsel %vm1295, %v2328, 0
      %v2392 = vsel %vm1295, %v2329, 0
      %v2395 = vsel %vm1295, %v2330, 0
      %v2398 = vsel %vm1295, %v2331, 0
      %v2401 = vsel %vm1295, %v2332, 0
      %v2404 = vsel %vm1295, %v2333, 0
      %v2407 = vsel %vm1295, %v2334, 0
      %v2410 = vsel %vm1295, %v2335, 0
      %v2413 = vsel %vm1295, %v2336, 0
      %v2416 = vsel %vm1295, %v2337, 0
      %v2419 = vsel %vm1295, %v2338, 0
      %v2422 = vsel %vm1295, %v2339, 0
      %v2425 = vsel %vm1295, %v2340, 0
      %v2428 = vsel %vm1295, %v2341, 0
      %v2431 = vsel %vm1295, %v2342, 0
      %v2434 = vsel %vm1295, %v2343, 0
      %v2437 = vsel %vm1295, %v2344, 0
      %v2440 = vsel %vm1295, %v2345, 0
      %v2443 = vsel %vm1295, %v2346, 0
      %2445 = vmatpush.msra.mxu0 0.0
      %2446 = vmatpush.msra.mxu0 0.0
      %2447 = vmatpush.msra.mxu0 0.0
      %2448 = vmatpush.msra.mxu0 0.0
      %2449 = vmatpush.msra.mxu0 0.0
      %2450 = vmatpush.msra.mxu0 0.0
      %2451 = vmatpush.msra.mxu0 0.0
      %2452 = vmatpush.msra.mxu0 0.0
      %2453 = vmatpush.msra.mxu0 0.0
      %2454 = vmatpush.msra.mxu0 0.0
      %2455 = vmatpush.msra.mxu0 0.0
      %2456 = vmatpush.msra.mxu0 0.0
      %2457 = vmatpush.msra.mxu0 %v2351
      %2458 = vmatpush.msra.mxu0 %v2350
      %2459 = vmatpush.msra.mxu0 %v2349
      %2460 = vmatpush.msra.mxu0 %v2348
      %2461 = vmatmul.f32.gmra.mxu0 %v2353
      %v2462 = vpop.f32.mrf.mxu0
      %v2463 = vadd.f32 0.0, %v2462
      %2464 = vmatmul.f32.gmra.mxu0 %v2356
      %v2465 = vpop.f32.mrf.mxu0
      %v2466 = vadd.f32 0.0, %v2465
      %2467 = vmatmul.f32.gmra.mxu0 %v2359
      %v2468 = vpop.f32.mrf.mxu0
      %v2469 = vadd.f32 0.0, %v2468
      %2470 = vmatmul.f32.gmra.mxu0 %v2362
      %v2471 = vpop.f32.mrf.mxu0
      %v2472 = vadd.f32 0.0, %v2471
      %2473 = vmatmul.f32.gmra.mxu0 %v2365
      %v2474 = vpop.f32.mrf.mxu0
      %v2475 = vadd.f32 0.0, %v2474
      %2476 = vmatmul.f32.gmra.mxu0 %v2368
      %v2477 = vpop.f32.mrf.mxu0
      %v2478 = vadd.f32 0.0, %v2477
      %2479 = vmatmul.f32.gmra.mxu0 %v2371
      %v2480 = vpop.f32.mrf.mxu0
      %v2481 = vadd.f32 0.0, %v2480
      %2482 = vmatmul.f32.gmra.mxu0 %v2374
      %v2483 = vpop.f32.mrf.mxu0
      %v2484 = vadd.f32 0.0, %v2483
      %2485 = vmatmul.f32.gmra.mxu0 %v2377
      %v2486 = vpop.f32.mrf.mxu0
      %v2487 = vadd.f32 0.0, %v2486
      %2488 = vmatmul.f32.gmra.mxu0 %v2380
      %v2489 = vpop.f32.mrf.mxu0
      %v2490 = vadd.f32 0.0, %v2489
      %2491 = vmatmul.f32.gmra.mxu0 %v2383
      %v2492 = vpop.f32.mrf.mxu0
      %v2493 = vadd.f32 0.0, %v2492
      %2494 = vmatmul.f32.gmra.mxu0 %v2386
      %v2495 = vpop.f32.mrf.mxu0
      %v2496 = vadd.f32 0.0, %v2495
      %2497 = vmatmul.f32.gmra.mxu0 %v2389
      %v2498 = vpop.f32.mrf.mxu0
      %v2499 = vadd.f32 0.0, %v2498
      %2500 = vmatmul.f32.gmra.mxu0 %v2392
      %v2501 = vpop.f32.mrf.mxu0
      %v2502 = vadd.f32 0.0, %v2501
      %2503 = vmatmul.f32.gmra.mxu0 %v2395
      %v2504 = vpop.f32.mrf.mxu0
      %v2505 = vadd.f32 0.0, %v2504
      %2506 = vmatmul.f32.gmra.mxu0 %v2398
      %v2507 = vpop.f32.mrf.mxu0
      %v2508 = vadd.f32 0.0, %v2507
      %2509 = vmatmul.f32.gmra.mxu0 %v2401
      %v2510 = vpop.f32.mrf.mxu0
      %v2511 = vadd.f32 0.0, %v2510
      %2512 = vmatmul.f32.gmra.mxu0 %v2404
      %v2513 = vpop.f32.mrf.mxu0
      %v2514 = vadd.f32 0.0, %v2513
      %2515 = vmatmul.f32.gmra.mxu0 %v2407
      %v2516 = vpop.f32.mrf.mxu0
      %v2517 = vadd.f32 0.0, %v2516
      %2518 = vmatmul.f32.gmra.mxu0 %v2410
      %v2519 = vpop.f32.mrf.mxu0
      %v2520 = vadd.f32 0.0, %v2519
      %2521 = vmatmul.f32.gmra.mxu0 %v2413
      %v2522 = vpop.f32.mrf.mxu0
      %v2523 = vadd.f32 0.0, %v2522
      %2524 = vmatmul.f32.gmra.mxu0 %v2416
      %v2525 = vpop.f32.mrf.mxu0
      %v2526 = vadd.f32 0.0, %v2525
      %2527 = vmatmul.f32.gmra.mxu0 %v2419
      %v2528 = vpop.f32.mrf.mxu0
      %v2529 = vadd.f32 0.0, %v2528
      %2530 = vmatmul.f32.gmra.mxu0 %v2422
      %v2531 = vpop.f32.mrf.mxu0
      %v2532 = vadd.f32 0.0, %v2531
      %2533 = vmatmul.f32.gmra.mxu0 %v2425
      %v2534 = vpop.f32.mrf.mxu0
      %v2535 = vadd.f32 0.0, %v2534
      %2536 = vmatmul.f32.gmra.mxu0 %v2428
      %v2537 = vpop.f32.mrf.mxu0
      %v2538 = vadd.f32 0.0, %v2537
      %2539 = vmatmul.f32.gmra.mxu0 %v2431
      %v2540 = vpop.f32.mrf.mxu0
      %v2541 = vadd.f32 0.0, %v2540
      %2542 = vmatmul.f32.gmra.mxu0 %v2434
      %v2543 = vpop.f32.mrf.mxu0
      %v2544 = vadd.f32 0.0, %v2543
      %2545 = vmatmul.f32.gmra.mxu0 %v2437
      %v2546 = vpop.f32.mrf.mxu0
      %v2547 = vadd.f32 0.0, %v2546
      %2548 = vmatmul.f32.gmra.mxu0 %v2440
      %v2549 = vpop.f32.mrf.mxu0
      %v2550 = vadd.f32 0.0, %v2549
      %2551 = vmatmul.f32.gmra.mxu0 %v2443
      %v2552 = vpop.f32.mrf.mxu0
      %v2553 = vadd.f32 0.0, %v2552
      %2554 = vdwg.mxu0
      %v2556 = vsel %vm1295, %v2281, 0
      %v2559 = vsel %vm1295, %v2282, 0
      %v2562 = vsel %vm1295, %v2283, 0
      %v2565 = vsel %vm1295, %v2284, 0
      %v2568 = vsel %vm1295, %v2285, 0
      %v2571 = vsel %vm1295, %v2286, 0
      %v2574 = vsel %vm1295, %v2287, 0
      %v2577 = vsel %vm1295, %v2288, 0
      %v2580 = vsel %vm1295, %v2289, 0
      %v2583 = vsel %vm1295, %v2290, 0
      %v2586 = vsel %vm1295, %v2291, 0
      %v2589 = vsel %vm1295, %v2292, 0
      %v2592 = vsel %vm1295, %v2293, 0
      %v2595 = vsel %vm1295, %v2294, 0
      %v2598 = vsel %vm1295, %v2295, 0
      %v2601 = vsel %vm1295, %v2296, 0
      %v2604 = vsel %vm1295, %v2297, 0
      %v2607 = vsel %vm1295, %v2298, 0
      %v2610 = vsel %vm1295, %v2299, 0
      %v2613 = vsel %vm1295, %v2300, 0
      %v2616 = vsel %vm1295, %v2301, 0
      %v2619 = vsel %vm1295, %v2302, 0
      %v2622 = vsel %vm1295, %v2303, 0
      %v2625 = vsel %vm1295, %v2304, 0
      %v2628 = vsel %vm1295, %v2305, 0
      %v2631 = vsel %vm1295, %v2306, 0
      %v2634 = vsel %vm1295, %v2307, 0
      %v2637 = vsel %vm1295, %v2308, 0
      %v2640 = vsel %vm1295, %v2309, 0
      %v2643 = vsel %vm1295, %v2310, 0
      %v2646 = vsel %vm1295, %v2311, 0
      %2648 = vmatpush.msra.mxu0 0.0
      %2649 = vmatpush.msra.mxu0 0.0
      %2650 = vmatpush.msra.mxu0 0.0
      %2651 = vmatpush.msra.mxu0 0.0
      %2652 = vmatpush.msra.mxu0 0.0
      %2653 = vmatpush.msra.mxu0 0.0
      %2654 = vmatpush.msra.mxu0 0.0
      %2655 = vmatpush.msra.mxu0 0.0
      %2656 = vmatpush.msra.mxu0 0.0
      %2657 = vmatpush.msra.mxu0 0.0
      %2658 = vmatpush.msra.mxu0 0.0
      %2659 = vmatpush.msra.mxu0 0.0
      %2660 = vmatpush.msra.mxu0 %v2315
      %2661 = vmatpush.msra.mxu0 %v2314
      %2662 = vmatpush.msra.mxu0 %v2313
      %2663 = vmatpush.msra.mxu0 %v2312
      %2664 = vmatmul.f32.gmra.mxu0 %v2556
      %v2665 = vpop.f32.mrf.mxu0
      %v2666 = vadd.f32 %v2463, %v2665
      %2667 = vmatmul.f32.gmra.mxu0 %v2559
      %v2668 = vpop.f32.mrf.mxu0
      %v2669 = vadd.f32 %v2466, %v2668
      %2670 = vmatmul.f32.gmra.mxu0 %v2562
      %v2671 = vpop.f32.mrf.mxu0
      %v2672 = vadd.f32 %v2469, %v2671
      %2673 = vmatmul.f32.gmra.mxu0 %v2565
      %v2674 = vpop.f32.mrf.mxu0
      %v2675 = vadd.f32 %v2472, %v2674
      %2676 = vmatmul.f32.gmra.mxu0 %v2568
      %v2677 = vpop.f32.mrf.mxu0
      %v2678 = vadd.f32 %v2475, %v2677
      %2679 = vmatmul.f32.gmra.mxu0 %v2571
      %v2680 = vpop.f32.mrf.mxu0
      %v2681 = vadd.f32 %v2478, %v2680
      %2682 = vmatmul.f32.gmra.mxu0 %v2574
      %v2683 = vpop.f32.mrf.mxu0
      %v2684 = vadd.f32 %v2481, %v2683
      %2685 = vmatmul.f32.gmra.mxu0 %v2577
      %v2686 = vpop.f32.mrf.mxu0
      %v2687 = vadd.f32 %v2484, %v2686
      %2688 = vmatmul.f32.gmra.mxu0 %v2580
      %v2689 = vpop.f32.mrf.mxu0
      %v2690 = vadd.f32 %v2487, %v2689
      %2691 = vmatmul.f32.gmra.mxu0 %v2583
      %v2692 = vpop.f32.mrf.mxu0
      %v2693 = vadd.f32 %v2490, %v2692
      %2694 = vmatmul.f32.gmra.mxu0 %v2586
      %v2695 = vpop.f32.mrf.mxu0
      %v2696 = vadd.f32 %v2493, %v2695
      %2697 = vmatmul.f32.gmra.mxu0 %v2589
      %v2698 = vpop.f32.mrf.mxu0
      %v2699 = vadd.f32 %v2496, %v2698
      %2700 = vmatmul.f32.gmra.mxu0 %v2592
      %v2701 = vpop.f32.mrf.mxu0
      %v2702 = vadd.f32 %v2499, %v2701
      %2703 = vmatmul.f32.gmra.mxu0 %v2595
      %v2704 = vpop.f32.mrf.mxu0
      %v2705 = vadd.f32 %v2502, %v2704
      %2706 = vmatmul.f32.gmra.mxu0 %v2598
      %v2707 = vpop.f32.mrf.mxu0
      %v2708 = vadd.f32 %v2505, %v2707
      %2709 = vmatmul.f32.gmra.mxu0 %v2601
      %v2710 = vpop.f32.mrf.mxu0
      %v2711 = vadd.f32 %v2508, %v2710
      %2712 = vmatmul.f32.gmra.mxu0 %v2604
      %v2713 = vpop.f32.mrf.mxu0
      %v2714 = vadd.f32 %v2511, %v2713
      %2715 = vmatmul.f32.gmra.mxu0 %v2607
      %v2716 = vpop.f32.mrf.mxu0
      %v2717 = vadd.f32 %v2514, %v2716
      %2718 = vmatmul.f32.gmra.mxu0 %v2610
      %v2719 = vpop.f32.mrf.mxu0
      %v2720 = vadd.f32 %v2517, %v2719
      %2721 = vmatmul.f32.gmra.mxu0 %v2613
      %v2722 = vpop.f32.mrf.mxu0
      %v2723 = vadd.f32 %v2520, %v2722
      %2724 = vmatmul.f32.gmra.mxu0 %v2616
      %v2725 = vpop.f32.mrf.mxu0
      %v2726 = vadd.f32 %v2523, %v2725
      %2727 = vmatmul.f32.gmra.mxu0 %v2619
      %v2728 = vpop.f32.mrf.mxu0
      %v2729 = vadd.f32 %v2526, %v2728
      %2730 = vmatmul.f32.gmra.mxu0 %v2622
      %v2731 = vpop.f32.mrf.mxu0
      %v2732 = vadd.f32 %v2529, %v2731
      %2733 = vmatmul.f32.gmra.mxu0 %v2625
      %v2734 = vpop.f32.mrf.mxu0
      %v2735 = vadd.f32 %v2532, %v2734
      %2736 = vmatmul.f32.gmra.mxu0 %v2628
      %v2737 = vpop.f32.mrf.mxu0
      %v2738 = vadd.f32 %v2535, %v2737
      %2739 = vmatmul.f32.gmra.mxu0 %v2631
      %v2740 = vpop.f32.mrf.mxu0
      %v2741 = vadd.f32 %v2538, %v2740
      %2742 = vmatmul.f32.gmra.mxu0 %v2634
      %v2743 = vpop.f32.mrf.mxu0
      %v2744 = vadd.f32 %v2541, %v2743
      %2745 = vmatmul.f32.gmra.mxu0 %v2637
      %v2746 = vpop.f32.mrf.mxu0
      %v2747 = vadd.f32 %v2544, %v2746
      %2748 = vmatmul.f32.gmra.mxu0 %v2640
      %v2749 = vpop.f32.mrf.mxu0
      %v2750 = vadd.f32 %v2547, %v2749
      %2751 = vmatmul.f32.gmra.mxu0 %v2643
      %v2752 = vpop.f32.mrf.mxu0
      %v2753 = vadd.f32 %v2550, %v2752
      %2754 = vmatmul.f32.gmra.mxu0 %v2646
      %v2755 = vpop.f32.mrf.mxu0
      %v2756 = vadd.f32 %v2553, %v2755
      %2757 = vdwg.mxu0
      %v2758 = vld [vmem:[#allocation3 + $0x2] sm:$0xff]
      %v2759 = vld [vmem:[#allocation3 + $0xa] sm:$0xff]
      %v2760 = vld [vmem:[#allocation3 + $0x12] sm:$0xff]
      %v2761 = vld [vmem:[#allocation3 + $0x1a] sm:$0xff]
      %v2762 = vld [vmem:[#allocation3 + $0x22] sm:$0xff]
      %v2763 = vld [vmem:[#allocation3 + $0x2a] sm:$0xff]
      %v2764 = vld [vmem:[#allocation3 + $0x32] sm:$0xff]
      %v2765 = vld [vmem:[#allocation3 + $0x3a] sm:$0xff]
      %v2766 = vld [vmem:[#allocation3 + $0x42] sm:$0xff]
      %v2767 = vld [vmem:[#allocation3 + $0x4a] sm:$0xff]
      %v2768 = vld [vmem:[#allocation3 + $0x52] sm:$0xff]
      %v2769 = vld [vmem:[#allocation3 + $0x5a] sm:$0xff]
      %v2770 = vld [vmem:[#allocation3 + $0x62] sm:$0xff]
      %v2771 = vld [vmem:[#allocation3 + $0x6a] sm:$0xff]
      %v2772 = vld [vmem:[#allocation3 + $0x72] sm:$0xff]
      %v2773 = vld [vmem:[#allocation3 + $0x7a] sm:$0xff]
      %v2774 = vld [vmem:[#allocation3 + $0x82] sm:$0xff]
      %v2775 = vld [vmem:[#allocation3 + $0x8a] sm:$0xff]
      %v2776 = vld [vmem:[#allocation3 + $0x92] sm:$0xff]
      %v2777 = vld [vmem:[#allocation3 + $0x9a] sm:$0xff]
      %v2778 = vld [vmem:[#allocation3 + $0xa2] sm:$0xff]
      %v2779 = vld [vmem:[#allocation3 + $0xaa] sm:$0xff]
      %v2780 = vld [vmem:[#allocation3 + $0xb2] sm:$0xff]
      %v2781 = vld [vmem:[#allocation3 + $0xba] sm:$0xff]
      %v2782 = vld [vmem:[#allocation3 + $0xc2] sm:$0xff]
      %v2783 = vld [vmem:[#allocation3 + $0xca] sm:$0xff]
      %v2784 = vld [vmem:[#allocation3 + $0xd2] sm:$0xff]
      %v2785 = vld [vmem:[#allocation3 + $0xda] sm:$0xff]
      %v2786 = vld [vmem:[#allocation3 + $0xe2] sm:$0xff]
      %v2787 = vld [vmem:[#allocation3 + $0xea] sm:$0xff]
      %v2788 = vld [vmem:[#allocation3 + $0xf2] sm:$0xff]
      %s2789 = scalar_lea.vmem %s4, 64
      %v2790 = vld [vmem:[%s2789] sm:$0xff]
      %v2791 = vld [vmem:[%s2789 + $0x8] sm:$0xff]
      %v2792 = vld [vmem:[%s2789 + $0x10] sm:$0xff]
      %v2793 = vld [vmem:[%s2789 + $0x18] sm:$0xff]
      %v2795 = vsel %vm1295, %v2758, 0
      %v2798 = vsel %vm1295, %v2759, 0
      %v2801 = vsel %vm1295, %v2760, 0
      %v2804 = vsel %vm1295, %v2761, 0
      %v2807 = vsel %vm1295, %v2762, 0
      %v2810 = vsel %vm1295, %v2763, 0
      %v2813 = vsel %vm1295, %v2764, 0
      %v2816 = vsel %vm1295, %v2765, 0
      %v2819 = vsel %vm1295, %v2766, 0
      %v2822 = vsel %vm1295, %v2767, 0
      %v2825 = vsel %vm1295, %v2768, 0
      %v2828 = vsel %vm1295, %v2769, 0
      %v2831 = vsel %vm1295, %v2770, 0
      %v2834 = vsel %vm1295, %v2771, 0
      %v2837 = vsel %vm1295, %v2772, 0
      %v2840 = vsel %vm1295, %v2773, 0
      %v2843 = vsel %vm1295, %v2774, 0
      %v2846 = vsel %vm1295, %v2775, 0
      %v2849 = vsel %vm1295, %v2776, 0
      %v2852 = vsel %vm1295, %v2777, 0
      %v2855 = vsel %vm1295, %v2778, 0
      %v2858 = vsel %vm1295, %v2779, 0
      %v2861 = vsel %vm1295, %v2780, 0
      %v2864 = vsel %vm1295, %v2781, 0
      %v2867 = vsel %vm1295, %v2782, 0
      %v2870 = vsel %vm1295, %v2783, 0
      %v2873 = vsel %vm1295, %v2784, 0
      %v2876 = vsel %vm1295, %v2785, 0
      %v2879 = vsel %vm1295, %v2786, 0
      %v2882 = vsel %vm1295, %v2787, 0
      %v2885 = vsel %vm1295, %v2788, 0
      %2887 = vmatpush.msra.mxu0 0.0
      %2888 = vmatpush.msra.mxu0 0.0
      %2889 = vmatpush.msra.mxu0 0.0
      %2890 = vmatpush.msra.mxu0 0.0
      %2891 = vmatpush.msra.mxu0 0.0
      %2892 = vmatpush.msra.mxu0 0.0
      %2893 = vmatpush.msra.mxu0 0.0
      %2894 = vmatpush.msra.mxu0 0.0
      %2895 = vmatpush.msra.mxu0 0.0
      %2896 = vmatpush.msra.mxu0 0.0
      %2897 = vmatpush.msra.mxu0 0.0
      %2898 = vmatpush.msra.mxu0 0.0
      %2899 = vmatpush.msra.mxu0 %v2793
      %2900 = vmatpush.msra.mxu0 %v2792
      %2901 = vmatpush.msra.mxu0 %v2791
      %2902 = vmatpush.msra.mxu0 %v2790
      %2903 = vmatmul.f32.gmra.mxu0 %v2795
      %v2904 = vpop.f32.mrf.mxu0
      %v2905 = vadd.f32 0.0, %v2904
      %2906 = vmatmul.f32.gmra.mxu0 %v2798
      %v2907 = vpop.f32.mrf.mxu0
      %v2908 = vadd.f32 0.0, %v2907
      %2909 = vmatmul.f32.gmra.mxu0 %v2801
      %v2910 = vpop.f32.mrf.mxu0
      %v2911 = vadd.f32 0.0, %v2910
      %2912 = vmatmul.f32.gmra.mxu0 %v2804
      %v2913 = vpop.f32.mrf.mxu0
      %v2914 = vadd.f32 0.0, %v2913
      %2915 = vmatmul.f32.gmra.mxu0 %v2807
      %v2916 = vpop.f32.mrf.mxu0
      %v2917 = vadd.f32 0.0, %v2916
      %2918 = vmatmul.f32.gmra.mxu0 %v2810
      %v2919 = vpop.f32.mrf.mxu0
      %v2920 = vadd.f32 0.0, %v2919
      %2921 = vmatmul.f32.gmra.mxu0 %v2813
      %v2922 = vpop.f32.mrf.mxu0
      %v2923 = vadd.f32 0.0, %v2922
      %2924 = vmatmul.f32.gmra.mxu0 %v2816
      %v2925 = vpop.f32.mrf.mxu0
      %v2926 = vadd.f32 0.0, %v2925
      %2927 = vmatmul.f32.gmra.mxu0 %v2819
      %v2928 = vpop.f32.mrf.mxu0
      %v2929 = vadd.f32 0.0, %v2928
      %2930 = vmatmul.f32.gmra.mxu0 %v2822
      %v2931 = vpop.f32.mrf.mxu0
      %v2932 = vadd.f32 0.0, %v2931
      %2933 = vmatmul.f32.gmra.mxu0 %v2825
      %v2934 = vpop.f32.mrf.mxu0
      %v2935 = vadd.f32 0.0, %v2934
      %2936 = vmatmul.f32.gmra.mxu0 %v2828
      %v2937 = vpop.f32.mrf.mxu0
      %v2938 = vadd.f32 0.0, %v2937
      %2939 = vmatmul.f32.gmra.mxu0 %v2831
      %v2940 = vpop.f32.mrf.mxu0
      %v2941 = vadd.f32 0.0, %v2940
      %2942 = vmatmul.f32.gmra.mxu0 %v2834
      %v2943 = vpop.f32.mrf.mxu0
      %v2944 = vadd.f32 0.0, %v2943
      %2945 = vmatmul.f32.gmra.mxu0 %v2837
      %v2946 = vpop.f32.mrf.mxu0
      %v2947 = vadd.f32 0.0, %v2946
      %2948 = vmatmul.f32.gmra.mxu0 %v2840
      %v2949 = vpop.f32.mrf.mxu0
      %v2950 = vadd.f32 0.0, %v2949
      %2951 = vmatmul.f32.gmra.mxu0 %v2843
      %v2952 = vpop.f32.mrf.mxu0
      %v2953 = vadd.f32 0.0, %v2952
      %2954 = vmatmul.f32.gmra.mxu0 %v2846
      %v2955 = vpop.f32.mrf.mxu0
      %v2956 = vadd.f32 0.0, %v2955
      %2957 = vmatmul.f32.gmra.mxu0 %v2849
      %v2958 = vpop.f32.mrf.mxu0
      %v2959 = vadd.f32 0.0, %v2958
      %2960 = vmatmul.f32.gmra.mxu0 %v2852
      %v2961 = vpop.f32.mrf.mxu0
      %v2962 = vadd.f32 0.0, %v2961
      %2963 = vmatmul.f32.gmra.mxu0 %v2855
      %v2964 = vpop.f32.mrf.mxu0
      %v2965 = vadd.f32 0.0, %v2964
      %2966 = vmatmul.f32.gmra.mxu0 %v2858
      %v2967 = vpop.f32.mrf.mxu0
      %v2968 = vadd.f32 0.0, %v2967
      %2969 = vmatmul.f32.gmra.mxu0 %v2861
      %v2970 = vpop.f32.mrf.mxu0
      %v2971 = vadd.f32 0.0, %v2970
      %2972 = vmatmul.f32.gmra.mxu0 %v2864
      %v2973 = vpop.f32.mrf.mxu0
      %v2974 = vadd.f32 0.0, %v2973
      %2975 = vmatmul.f32.gmra.mxu0 %v2867
      %v2976 = vpop.f32.mrf.mxu0
      %v2977 = vadd.f32 0.0, %v2976
      %2978 = vmatmul.f32.gmra.mxu0 %v2870
      %v2979 = vpop.f32.mrf.mxu0
      %v2980 = vadd.f32 0.0, %v2979
      %2981 = vmatmul.f32.gmra.mxu0 %v2873
      %v2982 = vpop.f32.mrf.mxu0
      %v2983 = vadd.f32 0.0, %v2982
      %2984 = vmatmul.f32.gmra.mxu0 %v2876
      %v2985 = vpop.f32.mrf.mxu0
      %v2986 = vadd.f32 0.0, %v2985
      %2987 = vmatmul.f32.gmra.mxu0 %v2879
      %v2988 = vpop.f32.mrf.mxu0
      %v2989 = vadd.f32 0.0, %v2988
      %2990 = vmatmul.f32.gmra.mxu0 %v2882
      %v2991 = vpop.f32.mrf.mxu0
      %v2992 = vadd.f32 0.0, %v2991
      %2993 = vmatmul.f32.gmra.mxu0 %v2885
      %v2994 = vpop.f32.mrf.mxu0
      %v2995 = vadd.f32 0.0, %v2994
      %2996 = vdwg.mxu0
      %v2997 = vadd.f32 %v2666, %v2905
      %v2998 = vadd.f32 %v2669, %v2908
      %v2999 = vadd.f32 %v2672, %v2911
      %v3000 = vadd.f32 %v2675, %v2914
      %v3001 = vadd.f32 %v2678, %v2917
      %v3002 = vadd.f32 %v2681, %v2920
      %v3003 = vadd.f32 %v2684, %v2923
      %v3004 = vadd.f32 %v2687, %v2926
      %v3005 = vadd.f32 %v2690, %v2929
      %v3006 = vadd.f32 %v2693, %v2932
      %v3007 = vadd.f32 %v2696, %v2935
      %v3008 = vadd.f32 %v2699, %v2938
      %v3009 = vadd.f32 %v2702, %v2941
      %v3010 = vadd.f32 %v2705, %v2944
      %v3011 = vadd.f32 %v2708, %v2947
      %v3012 = vadd.f32 %v2711, %v2950
      %v3013 = vadd.f32 %v2714, %v2953
      %v3014 = vadd.f32 %v2717, %v2956
      %v3015 = vadd.f32 %v2720, %v2959
      %v3016 = vadd.f32 %v2723, %v2962
      %v3017 = vadd.f32 %v2726, %v2965
      %v3018 = vadd.f32 %v2729, %v2968
      %v3019 = vadd.f32 %v2732, %v2971
      %v3020 = vadd.f32 %v2735, %v2974
      %v3021 = vadd.f32 %v2738, %v2977
      %v3022 = vadd.f32 %v2741, %v2980
      %v3023 = vadd.f32 %v2744, %v2983
      %v3024 = vadd.f32 %v2747, %v2986
      %v3025 = vadd.f32 %v2750, %v2989
      %v3026 = vadd.f32 %v2753, %v2992
      %v3027 = vadd.f32 %v2756, %v2995
      %v3028 = vld [vmem:[#allocation3 + $0x3] sm:$0xff]
      %v3029 = vld [vmem:[#allocation3 + $0xb] sm:$0xff]
      %v3030 = vld [vmem:[#allocation3 + $0x13] sm:$0xff]
      %v3031 = vld [vmem:[#allocation3 + $0x1b] sm:$0xff]
      %v3032 = vld [vmem:[#allocation3 + $0x23] sm:$0xff]
      %v3033 = vld [vmem:[#allocation3 + $0x2b] sm:$0xff]
      %v3034 = vld [vmem:[#allocation3 + $0x33] sm:$0xff]
      %v3035 = vld [vmem:[#allocation3 + $0x3b] sm:$0xff]
      %v3036 = vld [vmem:[#allocation3 + $0x43] sm:$0xff]
      %v3037 = vld [vmem:[#allocation3 + $0x4b] sm:$0xff]
      %v3038 = vld [vmem:[#allocation3 + $0x53] sm:$0xff]
      %v3039 = vld [vmem:[#allocation3 + $0x5b] sm:$0xff]
      %v3040 = vld [vmem:[#allocation3 + $0x63] sm:$0xff]
      %v3041 = vld [vmem:[#allocation3 + $0x6b] sm:$0xff]
      %v3042 = vld [vmem:[#allocation3 + $0x73] sm:$0xff]
      %v3043 = vld [vmem:[#allocation3 + $0x7b] sm:$0xff]
      %v3044 = vld [vmem:[#allocation3 + $0x83] sm:$0xff]
      %v3045 = vld [vmem:[#allocation3 + $0x8b] sm:$0xff]
      %v3046 = vld [vmem:[#allocation3 + $0x93] sm:$0xff]
      %v3047 = vld [vmem:[#allocation3 + $0x9b] sm:$0xff]
      %v3048 = vld [vmem:[#allocation3 + $0xa3] sm:$0xff]
      %v3049 = vld [vmem:[#allocation3 + $0xab] sm:$0xff]
      %v3050 = vld [vmem:[#allocation3 + $0xb3] sm:$0xff]
      %v3051 = vld [vmem:[#allocation3 + $0xbb] sm:$0xff]
      %v3052 = vld [vmem:[#allocation3 + $0xc3] sm:$0xff]
      %v3053 = vld [vmem:[#allocation3 + $0xcb] sm:$0xff]
      %v3054 = vld [vmem:[#allocation3 + $0xd3] sm:$0xff]
      %v3055 = vld [vmem:[#allocation3 + $0xdb] sm:$0xff]
      %v3056 = vld [vmem:[#allocation3 + $0xe3] sm:$0xff]
      %v3057 = vld [vmem:[#allocation3 + $0xeb] sm:$0xff]
      %v3058 = vld [vmem:[#allocation3 + $0xf3] sm:$0xff]
      %s3059 = scalar_lea.vmem %s4, 96
      %v3060 = vld [vmem:[%s3059] sm:$0xff]
      %v3061 = vld [vmem:[%s3059 + $0x8] sm:$0xff]
      %v3062 = vld [vmem:[%s3059 + $0x10] sm:$0xff]
      %v3063 = vld [vmem:[%s3059 + $0x18] sm:$0xff]
      %v3065 = vsel %vm1295, %v3028, 0
      %v3068 = vsel %vm1295, %v3029, 0
      %v3071 = vsel %vm1295, %v3030, 0
      %v3074 = vsel %vm1295, %v3031, 0
      %v3077 = vsel %vm1295, %v3032, 0
      %v3080 = vsel %vm1295, %v3033, 0
      %v3083 = vsel %vm1295, %v3034, 0
      %v3086 = vsel %vm1295, %v3035, 0
      %v3089 = vsel %vm1295, %v3036, 0
      %v3092 = vsel %vm1295, %v3037, 0
      %v3095 = vsel %vm1295, %v3038, 0
      %v3098 = vsel %vm1295, %v3039, 0
      %v3101 = vsel %vm1295, %v3040, 0
      %v3104 = vsel %vm1295, %v3041, 0
      %v3107 = vsel %vm1295, %v3042, 0
      %v3110 = vsel %vm1295, %v3043, 0
      %v3113 = vsel %vm1295, %v3044, 0
      %v3116 = vsel %vm1295, %v3045, 0
      %v3119 = vsel %vm1295, %v3046, 0
      %v3122 = vsel %vm1295, %v3047, 0
      %v3125 = vsel %vm1295, %v3048, 0
      %v3128 = vsel %vm1295, %v3049, 0
      %v3131 = vsel %vm1295, %v3050, 0
      %v3134 = vsel %vm1295, %v3051, 0
      %v3137 = vsel %vm1295, %v3052, 0
      %v3140 = vsel %vm1295, %v3053, 0
      %v3143 = vsel %vm1295, %v3054, 0
      %v3146 = vsel %vm1295, %v3055, 0
      %v3149 = vsel %vm1295, %v3056, 0
      %v3152 = vsel %vm1295, %v3057, 0
      %v3155 = vsel %vm1295, %v3058, 0
      %3157 = vmatpush.msra.mxu0 0.0
      %3158 = vmatpush.msra.mxu0 0.0
      %3159 = vmatpush.msra.mxu0 0.0
      %3160 = vmatpush.msra.mxu0 0.0
      %3161 = vmatpush.msra.mxu0 0.0
      %3162 = vmatpush.msra.mxu0 0.0
      %3163 = vmatpush.msra.mxu0 0.0
      %3164 = vmatpush.msra.mxu0 0.0
      %3165 = vmatpush.msra.mxu0 0.0
      %3166 = vmatpush.msra.mxu0 0.0
      %3167 = vmatpush.msra.mxu0 0.0
      %3168 = vmatpush.msra.mxu0 0.0
      %3169 = vmatpush.msra.mxu0 %v3063
      %3170 = vmatpush.msra.mxu0 %v3062
      %3171 = vmatpush.msra.mxu0 %v3061
      %3172 = vmatpush.msra.mxu0 %v3060
      %3173 = vmatmul.f32.gmra.mxu0 %v3065
      %v3174 = vpop.f32.mrf.mxu0
      %v3175 = vadd.f32 0.0, %v3174
      %3176 = vmatmul.f32.gmra.mxu0 %v3068
      %v3177 = vpop.f32.mrf.mxu0
      %v3178 = vadd.f32 0.0, %v3177
      %3179 = vmatmul.f32.gmra.mxu0 %v3071
      %v3180 = vpop.f32.mrf.mxu0
      %v3181 = vadd.f32 0.0, %v3180
      %3182 = vmatmul.f32.gmra.mxu0 %v3074
      %v3183 = vpop.f32.mrf.mxu0
      %v3184 = vadd.f32 0.0, %v3183
      %3185 = vmatmul.f32.gmra.mxu0 %v3077
      %v3186 = vpop.f32.mrf.mxu0
      %v3187 = vadd.f32 0.0, %v3186
      %3188 = vmatmul.f32.gmra.mxu0 %v3080
      %v3189 = vpop.f32.mrf.mxu0
      %v3190 = vadd.f32 0.0, %v3189
      %3191 = vmatmul.f32.gmra.mxu0 %v3083
      %v3192 = vpop.f32.mrf.mxu0
      %v3193 = vadd.f32 0.0, %v3192
      %3194 = vmatmul.f32.gmra.mxu0 %v3086
      %v3195 = vpop.f32.mrf.mxu0
      %v3196 = vadd.f32 0.0, %v3195
      %3197 = vmatmul.f32.gmra.mxu0 %v3089
      %v3198 = vpop.f32.mrf.mxu0
      %v3199 = vadd.f32 0.0, %v3198
      %3200 = vmatmul.f32.gmra.mxu0 %v3092
      %v3201 = vpop.f32.mrf.mxu0
      %v3202 = vadd.f32 0.0, %v3201
      %3203 = vmatmul.f32.gmra.mxu0 %v3095
      %v3204 = vpop.f32.mrf.mxu0
      %v3205 = vadd.f32 0.0, %v3204
      %3206 = vmatmul.f32.gmra.mxu0 %v3098
      %v3207 = vpop.f32.mrf.mxu0
      %v3208 = vadd.f32 0.0, %v3207
      %3209 = vmatmul.f32.gmra.mxu0 %v3101
      %v3210 = vpop.f32.mrf.mxu0
      %v3211 = vadd.f32 0.0, %v3210
      %3212 = vmatmul.f32.gmra.mxu0 %v3104
      %v3213 = vpop.f32.mrf.mxu0
      %v3214 = vadd.f32 0.0, %v3213
      %3215 = vmatmul.f32.gmra.mxu0 %v3107
      %v3216 = vpop.f32.mrf.mxu0
      %v3217 = vadd.f32 0.0, %v3216
      %3218 = vmatmul.f32.gmra.mxu0 %v3110
      %v3219 = vpop.f32.mrf.mxu0
      %v3220 = vadd.f32 0.0, %v3219
      %3221 = vmatmul.f32.gmra.mxu0 %v3113
      %v3222 = vpop.f32.mrf.mxu0
      %v3223 = vadd.f32 0.0, %v3222
      %3224 = vmatmul.f32.gmra.mxu0 %v3116
      %v3225 = vpop.f32.mrf.mxu0
      %v3226 = vadd.f32 0.0, %v3225
      %3227 = vmatmul.f32.gmra.mxu0 %v3119
      %v3228 = vpop.f32.mrf.mxu0
      %v3229 = vadd.f32 0.0, %v3228
      %3230 = vmatmul.f32.gmra.mxu0 %v3122
      %v3231 = vpop.f32.mrf.mxu0
      %v3232 = vadd.f32 0.0, %v3231
      %3233 = vmatmul.f32.gmra.mxu0 %v3125
      %v3234 = vpop.f32.mrf.mxu0
      %v3235 = vadd.f32 0.0, %v3234
      %3236 = vmatmul.f32.gmra.mxu0 %v3128
      %v3237 = vpop.f32.mrf.mxu0
      %v3238 = vadd.f32 0.0, %v3237
      %3239 = vmatmul.f32.gmra.mxu0 %v3131
      %v3240 = vpop.f32.mrf.mxu0
      %v3241 = vadd.f32 0.0, %v3240
      %3242 = vmatmul.f32.gmra.mxu0 %v3134
      %v3243 = vpop.f32.mrf.mxu0
      %v3244 = vadd.f32 0.0, %v3243
      %3245 = vmatmul.f32.gmra.mxu0 %v3137
      %v3246 = vpop.f32.mrf.mxu0
      %v3247 = vadd.f32 0.0, %v3246
      %3248 = vmatmul.f32.gmra.mxu0 %v3140
      %v3249 = vpop.f32.mrf.mxu0
      %v3250 = vadd.f32 0.0, %v3249
      %3251 = vmatmul.f32.gmra.mxu0 %v3143
      %v3252 = vpop.f32.mrf.mxu0
      %v3253 = vadd.f32 0.0, %v3252
      %3254 = vmatmul.f32.gmra.mxu0 %v3146
      %v3255 = vpop.f32.mrf.mxu0
      %v3256 = vadd.f32 0.0, %v3255
      %3257 = vmatmul.f32.gmra.mxu0 %v3149
      %v3258 = vpop.f32.mrf.mxu0
      %v3259 = vadd.f32 0.0, %v3258
      %3260 = vmatmul.f32.gmra.mxu0 %v3152
      %v3261 = vpop.f32.mrf.mxu0
      %v3262 = vadd.f32 0.0, %v3261
      %3263 = vmatmul.f32.gmra.mxu0 %v3155
      %v3264 = vpop.f32.mrf.mxu0
      %v3265 = vadd.f32 0.0, %v3264
      %3266 = vdwg.mxu0
      %v3267 = vadd.f32 %v2997, %v3175
      %v3268 = vadd.f32 %v2998, %v3178
      %v3269 = vadd.f32 %v2999, %v3181
      %v3270 = vadd.f32 %v3000, %v3184
      %v3271 = vadd.f32 %v3001, %v3187
      %v3272 = vadd.f32 %v3002, %v3190
      %v3273 = vadd.f32 %v3003, %v3193
      %v3274 = vadd.f32 %v3004, %v3196
      %v3275 = vadd.f32 %v3005, %v3199
      %v3276 = vadd.f32 %v3006, %v3202
      %v3277 = vadd.f32 %v3007, %v3205
      %v3278 = vadd.f32 %v3008, %v3208
      %v3279 = vadd.f32 %v3009, %v3211
      %v3280 = vadd.f32 %v3010, %v3214
      %v3281 = vadd.f32 %v3011, %v3217
      %v3282 = vadd.f32 %v3012, %v3220
      %v3283 = vadd.f32 %v3013, %v3223
      %v3284 = vadd.f32 %v3014, %v3226
      %v3285 = vadd.f32 %v3015, %v3229
      %v3286 = vadd.f32 %v3016, %v3232
      %v3287 = vadd.f32 %v3017, %v3235
      %v3288 = vadd.f32 %v3018, %v3238
      %v3289 = vadd.f32 %v3019, %v3241
      %v3290 = vadd.f32 %v3020, %v3244
      %v3291 = vadd.f32 %v3021, %v3247
      %v3292 = vadd.f32 %v3022, %v3250
      %v3293 = vadd.f32 %v3023, %v3253
      %v3294 = vadd.f32 %v3024, %v3256
      %v3295 = vadd.f32 %v3025, %v3259
      %v3296 = vadd.f32 %v3026, %v3262
      %v3297 = vadd.f32 %v3027, %v3265
      %v3298 = vld [vmem:[#allocation3 + $0x4] sm:$0xff]
      %v3299 = vld [vmem:[#allocation3 + $0xc] sm:$0xff]
      %v3300 = vld [vmem:[#allocation3 + $0x14] sm:$0xff]
      %v3301 = vld [vmem:[#allocation3 + $0x1c] sm:$0xff]
      %v3302 = vld [vmem:[#allocation3 + $0x24] sm:$0xff]
      %v3303 = vld [vmem:[#allocation3 + $0x2c] sm:$0xff]
      %v3304 = vld [vmem:[#allocation3 + $0x34] sm:$0xff]
      %v3305 = vld [vmem:[#allocation3 + $0x3c] sm:$0xff]
      %v3306 = vld [vmem:[#allocation3 + $0x44] sm:$0xff]
      %v3307 = vld [vmem:[#allocation3 + $0x4c] sm:$0xff]
      %v3308 = vld [vmem:[#allocation3 + $0x54] sm:$0xff]
      %v3309 = vld [vmem:[#allocation3 + $0x5c] sm:$0xff]
      %v3310 = vld [vmem:[#allocation3 + $0x64] sm:$0xff]
      %v3311 = vld [vmem:[#allocation3 + $0x6c] sm:$0xff]
      %v3312 = vld [vmem:[#allocation3 + $0x74] sm:$0xff]
      %v3313 = vld [vmem:[#allocation3 + $0x7c] sm:$0xff]
      %v3314 = vld [vmem:[#allocation3 + $0x84] sm:$0xff]
      %v3315 = vld [vmem:[#allocation3 + $0x8c] sm:$0xff]
      %v3316 = vld [vmem:[#allocation3 + $0x94] sm:$0xff]
      %v3317 = vld [vmem:[#allocation3 + $0x9c] sm:$0xff]
      %v3318 = vld [vmem:[#allocation3 + $0xa4] sm:$0xff]
      %v3319 = vld [vmem:[#allocation3 + $0xac] sm:$0xff]
      %v3320 = vld [vmem:[#allocation3 + $0xb4] sm:$0xff]
      %v3321 = vld [vmem:[#allocation3 + $0xbc] sm:$0xff]
      %v3322 = vld [vmem:[#allocation3 + $0xc4] sm:$0xff]
      %v3323 = vld [vmem:[#allocation3 + $0xcc] sm:$0xff]
      %v3324 = vld [vmem:[#allocation3 + $0xd4] sm:$0xff]
      %v3325 = vld [vmem:[#allocation3 + $0xdc] sm:$0xff]
      %v3326 = vld [vmem:[#allocation3 + $0xe4] sm:$0xff]
      %v3327 = vld [vmem:[#allocation3 + $0xec] sm:$0xff]
      %v3328 = vld [vmem:[#allocation3 + $0xf4] sm:$0xff]
      %s3329 = scalar_lea.vmem %s4, 128
      %v3330 = vld [vmem:[%s3329] sm:$0xff]
      %v3331 = vld [vmem:[%s3329 + $0x8] sm:$0xff]
      %v3332 = vld [vmem:[%s3329 + $0x10] sm:$0xff]
      %v3333 = vld [vmem:[%s3329 + $0x18] sm:$0xff]
      %v3335 = vsel %vm1295, %v3298, 0
      %v3338 = vsel %vm1295, %v3299, 0
      %v3341 = vsel %vm1295, %v3300, 0
      %v3344 = vsel %vm1295, %v3301, 0
      %v3347 = vsel %vm1295, %v3302, 0
      %v3350 = vsel %vm1295, %v3303, 0
      %v3353 = vsel %vm1295, %v3304, 0
      %v3356 = vsel %vm1295, %v3305, 0
      %v3359 = vsel %vm1295, %v3306, 0
      %v3362 = vsel %vm1295, %v3307, 0
      %v3365 = vsel %vm1295, %v3308, 0
      %v3368 = vsel %vm1295, %v3309, 0
      %v3371 = vsel %vm1295, %v3310, 0
      %v3374 = vsel %vm1295, %v3311, 0
      %v3377 = vsel %vm1295, %v3312, 0
      %v3380 = vsel %vm1295, %v3313, 0
      %v3383 = vsel %vm1295, %v3314, 0
      %v3386 = vsel %vm1295, %v3315, 0
      %v3389 = vsel %vm1295, %v3316, 0
      %v3392 = vsel %vm1295, %v3317, 0
      %v3395 = vsel %vm1295, %v3318, 0
      %v3398 = vsel %vm1295, %v3319, 0
      %v3401 = vsel %vm1295, %v3320, 0
      %v3404 = vsel %vm1295, %v3321, 0
      %v3407 = vsel %vm1295, %v3322, 0
      %v3410 = vsel %vm1295, %v3323, 0
      %v3413 = vsel %vm1295, %v3324, 0
      %v3416 = vsel %vm1295, %v3325, 0
      %v3419 = vsel %vm1295, %v3326, 0
      %v3422 = vsel %vm1295, %v3327, 0
      %v3425 = vsel %vm1295, %v3328, 0
      %3427 = vmatpush.msra.mxu0 0.0
      %3428 = vmatpush.msra.mxu0 0.0
      %3429 = vmatpush.msra.mxu0 0.0
      %3430 = vmatpush.msra.mxu0 0.0
      %3431 = vmatpush.msra.mxu0 0.0
      %3432 = vmatpush.msra.mxu0 0.0
      %3433 = vmatpush.msra.mxu0 0.0
      %3434 = vmatpush.msra.mxu0 0.0
      %3435 = vmatpush.msra.mxu0 0.0
      %3436 = vmatpush.msra.mxu0 0.0
      %3437 = vmatpush.msra.mxu0 0.0
      %3438 = vmatpush.msra.mxu0 0.0
      %3439 = vmatpush.msra.mxu0 %v3333
      %3440 = vmatpush.msra.mxu0 %v3332
      %3441 = vmatpush.msra.mxu0 %v3331
      %3442 = vmatpush.msra.mxu0 %v3330
      %3443 = vmatmul.f32.gmra.mxu0 %v3335
      %v3444 = vpop.f32.mrf.mxu0
      %v3445 = vadd.f32 0.0, %v3444
      %3446 = vmatmul.f32.gmra.mxu0 %v3338
      %v3447 = vpop.f32.mrf.mxu0
      %v3448 = vadd.f32 0.0, %v3447
      %3449 = vmatmul.f32.gmra.mxu0 %v3341
      %v3450 = vpop.f32.mrf.mxu0
      %v3451 = vadd.f32 0.0, %v3450
      %3452 = vmatmul.f32.gmra.mxu0 %v3344
      %v3453 = vpop.f32.mrf.mxu0
      %v3454 = vadd.f32 0.0, %v3453
      %3455 = vmatmul.f32.gmra.mxu0 %v3347
      %v3456 = vpop.f32.mrf.mxu0
      %v3457 = vadd.f32 0.0, %v3456
      %3458 = vmatmul.f32.gmra.mxu0 %v3350
      %v3459 = vpop.f32.mrf.mxu0
      %v3460 = vadd.f32 0.0, %v3459
      %3461 = vmatmul.f32.gmra.mxu0 %v3353
      %v3462 = vpop.f32.mrf.mxu0
      %v3463 = vadd.f32 0.0, %v3462
      %3464 = vmatmul.f32.gmra.mxu0 %v3356
      %v3465 = vpop.f32.mrf.mxu0
      %v3466 = vadd.f32 0.0, %v3465
      %3467 = vmatmul.f32.gmra.mxu0 %v3359
      %v3468 = vpop.f32.mrf.mxu0
      %v3469 = vadd.f32 0.0, %v3468
      %3470 = vmatmul.f32.gmra.mxu0 %v3362
      %v3471 = vpop.f32.mrf.mxu0
      %v3472 = vadd.f32 0.0, %v3471
      %3473 = vmatmul.f32.gmra.mxu0 %v3365
      %v3474 = vpop.f32.mrf.mxu0
      %v3475 = vadd.f32 0.0, %v3474
      %3476 = vmatmul.f32.gmra.mxu0 %v3368
      %v3477 = vpop.f32.mrf.mxu0
      %v3478 = vadd.f32 0.0, %v3477
      %3479 = vmatmul.f32.gmra.mxu0 %v3371
      %v3480 = vpop.f32.mrf.mxu0
      %v3481 = vadd.f32 0.0, %v3480
      %3482 = vmatmul.f32.gmra.mxu0 %v3374
      %v3483 = vpop.f32.mrf.mxu0
      %v3484 = vadd.f32 0.0, %v3483
      %3485 = vmatmul.f32.gmra.mxu0 %v3377
      %v3486 = vpop.f32.mrf.mxu0
      %v3487 = vadd.f32 0.0, %v3486
      %3488 = vmatmul.f32.gmra.mxu0 %v3380
      %v3489 = vpop.f32.mrf.mxu0
      %v3490 = vadd.f32 0.0, %v3489
      %3491 = vmatmul.f32.gmra.mxu0 %v3383
      %v3492 = vpop.f32.mrf.mxu0
      %v3493 = vadd.f32 0.0, %v3492
      %3494 = vmatmul.f32.gmra.mxu0 %v3386
      %v3495 = vpop.f32.mrf.mxu0
      %v3496 = vadd.f32 0.0, %v3495
      %3497 = vmatmul.f32.gmra.mxu0 %v3389
      %v3498 = vpop.f32.mrf.mxu0
      %v3499 = vadd.f32 0.0, %v3498
      %3500 = vmatmul.f32.gmra.mxu0 %v3392
      %v3501 = vpop.f32.mrf.mxu0
      %v3502 = vadd.f32 0.0, %v3501
      %3503 = vmatmul.f32.gmra.mxu0 %v3395
      %v3504 = vpop.f32.mrf.mxu0
      %v3505 = vadd.f32 0.0, %v3504
      %3506 = vmatmul.f32.gmra.mxu0 %v3398
      %v3507 = vpop.f32.mrf.mxu0
      %v3508 = vadd.f32 0.0, %v3507
      %3509 = vmatmul.f32.gmra.mxu0 %v3401
      %v3510 = vpop.f32.mrf.mxu0
      %v3511 = vadd.f32 0.0, %v3510
      %3512 = vmatmul.f32.gmra.mxu0 %v3404
      %v3513 = vpop.f32.mrf.mxu0
      %v3514 = vadd.f32 0.0, %v3513
      %3515 = vmatmul.f32.gmra.mxu0 %v3407
      %v3516 = vpop.f32.mrf.mxu0
      %v3517 = vadd.f32 0.0, %v3516
      %3518 = vmatmul.f32.gmra.mxu0 %v3410
      %v3519 = vpop.f32.mrf.mxu0
      %v3520 = vadd.f32 0.0, %v3519
      %3521 = vmatmul.f32.gmra.mxu0 %v3413
      %v3522 = vpop.f32.mrf.mxu0
      %v3523 = vadd.f32 0.0, %v3522
      %3524 = vmatmul.f32.gmra.mxu0 %v3416
      %v3525 = vpop.f32.mrf.mxu0
      %v3526 = vadd.f32 0.0, %v3525
      %3527 = vmatmul.f32.gmra.mxu0 %v3419
      %v3528 = vpop.f32.mrf.mxu0
      %v3529 = vadd.f32 0.0, %v3528
      %3530 = vmatmul.f32.gmra.mxu0 %v3422
      %v3531 = vpop.f32.mrf.mxu0
      %v3532 = vadd.f32 0.0, %v3531
      %3533 = vmatmul.f32.gmra.mxu0 %v3425
      %v3534 = vpop.f32.mrf.mxu0
      %v3535 = vadd.f32 0.0, %v3534
      %3536 = vdwg.mxu0
      %v3537 = vadd.f32 %v3267, %v3445
      %v3538 = vadd.f32 %v3268, %v3448
      %v3539 = vadd.f32 %v3269, %v3451
      %v3540 = vadd.f32 %v3270, %v3454
      %v3541 = vadd.f32 %v3271, %v3457
      %v3542 = vadd.f32 %v3272, %v3460
      %v3543 = vadd.f32 %v3273, %v3463
      %v3544 = vadd.f32 %v3274, %v3466
      %v3545 = vadd.f32 %v3275, %v3469
      %v3546 = vadd.f32 %v3276, %v3472
      %v3547 = vadd.f32 %v3277, %v3475
      %v3548 = vadd.f32 %v3278, %v3478
      %v3549 = vadd.f32 %v3279, %v3481
      %v3550 = vadd.f32 %v3280, %v3484
      %v3551 = vadd.f32 %v3281, %v3487
      %v3552 = vadd.f32 %v3282, %v3490
      %v3553 = vadd.f32 %v3283, %v3493
      %v3554 = vadd.f32 %v3284, %v3496
      %v3555 = vadd.f32 %v3285, %v3499
      %v3556 = vadd.f32 %v3286, %v3502
      %v3557 = vadd.f32 %v3287, %v3505
      %v3558 = vadd.f32 %v3288, %v3508
      %v3559 = vadd.f32 %v3289, %v3511
      %v3560 = vadd.f32 %v3290, %v3514
      %v3561 = vadd.f32 %v3291, %v3517
      %v3562 = vadd.f32 %v3292, %v3520
      %v3563 = vadd.f32 %v3293, %v3523
      %v3564 = vadd.f32 %v3294, %v3526
      %v3565 = vadd.f32 %v3295, %v3529
      %v3566 = vadd.f32 %v3296, %v3532
      %v3567 = vadd.f32 %v3297, %v3535
      %v3568 = vld [vmem:[#allocation3 + $0x12] sm:$0xff]
      %v3569 = vld [vmem:[#allocation3 + $0x1a] sm:$0xff]
      %v3570 = vld [vmem:[#allocation3 + $0x22] sm:$0xff]
      %v3571 = vld [vmem:[#allocation3 + $0x2a] sm:$0xff]
      %v3572 = vld [vmem:[#allocation3 + $0x32] sm:$0xff]
      %v3573 = vld [vmem:[#allocation3 + $0x3a] sm:$0xff]
      %v3574 = vld [vmem:[#allocation3 + $0x42] sm:$0xff]
      %v3575 = vld [vmem:[#allocation3 + $0x4a] sm:$0xff]
      %v3576 = vld [vmem:[#allocation3 + $0x52] sm:$0xff]
      %v3577 = vld [vmem:[#allocation3 + $0x5a] sm:$0xff]
      %v3578 = vld [vmem:[#allocation3 + $0x62] sm:$0xff]
      %v3579 = vld [vmem:[#allocation3 + $0x6a] sm:$0xff]
      %v3580 = vld [vmem:[#allocation3 + $0x72] sm:$0xff]
      %v3581 = vld [vmem:[#allocation3 + $0x7a] sm:$0xff]
      %v3582 = vld [vmem:[#allocation3 + $0x82] sm:$0xff]
      %v3583 = vld [vmem:[#allocation3 + $0x8a] sm:$0xff]
      %v3584 = vld [vmem:[#allocation3 + $0x92] sm:$0xff]
      %v3585 = vld [vmem:[#allocation3 + $0x9a] sm:$0xff]
      %v3586 = vld [vmem:[#allocation3 + $0xa2] sm:$0xff]
      %v3587 = vld [vmem:[#allocation3 + $0xaa] sm:$0xff]
      %v3588 = vld [vmem:[#allocation3 + $0xb2] sm:$0xff]
      %v3589 = vld [vmem:[#allocation3 + $0xba] sm:$0xff]
      %v3590 = vld [vmem:[#allocation3 + $0xc2] sm:$0xff]
      %v3591 = vld [vmem:[#allocation3 + $0xca] sm:$0xff]
      %v3592 = vld [vmem:[#allocation3 + $0xd2] sm:$0xff]
      %v3593 = vld [vmem:[#allocation3 + $0xda] sm:$0xff]
      %v3594 = vld [vmem:[#allocation3 + $0xe2] sm:$0xff]
      %v3595 = vld [vmem:[#allocation3 + $0xea] sm:$0xff]
      %v3596 = vld [vmem:[#allocation3 + $0xf2] sm:$0xff]
      %v3597 = vld [vmem:[#allocation3 + $0xfa] sm:$0xff]
      %v3598 = vld [vmem:[#allocation3 + $0x102] sm:$0xff]
      %s3599 = scalar_lea.vmem %s4, 160
      %v3600 = vld [vmem:[%s3599] sm:$0xff]
      %v3601 = vld [vmem:[%s3599 + $0x8] sm:$0xff]
      %v3602 = vld [vmem:[%s3599 + $0x10] sm:$0xff]
      %v3603 = vld [vmem:[%s3599 + $0x18] sm:$0xff]
      %v3605 = vsel %vm1295, %v3568, 0
      %v3608 = vsel %vm1295, %v3569, 0
      %v3611 = vsel %vm1295, %v3570, 0
      %v3614 = vsel %vm1295, %v3571, 0
      %v3617 = vsel %vm1295, %v3572, 0
      %v3620 = vsel %vm1295, %v3573, 0
      %v3623 = vsel %vm1295, %v3574, 0
      %v3626 = vsel %vm1295, %v3575, 0
      %v3629 = vsel %vm1295, %v3576, 0
      %v3632 = vsel %vm1295, %v3577, 0
      %v3635 = vsel %vm1295, %v3578, 0
      %v3638 = vsel %vm1295, %v3579, 0
      %v3641 = vsel %vm1295, %v3580, 0
      %v3644 = vsel %vm1295, %v3581, 0
      %v3647 = vsel %vm1295, %v3582, 0
      %v3650 = vsel %vm1295, %v3583, 0
      %v3653 = vsel %vm1295, %v3584, 0
      %v3656 = vsel %vm1295, %v3585, 0
      %v3659 = vsel %vm1295, %v3586, 0
      %v3662 = vsel %vm1295, %v3587, 0
      %v3665 = vsel %vm1295, %v3588, 0
      %v3668 = vsel %vm1295, %v3589, 0
      %v3671 = vsel %vm1295, %v3590, 0
      %v3674 = vsel %vm1295, %v3591, 0
      %v3677 = vsel %vm1295, %v3592, 0
      %v3680 = vsel %vm1295, %v3593, 0
      %v3683 = vsel %vm1295, %v3594, 0
      %v3686 = vsel %vm1295, %v3595, 0
      %v3689 = vsel %vm1295, %v3596, 0
      %v3692 = vsel %vm1295, %v3597, 0
      %v3695 = vsel %vm1295, %v3598, 0
      %3697 = vmatpush.msra.mxu0 0.0
      %3698 = vmatpush.msra.mxu0 0.0
      %3699 = vmatpush.msra.mxu0 0.0
      %3700 = vmatpush.msra.mxu0 0.0
      %3701 = vmatpush.msra.mxu0 0.0
      %3702 = vmatpush.msra.mxu0 0.0
      %3703 = vmatpush.msra.mxu0 0.0
      %3704 = vmatpush.msra.mxu0 0.0
      %3705 = vmatpush.msra.mxu0 0.0
      %3706 = vmatpush.msra.mxu0 0.0
      %3707 = vmatpush.msra.mxu0 0.0
      %3708 = vmatpush.msra.mxu0 0.0
      %3709 = vmatpush.msra.mxu0 %v3603
      %3710 = vmatpush.msra.mxu0 %v3602
      %3711 = vmatpush.msra.mxu0 %v3601
      %3712 = vmatpush.msra.mxu0 %v3600
      %3713 = vmatmul.f32.gmra.mxu0 %v3605
      %v3714 = vpop.f32.mrf.mxu0
      %v3715 = vadd.f32 0.0, %v3714
      %3716 = vmatmul.f32.gmra.mxu0 %v3608
      %v3717 = vpop.f32.mrf.mxu0
      %v3718 = vadd.f32 0.0, %v3717
      %3719 = vmatmul.f32.gmra.mxu0 %v3611
      %v3720 = vpop.f32.mrf.mxu0
      %v3721 = vadd.f32 0.0, %v3720
      %3722 = vmatmul.f32.gmra.mxu0 %v3614
      %v3723 = vpop.f32.mrf.mxu0
      %v3724 = vadd.f32 0.0, %v3723
      %3725 = vmatmul.f32.gmra.mxu0 %v3617
      %v3726 = vpop.f32.mrf.mxu0
      %v3727 = vadd.f32 0.0, %v3726
      %3728 = vmatmul.f32.gmra.mxu0 %v3620
      %v3729 = vpop.f32.mrf.mxu0
      %v3730 = vadd.f32 0.0, %v3729
      %3731 = vmatmul.f32.gmra.mxu0 %v3623
      %v3732 = vpop.f32.mrf.mxu0
      %v3733 = vadd.f32 0.0, %v3732
      %3734 = vmatmul.f32.gmra.mxu0 %v3626
      %v3735 = vpop.f32.mrf.mxu0
      %v3736 = vadd.f32 0.0, %v3735
      %3737 = vmatmul.f32.gmra.mxu0 %v3629
      %v3738 = vpop.f32.mrf.mxu0
      %v3739 = vadd.f32 0.0, %v3738
      %3740 = vmatmul.f32.gmra.mxu0 %v3632
      %v3741 = vpop.f32.mrf.mxu0
      %v3742 = vadd.f32 0.0, %v3741
      %3743 = vmatmul.f32.gmra.mxu0 %v3635
      %v3744 = vpop.f32.mrf.mxu0
      %v3745 = vadd.f32 0.0, %v3744
      %3746 = vmatmul.f32.gmra.mxu0 %v3638
      %v3747 = vpop.f32.mrf.mxu0
      %v3748 = vadd.f32 0.0, %v3747
      %3749 = vmatmul.f32.gmra.mxu0 %v3641
      %v3750 = vpop.f32.mrf.mxu0
      %v3751 = vadd.f32 0.0, %v3750
      %3752 = vmatmul.f32.gmra.mxu0 %v3644
      %v3753 = vpop.f32.mrf.mxu0
      %v3754 = vadd.f32 0.0, %v3753
      %3755 = vmatmul.f32.gmra.mxu0 %v3647
      %v3756 = vpop.f32.mrf.mxu0
      %v3757 = vadd.f32 0.0, %v3756
      %3758 = vmatmul.f32.gmra.mxu0 %v3650
      %v3759 = vpop.f32.mrf.mxu0
      %v3760 = vadd.f32 0.0, %v3759
      %3761 = vmatmul.f32.gmra.mxu0 %v3653
      %v3762 = vpop.f32.mrf.mxu0
      %v3763 = vadd.f32 0.0, %v3762
      %3764 = vmatmul.f32.gmra.mxu0 %v3656
      %v3765 = vpop.f32.mrf.mxu0
      %v3766 = vadd.f32 0.0, %v3765
      %3767 = vmatmul.f32.gmra.mxu0 %v3659
      %v3768 = vpop.f32.mrf.mxu0
      %v3769 = vadd.f32 0.0, %v3768
      %3770 = vmatmul.f32.gmra.mxu0 %v3662
      %v3771 = vpop.f32.mrf.mxu0
      %v3772 = vadd.f32 0.0, %v3771
      %3773 = vmatmul.f32.gmra.mxu0 %v3665
      %v3774 = vpop.f32.mrf.mxu0
      %v3775 = vadd.f32 0.0, %v3774
      %3776 = vmatmul.f32.gmra.mxu0 %v3668
      %v3777 = vpop.f32.mrf.mxu0
      %v3778 = vadd.f32 0.0, %v3777
      %3779 = vmatmul.f32.gmra.mxu0 %v3671
      %v3780 = vpop.f32.mrf.mxu0
      %v3781 = vadd.f32 0.0, %v3780
      %3782 = vmatmul.f32.gmra.mxu0 %v3674
      %v3783 = vpop.f32.mrf.mxu0
      %v3784 = vadd.f32 0.0, %v3783
      %3785 = vmatmul.f32.gmra.mxu0 %v3677
      %v3786 = vpop.f32.mrf.mxu0
      %v3787 = vadd.f32 0.0, %v3786
      %3788 = vmatmul.f32.gmra.mxu0 %v3680
      %v3789 = vpop.f32.mrf.mxu0
      %v3790 = vadd.f32 0.0, %v3789
      %3791 = vmatmul.f32.gmra.mxu0 %v3683
      %v3792 = vpop.f32.mrf.mxu0
      %v3793 = vadd.f32 0.0, %v3792
      %3794 = vmatmul.f32.gmra.mxu0 %v3686
      %v3795 = vpop.f32.mrf.mxu0
      %v3796 = vadd.f32 0.0, %v3795
      %3797 = vmatmul.f32.gmra.mxu0 %v3689
      %v3798 = vpop.f32.mrf.mxu0
      %v3799 = vadd.f32 0.0, %v3798
      %3800 = vmatmul.f32.gmra.mxu0 %v3692
      %v3801 = vpop.f32.mrf.mxu0
      %v3802 = vadd.f32 0.0, %v3801
      %3803 = vmatmul.f32.gmra.mxu0 %v3695
      %v3804 = vpop.f32.mrf.mxu0
      %v3805 = vadd.f32 0.0, %v3804
      %3806 = vdwg.mxu0
      %v3807 = vadd.f32 %v3537, %v3715
      %v3808 = vadd.f32 %v3538, %v3718
      %v3809 = vadd.f32 %v3539, %v3721
      %v3810 = vadd.f32 %v3540, %v3724
      %v3811 = vadd.f32 %v3541, %v3727
      %v3812 = vadd.f32 %v3542, %v3730
      %v3813 = vadd.f32 %v3543, %v3733
      %v3814 = vadd.f32 %v3544, %v3736
      %v3815 = vadd.f32 %v3545, %v3739
      %v3816 = vadd.f32 %v3546, %v3742
      %v3817 = vadd.f32 %v3547, %v3745
      %v3818 = vadd.f32 %v3548, %v3748
      %v3819 = vadd.f32 %v3549, %v3751
      %v3820 = vadd.f32 %v3550, %v3754
      %v3821 = vadd.f32 %v3551, %v3757
      %v3822 = vadd.f32 %v3552, %v3760
      %v3823 = vadd.f32 %v3553, %v3763
      %v3824 = vadd.f32 %v3554, %v3766
      %v3825 = vadd.f32 %v3555, %v3769
      %v3826 = vadd.f32 %v3556, %v3772
      %v3827 = vadd.f32 %v3557, %v3775
      %v3828 = vadd.f32 %v3558, %v3778
      %v3829 = vadd.f32 %v3559, %v3781
      %v3830 = vadd.f32 %v3560, %v3784
      %v3831 = vadd.f32 %v3561, %v3787
      %v3832 = vadd.f32 %v3562, %v3790
      %v3833 = vadd.f32 %v3563, %v3793
      %v3834 = vadd.f32 %v3564, %v3796
      %v3835 = vadd.f32 %v3565, %v3799
      %v3836 = vadd.f32 %v3566, %v3802
      %v3837 = vadd.f32 %v3567, %v3805
      %v3838 = vld [vmem:[#allocation3 + $0x13] sm:$0xff]
      %v3839 = vld [vmem:[#allocation3 + $0x1b] sm:$0xff]
      %v3840 = vld [vmem:[#allocation3 + $0x23] sm:$0xff]
      %v3841 = vld [vmem:[#allocation3 + $0x2b] sm:$0xff]
      %v3842 = vld [vmem:[#allocation3 + $0x33] sm:$0xff]
      %v3843 = vld [vmem:[#allocation3 + $0x3b] sm:$0xff]
      %v3844 = vld [vmem:[#allocation3 + $0x43] sm:$0xff]
      %v3845 = vld [vmem:[#allocation3 + $0x4b] sm:$0xff]
      %v3846 = vld [vmem:[#allocation3 + $0x53] sm:$0xff]
      %v3847 = vld [vmem:[#allocation3 + $0x5b] sm:$0xff]
      %v3848 = vld [vmem:[#allocation3 + $0x63] sm:$0xff]
      %v3849 = vld [vmem:[#allocation3 + $0x6b] sm:$0xff]
      %v3850 = vld [vmem:[#allocation3 + $0x73] sm:$0xff]
      %v3851 = vld [vmem:[#allocation3 + $0x7b] sm:$0xff]
      %v3852 = vld [vmem:[#allocation3 + $0x83] sm:$0xff]
      %v3853 = vld [vmem:[#allocation3 + $0x8b] sm:$0xff]
      %v3854 = vld [vmem:[#allocation3 + $0x93] sm:$0xff]
      %v3855 = vld [vmem:[#allocation3 + $0x9b] sm:$0xff]
      %v3856 = vld [vmem:[#allocation3 + $0xa3] sm:$0xff]
      %v3857 = vld [vmem:[#allocation3 + $0xab] sm:$0xff]
      %v3858 = vld [vmem:[#allocation3 + $0xb3] sm:$0xff]
      %v3859 = vld [vmem:[#allocation3 + $0xbb] sm:$0xff]
      %v3860 = vld [vmem:[#allocation3 + $0xc3] sm:$0xff]
      %v3861 = vld [vmem:[#allocation3 + $0xcb] sm:$0xff]
      %v3862 = vld [vmem:[#allocation3 + $0xd3] sm:$0xff]
      %v3863 = vld [vmem:[#allocation3 + $0xdb] sm:$0xff]
      %v3864 = vld [vmem:[#allocation3 + $0xe3] sm:$0xff]
      %v3865 = vld [vmem:[#allocation3 + $0xeb] sm:$0xff]
      %v3866 = vld [vmem:[#allocation3 + $0xf3] sm:$0xff]
      %v3867 = vld [vmem:[#allocation3 + $0xfb] sm:$0xff]
      %v3868 = vld [vmem:[#allocation3 + $0x103] sm:$0xff]
      %s3869 = scalar_lea.vmem %s4, 192
      %v3870 = vld [vmem:[%s3869] sm:$0xff]
      %v3871 = vld [vmem:[%s3869 + $0x8] sm:$0xff]
      %v3872 = vld [vmem:[%s3869 + $0x10] sm:$0xff]
      %v3873 = vld [vmem:[%s3869 + $0x18] sm:$0xff]
      %v3875 = vsel %vm1295, %v3838, 0
      %v3878 = vsel %vm1295, %v3839, 0
      %v3881 = vsel %vm1295, %v3840, 0
      %v3884 = vsel %vm1295, %v3841, 0
      %v3887 = vsel %vm1295, %v3842, 0
      %v3890 = vsel %vm1295, %v3843, 0
      %v3893 = vsel %vm1295, %v3844, 0
      %v3896 = vsel %vm1295, %v3845, 0
      %v3899 = vsel %vm1295, %v3846, 0
      %v3902 = vsel %vm1295, %v3847, 0
      %v3905 = vsel %vm1295, %v3848, 0
      %v3908 = vsel %vm1295, %v3849, 0
      %v3911 = vsel %vm1295, %v3850, 0
      %v3914 = vsel %vm1295, %v3851, 0
      %v3917 = vsel %vm1295, %v3852, 0
      %v3920 = vsel %vm1295, %v3853, 0
      %v3923 = vsel %vm1295, %v3854, 0
      %v3926 = vsel %vm1295, %v3855, 0
      %v3929 = vsel %vm1295, %v3856, 0
      %v3932 = vsel %vm1295, %v3857, 0
      %v3935 = vsel %vm1295, %v3858, 0
      %v3938 = vsel %vm1295, %v3859, 0
      %v3941 = vsel %vm1295, %v3860, 0
      %v3944 = vsel %vm1295, %v3861, 0
      %v3947 = vsel %vm1295, %v3862, 0
      %v3950 = vsel %vm1295, %v3863, 0
      %v3953 = vsel %vm1295, %v3864, 0
      %v3956 = vsel %vm1295, %v3865, 0
      %v3959 = vsel %vm1295, %v3866, 0
      %v3962 = vsel %vm1295, %v3867, 0
      %v3965 = vsel %vm1295, %v3868, 0
      %3967 = vmatpush.msra.mxu0 0.0
      %3968 = vmatpush.msra.mxu0 0.0
      %3969 = vmatpush.msra.mxu0 0.0
      %3970 = vmatpush.msra.mxu0 0.0
      %3971 = vmatpush.msra.mxu0 0.0
      %3972 = vmatpush.msra.mxu0 0.0
      %3973 = vmatpush.msra.mxu0 0.0
      %3974 = vmatpush.msra.mxu0 0.0
      %3975 = vmatpush.msra.mxu0 0.0
      %3976 = vmatpush.msra.mxu0 0.0
      %3977 = vmatpush.msra.mxu0 0.0
      %3978 = vmatpush.msra.mxu0 0.0
      %3979 = vmatpush.msra.mxu0 %v3873
      %3980 = vmatpush.msra.mxu0 %v3872
      %3981 = vmatpush.msra.mxu0 %v3871
      %3982 = vmatpush.msra.mxu0 %v3870
      %3983 = vmatmul.f32.gmra.mxu0 %v3875
      %v3984 = vpop.f32.mrf.mxu0
      %v3985 = vadd.f32 0.0, %v3984
      %3986 = vmatmul.f32.gmra.mxu0 %v3878
      %v3987 = vpop.f32.mrf.mxu0
      %v3988 = vadd.f32 0.0, %v3987
      %3989 = vmatmul.f32.gmra.mxu0 %v3881
      %v3990 = vpop.f32.mrf.mxu0
      %v3991 = vadd.f32 0.0, %v3990
      %3992 = vmatmul.f32.gmra.mxu0 %v3884
      %v3993 = vpop.f32.mrf.mxu0
      %v3994 = vadd.f32 0.0, %v3993
      %3995 = vmatmul.f32.gmra.mxu0 %v3887
      %v3996 = vpop.f32.mrf.mxu0
      %v3997 = vadd.f32 0.0, %v3996
      %3998 = vmatmul.f32.gmra.mxu0 %v3890
      %v3999 = vpop.f32.mrf.mxu0
      %v4000 = vadd.f32 0.0, %v3999
      %4001 = vmatmul.f32.gmra.mxu0 %v3893
      %v4002 = vpop.f32.mrf.mxu0
      %v4003 = vadd.f32 0.0, %v4002
      %4004 = vmatmul.f32.gmra.mxu0 %v3896
      %v4005 = vpop.f32.mrf.mxu0
      %v4006 = vadd.f32 0.0, %v4005
      %4007 = vmatmul.f32.gmra.mxu0 %v3899
      %v4008 = vpop.f32.mrf.mxu0
      %v4009 = vadd.f32 0.0, %v4008
      %4010 = vmatmul.f32.gmra.mxu0 %v3902
      %v4011 = vpop.f32.mrf.mxu0
      %v4012 = vadd.f32 0.0, %v4011
      %4013 = vmatmul.f32.gmra.mxu0 %v3905
      %v4014 = vpop.f32.mrf.mxu0
      %v4015 = vadd.f32 0.0, %v4014
      %4016 = vmatmul.f32.gmra.mxu0 %v3908
      %v4017 = vpop.f32.mrf.mxu0
      %v4018 = vadd.f32 0.0, %v4017
      %4019 = vmatmul.f32.gmra.mxu0 %v3911
      %v4020 = vpop.f32.mrf.mxu0
      %v4021 = vadd.f32 0.0, %v4020
      %4022 = vmatmul.f32.gmra.mxu0 %v3914
      %v4023 = vpop.f32.mrf.mxu0
      %v4024 = vadd.f32 0.0, %v4023
      %4025 = vmatmul.f32.gmra.mxu0 %v3917
      %v4026 = vpop.f32.mrf.mxu0
      %v4027 = vadd.f32 0.0, %v4026
      %4028 = vmatmul.f32.gmra.mxu0 %v3920
      %v4029 = vpop.f32.mrf.mxu0
      %v4030 = vadd.f32 0.0, %v4029
      %4031 = vmatmul.f32.gmra.mxu0 %v3923
      %v4032 = vpop.f32.mrf.mxu0
      %v4033 = vadd.f32 0.0, %v4032
      %4034 = vmatmul.f32.gmra.mxu0 %v3926
      %v4035 = vpop.f32.mrf.mxu0
      %v4036 = vadd.f32 0.0, %v4035
      %4037 = vmatmul.f32.gmra.mxu0 %v3929
      %v4038 = vpop.f32.mrf.mxu0
      %v4039 = vadd.f32 0.0, %v4038
      %4040 = vmatmul.f32.gmra.mxu0 %v3932
      %v4041 = vpop.f32.mrf.mxu0
      %v4042 = vadd.f32 0.0, %v4041
      %4043 = vmatmul.f32.gmra.mxu0 %v3935
      %v4044 = vpop.f32.mrf.mxu0
      %v4045 = vadd.f32 0.0, %v4044
      %4046 = vmatmul.f32.gmra.mxu0 %v3938
      %v4047 = vpop.f32.mrf.mxu0
      %v4048 = vadd.f32 0.0, %v4047
      %4049 = vmatmul.f32.gmra.mxu0 %v3941
      %v4050 = vpop.f32.mrf.mxu0
      %v4051 = vadd.f32 0.0, %v4050
      %4052 = vmatmul.f32.gmra.mxu0 %v3944
      %v4053 = vpop.f32.mrf.mxu0
      %v4054 = vadd.f32 0.0, %v4053
      %4055 = vmatmul.f32.gmra.mxu0 %v3947
      %v4056 = vpop.f32.mrf.mxu0
      %v4057 = vadd.f32 0.0, %v4056
      %4058 = vmatmul.f32.gmra.mxu0 %v3950
      %v4059 = vpop.f32.mrf.mxu0
      %v4060 = vadd.f32 0.0, %v4059
      %4061 = vmatmul.f32.gmra.mxu0 %v3953
      %v4062 = vpop.f32.mrf.mxu0
      %v4063 = vadd.f32 0.0, %v4062
      %4064 = vmatmul.f32.gmra.mxu0 %v3956
      %v4065 = vpop.f32.mrf.mxu0
      %v4066 = vadd.f32 0.0, %v4065
      %4067 = vmatmul.f32.gmra.mxu0 %v3959
      %v4068 = vpop.f32.mrf.mxu0
      %v4069 = vadd.f32 0.0, %v4068
      %4070 = vmatmul.f32.gmra.mxu0 %v3962
      %v4071 = vpop.f32.mrf.mxu0
      %v4072 = vadd.f32 0.0, %v4071
      %4073 = vmatmul.f32.gmra.mxu0 %v3965
      %v4074 = vpop.f32.mrf.mxu0
      %v4075 = vadd.f32 0.0, %v4074
      %4076 = vdwg.mxu0
      %v4077 = vadd.f32 %v3807, %v3985
      %v4078 = vadd.f32 %v3808, %v3988
      %v4079 = vadd.f32 %v3809, %v3991
      %v4080 = vadd.f32 %v3810, %v3994
      %v4081 = vadd.f32 %v3811, %v3997
      %v4082 = vadd.f32 %v3812, %v4000
      %v4083 = vadd.f32 %v3813, %v4003
      %v4084 = vadd.f32 %v3814, %v4006
      %v4085 = vadd.f32 %v3815, %v4009
      %v4086 = vadd.f32 %v3816, %v4012
      %v4087 = vadd.f32 %v3817, %v4015
      %v4088 = vadd.f32 %v3818, %v4018
      %v4089 = vadd.f32 %v3819, %v4021
      %v4090 = vadd.f32 %v3820, %v4024
      %v4091 = vadd.f32 %v3821, %v4027
      %v4092 = vadd.f32 %v3822, %v4030
      %v4093 = vadd.f32 %v3823, %v4033
      %v4094 = vadd.f32 %v3824, %v4036
      %v4095 = vadd.f32 %v3825, %v4039
      %v4096 = vadd.f32 %v3826, %v4042
      %v4097 = vadd.f32 %v3827, %v4045
      %v4098 = vadd.f32 %v3828, %v4048
      %v4099 = vadd.f32 %v3829, %v4051
      %v4100 = vadd.f32 %v3830, %v4054
      %v4101 = vadd.f32 %v3831, %v4057
      %v4102 = vadd.f32 %v3832, %v4060
      %v4103 = vadd.f32 %v3833, %v4063
      %v4104 = vadd.f32 %v3834, %v4066
      %v4105 = vadd.f32 %v3835, %v4069
      %v4106 = vadd.f32 %v3836, %v4072
      %v4107 = vadd.f32 %v3837, %v4075
      %v4108 = vld [vmem:[#allocation3 + $0x14] sm:$0xff]
      %v4109 = vld [vmem:[#allocation3 + $0x1c] sm:$0xff]
      %v4110 = vld [vmem:[#allocation3 + $0x24] sm:$0xff]
      %v4111 = vld [vmem:[#allocation3 + $0x2c] sm:$0xff]
      %v4112 = vld [vmem:[#allocation3 + $0x34] sm:$0xff]
      %v4113 = vld [vmem:[#allocation3 + $0x3c] sm:$0xff]
      %v4114 = vld [vmem:[#allocation3 + $0x44] sm:$0xff]
      %v4115 = vld [vmem:[#allocation3 + $0x4c] sm:$0xff]
      %v4116 = vld [vmem:[#allocation3 + $0x54] sm:$0xff]
      %v4117 = vld [vmem:[#allocation3 + $0x5c] sm:$0xff]
      %v4118 = vld [vmem:[#allocation3 + $0x64] sm:$0xff]
      %v4119 = vld [vmem:[#allocation3 + $0x6c] sm:$0xff]
      %v4120 = vld [vmem:[#allocation3 + $0x74] sm:$0xff]
      %v4121 = vld [vmem:[#allocation3 + $0x7c] sm:$0xff]
      %v4122 = vld [vmem:[#allocation3 + $0x84] sm:$0xff]
      %v4123 = vld [vmem:[#allocation3 + $0x8c] sm:$0xff]
      %v4124 = vld [vmem:[#allocation3 + $0x94] sm:$0xff]
      %v4125 = vld [vmem:[#allocation3 + $0x9c] sm:$0xff]
      %v4126 = vld [vmem:[#allocation3 + $0xa4] sm:$0xff]
      %v4127 = vld [vmem:[#allocation3 + $0xac] sm:$0xff]
      %v4128 = vld [vmem:[#allocation3 + $0xb4] sm:$0xff]
      %v4129 = vld [vmem:[#allocation3 + $0xbc] sm:$0xff]
      %v4130 = vld [vmem:[#allocation3 + $0xc4] sm:$0xff]
      %v4131 = vld [vmem:[#allocation3 + $0xcc] sm:$0xff]
      %v4132 = vld [vmem:[#allocation3 + $0xd4] sm:$0xff]
      %v4133 = vld [vmem:[#allocation3 + $0xdc] sm:$0xff]
      %v4134 = vld [vmem:[#allocation3 + $0xe4] sm:$0xff]
      %v4135 = vld [vmem:[#allocation3 + $0xec] sm:$0xff]
      %v4136 = vld [vmem:[#allocation3 + $0xf4] sm:$0xff]
      %v4137 = vld [vmem:[#allocation3 + $0xfc] sm:$0xff]
      %v4138 = vld [vmem:[#allocation3 + $0x104] sm:$0xff]
      %s4139 = scalar_lea.vmem %s4, 224
      %v4140 = vld [vmem:[%s4139] sm:$0xff]
      %v4141 = vld [vmem:[%s4139 + $0x8] sm:$0xff]
      %v4142 = vld [vmem:[%s4139 + $0x10] sm:$0xff]
      %v4143 = vld [vmem:[%s4139 + $0x18] sm:$0xff]
      %v4145 = vsel %vm1295, %v4108, 0
      %v4148 = vsel %vm1295, %v4109, 0
      %v4151 = vsel %vm1295, %v4110, 0
      %v4154 = vsel %vm1295, %v4111, 0
      %v4157 = vsel %vm1295, %v4112, 0
      %v4160 = vsel %vm1295, %v4113, 0
      %v4163 = vsel %vm1295, %v4114, 0
      %v4166 = vsel %vm1295, %v4115, 0
      %v4169 = vsel %vm1295, %v4116, 0
      %v4172 = vsel %vm1295, %v4117, 0
      %v4175 = vsel %vm1295, %v4118, 0
      %v4178 = vsel %vm1295, %v4119, 0
      %v4181 = vsel %vm1295, %v4120, 0
      %v4184 = vsel %vm1295, %v4121, 0
      %v4187 = vsel %vm1295, %v4122, 0
      %v4190 = vsel %vm1295, %v4123, 0
      %v4193 = vsel %vm1295, %v4124, 0
      %v4196 = vsel %vm1295, %v4125, 0
      %v4199 = vsel %vm1295, %v4126, 0
      %v4202 = vsel %vm1295, %v4127, 0
      %v4205 = vsel %vm1295, %v4128, 0
      %v4208 = vsel %vm1295, %v4129, 0
      %v4211 = vsel %vm1295, %v4130, 0
      %v4214 = vsel %vm1295, %v4131, 0
      %v4217 = vsel %vm1295, %v4132, 0
      %v4220 = vsel %vm1295, %v4133, 0
      %v4223 = vsel %vm1295, %v4134, 0
      %v4226 = vsel %vm1295, %v4135, 0
      %v4229 = vsel %vm1295, %v4136, 0
      %v4232 = vsel %vm1295, %v4137, 0
      %v4235 = vsel %vm1295, %v4138, 0
      %4237 = vmatpush.msra.mxu0 0.0
      %4238 = vmatpush.msra.mxu0 0.0
      %4239 = vmatpush.msra.mxu0 0.0
      %4240 = vmatpush.msra.mxu0 0.0
      %4241 = vmatpush.msra.mxu0 0.0
      %4242 = vmatpush.msra.mxu0 0.0
      %4243 = vmatpush.msra.mxu0 0.0
      %4244 = vmatpush.msra.mxu0 0.0
      %4245 = vmatpush.msra.mxu0 0.0
      %4246 = vmatpush.msra.mxu0 0.0
      %4247 = vmatpush.msra.mxu0 0.0
      %4248 = vmatpush.msra.mxu0 0.0
      %4249 = vmatpush.msra.mxu0 %v4143
      %4250 = vmatpush.msra.mxu0 %v4142
      %4251 = vmatpush.msra.mxu0 %v4141
      %4252 = vmatpush.msra.mxu0 %v4140
      %4253 = vmatmul.f32.gmra.mxu0 %v4145
      %v4254 = vpop.f32.mrf.mxu0
      %v4255 = vadd.f32 0.0, %v4254
      %4256 = vmatmul.f32.gmra.mxu0 %v4148
      %v4257 = vpop.f32.mrf.mxu0
      %v4258 = vadd.f32 0.0, %v4257
      %4259 = vmatmul.f32.gmra.mxu0 %v4151
      %v4260 = vpop.f32.mrf.mxu0
      %v4261 = vadd.f32 0.0, %v4260
      %4262 = vmatmul.f32.gmra.mxu0 %v4154
      %v4263 = vpop.f32.mrf.mxu0
      %v4264 = vadd.f32 0.0, %v4263
      %4265 = vmatmul.f32.gmra.mxu0 %v4157
      %v4266 = vpop.f32.mrf.mxu0
      %v4267 = vadd.f32 0.0, %v4266
      %4268 = vmatmul.f32.gmra.mxu0 %v4160
      %v4269 = vpop.f32.mrf.mxu0
      %v4270 = vadd.f32 0.0, %v4269
      %4271 = vmatmul.f32.gmra.mxu0 %v4163
      %v4272 = vpop.f32.mrf.mxu0
      %v4273 = vadd.f32 0.0, %v4272
      %4274 = vmatmul.f32.gmra.mxu0 %v4166
      %v4275 = vpop.f32.mrf.mxu0
      %v4276 = vadd.f32 0.0, %v4275
      %4277 = vmatmul.f32.gmra.mxu0 %v4169
      %v4278 = vpop.f32.mrf.mxu0
      %v4279 = vadd.f32 0.0, %v4278
      %4280 = vmatmul.f32.gmra.mxu0 %v4172
      %v4281 = vpop.f32.mrf.mxu0
      %v4282 = vadd.f32 0.0, %v4281
      %4283 = vmatmul.f32.gmra.mxu0 %v4175
      %v4284 = vpop.f32.mrf.mxu0
      %v4285 = vadd.f32 0.0, %v4284
      %4286 = vmatmul.f32.gmra.mxu0 %v4178
      %v4287 = vpop.f32.mrf.mxu0
      %v4288 = vadd.f32 0.0, %v4287
      %4289 = vmatmul.f32.gmra.mxu0 %v4181
      %v4290 = vpop.f32.mrf.mxu0
      %v4291 = vadd.f32 0.0, %v4290
      %4292 = vmatmul.f32.gmra.mxu0 %v4184
      %v4293 = vpop.f32.mrf.mxu0
      %v4294 = vadd.f32 0.0, %v4293
      %4295 = vmatmul.f32.gmra.mxu0 %v4187
      %v4296 = vpop.f32.mrf.mxu0
      %v4297 = vadd.f32 0.0, %v4296
      %4298 = vmatmul.f32.gmra.mxu0 %v4190
      %v4299 = vpop.f32.mrf.mxu0
      %v4300 = vadd.f32 0.0, %v4299
      %4301 = vmatmul.f32.gmra.mxu0 %v4193
      %v4302 = vpop.f32.mrf.mxu0
      %v4303 = vadd.f32 0.0, %v4302
      %4304 = vmatmul.f32.gmra.mxu0 %v4196
      %v4305 = vpop.f32.mrf.mxu0
      %v4306 = vadd.f32 0.0, %v4305
      %4307 = vmatmul.f32.gmra.mxu0 %v4199
      %v4308 = vpop.f32.mrf.mxu0
      %v4309 = vadd.f32 0.0, %v4308
      %4310 = vmatmul.f32.gmra.mxu0 %v4202
      %v4311 = vpop.f32.mrf.mxu0
      %v4312 = vadd.f32 0.0, %v4311
      %4313 = vmatmul.f32.gmra.mxu0 %v4205
      %v4314 = vpop.f32.mrf.mxu0
      %v4315 = vadd.f32 0.0, %v4314
      %4316 = vmatmul.f32.gmra.mxu0 %v4208
      %v4317 = vpop.f32.mrf.mxu0
      %v4318 = vadd.f32 0.0, %v4317
      %4319 = vmatmul.f32.gmra.mxu0 %v4211
      %v4320 = vpop.f32.mrf.mxu0
      %v4321 = vadd.f32 0.0, %v4320
      %4322 = vmatmul.f32.gmra.mxu0 %v4214
      %v4323 = vpop.f32.mrf.mxu0
      %v4324 = vadd.f32 0.0, %v4323
      %4325 = vmatmul.f32.gmra.mxu0 %v4217
      %v4326 = vpop.f32.mrf.mxu0
      %v4327 = vadd.f32 0.0, %v4326
      %4328 = vmatmul.f32.gmra.mxu0 %v4220
      %v4329 = vpop.f32.mrf.mxu0
      %v4330 = vadd.f32 0.0, %v4329
      %4331 = vmatmul.f32.gmra.mxu0 %v4223
      %v4332 = vpop.f32.mrf.mxu0
      %v4333 = vadd.f32 0.0, %v4332
      %4334 = vmatmul.f32.gmra.mxu0 %v4226
      %v4335 = vpop.f32.mrf.mxu0
      %v4336 = vadd.f32 0.0, %v4335
      %4337 = vmatmul.f32.gmra.mxu0 %v4229
      %v4338 = vpop.f32.mrf.mxu0
      %v4339 = vadd.f32 0.0, %v4338
      %4340 = vmatmul.f32.gmra.mxu0 %v4232
      %v4341 = vpop.f32.mrf.mxu0
      %v4342 = vadd.f32 0.0, %v4341
      %4343 = vmatmul.f32.gmra.mxu0 %v4235
      %v4344 = vpop.f32.mrf.mxu0
      %v4345 = vadd.f32 0.0, %v4344
      %4346 = vdwg.mxu0
      %v4347 = vadd.f32 %v4077, %v4255
      %v4348 = vadd.f32 %v4078, %v4258
      %v4349 = vadd.f32 %v4079, %v4261
      %v4350 = vadd.f32 %v4080, %v4264
      %v4351 = vadd.f32 %v4081, %v4267
      %v4352 = vadd.f32 %v4082, %v4270
      %v4353 = vadd.f32 %v4083, %v4273
      %v4354 = vadd.f32 %v4084, %v4276
      %v4355 = vadd.f32 %v4085, %v4279
      %v4356 = vadd.f32 %v4086, %v4282
      %v4357 = vadd.f32 %v4087, %v4285
      %v4358 = vadd.f32 %v4088, %v4288
      %v4359 = vadd.f32 %v4089, %v4291
      %v4360 = vadd.f32 %v4090, %v4294
      %v4361 = vadd.f32 %v4091, %v4297
      %v4362 = vadd.f32 %v4092, %v4300
      %v4363 = vadd.f32 %v4093, %v4303
      %v4364 = vadd.f32 %v4094, %v4306
      %v4365 = vadd.f32 %v4095, %v4309
      %v4366 = vadd.f32 %v4096, %v4312
      %v4367 = vadd.f32 %v4097, %v4315
      %v4368 = vadd.f32 %v4098, %v4318
      %v4369 = vadd.f32 %v4099, %v4321
      %v4370 = vadd.f32 %v4100, %v4324
      %v4371 = vadd.f32 %v4101, %v4327
      %v4372 = vadd.f32 %v4102, %v4330
      %v4373 = vadd.f32 %v4103, %v4333
      %v4374 = vadd.f32 %v4104, %v4336
      %v4375 = vadd.f32 %v4105, %v4339
      %v4376 = vadd.f32 %v4106, %v4342
      %v4377 = vadd.f32 %v4107, %v4345
      %v4378 = vld [vmem:[#allocation3 + $0x15] sm:$0xff]
      %v4379 = vld [vmem:[#allocation3 + $0x1d] sm:$0xff]
      %v4380 = vld [vmem:[#allocation3 + $0x25] sm:$0xff]
      %v4381 = vld [vmem:[#allocation3 + $0x2d] sm:$0xff]
      %v4382 = vld [vmem:[#allocation3 + $0x35] sm:$0xff]
      %v4383 = vld [vmem:[#allocation3 + $0x3d] sm:$0xff]
      %v4384 = vld [vmem:[#allocation3 + $0x45] sm:$0xff]
      %v4385 = vld [vmem:[#allocation3 + $0x4d] sm:$0xff]
      %v4386 = vld [vmem:[#allocation3 + $0x55] sm:$0xff]
      %v4387 = vld [vmem:[#allocation3 + $0x5d] sm:$0xff]
      %v4388 = vld [vmem:[#allocation3 + $0x65] sm:$0xff]
      %v4389 = vld [vmem:[#allocation3 + $0x6d] sm:$0xff]
      %v4390 = vld [vmem:[#allocation3 + $0x75] sm:$0xff]
      %v4391 = vld [vmem:[#allocation3 + $0x7d] sm:$0xff]
      %v4392 = vld [vmem:[#allocation3 + $0x85] sm:$0xff]
      %v4393 = vld [vmem:[#allocation3 + $0x8d] sm:$0xff]
      %v4394 = vld [vmem:[#allocation3 + $0x95] sm:$0xff]
      %v4395 = vld [vmem:[#allocation3 + $0x9d] sm:$0xff]
      %v4396 = vld [vmem:[#allocation3 + $0xa5] sm:$0xff]
      %v4397 = vld [vmem:[#allocation3 + $0xad] sm:$0xff]
      %v4398 = vld [vmem:[#allocation3 + $0xb5] sm:$0xff]
      %v4399 = vld [vmem:[#allocation3 + $0xbd] sm:$0xff]
      %v4400 = vld [vmem:[#allocation3 + $0xc5] sm:$0xff]
      %v4401 = vld [vmem:[#allocation3 + $0xcd] sm:$0xff]
      %v4402 = vld [vmem:[#allocation3 + $0xd5] sm:$0xff]
      %v4403 = vld [vmem:[#allocation3 + $0xdd] sm:$0xff]
      %v4404 = vld [vmem:[#allocation3 + $0xe5] sm:$0xff]
      %v4405 = vld [vmem:[#allocation3 + $0xed] sm:$0xff]
      %v4406 = vld [vmem:[#allocation3 + $0xf5] sm:$0xff]
      %v4407 = vld [vmem:[#allocation3 + $0xfd] sm:$0xff]
      %v4408 = vld [vmem:[#allocation3 + $0x105] sm:$0xff]
      %s4409 = scalar_lea.vmem %s4, 256
      %v4410 = vld [vmem:[%s4409] sm:$0xff]
      %v4411 = vld [vmem:[%s4409 + $0x8] sm:$0xff]
      %v4412 = vld [vmem:[%s4409 + $0x10] sm:$0xff]
      %v4413 = vld [vmem:[%s4409 + $0x18] sm:$0xff]
      %v4415 = vsel %vm1295, %v4378, 0
      %v4418 = vsel %vm1295, %v4379, 0
      %v4421 = vsel %vm1295, %v4380, 0
      %v4424 = vsel %vm1295, %v4381, 0
      %v4427 = vsel %vm1295, %v4382, 0
      %v4430 = vsel %vm1295, %v4383, 0
      %v4433 = vsel %vm1295, %v4384, 0
      %v4436 = vsel %vm1295, %v4385, 0
      %v4439 = vsel %vm1295, %v4386, 0
      %v4442 = vsel %vm1295, %v4387, 0
      %v4445 = vsel %vm1295, %v4388, 0
      %v4448 = vsel %vm1295, %v4389, 0
      %v4451 = vsel %vm1295, %v4390, 0
      %v4454 = vsel %vm1295, %v4391, 0
      %v4457 = vsel %vm1295, %v4392, 0
      %v4460 = vsel %vm1295, %v4393, 0
      %v4463 = vsel %vm1295, %v4394, 0
      %v4466 = vsel %vm1295, %v4395, 0
      %v4469 = vsel %vm1295, %v4396, 0
      %v4472 = vsel %vm1295, %v4397, 0
      %v4475 = vsel %vm1295, %v4398, 0
      %v4478 = vsel %vm1295, %v4399, 0
      %v4481 = vsel %vm1295, %v4400, 0
      %v4484 = vsel %vm1295, %v4401, 0
      %v4487 = vsel %vm1295, %v4402, 0
      %v4490 = vsel %vm1295, %v4403, 0
      %v4493 = vsel %vm1295, %v4404, 0
      %v4496 = vsel %vm1295, %v4405, 0
      %v4499 = vsel %vm1295, %v4406, 0
      %v4502 = vsel %vm1295, %v4407, 0
      %v4505 = vsel %vm1295, %v4408, 0
      %4507 = vmatpush.msra.mxu0 0.0
      %4508 = vmatpush.msra.mxu0 0.0
      %4509 = vmatpush.msra.mxu0 0.0
      %4510 = vmatpush.msra.mxu0 0.0
      %4511 = vmatpush.msra.mxu0 0.0
      %4512 = vmatpush.msra.mxu0 0.0
      %4513 = vmatpush.msra.mxu0 0.0
      %4514 = vmatpush.msra.mxu0 0.0
      %4515 = vmatpush.msra.mxu0 0.0
      %4516 = vmatpush.msra.mxu0 0.0
      %4517 = vmatpush.msra.mxu0 0.0
      %4518 = vmatpush.msra.mxu0 0.0
      %4519 = vmatpush.msra.mxu0 %v4413
      %4520 = vmatpush.msra.mxu0 %v4412
      %4521 = vmatpush.msra.mxu0 %v4411
      %4522 = vmatpush.msra.mxu0 %v4410
      %4523 = vmatmul.f32.gmra.mxu0 %v4415
      %v4524 = vpop.f32.mrf.mxu0
      %v4525 = vadd.f32 0.0, %v4524
      %4526 = vmatmul.f32.gmra.mxu0 %v4418
      %v4527 = vpop.f32.mrf.mxu0
      %v4528 = vadd.f32 0.0, %v4527
      %4529 = vmatmul.f32.gmra.mxu0 %v4421
      %v4530 = vpop.f32.mrf.mxu0
      %v4531 = vadd.f32 0.0, %v4530
      %4532 = vmatmul.f32.gmra.mxu0 %v4424
      %v4533 = vpop.f32.mrf.mxu0
      %v4534 = vadd.f32 0.0, %v4533
      %4535 = vmatmul.f32.gmra.mxu0 %v4427
      %v4536 = vpop.f32.mrf.mxu0
      %v4537 = vadd.f32 0.0, %v4536
      %4538 = vmatmul.f32.gmra.mxu0 %v4430
      %v4539 = vpop.f32.mrf.mxu0
      %v4540 = vadd.f32 0.0, %v4539
      %4541 = vmatmul.f32.gmra.mxu0 %v4433
      %v4542 = vpop.f32.mrf.mxu0
      %v4543 = vadd.f32 0.0, %v4542
      %4544 = vmatmul.f32.gmra.mxu0 %v4436
      %v4545 = vpop.f32.mrf.mxu0
      %v4546 = vadd.f32 0.0, %v4545
      %4547 = vmatmul.f32.gmra.mxu0 %v4439
      %v4548 = vpop.f32.mrf.mxu0
      %v4549 = vadd.f32 0.0, %v4548
      %4550 = vmatmul.f32.gmra.mxu0 %v4442
      %v4551 = vpop.f32.mrf.mxu0
      %v4552 = vadd.f32 0.0, %v4551
      %4553 = vmatmul.f32.gmra.mxu0 %v4445
      %v4554 = vpop.f32.mrf.mxu0
      %v4555 = vadd.f32 0.0, %v4554
      %4556 = vmatmul.f32.gmra.mxu0 %v4448
      %v4557 = vpop.f32.mrf.mxu0
      %v4558 = vadd.f32 0.0, %v4557
      %4559 = vmatmul.f32.gmra.mxu0 %v4451
      %v4560 = vpop.f32.mrf.mxu0
      %v4561 = vadd.f32 0.0, %v4560
      %4562 = vmatmul.f32.gmra.mxu0 %v4454
      %v4563 = vpop.f32.mrf.mxu0
      %v4564 = vadd.f32 0.0, %v4563
      %4565 = vmatmul.f32.gmra.mxu0 %v4457
      %v4566 = vpop.f32.mrf.mxu0
      %v4567 = vadd.f32 0.0, %v4566
      %4568 = vmatmul.f32.gmra.mxu0 %v4460
      %v4569 = vpop.f32.mrf.mxu0
      %v4570 = vadd.f32 0.0, %v4569
      %4571 = vmatmul.f32.gmra.mxu0 %v4463
      %v4572 = vpop.f32.mrf.mxu0
      %v4573 = vadd.f32 0.0, %v4572
      %4574 = vmatmul.f32.gmra.mxu0 %v4466
      %v4575 = vpop.f32.mrf.mxu0
      %v4576 = vadd.f32 0.0, %v4575
      %4577 = vmatmul.f32.gmra.mxu0 %v4469
      %v4578 = vpop.f32.mrf.mxu0
      %v4579 = vadd.f32 0.0, %v4578
      %4580 = vmatmul.f32.gmra.mxu0 %v4472
      %v4581 = vpop.f32.mrf.mxu0
      %v4582 = vadd.f32 0.0, %v4581
      %4583 = vmatmul.f32.gmra.mxu0 %v4475
      %v4584 = vpop.f32.mrf.mxu0
      %v4585 = vadd.f32 0.0, %v4584
      %4586 = vmatmul.f32.gmra.mxu0 %v4478
      %v4587 = vpop.f32.mrf.mxu0
      %v4588 = vadd.f32 0.0, %v4587
      %4589 = vmatmul.f32.gmra.mxu0 %v4481
      %v4590 = vpop.f32.mrf.mxu0
      %v4591 = vadd.f32 0.0, %v4590
      %4592 = vmatmul.f32.gmra.mxu0 %v4484
      %v4593 = vpop.f32.mrf.mxu0
      %v4594 = vadd.f32 0.0, %v4593
      %4595 = vmatmul.f32.gmra.mxu0 %v4487
      %v4596 = vpop.f32.mrf.mxu0
      %v4597 = vadd.f32 0.0, %v4596
      %4598 = vmatmul.f32.gmra.mxu0 %v4490
      %v4599 = vpop.f32.mrf.mxu0
      %v4600 = vadd.f32 0.0, %v4599
      %4601 = vmatmul.f32.gmra.mxu0 %v4493
      %v4602 = vpop.f32.mrf.mxu0
      %v4603 = vadd.f32 0.0, %v4602
      %4604 = vmatmul.f32.gmra.mxu0 %v4496
      %v4605 = vpop.f32.mrf.mxu0
      %v4606 = vadd.f32 0.0, %v4605
      %4607 = vmatmul.f32.gmra.mxu0 %v4499
      %v4608 = vpop.f32.mrf.mxu0
      %v4609 = vadd.f32 0.0, %v4608
      %4610 = vmatmul.f32.gmra.mxu0 %v4502
      %v4611 = vpop.f32.mrf.mxu0
      %v4612 = vadd.f32 0.0, %v4611
      %4613 = vmatmul.f32.gmra.mxu0 %v4505
      %v4614 = vpop.f32.mrf.mxu0
      %v4615 = vadd.f32 0.0, %v4614
      %4616 = vdwg.mxu0
      %v4617 = vadd.f32 %v4347, %v4525
      %v4618 = vadd.f32 %v4348, %v4528
      %v4619 = vadd.f32 %v4349, %v4531
      %v4620 = vadd.f32 %v4350, %v4534
      %v4621 = vadd.f32 %v4351, %v4537
      %v4622 = vadd.f32 %v4352, %v4540
      %v4623 = vadd.f32 %v4353, %v4543
      %v4624 = vadd.f32 %v4354, %v4546
      %v4625 = vadd.f32 %v4355, %v4549
      %v4626 = vadd.f32 %v4356, %v4552
      %v4627 = vadd.f32 %v4357, %v4555
      %v4628 = vadd.f32 %v4358, %v4558
      %v4629 = vadd.f32 %v4359, %v4561
      %v4630 = vadd.f32 %v4360, %v4564
      %v4631 = vadd.f32 %v4361, %v4567
      %v4632 = vadd.f32 %v4362, %v4570
      %v4633 = vadd.f32 %v4363, %v4573
      %v4634 = vadd.f32 %v4364, %v4576
      %v4635 = vadd.f32 %v4365, %v4579
      %v4636 = vadd.f32 %v4366, %v4582
      %v4637 = vadd.f32 %v4367, %v4585
      %v4638 = vadd.f32 %v4368, %v4588
      %v4639 = vadd.f32 %v4369, %v4591
      %v4640 = vadd.f32 %v4370, %v4594
      %v4641 = vadd.f32 %v4371, %v4597
      %v4642 = vadd.f32 %v4372, %v4600
      %v4643 = vadd.f32 %v4373, %v4603
      %v4644 = vadd.f32 %v4374, %v4606
      %v4645 = vadd.f32 %v4375, %v4609
      %v4646 = vadd.f32 %v4376, %v4612
      %v4647 = vadd.f32 %v4377, %v4615
      %v4648 = vld [vmem:[#allocation3 + $0x16] sm:$0xff]
      %v4649 = vld [vmem:[#allocation3 + $0x1e] sm:$0xff]
      %v4650 = vld [vmem:[#allocation3 + $0x26] sm:$0xff]
      %v4651 = vld [vmem:[#allocation3 + $0x2e] sm:$0xff]
      %v4652 = vld [vmem:[#allocation3 + $0x36] sm:$0xff]
      %v4653 = vld [vmem:[#allocation3 + $0x3e] sm:$0xff]
      %v4654 = vld [vmem:[#allocation3 + $0x46] sm:$0xff]
      %v4655 = vld [vmem:[#allocation3 + $0x4e] sm:$0xff]
      %v4656 = vld [vmem:[#allocation3 + $0x56] sm:$0xff]
      %v4657 = vld [vmem:[#allocation3 + $0x5e] sm:$0xff]
      %v4658 = vld [vmem:[#allocation3 + $0x66] sm:$0xff]
      %v4659 = vld [vmem:[#allocation3 + $0x6e] sm:$0xff]
      %v4660 = vld [vmem:[#allocation3 + $0x76] sm:$0xff]
      %v4661 = vld [vmem:[#allocation3 + $0x7e] sm:$0xff]
      %v4662 = vld [vmem:[#allocation3 + $0x86] sm:$0xff]
      %v4663 = vld [vmem:[#allocation3 + $0x8e] sm:$0xff]
      %v4664 = vld [vmem:[#allocation3 + $0x96] sm:$0xff]
      %v4665 = vld [vmem:[#allocation3 + $0x9e] sm:$0xff]
      %v4666 = vld [vmem:[#allocation3 + $0xa6] sm:$0xff]
      %v4667 = vld [vmem:[#allocation3 + $0xae] sm:$0xff]
      %v4668 = vld [vmem:[#allocation3 + $0xb6] sm:$0xff]
      %v4669 = vld [vmem:[#allocation3 + $0xbe] sm:$0xff]
      %v4670 = vld [vmem:[#allocation3 + $0xc6] sm:$0xff]
      %v4671 = vld [vmem:[#allocation3 + $0xce] sm:$0xff]
      %v4672 = vld [vmem:[#allocation3 + $0xd6] sm:$0xff]
      %v4673 = vld [vmem:[#allocation3 + $0xde] sm:$0xff]
      %v4674 = vld [vmem:[#allocation3 + $0xe6] sm:$0xff]
      %v4675 = vld [vmem:[#allocation3 + $0xee] sm:$0xff]
      %v4676 = vld [vmem:[#allocation3 + $0xf6] sm:$0xff]
      %v4677 = vld [vmem:[#allocation3 + $0xfe] sm:$0xff]
      %v4678 = vld [vmem:[#allocation3 + $0x106] sm:$0xff]
      %s4679 = scalar_lea.vmem %s4, 288
      %v4680 = vld [vmem:[%s4679] sm:$0xff]
      %v4681 = vld [vmem:[%s4679 + $0x8] sm:$0xff]
      %v4682 = vld [vmem:[%s4679 + $0x10] sm:$0xff]
      %v4683 = vld [vmem:[%s4679 + $0x18] sm:$0xff]
      %v4685 = vsel %vm1295, %v4648, 0
      %v4688 = vsel %vm1295, %v4649, 0
      %v4691 = vsel %vm1295, %v4650, 0
      %v4694 = vsel %vm1295, %v4651, 0
      %v4697 = vsel %vm1295, %v4652, 0
      %v4700 = vsel %vm1295, %v4653, 0
      %v4703 = vsel %vm1295, %v4654, 0
      %v4706 = vsel %vm1295, %v4655, 0
      %v4709 = vsel %vm1295, %v4656, 0
      %v4712 = vsel %vm1295, %v4657, 0
      %v4715 = vsel %vm1295, %v4658, 0
      %v4718 = vsel %vm1295, %v4659, 0
      %v4721 = vsel %vm1295, %v4660, 0
      %v4724 = vsel %vm1295, %v4661, 0
      %v4727 = vsel %vm1295, %v4662, 0
      %v4730 = vsel %vm1295, %v4663, 0
      %v4733 = vsel %vm1295, %v4664, 0
      %v4736 = vsel %vm1295, %v4665, 0
      %v4739 = vsel %vm1295, %v4666, 0
      %v4742 = vsel %vm1295, %v4667, 0
      %v4745 = vsel %vm1295, %v4668, 0
      %v4748 = vsel %vm1295, %v4669, 0
      %v4751 = vsel %vm1295, %v4670, 0
      %v4754 = vsel %vm1295, %v4671, 0
      %v4757 = vsel %vm1295, %v4672, 0
      %v4760 = vsel %vm1295, %v4673, 0
      %v4763 = vsel %vm1295, %v4674, 0
      %v4766 = vsel %vm1295, %v4675, 0
      %v4769 = vsel %vm1295, %v4676, 0
      %v4772 = vsel %vm1295, %v4677, 0
      %v4775 = vsel %vm1295, %v4678, 0
      %4777 = vmatpush.msra.mxu0 0.0
      %4778 = vmatpush.msra.mxu0 0.0
      %4779 = vmatpush.msra.mxu0 0.0
      %4780 = vmatpush.msra.mxu0 0.0
      %4781 = vmatpush.msra.mxu0 0.0
      %4782 = vmatpush.msra.mxu0 0.0
      %4783 = vmatpush.msra.mxu0 0.0
      %4784 = vmatpush.msra.mxu0 0.0
      %4785 = vmatpush.msra.mxu0 0.0
      %4786 = vmatpush.msra.mxu0 0.0
      %4787 = vmatpush.msra.mxu0 0.0
      %4788 = vmatpush.msra.mxu0 0.0
      %4789 = vmatpush.msra.mxu0 %v4683
      %4790 = vmatpush.msra.mxu0 %v4682
      %4791 = vmatpush.msra.mxu0 %v4681
      %4792 = vmatpush.msra.mxu0 %v4680
      %4793 = vmatmul.f32.gmra.mxu0 %v4685
      %v4794 = vpop.f32.mrf.mxu0
      %v4795 = vadd.f32 0.0, %v4794
      %4796 = vmatmul.f32.gmra.mxu0 %v4688
      %v4797 = vpop.f32.mrf.mxu0
      %v4798 = vadd.f32 0.0, %v4797
      %4799 = vmatmul.f32.gmra.mxu0 %v4691
      %v4800 = vpop.f32.mrf.mxu0
      %v4801 = vadd.f32 0.0, %v4800
      %4802 = vmatmul.f32.gmra.mxu0 %v4694
      %v4803 = vpop.f32.mrf.mxu0
      %v4804 = vadd.f32 0.0, %v4803
      %4805 = vmatmul.f32.gmra.mxu0 %v4697
      %v4806 = vpop.f32.mrf.mxu0
      %v4807 = vadd.f32 0.0, %v4806
      %4808 = vmatmul.f32.gmra.mxu0 %v4700
      %v4809 = vpop.f32.mrf.mxu0
      %v4810 = vadd.f32 0.0, %v4809
      %4811 = vmatmul.f32.gmra.mxu0 %v4703
      %v4812 = vpop.f32.mrf.mxu0
      %v4813 = vadd.f32 0.0, %v4812
      %4814 = vmatmul.f32.gmra.mxu0 %v4706
      %v4815 = vpop.f32.mrf.mxu0
      %v4816 = vadd.f32 0.0, %v4815
      %4817 = vmatmul.f32.gmra.mxu0 %v4709
      %v4818 = vpop.f32.mrf.mxu0
      %v4819 = vadd.f32 0.0, %v4818
      %4820 = vmatmul.f32.gmra.mxu0 %v4712
      %v4821 = vpop.f32.mrf.mxu0
      %v4822 = vadd.f32 0.0, %v4821
      %4823 = vmatmul.f32.gmra.mxu0 %v4715
      %v4824 = vpop.f32.mrf.mxu0
      %v4825 = vadd.f32 0.0, %v4824
      %4826 = vmatmul.f32.gmra.mxu0 %v4718
      %v4827 = vpop.f32.mrf.mxu0
      %v4828 = vadd.f32 0.0, %v4827
      %4829 = vmatmul.f32.gmra.mxu0 %v4721
      %v4830 = vpop.f32.mrf.mxu0
      %v4831 = vadd.f32 0.0, %v4830
      %4832 = vmatmul.f32.gmra.mxu0 %v4724
      %v4833 = vpop.f32.mrf.mxu0
      %v4834 = vadd.f32 0.0, %v4833
      %4835 = vmatmul.f32.gmra.mxu0 %v4727
      %v4836 = vpop.f32.mrf.mxu0
      %v4837 = vadd.f32 0.0, %v4836
      %4838 = vmatmul.f32.gmra.mxu0 %v4730
      %v4839 = vpop.f32.mrf.mxu0
      %v4840 = vadd.f32 0.0, %v4839
      %4841 = vmatmul.f32.gmra.mxu0 %v4733
      %v4842 = vpop.f32.mrf.mxu0
      %v4843 = vadd.f32 0.0, %v4842
      %4844 = vmatmul.f32.gmra.mxu0 %v4736
      %v4845 = vpop.f32.mrf.mxu0
      %v4846 = vadd.f32 0.0, %v4845
      %4847 = vmatmul.f32.gmra.mxu0 %v4739
      %v4848 = vpop.f32.mrf.mxu0
      %v4849 = vadd.f32 0.0, %v4848
      %4850 = vmatmul.f32.gmra.mxu0 %v4742
      %v4851 = vpop.f32.mrf.mxu0
      %v4852 = vadd.f32 0.0, %v4851
      %4853 = vmatmul.f32.gmra.mxu0 %v4745
      %v4854 = vpop.f32.mrf.mxu0
      %v4855 = vadd.f32 0.0, %v4854
      %4856 = vmatmul.f32.gmra.mxu0 %v4748
      %v4857 = vpop.f32.mrf.mxu0
      %v4858 = vadd.f32 0.0, %v4857
      %4859 = vmatmul.f32.gmra.mxu0 %v4751
      %v4860 = vpop.f32.mrf.mxu0
      %v4861 = vadd.f32 0.0, %v4860
      %4862 = vmatmul.f32.gmra.mxu0 %v4754
      %v4863 = vpop.f32.mrf.mxu0
      %v4864 = vadd.f32 0.0, %v4863
      %4865 = vmatmul.f32.gmra.mxu0 %v4757
      %v4866 = vpop.f32.mrf.mxu0
      %v4867 = vadd.f32 0.0, %v4866
      %4868 = vmatmul.f32.gmra.mxu0 %v4760
      %v4869 = vpop.f32.mrf.mxu0
      %v4870 = vadd.f32 0.0, %v4869
      %4871 = vmatmul.f32.gmra.mxu0 %v4763
      %v4872 = vpop.f32.mrf.mxu0
      %v4873 = vadd.f32 0.0, %v4872
      %4874 = vmatmul.f32.gmra.mxu0 %v4766
      %v4875 = vpop.f32.mrf.mxu0
      %v4876 = vadd.f32 0.0, %v4875
      %4877 = vmatmul.f32.gmra.mxu0 %v4769
      %v4878 = vpop.f32.mrf.mxu0
      %v4879 = vadd.f32 0.0, %v4878
      %4880 = vmatmul.f32.gmra.mxu0 %v4772
      %v4881 = vpop.f32.mrf.mxu0
      %v4882 = vadd.f32 0.0, %v4881
      %4883 = vmatmul.f32.gmra.mxu0 %v4775
      %v4884 = vpop.f32.mrf.mxu0
      %v4885 = vadd.f32 0.0, %v4884
      %4886 = vdwg.mxu0
      %v4887 = vadd.f32 %v4617, %v4795
      %v4888 = vadd.f32 %v4618, %v4798
      %v4889 = vadd.f32 %v4619, %v4801
      %v4890 = vadd.f32 %v4620, %v4804
      %v4891 = vadd.f32 %v4621, %v4807
      %v4892 = vadd.f32 %v4622, %v4810
      %v4893 = vadd.f32 %v4623, %v4813
      %v4894 = vadd.f32 %v4624, %v4816
      %v4895 = vadd.f32 %v4625, %v4819
      %v4896 = vadd.f32 %v4626, %v4822
      %v4897 = vadd.f32 %v4627, %v4825
      %v4898 = vadd.f32 %v4628, %v4828
      %v4899 = vadd.f32 %v4629, %v4831
      %v4900 = vadd.f32 %v4630, %v4834
      %v4901 = vadd.f32 %v4631, %v4837
      %v4902 = vadd.f32 %v4632, %v4840
      %v4903 = vadd.f32 %v4633, %v4843
      %v4904 = vadd.f32 %v4634, %v4846
      %v4905 = vadd.f32 %v4635, %v4849
      %v4906 = vadd.f32 %v4636, %v4852
      %v4907 = vadd.f32 %v4637, %v4855
      %v4908 = vadd.f32 %v4638, %v4858
      %v4909 = vadd.f32 %v4639, %v4861
      %v4910 = vadd.f32 %v4640, %v4864
      %v4911 = vadd.f32 %v4641, %v4867
      %v4912 = vadd.f32 %v4642, %v4870
      %v4913 = vadd.f32 %v4643, %v4873
      %v4914 = vadd.f32 %v4644, %v4876
      %v4915 = vadd.f32 %v4645, %v4879
      %v4916 = vadd.f32 %v4646, %v4882
      %v4917 = vadd.f32 %v4647, %v4885
      %v4918 = vld [vmem:[#allocation3 + $0x24] sm:$0xff]
      %v4919 = vld [vmem:[#allocation3 + $0x2c] sm:$0xff]
      %v4920 = vld [vmem:[#allocation3 + $0x34] sm:$0xff]
      %v4921 = vld [vmem:[#allocation3 + $0x3c] sm:$0xff]
      %v4922 = vld [vmem:[#allocation3 + $0x44] sm:$0xff]
      %v4923 = vld [vmem:[#allocation3 + $0x4c] sm:$0xff]
      %v4924 = vld [vmem:[#allocation3 + $0x54] sm:$0xff]
      %v4925 = vld [vmem:[#allocation3 + $0x5c] sm:$0xff]
      %v4926 = vld [vmem:[#allocation3 + $0x64] sm:$0xff]
      %v4927 = vld [vmem:[#allocation3 + $0x6c] sm:$0xff]
      %v4928 = vld [vmem:[#allocation3 + $0x74] sm:$0xff]
      %v4929 = vld [vmem:[#allocation3 + $0x7c] sm:$0xff]
      %v4930 = vld [vmem:[#allocation3 + $0x84] sm:$0xff]
      %v4931 = vld [vmem:[#allocation3 + $0x8c] sm:$0xff]
      %v4932 = vld [vmem:[#allocation3 + $0x94] sm:$0xff]
      %v4933 = vld [vmem:[#allocation3 + $0x9c] sm:$0xff]
      %v4934 = vld [vmem:[#allocation3 + $0xa4] sm:$0xff]
      %v4935 = vld [vmem:[#allocation3 + $0xac] sm:$0xff]
      %v4936 = vld [vmem:[#allocation3 + $0xb4] sm:$0xff]
      %v4937 = vld [vmem:[#allocation3 + $0xbc] sm:$0xff]
      %v4938 = vld [vmem:[#allocation3 + $0xc4] sm:$0xff]
      %v4939 = vld [vmem:[#allocation3 + $0xcc] sm:$0xff]
      %v4940 = vld [vmem:[#allocation3 + $0xd4] sm:$0xff]
      %v4941 = vld [vmem:[#allocation3 + $0xdc] sm:$0xff]
      %v4942 = vld [vmem:[#allocation3 + $0xe4] sm:$0xff]
      %v4943 = vld [vmem:[#allocation3 + $0xec] sm:$0xff]
      %v4944 = vld [vmem:[#allocation3 + $0xf4] sm:$0xff]
      %v4945 = vld [vmem:[#allocation3 + $0xfc] sm:$0xff]
      %v4946 = vld [vmem:[#allocation3 + $0x104] sm:$0xff]
      %v4947 = vld [vmem:[#allocation3 + $0x10c] sm:$0xff]
      %v4948 = vld [vmem:[#allocation3 + $0x114] sm:$0xff]
      %s4949 = scalar_lea.vmem %s4, 320
      %v4950 = vld [vmem:[%s4949] sm:$0xff]
      %v4951 = vld [vmem:[%s4949 + $0x8] sm:$0xff]
      %v4952 = vld [vmem:[%s4949 + $0x10] sm:$0xff]
      %v4953 = vld [vmem:[%s4949 + $0x18] sm:$0xff]
      %v4955 = vsel %vm1295, %v4918, 0
      %v4958 = vsel %vm1295, %v4919, 0
      %v4961 = vsel %vm1295, %v4920, 0
      %v4964 = vsel %vm1295, %v4921, 0
      %v4967 = vsel %vm1295, %v4922, 0
      %v4970 = vsel %vm1295, %v4923, 0
      %v4973 = vsel %vm1295, %v4924, 0
      %v4976 = vsel %vm1295, %v4925, 0
      %v4979 = vsel %vm1295, %v4926, 0
      %v4982 = vsel %vm1295, %v4927, 0
      %v4985 = vsel %vm1295, %v4928, 0
      %v4988 = vsel %vm1295, %v4929, 0
      %v4991 = vsel %vm1295, %v4930, 0
      %v4994 = vsel %vm1295, %v4931, 0
      %v4997 = vsel %vm1295, %v4932, 0
      %v5000 = vsel %vm1295, %v4933, 0
      %v5003 = vsel %vm1295, %v4934, 0
      %v5006 = vsel %vm1295, %v4935, 0
      %v5009 = vsel %vm1295, %v4936, 0
      %v5012 = vsel %vm1295, %v4937, 0
      %v5015 = vsel %vm1295, %v4938, 0
      %v5018 = vsel %vm1295, %v4939, 0
      %v5021 = vsel %vm1295, %v4940, 0
      %v5024 = vsel %vm1295, %v4941, 0
      %v5027 = vsel %vm1295, %v4942, 0
      %v5030 = vsel %vm1295, %v4943, 0
      %v5033 = vsel %vm1295, %v4944, 0
      %v5036 = vsel %vm1295, %v4945, 0
      %v5039 = vsel %vm1295, %v4946, 0
      %v5042 = vsel %vm1295, %v4947, 0
      %v5045 = vsel %vm1295, %v4948, 0
      %5047 = vmatpush.msra.mxu0 0.0
      %5048 = vmatpush.msra.mxu0 0.0
      %5049 = vmatpush.msra.mxu0 0.0
      %5050 = vmatpush.msra.mxu0 0.0
      %5051 = vmatpush.msra.mxu0 0.0
      %5052 = vmatpush.msra.mxu0 0.0
      %5053 = vmatpush.msra.mxu0 0.0
      %5054 = vmatpush.msra.mxu0 0.0
      %5055 = vmatpush.msra.mxu0 0.0
      %5056 = vmatpush.msra.mxu0 0.0
      %5057 = vmatpush.msra.mxu0 0.0
      %5058 = vmatpush.msra.mxu0 0.0
      %5059 = vmatpush.msra.mxu0 %v4953
      %5060 = vmatpush.msra.mxu0 %v4952
      %5061 = vmatpush.msra.mxu0 %v4951
      %5062 = vmatpush.msra.mxu0 %v4950
      %5063 = vmatmul.f32.gmra.mxu0 %v4955
      %v5064 = vpop.f32.mrf.mxu0
      %v5065 = vadd.f32 0.0, %v5064
      %5066 = vmatmul.f32.gmra.mxu0 %v4958
      %v5067 = vpop.f32.mrf.mxu0
      %v5068 = vadd.f32 0.0, %v5067
      %5069 = vmatmul.f32.gmra.mxu0 %v4961
      %v5070 = vpop.f32.mrf.mxu0
      %v5071 = vadd.f32 0.0, %v5070
      %5072 = vmatmul.f32.gmra.mxu0 %v4964
      %v5073 = vpop.f32.mrf.mxu0
      %v5074 = vadd.f32 0.0, %v5073
      %5075 = vmatmul.f32.gmra.mxu0 %v4967
      %v5076 = vpop.f32.mrf.mxu0
      %v5077 = vadd.f32 0.0, %v5076
      %5078 = vmatmul.f32.gmra.mxu0 %v4970
      %v5079 = vpop.f32.mrf.mxu0
      %v5080 = vadd.f32 0.0, %v5079
      %5081 = vmatmul.f32.gmra.mxu0 %v4973
      %v5082 = vpop.f32.mrf.mxu0
      %v5083 = vadd.f32 0.0, %v5082
      %5084 = vmatmul.f32.gmra.mxu0 %v4976
      %v5085 = vpop.f32.mrf.mxu0
      %v5086 = vadd.f32 0.0, %v5085
      %5087 = vmatmul.f32.gmra.mxu0 %v4979
      %v5088 = vpop.f32.mrf.mxu0
      %v5089 = vadd.f32 0.0, %v5088
      %5090 = vmatmul.f32.gmra.mxu0 %v4982
      %v5091 = vpop.f32.mrf.mxu0
      %v5092 = vadd.f32 0.0, %v5091
      %5093 = vmatmul.f32.gmra.mxu0 %v4985
      %v5094 = vpop.f32.mrf.mxu0
      %v5095 = vadd.f32 0.0, %v5094
      %5096 = vmatmul.f32.gmra.mxu0 %v4988
      %v5097 = vpop.f32.mrf.mxu0
      %v5098 = vadd.f32 0.0, %v5097
      %5099 = vmatmul.f32.gmra.mxu0 %v4991
      %v5100 = vpop.f32.mrf.mxu0
      %v5101 = vadd.f32 0.0, %v5100
      %5102 = vmatmul.f32.gmra.mxu0 %v4994
      %v5103 = vpop.f32.mrf.mxu0
      %v5104 = vadd.f32 0.0, %v5103
      %5105 = vmatmul.f32.gmra.mxu0 %v4997
      %v5106 = vpop.f32.mrf.mxu0
      %v5107 = vadd.f32 0.0, %v5106
      %5108 = vmatmul.f32.gmra.mxu0 %v5000
      %v5109 = vpop.f32.mrf.mxu0
      %v5110 = vadd.f32 0.0, %v5109
      %5111 = vmatmul.f32.gmra.mxu0 %v5003
      %v5112 = vpop.f32.mrf.mxu0
      %v5113 = vadd.f32 0.0, %v5112
      %5114 = vmatmul.f32.gmra.mxu0 %v5006
      %v5115 = vpop.f32.mrf.mxu0
      %v5116 = vadd.f32 0.0, %v5115
      %5117 = vmatmul.f32.gmra.mxu0 %v5009
      %v5118 = vpop.f32.mrf.mxu0
      %v5119 = vadd.f32 0.0, %v5118
      %5120 = vmatmul.f32.gmra.mxu0 %v5012
      %v5121 = vpop.f32.mrf.mxu0
      %v5122 = vadd.f32 0.0, %v5121
      %5123 = vmatmul.f32.gmra.mxu0 %v5015
      %v5124 = vpop.f32.mrf.mxu0
      %v5125 = vadd.f32 0.0, %v5124
      %5126 = vmatmul.f32.gmra.mxu0 %v5018
      %v5127 = vpop.f32.mrf.mxu0
      %v5128 = vadd.f32 0.0, %v5127
      %5129 = vmatmul.f32.gmra.mxu0 %v5021
      %v5130 = vpop.f32.mrf.mxu0
      %v5131 = vadd.f32 0.0, %v5130
      %5132 = vmatmul.f32.gmra.mxu0 %v5024
      %v5133 = vpop.f32.mrf.mxu0
      %v5134 = vadd.f32 0.0, %v5133
      %5135 = vmatmul.f32.gmra.mxu0 %v5027
      %v5136 = vpop.f32.mrf.mxu0
      %v5137 = vadd.f32 0.0, %v5136
      %5138 = vmatmul.f32.gmra.mxu0 %v5030
      %v5139 = vpop.f32.mrf.mxu0
      %v5140 = vadd.f32 0.0, %v5139
      %5141 = vmatmul.f32.gmra.mxu0 %v5033
      %v5142 = vpop.f32.mrf.mxu0
      %v5143 = vadd.f32 0.0, %v5142
      %5144 = vmatmul.f32.gmra.mxu0 %v5036
      %v5145 = vpop.f32.mrf.mxu0
      %v5146 = vadd.f32 0.0, %v5145
      %5147 = vmatmul.f32.gmra.mxu0 %v5039
      %v5148 = vpop.f32.mrf.mxu0
      %v5149 = vadd.f32 0.0, %v5148
      %5150 = vmatmul.f32.gmra.mxu0 %v5042
      %v5151 = vpop.f32.mrf.mxu0
      %v5152 = vadd.f32 0.0, %v5151
      %5153 = vmatmul.f32.gmra.mxu0 %v5045
      %v5154 = vpop.f32.mrf.mxu0
      %v5155 = vadd.f32 0.0, %v5154
      %5156 = vdwg.mxu0
      %v5157 = vadd.f32 %v4887, %v5065
      %v5158 = vadd.f32 %v4888, %v5068
      %v5159 = vadd.f32 %v4889, %v5071
      %v5160 = vadd.f32 %v4890, %v5074
      %v5161 = vadd.f32 %v4891, %v5077
      %v5162 = vadd.f32 %v4892, %v5080
      %v5163 = vadd.f32 %v4893, %v5083
      %v5164 = vadd.f32 %v4894, %v5086
      %v5165 = vadd.f32 %v4895, %v5089
      %v5166 = vadd.f32 %v4896, %v5092
      %v5167 = vadd.f32 %v4897, %v5095
      %v5168 = vadd.f32 %v4898, %v5098
      %v5169 = vadd.f32 %v4899, %v5101
      %v5170 = vadd.f32 %v4900, %v5104
      %v5171 = vadd.f32 %v4901, %v5107
      %v5172 = vadd.f32 %v4902, %v5110
      %v5173 = vadd.f32 %v4903, %v5113
      %v5174 = vadd.f32 %v4904, %v5116
      %v5175 = vadd.f32 %v4905, %v5119
      %v5176 = vadd.f32 %v4906, %v5122
      %v5177 = vadd.f32 %v4907, %v5125
      %v5178 = vadd.f32 %v4908, %v5128
      %v5179 = vadd.f32 %v4909, %v5131
      %v5180 = vadd.f32 %v4910, %v5134
      %v5181 = vadd.f32 %v4911, %v5137
      %v5182 = vadd.f32 %v4912, %v5140
      %v5183 = vadd.f32 %v4913, %v5143
      %v5184 = vadd.f32 %v4914, %v5146
      %v5185 = vadd.f32 %v4915, %v5149
      %v5186 = vadd.f32 %v4916, %v5152
      %v5187 = vadd.f32 %v4917, %v5155
      %v5188 = vld [vmem:[#allocation3 + $0x25] sm:$0xff]
      %v5189 = vld [vmem:[#allocation3 + $0x2d] sm:$0xff]
      %v5190 = vld [vmem:[#allocation3 + $0x35] sm:$0xff]
      %v5191 = vld [vmem:[#allocation3 + $0x3d] sm:$0xff]
      %v5192 = vld [vmem:[#allocation3 + $0x45] sm:$0xff]
      %v5193 = vld [vmem:[#allocation3 + $0x4d] sm:$0xff]
      %v5194 = vld [vmem:[#allocation3 + $0x55] sm:$0xff]
      %v5195 = vld [vmem:[#allocation3 + $0x5d] sm:$0xff]
      %v5196 = vld [vmem:[#allocation3 + $0x65] sm:$0xff]
      %v5197 = vld [vmem:[#allocation3 + $0x6d] sm:$0xff]
      %v5198 = vld [vmem:[#allocation3 + $0x75] sm:$0xff]
      %v5199 = vld [vmem:[#allocation3 + $0x7d] sm:$0xff]
      %v5200 = vld [vmem:[#allocation3 + $0x85] sm:$0xff]
      %v5201 = vld [vmem:[#allocation3 + $0x8d] sm:$0xff]
      %v5202 = vld [vmem:[#allocation3 + $0x95] sm:$0xff]
      %v5203 = vld [vmem:[#allocation3 + $0x9d] sm:$0xff]
      %v5204 = vld [vmem:[#allocation3 + $0xa5] sm:$0xff]
      %v5205 = vld [vmem:[#allocation3 + $0xad] sm:$0xff]
      %v5206 = vld [vmem:[#allocation3 + $0xb5] sm:$0xff]
      %v5207 = vld [vmem:[#allocation3 + $0xbd] sm:$0xff]
      %v5208 = vld [vmem:[#allocation3 + $0xc5] sm:$0xff]
      %v5209 = vld [vmem:[#allocation3 + $0xcd] sm:$0xff]
      %v5210 = vld [vmem:[#allocation3 + $0xd5] sm:$0xff]
      %v5211 = vld [vmem:[#allocation3 + $0xdd] sm:$0xff]
      %v5212 = vld [vmem:[#allocation3 + $0xe5] sm:$0xff]
      %v5213 = vld [vmem:[#allocation3 + $0xed] sm:$0xff]
      %v5214 = vld [vmem:[#allocation3 + $0xf5] sm:$0xff]
      %v5215 = vld [vmem:[#allocation3 + $0xfd] sm:$0xff]
      %v5216 = vld [vmem:[#allocation3 + $0x105] sm:$0xff]
      %v5217 = vld [vmem:[#allocation3 + $0x10d] sm:$0xff]
      %v5218 = vld [vmem:[#allocation3 + $0x115] sm:$0xff]
      %s5219 = scalar_lea.vmem %s4, 352
      %v5220 = vld [vmem:[%s5219] sm:$0xff]
      %v5221 = vld [vmem:[%s5219 + $0x8] sm:$0xff]
      %v5222 = vld [vmem:[%s5219 + $0x10] sm:$0xff]
      %v5223 = vld [vmem:[%s5219 + $0x18] sm:$0xff]
      %v5225 = vsel %vm1295, %v5188, 0
      %v5228 = vsel %vm1295, %v5189, 0
      %v5231 = vsel %vm1295, %v5190, 0
      %v5234 = vsel %vm1295, %v5191, 0
      %v5237 = vsel %vm1295, %v5192, 0
      %v5240 = vsel %vm1295, %v5193, 0
      %v5243 = vsel %vm1295, %v5194, 0
      %v5246 = vsel %vm1295, %v5195, 0
      %v5249 = vsel %vm1295, %v5196, 0
      %v5252 = vsel %vm1295, %v5197, 0
      %v5255 = vsel %vm1295, %v5198, 0
      %v5258 = vsel %vm1295, %v5199, 0
      %v5261 = vsel %vm1295, %v5200, 0
      %v5264 = vsel %vm1295, %v5201, 0
      %v5267 = vsel %vm1295, %v5202, 0
      %v5270 = vsel %vm1295, %v5203, 0
      %v5273 = vsel %vm1295, %v5204, 0
      %v5276 = vsel %vm1295, %v5205, 0
      %v5279 = vsel %vm1295, %v5206, 0
      %v5282 = vsel %vm1295, %v5207, 0
      %v5285 = vsel %vm1295, %v5208, 0
      %v5288 = vsel %vm1295, %v5209, 0
      %v5291 = vsel %vm1295, %v5210, 0
      %v5294 = vsel %vm1295, %v5211, 0
      %v5297 = vsel %vm1295, %v5212, 0
      %v5300 = vsel %vm1295, %v5213, 0
      %v5303 = vsel %vm1295, %v5214, 0
      %v5306 = vsel %vm1295, %v5215, 0
      %v5309 = vsel %vm1295, %v5216, 0
      %v5312 = vsel %vm1295, %v5217, 0
      %v5315 = vsel %vm1295, %v5218, 0
      %5317 = vmatpush.msra.mxu0 0.0
      %5318 = vmatpush.msra.mxu0 0.0
      %5319 = vmatpush.msra.mxu0 0.0
      %5320 = vmatpush.msra.mxu0 0.0
      %5321 = vmatpush.msra.mxu0 0.0
      %5322 = vmatpush.msra.mxu0 0.0
      %5323 = vmatpush.msra.mxu0 0.0
      %5324 = vmatpush.msra.mxu0 0.0
      %5325 = vmatpush.msra.mxu0 0.0
      %5326 = vmatpush.msra.mxu0 0.0
      %5327 = vmatpush.msra.mxu0 0.0
      %5328 = vmatpush.msra.mxu0 0.0
      %5329 = vmatpush.msra.mxu0 %v5223
      %5330 = vmatpush.msra.mxu0 %v5222
      %5331 = vmatpush.msra.mxu0 %v5221
      %5332 = vmatpush.msra.mxu0 %v5220
      %5333 = vmatmul.f32.gmra.mxu0 %v5225
      %v5334 = vpop.f32.mrf.mxu0
      %v5335 = vadd.f32 0.0, %v5334
      %5336 = vmatmul.f32.gmra.mxu0 %v5228
      %v5337 = vpop.f32.mrf.mxu0
      %v5338 = vadd.f32 0.0, %v5337
      %5339 = vmatmul.f32.gmra.mxu0 %v5231
      %v5340 = vpop.f32.mrf.mxu0
      %v5341 = vadd.f32 0.0, %v5340
      %5342 = vmatmul.f32.gmra.mxu0 %v5234
      %v5343 = vpop.f32.mrf.mxu0
      %v5344 = vadd.f32 0.0, %v5343
      %5345 = vmatmul.f32.gmra.mxu0 %v5237
      %v5346 = vpop.f32.mrf.mxu0
      %v5347 = vadd.f32 0.0, %v5346
      %5348 = vmatmul.f32.gmra.mxu0 %v5240
      %v5349 = vpop.f32.mrf.mxu0
      %v5350 = vadd.f32 0.0, %v5349
      %5351 = vmatmul.f32.gmra.mxu0 %v5243
      %v5352 = vpop.f32.mrf.mxu0
      %v5353 = vadd.f32 0.0, %v5352
      %5354 = vmatmul.f32.gmra.mxu0 %v5246
      %v5355 = vpop.f32.mrf.mxu0
      %v5356 = vadd.f32 0.0, %v5355
      %5357 = vmatmul.f32.gmra.mxu0 %v5249
      %v5358 = vpop.f32.mrf.mxu0
      %v5359 = vadd.f32 0.0, %v5358
      %5360 = vmatmul.f32.gmra.mxu0 %v5252
      %v5361 = vpop.f32.mrf.mxu0
      %v5362 = vadd.f32 0.0, %v5361
      %5363 = vmatmul.f32.gmra.mxu0 %v5255
      %v5364 = vpop.f32.mrf.mxu0
      %v5365 = vadd.f32 0.0, %v5364
      %5366 = vmatmul.f32.gmra.mxu0 %v5258
      %v5367 = vpop.f32.mrf.mxu0
      %v5368 = vadd.f32 0.0, %v5367
      %5369 = vmatmul.f32.gmra.mxu0 %v5261
      %v5370 = vpop.f32.mrf.mxu0
      %v5371 = vadd.f32 0.0, %v5370
      %5372 = vmatmul.f32.gmra.mxu0 %v5264
      %v5373 = vpop.f32.mrf.mxu0
      %v5374 = vadd.f32 0.0, %v5373
      %5375 = vmatmul.f32.gmra.mxu0 %v5267
      %v5376 = vpop.f32.mrf.mxu0
      %v5377 = vadd.f32 0.0, %v5376
      %5378 = vmatmul.f32.gmra.mxu0 %v5270
      %v5379 = vpop.f32.mrf.mxu0
      %v5380 = vadd.f32 0.0, %v5379
      %5381 = vmatmul.f32.gmra.mxu0 %v5273
      %v5382 = vpop.f32.mrf.mxu0
      %v5383 = vadd.f32 0.0, %v5382
      %5384 = vmatmul.f32.gmra.mxu0 %v5276
      %v5385 = vpop.f32.mrf.mxu0
      %v5386 = vadd.f32 0.0, %v5385
      %5387 = vmatmul.f32.gmra.mxu0 %v5279
      %v5388 = vpop.f32.mrf.mxu0
      %v5389 = vadd.f32 0.0, %v5388
      %5390 = vmatmul.f32.gmra.mxu0 %v5282
      %v5391 = vpop.f32.mrf.mxu0
      %v5392 = vadd.f32 0.0, %v5391
      %5393 = vmatmul.f32.gmra.mxu0 %v5285
      %v5394 = vpop.f32.mrf.mxu0
      %v5395 = vadd.f32 0.0, %v5394
      %5396 = vmatmul.f32.gmra.mxu0 %v5288
      %v5397 = vpop.f32.mrf.mxu0
      %v5398 = vadd.f32 0.0, %v5397
      %5399 = vmatmul.f32.gmra.mxu0 %v5291
      %v5400 = vpop.f32.mrf.mxu0
      %v5401 = vadd.f32 0.0, %v5400
      %5402 = vmatmul.f32.gmra.mxu0 %v5294
      %v5403 = vpop.f32.mrf.mxu0
      %v5404 = vadd.f32 0.0, %v5403
      %5405 = vmatmul.f32.gmra.mxu0 %v5297
      %v5406 = vpop.f32.mrf.mxu0
      %v5407 = vadd.f32 0.0, %v5406
      %5408 = vmatmul.f32.gmra.mxu0 %v5300
      %v5409 = vpop.f32.mrf.mxu0
      %v5410 = vadd.f32 0.0, %v5409
      %5411 = vmatmul.f32.gmra.mxu0 %v5303
      %v5412 = vpop.f32.mrf.mxu0
      %v5413 = vadd.f32 0.0, %v5412
      %5414 = vmatmul.f32.gmra.mxu0 %v5306
      %v5415 = vpop.f32.mrf.mxu0
      %v5416 = vadd.f32 0.0, %v5415
      %5417 = vmatmul.f32.gmra.mxu0 %v5309
      %v5418 = vpop.f32.mrf.mxu0
      %v5419 = vadd.f32 0.0, %v5418
      %5420 = vmatmul.f32.gmra.mxu0 %v5312
      %v5421 = vpop.f32.mrf.mxu0
      %v5422 = vadd.f32 0.0, %v5421
      %5423 = vmatmul.f32.gmra.mxu0 %v5315
      %v5424 = vpop.f32.mrf.mxu0
      %v5425 = vadd.f32 0.0, %v5424
      %5426 = vdwg.mxu0
      %v5427 = vadd.f32 %v5157, %v5335
      %v5428 = vadd.f32 %v5158, %v5338
      %v5429 = vadd.f32 %v5159, %v5341
      %v5430 = vadd.f32 %v5160, %v5344
      %v5431 = vadd.f32 %v5161, %v5347
      %v5432 = vadd.f32 %v5162, %v5350
      %v5433 = vadd.f32 %v5163, %v5353
      %v5434 = vadd.f32 %v5164, %v5356
      %v5435 = vadd.f32 %v5165, %v5359
      %v5436 = vadd.f32 %v5166, %v5362
      %v5437 = vadd.f32 %v5167, %v5365
      %v5438 = vadd.f32 %v5168, %v5368
      %v5439 = vadd.f32 %v5169, %v5371
      %v5440 = vadd.f32 %v5170, %v5374
      %v5441 = vadd.f32 %v5171, %v5377
      %v5442 = vadd.f32 %v5172, %v5380
      %v5443 = vadd.f32 %v5173, %v5383
      %v5444 = vadd.f32 %v5174, %v5386
      %v5445 = vadd.f32 %v5175, %v5389
      %v5446 = vadd.f32 %v5176, %v5392
      %v5447 = vadd.f32 %v5177, %v5395
      %v5448 = vadd.f32 %v5178, %v5398
      %v5449 = vadd.f32 %v5179, %v5401
      %v5450 = vadd.f32 %v5180, %v5404
      %v5451 = vadd.f32 %v5181, %v5407
      %v5452 = vadd.f32 %v5182, %v5410
      %v5453 = vadd.f32 %v5183, %v5413
      %v5454 = vadd.f32 %v5184, %v5416
      %v5455 = vadd.f32 %v5185, %v5419
      %v5456 = vadd.f32 %v5186, %v5422
      %v5457 = vadd.f32 %v5187, %v5425
      %v5458 = vld [vmem:[#allocation3 + $0x26] sm:$0xff]
      %v5459 = vld [vmem:[#allocation3 + $0x2e] sm:$0xff]
      %v5460 = vld [vmem:[#allocation3 + $0x36] sm:$0xff]
      %v5461 = vld [vmem:[#allocation3 + $0x3e] sm:$0xff]
      %v5462 = vld [vmem:[#allocation3 + $0x46] sm:$0xff]
      %v5463 = vld [vmem:[#allocation3 + $0x4e] sm:$0xff]
      %v5464 = vld [vmem:[#allocation3 + $0x56] sm:$0xff]
      %v5465 = vld [vmem:[#allocation3 + $0x5e] sm:$0xff]
      %v5466 = vld [vmem:[#allocation3 + $0x66] sm:$0xff]
      %v5467 = vld [vmem:[#allocation3 + $0x6e] sm:$0xff]
      %v5468 = vld [vmem:[#allocation3 + $0x76] sm:$0xff]
      %v5469 = vld [vmem:[#allocation3 + $0x7e] sm:$0xff]
      %v5470 = vld [vmem:[#allocation3 + $0x86] sm:$0xff]
      %v5471 = vld [vmem:[#allocation3 + $0x8e] sm:$0xff]
      %v5472 = vld [vmem:[#allocation3 + $0x96] sm:$0xff]
      %v5473 = vld [vmem:[#allocation3 + $0x9e] sm:$0xff]
      %v5474 = vld [vmem:[#allocation3 + $0xa6] sm:$0xff]
      %v5475 = vld [vmem:[#allocation3 + $0xae] sm:$0xff]
      %v5476 = vld [vmem:[#allocation3 + $0xb6] sm:$0xff]
      %v5477 = vld [vmem:[#allocation3 + $0xbe] sm:$0xff]
      %v5478 = vld [vmem:[#allocation3 + $0xc6] sm:$0xff]
      %v5479 = vld [vmem:[#allocation3 + $0xce] sm:$0xff]
      %v5480 = vld [vmem:[#allocation3 + $0xd6] sm:$0xff]
      %v5481 = vld [vmem:[#allocation3 + $0xde] sm:$0xff]
      %v5482 = vld [vmem:[#allocation3 + $0xe6] sm:$0xff]
      %v5483 = vld [vmem:[#allocation3 + $0xee] sm:$0xff]
      %v5484 = vld [vmem:[#allocation3 + $0xf6] sm:$0xff]
      %v5485 = vld [vmem:[#allocation3 + $0xfe] sm:$0xff]
      %v5486 = vld [vmem:[#allocation3 + $0x106] sm:$0xff]
      %v5487 = vld [vmem:[#allocation3 + $0x10e] sm:$0xff]
      %v5488 = vld [vmem:[#allocation3 + $0x116] sm:$0xff]
      %s5489 = scalar_lea.vmem %s4, 384
      %v5490 = vld [vmem:[%s5489] sm:$0xff]
      %v5491 = vld [vmem:[%s5489 + $0x8] sm:$0xff]
      %v5492 = vld [vmem:[%s5489 + $0x10] sm:$0xff]
      %v5493 = vld [vmem:[%s5489 + $0x18] sm:$0xff]
      %v5495 = vsel %vm1295, %v5458, 0
      %v5498 = vsel %vm1295, %v5459, 0
      %v5501 = vsel %vm1295, %v5460, 0
      %v5504 = vsel %vm1295, %v5461, 0
      %v5507 = vsel %vm1295, %v5462, 0
      %v5510 = vsel %vm1295, %v5463, 0
      %v5513 = vsel %vm1295, %v5464, 0
      %v5516 = vsel %vm1295, %v5465, 0
      %v5519 = vsel %vm1295, %v5466, 0
      %v5522 = vsel %vm1295, %v5467, 0
      %v5525 = vsel %vm1295, %v5468, 0
      %v5528 = vsel %vm1295, %v5469, 0
      %v5531 = vsel %vm1295, %v5470, 0
      %v5534 = vsel %vm1295, %v5471, 0
      %v5537 = vsel %vm1295, %v5472, 0
      %v5540 = vsel %vm1295, %v5473, 0
      %v5543 = vsel %vm1295, %v5474, 0
      %v5546 = vsel %vm1295, %v5475, 0
      %v5549 = vsel %vm1295, %v5476, 0
      %v5552 = vsel %vm1295, %v5477, 0
      %v5555 = vsel %vm1295, %v5478, 0
      %v5558 = vsel %vm1295, %v5479, 0
      %v5561 = vsel %vm1295, %v5480, 0
      %v5564 = vsel %vm1295, %v5481, 0
      %v5567 = vsel %vm1295, %v5482, 0
      %v5570 = vsel %vm1295, %v5483, 0
      %v5573 = vsel %vm1295, %v5484, 0
      %v5576 = vsel %vm1295, %v5485, 0
      %v5579 = vsel %vm1295, %v5486, 0
      %v5582 = vsel %vm1295, %v5487, 0
      %v5585 = vsel %vm1295, %v5488, 0
      %5587 = vmatpush.msra.mxu0 0.0
      %5588 = vmatpush.msra.mxu0 0.0
      %5589 = vmatpush.msra.mxu0 0.0
      %5590 = vmatpush.msra.mxu0 0.0
      %5591 = vmatpush.msra.mxu0 0.0
      %5592 = vmatpush.msra.mxu0 0.0
      %5593 = vmatpush.msra.mxu0 0.0
      %5594 = vmatpush.msra.mxu0 0.0
      %5595 = vmatpush.msra.mxu0 0.0
      %5596 = vmatpush.msra.mxu0 0.0
      %5597 = vmatpush.msra.mxu0 0.0
      %5598 = vmatpush.msra.mxu0 0.0
      %5599 = vmatpush.msra.mxu0 %v5493
      %5600 = vmatpush.msra.mxu0 %v5492
      %5601 = vmatpush.msra.mxu0 %v5491
      %5602 = vmatpush.msra.mxu0 %v5490
      %5603 = vmatmul.f32.gmra.mxu0 %v5495
      %v5604 = vpop.f32.mrf.mxu0
      %v5605 = vadd.f32 0.0, %v5604
      %5606 = vmatmul.f32.gmra.mxu0 %v5498
      %v5607 = vpop.f32.mrf.mxu0
      %v5608 = vadd.f32 0.0, %v5607
      %5609 = vmatmul.f32.gmra.mxu0 %v5501
      %v5610 = vpop.f32.mrf.mxu0
      %v5611 = vadd.f32 0.0, %v5610
      %5612 = vmatmul.f32.gmra.mxu0 %v5504
      %v5613 = vpop.f32.mrf.mxu0
      %v5614 = vadd.f32 0.0, %v5613
      %5615 = vmatmul.f32.gmra.mxu0 %v5507
      %v5616 = vpop.f32.mrf.mxu0
      %v5617 = vadd.f32 0.0, %v5616
      %5618 = vmatmul.f32.gmra.mxu0 %v5510
      %v5619 = vpop.f32.mrf.mxu0
      %v5620 = vadd.f32 0.0, %v5619
      %5621 = vmatmul.f32.gmra.mxu0 %v5513
      %v5622 = vpop.f32.mrf.mxu0
      %v5623 = vadd.f32 0.0, %v5622
      %5624 = vmatmul.f32.gmra.mxu0 %v5516
      %v5625 = vpop.f32.mrf.mxu0
      %v5626 = vadd.f32 0.0, %v5625
      %5627 = vmatmul.f32.gmra.mxu0 %v5519
      %v5628 = vpop.f32.mrf.mxu0
      %v5629 = vadd.f32 0.0, %v5628
      %5630 = vmatmul.f32.gmra.mxu0 %v5522
      %v5631 = vpop.f32.mrf.mxu0
      %v5632 = vadd.f32 0.0, %v5631
      %5633 = vmatmul.f32.gmra.mxu0 %v5525
      %v5634 = vpop.f32.mrf.mxu0
      %v5635 = vadd.f32 0.0, %v5634
      %5636 = vmatmul.f32.gmra.mxu0 %v5528
      %v5637 = vpop.f32.mrf.mxu0
      %v5638 = vadd.f32 0.0, %v5637
      %5639 = vmatmul.f32.gmra.mxu0 %v5531
      %v5640 = vpop.f32.mrf.mxu0
      %v5641 = vadd.f32 0.0, %v5640
      %5642 = vmatmul.f32.gmra.mxu0 %v5534
      %v5643 = vpop.f32.mrf.mxu0
      %v5644 = vadd.f32 0.0, %v5643
      %5645 = vmatmul.f32.gmra.mxu0 %v5537
      %v5646 = vpop.f32.mrf.mxu0
      %v5647 = vadd.f32 0.0, %v5646
      %5648 = vmatmul.f32.gmra.mxu0 %v5540
      %v5649 = vpop.f32.mrf.mxu0
      %v5650 = vadd.f32 0.0, %v5649
      %5651 = vmatmul.f32.gmra.mxu0 %v5543
      %v5652 = vpop.f32.mrf.mxu0
      %v5653 = vadd.f32 0.0, %v5652
      %5654 = vmatmul.f32.gmra.mxu0 %v5546
      %v5655 = vpop.f32.mrf.mxu0
      %v5656 = vadd.f32 0.0, %v5655
      %5657 = vmatmul.f32.gmra.mxu0 %v5549
      %v5658 = vpop.f32.mrf.mxu0
      %v5659 = vadd.f32 0.0, %v5658
      %5660 = vmatmul.f32.gmra.mxu0 %v5552
      %v5661 = vpop.f32.mrf.mxu0
      %v5662 = vadd.f32 0.0, %v5661
      %5663 = vmatmul.f32.gmra.mxu0 %v5555
      %v5664 = vpop.f32.mrf.mxu0
      %v5665 = vadd.f32 0.0, %v5664
      %5666 = vmatmul.f32.gmra.mxu0 %v5558
      %v5667 = vpop.f32.mrf.mxu0
      %v5668 = vadd.f32 0.0, %v5667
      %5669 = vmatmul.f32.gmra.mxu0 %v5561
      %v5670 = vpop.f32.mrf.mxu0
      %v5671 = vadd.f32 0.0, %v5670
      %5672 = vmatmul.f32.gmra.mxu0 %v5564
      %v5673 = vpop.f32.mrf.mxu0
      %v5674 = vadd.f32 0.0, %v5673
      %5675 = vmatmul.f32.gmra.mxu0 %v5567
      %v5676 = vpop.f32.mrf.mxu0
      %v5677 = vadd.f32 0.0, %v5676
      %5678 = vmatmul.f32.gmra.mxu0 %v5570
      %v5679 = vpop.f32.mrf.mxu0
      %v5680 = vadd.f32 0.0, %v5679
      %5681 = vmatmul.f32.gmra.mxu0 %v5573
      %v5682 = vpop.f32.mrf.mxu0
      %v5683 = vadd.f32 0.0, %v5682
      %5684 = vmatmul.f32.gmra.mxu0 %v5576
      %v5685 = vpop.f32.mrf.mxu0
      %v5686 = vadd.f32 0.0, %v5685
      %5687 = vmatmul.f32.gmra.mxu0 %v5579
      %v5688 = vpop.f32.mrf.mxu0
      %v5689 = vadd.f32 0.0, %v5688
      %5690 = vmatmul.f32.gmra.mxu0 %v5582
      %v5691 = vpop.f32.mrf.mxu0
      %v5692 = vadd.f32 0.0, %v5691
      %5693 = vmatmul.f32.gmra.mxu0 %v5585
      %v5694 = vpop.f32.mrf.mxu0
      %v5695 = vadd.f32 0.0, %v5694
      %5696 = vdwg.mxu0
      %v5697 = vadd.f32 %v5427, %v5605
      %v5698 = vadd.f32 %v5428, %v5608
      %v5699 = vadd.f32 %v5429, %v5611
      %v5700 = vadd.f32 %v5430, %v5614
      %v5701 = vadd.f32 %v5431, %v5617
      %v5702 = vadd.f32 %v5432, %v5620
      %v5703 = vadd.f32 %v5433, %v5623
      %v5704 = vadd.f32 %v5434, %v5626
      %v5705 = vadd.f32 %v5435, %v5629
      %v5706 = vadd.f32 %v5436, %v5632
      %v5707 = vadd.f32 %v5437, %v5635
      %v5708 = vadd.f32 %v5438, %v5638
      %v5709 = vadd.f32 %v5439, %v5641
      %v5710 = vadd.f32 %v5440, %v5644
      %v5711 = vadd.f32 %v5441, %v5647
      %v5712 = vadd.f32 %v5442, %v5650
      %v5713 = vadd.f32 %v5443, %v5653
      %v5714 = vadd.f32 %v5444, %v5656
      %v5715 = vadd.f32 %v5445, %v5659
      %v5716 = vadd.f32 %v5446, %v5662
      %v5717 = vadd.f32 %v5447, %v5665
      %v5718 = vadd.f32 %v5448, %v5668
      %v5719 = vadd.f32 %v5449, %v5671
      %v5720 = vadd.f32 %v5450, %v5674
      %v5721 = vadd.f32 %v5451, %v5677
      %v5722 = vadd.f32 %v5452, %v5680
      %v5723 = vadd.f32 %v5453, %v5683
      %v5724 = vadd.f32 %v5454, %v5686
      %v5725 = vadd.f32 %v5455, %v5689
      %v5726 = vadd.f32 %v5456, %v5692
      %v5727 = vadd.f32 %v5457, %v5695
      %v5728 = vld [vmem:[#allocation3 + $0x27] sm:$0xff]
      %v5729 = vld [vmem:[#allocation3 + $0x2f] sm:$0xff]
      %v5730 = vld [vmem:[#allocation3 + $0x37] sm:$0xff]
      %v5731 = vld [vmem:[#allocation3 + $0x3f] sm:$0xff]
      %v5732 = vld [vmem:[#allocation3 + $0x47] sm:$0xff]
      %v5733 = vld [vmem:[#allocation3 + $0x4f] sm:$0xff]
      %v5734 = vld [vmem:[#allocation3 + $0x57] sm:$0xff]
      %v5735 = vld [vmem:[#allocation3 + $0x5f] sm:$0xff]
      %v5736 = vld [vmem:[#allocation3 + $0x67] sm:$0xff]
      %v5737 = vld [vmem:[#allocation3 + $0x6f] sm:$0xff]
      %v5738 = vld [vmem:[#allocation3 + $0x77] sm:$0xff]
      %v5739 = vld [vmem:[#allocation3 + $0x7f] sm:$0xff]
      %v5740 = vld [vmem:[#allocation3 + $0x87] sm:$0xff]
      %v5741 = vld [vmem:[#allocation3 + $0x8f] sm:$0xff]
      %v5742 = vld [vmem:[#allocation3 + $0x97] sm:$0xff]
      %v5743 = vld [vmem:[#allocation3 + $0x9f] sm:$0xff]
      %v5744 = vld [vmem:[#allocation3 + $0xa7] sm:$0xff]
      %v5745 = vld [vmem:[#allocation3 + $0xaf] sm:$0xff]
      %v5746 = vld [vmem:[#allocation3 + $0xb7] sm:$0xff]
      %v5747 = vld [vmem:[#allocation3 + $0xbf] sm:$0xff]
      %v5748 = vld [vmem:[#allocation3 + $0xc7] sm:$0xff]
      %v5749 = vld [vmem:[#allocation3 + $0xcf] sm:$0xff]
      %v5750 = vld [vmem:[#allocation3 + $0xd7] sm:$0xff]
      %v5751 = vld [vmem:[#allocation3 + $0xdf] sm:$0xff]
      %v5752 = vld [vmem:[#allocation3 + $0xe7] sm:$0xff]
      %v5753 = vld [vmem:[#allocation3 + $0xef] sm:$0xff]
      %v5754 = vld [vmem:[#allocation3 + $0xf7] sm:$0xff]
      %v5755 = vld [vmem:[#allocation3 + $0xff] sm:$0xff]
      %v5756 = vld [vmem:[#allocation3 + $0x107] sm:$0xff]
      %v5757 = vld [vmem:[#allocation3 + $0x10f] sm:$0xff]
      %v5758 = vld [vmem:[#allocation3 + $0x117] sm:$0xff]
      %s5759 = scalar_lea.vmem %s4, 416
      %v5760 = vld [vmem:[%s5759] sm:$0xff]
      %v5761 = vld [vmem:[%s5759 + $0x8] sm:$0xff]
      %v5762 = vld [vmem:[%s5759 + $0x10] sm:$0xff]
      %v5763 = vld [vmem:[%s5759 + $0x18] sm:$0xff]
      %v5765 = vsel %vm1295, %v5728, 0
      %v5768 = vsel %vm1295, %v5729, 0
      %v5771 = vsel %vm1295, %v5730, 0
      %v5774 = vsel %vm1295, %v5731, 0
      %v5777 = vsel %vm1295, %v5732, 0
      %v5780 = vsel %vm1295, %v5733, 0
      %v5783 = vsel %vm1295, %v5734, 0
      %v5786 = vsel %vm1295, %v5735, 0
      %v5789 = vsel %vm1295, %v5736, 0
      %v5792 = vsel %vm1295, %v5737, 0
      %v5795 = vsel %vm1295, %v5738, 0
      %v5798 = vsel %vm1295, %v5739, 0
      %v5801 = vsel %vm1295, %v5740, 0
      %v5804 = vsel %vm1295, %v5741, 0
      %v5807 = vsel %vm1295, %v5742, 0
      %v5810 = vsel %vm1295, %v5743, 0
      %v5813 = vsel %vm1295, %v5744, 0
      %v5816 = vsel %vm1295, %v5745, 0
      %v5819 = vsel %vm1295, %v5746, 0
      %v5822 = vsel %vm1295, %v5747, 0
      %v5825 = vsel %vm1295, %v5748, 0
      %v5828 = vsel %vm1295, %v5749, 0
      %v5831 = vsel %vm1295, %v5750, 0
      %v5834 = vsel %vm1295, %v5751, 0
      %v5837 = vsel %vm1295, %v5752, 0
      %v5840 = vsel %vm1295, %v5753, 0
      %v5843 = vsel %vm1295, %v5754, 0
      %v5846 = vsel %vm1295, %v5755, 0
      %v5849 = vsel %vm1295, %v5756, 0
      %v5852 = vsel %vm1295, %v5757, 0
      %v5855 = vsel %vm1295, %v5758, 0
      %5857 = vmatpush.msra.mxu0 0.0
      %5858 = vmatpush.msra.mxu0 0.0
      %5859 = vmatpush.msra.mxu0 0.0
      %5860 = vmatpush.msra.mxu0 0.0
      %5861 = vmatpush.msra.mxu0 0.0
      %5862 = vmatpush.msra.mxu0 0.0
      %5863 = vmatpush.msra.mxu0 0.0
      %5864 = vmatpush.msra.mxu0 0.0
      %5865 = vmatpush.msra.mxu0 0.0
      %5866 = vmatpush.msra.mxu0 0.0
      %5867 = vmatpush.msra.mxu0 0.0
      %5868 = vmatpush.msra.mxu0 0.0
      %5869 = vmatpush.msra.mxu0 %v5763
      %5870 = vmatpush.msra.mxu0 %v5762
      %5871 = vmatpush.msra.mxu0 %v5761
      %5872 = vmatpush.msra.mxu0 %v5760
      %5873 = vmatmul.f32.gmra.mxu0 %v5765
      %v5874 = vpop.f32.mrf.mxu0
      %v5875 = vadd.f32 0.0, %v5874
      %5876 = vmatmul.f32.gmra.mxu0 %v5768
      %v5877 = vpop.f32.mrf.mxu0
      %v5878 = vadd.f32 0.0, %v5877
      %5879 = vmatmul.f32.gmra.mxu0 %v5771
      %v5880 = vpop.f32.mrf.mxu0
      %v5881 = vadd.f32 0.0, %v5880
      %5882 = vmatmul.f32.gmra.mxu0 %v5774
      %v5883 = vpop.f32.mrf.mxu0
      %v5884 = vadd.f32 0.0, %v5883
      %5885 = vmatmul.f32.gmra.mxu0 %v5777
      %v5886 = vpop.f32.mrf.mxu0
      %v5887 = vadd.f32 0.0, %v5886
      %5888 = vmatmul.f32.gmra.mxu0 %v5780
      %v5889 = vpop.f32.mrf.mxu0
      %v5890 = vadd.f32 0.0, %v5889
      %5891 = vmatmul.f32.gmra.mxu0 %v5783
      %v5892 = vpop.f32.mrf.mxu0
      %v5893 = vadd.f32 0.0, %v5892
      %5894 = vmatmul.f32.gmra.mxu0 %v5786
      %v5895 = vpop.f32.mrf.mxu0
      %v5896 = vadd.f32 0.0, %v5895
      %5897 = vmatmul.f32.gmra.mxu0 %v5789
      %v5898 = vpop.f32.mrf.mxu0
      %v5899 = vadd.f32 0.0, %v5898
      %5900 = vmatmul.f32.gmra.mxu0 %v5792
      %v5901 = vpop.f32.mrf.mxu0
      %v5902 = vadd.f32 0.0, %v5901
      %5903 = vmatmul.f32.gmra.mxu0 %v5795
      %v5904 = vpop.f32.mrf.mxu0
      %v5905 = vadd.f32 0.0, %v5904
      %5906 = vmatmul.f32.gmra.mxu0 %v5798
      %v5907 = vpop.f32.mrf.mxu0
      %v5908 = vadd.f32 0.0, %v5907
      %5909 = vmatmul.f32.gmra.mxu0 %v5801
      %v5910 = vpop.f32.mrf.mxu0
      %v5911 = vadd.f32 0.0, %v5910
      %5912 = vmatmul.f32.gmra.mxu0 %v5804
      %v5913 = vpop.f32.mrf.mxu0
      %v5914 = vadd.f32 0.0, %v5913
      %5915 = vmatmul.f32.gmra.mxu0 %v5807
      %v5916 = vpop.f32.mrf.mxu0
      %v5917 = vadd.f32 0.0, %v5916
      %5918 = vmatmul.f32.gmra.mxu0 %v5810
      %v5919 = vpop.f32.mrf.mxu0
      %v5920 = vadd.f32 0.0, %v5919
      %5921 = vmatmul.f32.gmra.mxu0 %v5813
      %v5922 = vpop.f32.mrf.mxu0
      %v5923 = vadd.f32 0.0, %v5922
      %5924 = vmatmul.f32.gmra.mxu0 %v5816
      %v5925 = vpop.f32.mrf.mxu0
      %v5926 = vadd.f32 0.0, %v5925
      %5927 = vmatmul.f32.gmra.mxu0 %v5819
      %v5928 = vpop.f32.mrf.mxu0
      %v5929 = vadd.f32 0.0, %v5928
      %5930 = vmatmul.f32.gmra.mxu0 %v5822
      %v5931 = vpop.f32.mrf.mxu0
      %v5932 = vadd.f32 0.0, %v5931
      %5933 = vmatmul.f32.gmra.mxu0 %v5825
      %v5934 = vpop.f32.mrf.mxu0
      %v5935 = vadd.f32 0.0, %v5934
      %5936 = vmatmul.f32.gmra.mxu0 %v5828
      %v5937 = vpop.f32.mrf.mxu0
      %v5938 = vadd.f32 0.0, %v5937
      %5939 = vmatmul.f32.gmra.mxu0 %v5831
      %v5940 = vpop.f32.mrf.mxu0
      %v5941 = vadd.f32 0.0, %v5940
      %5942 = vmatmul.f32.gmra.mxu0 %v5834
      %v5943 = vpop.f32.mrf.mxu0
      %v5944 = vadd.f32 0.0, %v5943
      %5945 = vmatmul.f32.gmra.mxu0 %v5837
      %v5946 = vpop.f32.mrf.mxu0
      %v5947 = vadd.f32 0.0, %v5946
      %5948 = vmatmul.f32.gmra.mxu0 %v5840
      %v5949 = vpop.f32.mrf.mxu0
      %v5950 = vadd.f32 0.0, %v5949
      %5951 = vmatmul.f32.gmra.mxu0 %v5843
      %v5952 = vpop.f32.mrf.mxu0
      %v5953 = vadd.f32 0.0, %v5952
      %5954 = vmatmul.f32.gmra.mxu0 %v5846
      %v5955 = vpop.f32.mrf.mxu0
      %v5956 = vadd.f32 0.0, %v5955
      %5957 = vmatmul.f32.gmra.mxu0 %v5849
      %v5958 = vpop.f32.mrf.mxu0
      %v5959 = vadd.f32 0.0, %v5958
      %5960 = vmatmul.f32.gmra.mxu0 %v5852
      %v5961 = vpop.f32.mrf.mxu0
      %v5962 = vadd.f32 0.0, %v5961
      %5963 = vmatmul.f32.gmra.mxu0 %v5855
      %v5964 = vpop.f32.mrf.mxu0
      %v5965 = vadd.f32 0.0, %v5964
      %5966 = vdwg.mxu0
      %v5967 = vadd.f32 %v5697, %v5875
      %v5968 = vadd.f32 %v5698, %v5878
      %v5969 = vadd.f32 %v5699, %v5881
      %v5970 = vadd.f32 %v5700, %v5884
      %v5971 = vadd.f32 %v5701, %v5887
      %v5972 = vadd.f32 %v5702, %v5890
      %v5973 = vadd.f32 %v5703, %v5893
      %v5974 = vadd.f32 %v5704, %v5896
      %v5975 = vadd.f32 %v5705, %v5899
      %v5976 = vadd.f32 %v5706, %v5902
      %v5977 = vadd.f32 %v5707, %v5905
      %v5978 = vadd.f32 %v5708, %v5908
      %v5979 = vadd.f32 %v5709, %v5911
      %v5980 = vadd.f32 %v5710, %v5914
      %v5981 = vadd.f32 %v5711, %v5917
      %v5982 = vadd.f32 %v5712, %v5920
      %v5983 = vadd.f32 %v5713, %v5923
      %v5984 = vadd.f32 %v5714, %v5926
      %v5985 = vadd.f32 %v5715, %v5929
      %v5986 = vadd.f32 %v5716, %v5932
      %v5987 = vadd.f32 %v5717, %v5935
      %v5988 = vadd.f32 %v5718, %v5938
      %v5989 = vadd.f32 %v5719, %v5941
      %v5990 = vadd.f32 %v5720, %v5944
      %v5991 = vadd.f32 %v5721, %v5947
      %v5992 = vadd.f32 %v5722, %v5950
      %v5993 = vadd.f32 %v5723, %v5953
      %v5994 = vadd.f32 %v5724, %v5956
      %v5995 = vadd.f32 %v5725, %v5959
      %v5996 = vadd.f32 %v5726, %v5962
      %v5997 = vadd.f32 %v5727, %v5965
      %v5998 = vld [vmem:[#allocation3 + $0x28] sm:$0xff]
      %v5999 = vld [vmem:[#allocation3 + $0x30] sm:$0xff]
      %v6000 = vld [vmem:[#allocation3 + $0x38] sm:$0xff]
      %v6001 = vld [vmem:[#allocation3 + $0x40] sm:$0xff]
      %v6002 = vld [vmem:[#allocation3 + $0x48] sm:$0xff]
      %v6003 = vld [vmem:[#allocation3 + $0x50] sm:$0xff]
      %v6004 = vld [vmem:[#allocation3 + $0x58] sm:$0xff]
      %v6005 = vld [vmem:[#allocation3 + $0x60] sm:$0xff]
      %v6006 = vld [vmem:[#allocation3 + $0x68] sm:$0xff]
      %v6007 = vld [vmem:[#allocation3 + $0x70] sm:$0xff]
      %v6008 = vld [vmem:[#allocation3 + $0x78] sm:$0xff]
      %v6009 = vld [vmem:[#allocation3 + $0x80] sm:$0xff]
      %v6010 = vld [vmem:[#allocation3 + $0x88] sm:$0xff]
      %v6011 = vld [vmem:[#allocation3 + $0x90] sm:$0xff]
      %v6012 = vld [vmem:[#allocation3 + $0x98] sm:$0xff]
      %v6013 = vld [vmem:[#allocation3 + $0xa0] sm:$0xff]
      %v6014 = vld [vmem:[#allocation3 + $0xa8] sm:$0xff]
      %v6015 = vld [vmem:[#allocation3 + $0xb0] sm:$0xff]
      %v6016 = vld [vmem:[#allocation3 + $0xb8] sm:$0xff]
      %v6017 = vld [vmem:[#allocation3 + $0xc0] sm:$0xff]
      %v6018 = vld [vmem:[#allocation3 + $0xc8] sm:$0xff]
      %v6019 = vld [vmem:[#allocation3 + $0xd0] sm:$0xff]
      %v6020 = vld [vmem:[#allocation3 + $0xd8] sm:$0xff]
      %v6021 = vld [vmem:[#allocation3 + $0xe0] sm:$0xff]
      %v6022 = vld [vmem:[#allocation3 + $0xe8] sm:$0xff]
      %v6023 = vld [vmem:[#allocation3 + $0xf0] sm:$0xff]
      %v6024 = vld [vmem:[#allocation3 + $0xf8] sm:$0xff]
      %v6025 = vld [vmem:[#allocation3 + $0x100] sm:$0xff]
      %v6026 = vld [vmem:[#allocation3 + $0x108] sm:$0xff]
      %v6027 = vld [vmem:[#allocation3 + $0x110] sm:$0xff]
      %v6028 = vld [vmem:[#allocation3 + $0x118] sm:$0xff]
      %s6029 = scalar_lea.vmem %s4, 448
      %v6030 = vld [vmem:[%s6029] sm:$0xff]
      %v6031 = vld [vmem:[%s6029 + $0x8] sm:$0xff]
      %v6032 = vld [vmem:[%s6029 + $0x10] sm:$0xff]
      %v6033 = vld [vmem:[%s6029 + $0x18] sm:$0xff]
      %v6035 = vsel %vm1295, %v5998, 0
      %v6038 = vsel %vm1295, %v5999, 0
      %v6041 = vsel %vm1295, %v6000, 0
      %v6044 = vsel %vm1295, %v6001, 0
      %v6047 = vsel %vm1295, %v6002, 0
      %v6050 = vsel %vm1295, %v6003, 0
      %v6053 = vsel %vm1295, %v6004, 0
      %v6056 = vsel %vm1295, %v6005, 0
      %v6059 = vsel %vm1295, %v6006, 0
      %v6062 = vsel %vm1295, %v6007, 0
      %v6065 = vsel %vm1295, %v6008, 0
      %v6068 = vsel %vm1295, %v6009, 0
      %v6071 = vsel %vm1295, %v6010, 0
      %v6074 = vsel %vm1295, %v6011, 0
      %v6077 = vsel %vm1295, %v6012, 0
      %v6080 = vsel %vm1295, %v6013, 0
      %v6083 = vsel %vm1295, %v6014, 0
      %v6086 = vsel %vm1295, %v6015, 0
      %v6089 = vsel %vm1295, %v6016, 0
      %v6092 = vsel %vm1295, %v6017, 0
      %v6095 = vsel %vm1295, %v6018, 0
      %v6098 = vsel %vm1295, %v6019, 0
      %v6101 = vsel %vm1295, %v6020, 0
      %v6104 = vsel %vm1295, %v6021, 0
      %v6107 = vsel %vm1295, %v6022, 0
      %v6110 = vsel %vm1295, %v6023, 0
      %v6113 = vsel %vm1295, %v6024, 0
      %v6116 = vsel %vm1295, %v6025, 0
      %v6119 = vsel %vm1295, %v6026, 0
      %v6122 = vsel %vm1295, %v6027, 0
      %v6125 = vsel %vm1295, %v6028, 0
      %6127 = vmatpush.msra.mxu0 0.0
      %6128 = vmatpush.msra.mxu0 0.0
      %6129 = vmatpush.msra.mxu0 0.0
      %6130 = vmatpush.msra.mxu0 0.0
      %6131 = vmatpush.msra.mxu0 0.0
      %6132 = vmatpush.msra.mxu0 0.0
      %6133 = vmatpush.msra.mxu0 0.0
      %6134 = vmatpush.msra.mxu0 0.0
      %6135 = vmatpush.msra.mxu0 0.0
      %6136 = vmatpush.msra.mxu0 0.0
      %6137 = vmatpush.msra.mxu0 0.0
      %6138 = vmatpush.msra.mxu0 0.0
      %6139 = vmatpush.msra.mxu0 %v6033
      %6140 = vmatpush.msra.mxu0 %v6032
      %6141 = vmatpush.msra.mxu0 %v6031
      %6142 = vmatpush.msra.mxu0 %v6030
      %6143 = vmatmul.f32.gmra.mxu0 %v6035
      %v6144 = vpop.f32.mrf.mxu0
      %v6145 = vadd.f32 0.0, %v6144
      %6146 = vmatmul.f32.gmra.mxu0 %v6038
      %v6147 = vpop.f32.mrf.mxu0
      %v6148 = vadd.f32 0.0, %v6147
      %6149 = vmatmul.f32.gmra.mxu0 %v6041
      %v6150 = vpop.f32.mrf.mxu0
      %v6151 = vadd.f32 0.0, %v6150
      %6152 = vmatmul.f32.gmra.mxu0 %v6044
      %v6153 = vpop.f32.mrf.mxu0
      %v6154 = vadd.f32 0.0, %v6153
      %6155 = vmatmul.f32.gmra.mxu0 %v6047
      %v6156 = vpop.f32.mrf.mxu0
      %v6157 = vadd.f32 0.0, %v6156
      %6158 = vmatmul.f32.gmra.mxu0 %v6050
      %v6159 = vpop.f32.mrf.mxu0
      %v6160 = vadd.f32 0.0, %v6159
      %6161 = vmatmul.f32.gmra.mxu0 %v6053
      %v6162 = vpop.f32.mrf.mxu0
      %v6163 = vadd.f32 0.0, %v6162
      %6164 = vmatmul.f32.gmra.mxu0 %v6056
      %v6165 = vpop.f32.mrf.mxu0
      %v6166 = vadd.f32 0.0, %v6165
      %6167 = vmatmul.f32.gmra.mxu0 %v6059
      %v6168 = vpop.f32.mrf.mxu0
      %v6169 = vadd.f32 0.0, %v6168
      %6170 = vmatmul.f32.gmra.mxu0 %v6062
      %v6171 = vpop.f32.mrf.mxu0
      %v6172 = vadd.f32 0.0, %v6171
      %6173 = vmatmul.f32.gmra.mxu0 %v6065
      %v6174 = vpop.f32.mrf.mxu0
      %v6175 = vadd.f32 0.0, %v6174
      %6176 = vmatmul.f32.gmra.mxu0 %v6068
      %v6177 = vpop.f32.mrf.mxu0
      %v6178 = vadd.f32 0.0, %v6177
      %6179 = vmatmul.f32.gmra.mxu0 %v6071
      %v6180 = vpop.f32.mrf.mxu0
      %v6181 = vadd.f32 0.0, %v6180
      %6182 = vmatmul.f32.gmra.mxu0 %v6074
      %v6183 = vpop.f32.mrf.mxu0
      %v6184 = vadd.f32 0.0, %v6183
      %6185 = vmatmul.f32.gmra.mxu0 %v6077
      %v6186 = vpop.f32.mrf.mxu0
      %v6187 = vadd.f32 0.0, %v6186
      %6188 = vmatmul.f32.gmra.mxu0 %v6080
      %v6189 = vpop.f32.mrf.mxu0
      %v6190 = vadd.f32 0.0, %v6189
      %6191 = vmatmul.f32.gmra.mxu0 %v6083
      %v6192 = vpop.f32.mrf.mxu0
      %v6193 = vadd.f32 0.0, %v6192
      %6194 = vmatmul.f32.gmra.mxu0 %v6086
      %v6195 = vpop.f32.mrf.mxu0
      %v6196 = vadd.f32 0.0, %v6195
      %6197 = vmatmul.f32.gmra.mxu0 %v6089
      %v6198 = vpop.f32.mrf.mxu0
      %v6199 = vadd.f32 0.0, %v6198
      %6200 = vmatmul.f32.gmra.mxu0 %v6092
      %v6201 = vpop.f32.mrf.mxu0
      %v6202 = vadd.f32 0.0, %v6201
      %6203 = vmatmul.f32.gmra.mxu0 %v6095
      %v6204 = vpop.f32.mrf.mxu0
      %v6205 = vadd.f32 0.0, %v6204
      %6206 = vmatmul.f32.gmra.mxu0 %v6098
      %v6207 = vpop.f32.mrf.mxu0
      %v6208 = vadd.f32 0.0, %v6207
      %6209 = vmatmul.f32.gmra.mxu0 %v6101
      %v6210 = vpop.f32.mrf.mxu0
      %v6211 = vadd.f32 0.0, %v6210
      %6212 = vmatmul.f32.gmra.mxu0 %v6104
      %v6213 = vpop.f32.mrf.mxu0
      %v6214 = vadd.f32 0.0, %v6213
      %6215 = vmatmul.f32.gmra.mxu0 %v6107
      %v6216 = vpop.f32.mrf.mxu0
      %v6217 = vadd.f32 0.0, %v6216
      %6218 = vmatmul.f32.gmra.mxu0 %v6110
      %v6219 = vpop.f32.mrf.mxu0
      %v6220 = vadd.f32 0.0, %v6219
      %6221 = vmatmul.f32.gmra.mxu0 %v6113
      %v6222 = vpop.f32.mrf.mxu0
      %v6223 = vadd.f32 0.0, %v6222
      %6224 = vmatmul.f32.gmra.mxu0 %v6116
      %v6225 = vpop.f32.mrf.mxu0
      %v6226 = vadd.f32 0.0, %v6225
      %6227 = vmatmul.f32.gmra.mxu0 %v6119
      %v6228 = vpop.f32.mrf.mxu0
      %v6229 = vadd.f32 0.0, %v6228
      %6230 = vmatmul.f32.gmra.mxu0 %v6122
      %v6231 = vpop.f32.mrf.mxu0
      %v6232 = vadd.f32 0.0, %v6231
      %6233 = vmatmul.f32.gmra.mxu0 %v6125
      %v6234 = vpop.f32.mrf.mxu0
      %v6235 = vadd.f32 0.0, %v6234
      %6236 = vdwg.mxu0
      %v6237 = vadd.f32 %v5967, %v6145
      %v6238 = vadd.f32 %v5968, %v6148
      %v6239 = vadd.f32 %v5969, %v6151
      %v6240 = vadd.f32 %v5970, %v6154
      %v6241 = vadd.f32 %v5971, %v6157
      %v6242 = vadd.f32 %v5972, %v6160
      %v6243 = vadd.f32 %v5973, %v6163
      %v6244 = vadd.f32 %v5974, %v6166
      %v6245 = vadd.f32 %v5975, %v6169
      %v6246 = vadd.f32 %v5976, %v6172
      %v6247 = vadd.f32 %v5977, %v6175
      %v6248 = vadd.f32 %v5978, %v6178
      %v6249 = vadd.f32 %v5979, %v6181
      %v6250 = vadd.f32 %v5980, %v6184
      %v6251 = vadd.f32 %v5981, %v6187
      %v6252 = vadd.f32 %v5982, %v6190
      %v6253 = vadd.f32 %v5983, %v6193
      %v6254 = vadd.f32 %v5984, %v6196
      %v6255 = vadd.f32 %v5985, %v6199
      %v6256 = vadd.f32 %v5986, %v6202
      %v6257 = vadd.f32 %v5987, %v6205
      %v6258 = vadd.f32 %v5988, %v6208
      %v6259 = vadd.f32 %v5989, %v6211
      %v6260 = vadd.f32 %v5990, %v6214
      %v6261 = vadd.f32 %v5991, %v6217
      %v6262 = vadd.f32 %v5992, %v6220
      %v6263 = vadd.f32 %v5993, %v6223
      %v6264 = vadd.f32 %v5994, %v6226
      %v6265 = vadd.f32 %v5995, %v6229
      %v6266 = vadd.f32 %v5996, %v6232
      %v6267 = vadd.f32 %v5997, %v6235
      %v6268 = vld [vmem:[#allocation3 + $0x36] sm:$0xff]
      %v6269 = vld [vmem:[#allocation3 + $0x3e] sm:$0xff]
      %v6270 = vld [vmem:[#allocation3 + $0x46] sm:$0xff]
      %v6271 = vld [vmem:[#allocation3 + $0x4e] sm:$0xff]
      %v6272 = vld [vmem:[#allocation3 + $0x56] sm:$0xff]
      %v6273 = vld [vmem:[#allocation3 + $0x5e] sm:$0xff]
      %v6274 = vld [vmem:[#allocation3 + $0x66] sm:$0xff]
      %v6275 = vld [vmem:[#allocation3 + $0x6e] sm:$0xff]
      %v6276 = vld [vmem:[#allocation3 + $0x76] sm:$0xff]
      %v6277 = vld [vmem:[#allocation3 + $0x7e] sm:$0xff]
      %v6278 = vld [vmem:[#allocation3 + $0x86] sm:$0xff]
      %v6279 = vld [vmem:[#allocation3 + $0x8e] sm:$0xff]
      %v6280 = vld [vmem:[#allocation3 + $0x96] sm:$0xff]
      %v6281 = vld [vmem:[#allocation3 + $0x9e] sm:$0xff]
      %v6282 = vld [vmem:[#allocation3 + $0xa6] sm:$0xff]
      %v6283 = vld [vmem:[#allocation3 + $0xae] sm:$0xff]
      %v6284 = vld [vmem:[#allocation3 + $0xb6] sm:$0xff]
      %v6285 = vld [vmem:[#allocation3 + $0xbe] sm:$0xff]
      %v6286 = vld [vmem:[#allocation3 + $0xc6] sm:$0xff]
      %v6287 = vld [vmem:[#allocation3 + $0xce] sm:$0xff]
      %v6288 = vld [vmem:[#allocation3 + $0xd6] sm:$0xff]
      %v6289 = vld [vmem:[#allocation3 + $0xde] sm:$0xff]
      %v6290 = vld [vmem:[#allocation3 + $0xe6] sm:$0xff]
      %v6291 = vld [vmem:[#allocation3 + $0xee] sm:$0xff]
      %v6292 = vld [vmem:[#allocation3 + $0xf6] sm:$0xff]
      %v6293 = vld [vmem:[#allocation3 + $0xfe] sm:$0xff]
      %v6294 = vld [vmem:[#allocation3 + $0x106] sm:$0xff]
      %v6295 = vld [vmem:[#allocation3 + $0x10e] sm:$0xff]
      %v6296 = vld [vmem:[#allocation3 + $0x116] sm:$0xff]
      %v6297 = vld [vmem:[#allocation3 + $0x11e] sm:$0xff]
      %v6298 = vld [vmem:[#allocation3 + $0x126] sm:$0xff]
      %s6299 = scalar_lea.vmem %s4, 480
      %v6300 = vld [vmem:[%s6299] sm:$0xff]
      %v6301 = vld [vmem:[%s6299 + $0x8] sm:$0xff]
      %v6302 = vld [vmem:[%s6299 + $0x10] sm:$0xff]
      %v6303 = vld [vmem:[%s6299 + $0x18] sm:$0xff]
      %v6305 = vsel %vm1295, %v6268, 0
      %v6308 = vsel %vm1295, %v6269, 0
      %v6311 = vsel %vm1295, %v6270, 0
      %v6314 = vsel %vm1295, %v6271, 0
      %v6317 = vsel %vm1295, %v6272, 0
      %v6320 = vsel %vm1295, %v6273, 0
      %v6323 = vsel %vm1295, %v6274, 0
      %v6326 = vsel %vm1295, %v6275, 0
      %v6329 = vsel %vm1295, %v6276, 0
      %v6332 = vsel %vm1295, %v6277, 0
      %v6335 = vsel %vm1295, %v6278, 0
      %v6338 = vsel %vm1295, %v6279, 0
      %v6341 = vsel %vm1295, %v6280, 0
      %v6344 = vsel %vm1295, %v6281, 0
      %v6347 = vsel %vm1295, %v6282, 0
      %v6350 = vsel %vm1295, %v6283, 0
      %v6353 = vsel %vm1295, %v6284, 0
      %v6356 = vsel %vm1295, %v6285, 0
      %v6359 = vsel %vm1295, %v6286, 0
      %v6362 = vsel %vm1295, %v6287, 0
      %v6365 = vsel %vm1295, %v6288, 0
      %v6368 = vsel %vm1295, %v6289, 0
      %v6371 = vsel %vm1295, %v6290, 0
      %v6374 = vsel %vm1295, %v6291, 0
      %v6377 = vsel %vm1295, %v6292, 0
      %v6380 = vsel %vm1295, %v6293, 0
      %v6383 = vsel %vm1295, %v6294, 0
      %v6386 = vsel %vm1295, %v6295, 0
      %v6389 = vsel %vm1295, %v6296, 0
      %v6392 = vsel %vm1295, %v6297, 0
      %v6395 = vsel %vm1295, %v6298, 0
      %6397 = vmatpush.msra.mxu0 0.0
      %6398 = vmatpush.msra.mxu0 0.0
      %6399 = vmatpush.msra.mxu0 0.0
      %6400 = vmatpush.msra.mxu0 0.0
      %6401 = vmatpush.msra.mxu0 0.0
      %6402 = vmatpush.msra.mxu0 0.0
      %6403 = vmatpush.msra.mxu0 0.0
      %6404 = vmatpush.msra.mxu0 0.0
      %6405 = vmatpush.msra.mxu0 0.0
      %6406 = vmatpush.msra.mxu0 0.0
      %6407 = vmatpush.msra.mxu0 0.0
      %6408 = vmatpush.msra.mxu0 0.0
      %6409 = vmatpush.msra.mxu0 %v6303
      %6410 = vmatpush.msra.mxu0 %v6302
      %6411 = vmatpush.msra.mxu0 %v6301
      %6412 = vmatpush.msra.mxu0 %v6300
      %6413 = vmatmul.f32.gmra.mxu0 %v6305
      %v6414 = vpop.f32.mrf.mxu0
      %v6415 = vadd.f32 0.0, %v6414
      %6416 = vmatmul.f32.gmra.mxu0 %v6308
      %v6417 = vpop.f32.mrf.mxu0
      %v6418 = vadd.f32 0.0, %v6417
      %6419 = vmatmul.f32.gmra.mxu0 %v6311
      %v6420 = vpop.f32.mrf.mxu0
      %v6421 = vadd.f32 0.0, %v6420
      %6422 = vmatmul.f32.gmra.mxu0 %v6314
      %v6423 = vpop.f32.mrf.mxu0
      %v6424 = vadd.f32 0.0, %v6423
      %6425 = vmatmul.f32.gmra.mxu0 %v6317
      %v6426 = vpop.f32.mrf.mxu0
      %v6427 = vadd.f32 0.0, %v6426
      %6428 = vmatmul.f32.gmra.mxu0 %v6320
      %v6429 = vpop.f32.mrf.mxu0
      %v6430 = vadd.f32 0.0, %v6429
      %6431 = vmatmul.f32.gmra.mxu0 %v6323
      %v6432 = vpop.f32.mrf.mxu0
      %v6433 = vadd.f32 0.0, %v6432
      %6434 = vmatmul.f32.gmra.mxu0 %v6326
      %v6435 = vpop.f32.mrf.mxu0
      %v6436 = vadd.f32 0.0, %v6435
      %6437 = vmatmul.f32.gmra.mxu0 %v6329
      %v6438 = vpop.f32.mrf.mxu0
      %v6439 = vadd.f32 0.0, %v6438
      %6440 = vmatmul.f32.gmra.mxu0 %v6332
      %v6441 = vpop.f32.mrf.mxu0
      %v6442 = vadd.f32 0.0, %v6441
      %6443 = vmatmul.f32.gmra.mxu0 %v6335
      %v6444 = vpop.f32.mrf.mxu0
      %v6445 = vadd.f32 0.0, %v6444
      %6446 = vmatmul.f32.gmra.mxu0 %v6338
      %v6447 = vpop.f32.mrf.mxu0
      %v6448 = vadd.f32 0.0, %v6447
      %6449 = vmatmul.f32.gmra.mxu0 %v6341
      %v6450 = vpop.f32.mrf.mxu0
      %v6451 = vadd.f32 0.0, %v6450
      %6452 = vmatmul.f32.gmra.mxu0 %v6344
      %v6453 = vpop.f32.mrf.mxu0
      %v6454 = vadd.f32 0.0, %v6453
      %6455 = vmatmul.f32.gmra.mxu0 %v6347
      %v6456 = vpop.f32.mrf.mxu0
      %v6457 = vadd.f32 0.0, %v6456
      %6458 = vmatmul.f32.gmra.mxu0 %v6350
      %v6459 = vpop.f32.mrf.mxu0
      %v6460 = vadd.f32 0.0, %v6459
      %6461 = vmatmul.f32.gmra.mxu0 %v6353
      %v6462 = vpop.f32.mrf.mxu0
      %v6463 = vadd.f32 0.0, %v6462
      %6464 = vmatmul.f32.gmra.mxu0 %v6356
      %v6465 = vpop.f32.mrf.mxu0
      %v6466 = vadd.f32 0.0, %v6465
      %6467 = vmatmul.f32.gmra.mxu0 %v6359
      %v6468 = vpop.f32.mrf.mxu0
      %v6469 = vadd.f32 0.0, %v6468
      %6470 = vmatmul.f32.gmra.mxu0 %v6362
      %v6471 = vpop.f32.mrf.mxu0
      %v6472 = vadd.f32 0.0, %v6471
      %6473 = vmatmul.f32.gmra.mxu0 %v6365
      %v6474 = vpop.f32.mrf.mxu0
      %v6475 = vadd.f32 0.0, %v6474
      %6476 = vmatmul.f32.gmra.mxu0 %v6368
      %v6477 = vpop.f32.mrf.mxu0
      %v6478 = vadd.f32 0.0, %v6477
      %6479 = vmatmul.f32.gmra.mxu0 %v6371
      %v6480 = vpop.f32.mrf.mxu0
      %v6481 = vadd.f32 0.0, %v6480
      %6482 = vmatmul.f32.gmra.mxu0 %v6374
      %v6483 = vpop.f32.mrf.mxu0
      %v6484 = vadd.f32 0.0, %v6483
      %6485 = vmatmul.f32.gmra.mxu0 %v6377
      %v6486 = vpop.f32.mrf.mxu0
      %v6487 = vadd.f32 0.0, %v6486
      %6488 = vmatmul.f32.gmra.mxu0 %v6380
      %v6489 = vpop.f32.mrf.mxu0
      %v6490 = vadd.f32 0.0, %v6489
      %6491 = vmatmul.f32.gmra.mxu0 %v6383
      %v6492 = vpop.f32.mrf.mxu0
      %v6493 = vadd.f32 0.0, %v6492
      %6494 = vmatmul.f32.gmra.mxu0 %v6386
      %v6495 = vpop.f32.mrf.mxu0
      %v6496 = vadd.f32 0.0, %v6495
      %6497 = vmatmul.f32.gmra.mxu0 %v6389
      %v6498 = vpop.f32.mrf.mxu0
      %v6499 = vadd.f32 0.0, %v6498
      %6500 = vmatmul.f32.gmra.mxu0 %v6392
      %v6501 = vpop.f32.mrf.mxu0
      %v6502 = vadd.f32 0.0, %v6501
      %6503 = vmatmul.f32.gmra.mxu0 %v6395
      %v6504 = vpop.f32.mrf.mxu0
      %v6505 = vadd.f32 0.0, %v6504
      %6506 = vdwg.mxu0
      %v6507 = vadd.f32 %v6237, %v6415
      %v6508 = vadd.f32 %v6238, %v6418
      %v6509 = vadd.f32 %v6239, %v6421
      %v6510 = vadd.f32 %v6240, %v6424
      %v6511 = vadd.f32 %v6241, %v6427
      %v6512 = vadd.f32 %v6242, %v6430
      %v6513 = vadd.f32 %v6243, %v6433
      %v6514 = vadd.f32 %v6244, %v6436
      %v6515 = vadd.f32 %v6245, %v6439
      %v6516 = vadd.f32 %v6246, %v6442
      %v6517 = vadd.f32 %v6247, %v6445
      %v6518 = vadd.f32 %v6248, %v6448
      %v6519 = vadd.f32 %v6249, %v6451
      %v6520 = vadd.f32 %v6250, %v6454
      %v6521 = vadd.f32 %v6251, %v6457
      %v6522 = vadd.f32 %v6252, %v6460
      %v6523 = vadd.f32 %v6253, %v6463
      %v6524 = vadd.f32 %v6254, %v6466
      %v6525 = vadd.f32 %v6255, %v6469
      %v6526 = vadd.f32 %v6256, %v6472
      %v6527 = vadd.f32 %v6257, %v6475
      %v6528 = vadd.f32 %v6258, %v6478
      %v6529 = vadd.f32 %v6259, %v6481
      %v6530 = vadd.f32 %v6260, %v6484
      %v6531 = vadd.f32 %v6261, %v6487
      %v6532 = vadd.f32 %v6262, %v6490
      %v6533 = vadd.f32 %v6263, %v6493
      %v6534 = vadd.f32 %v6264, %v6496
      %v6535 = vadd.f32 %v6265, %v6499
      %v6536 = vadd.f32 %v6266, %v6502
      %v6537 = vadd.f32 %v6267, %v6505
      %v6538 = vld [vmem:[#allocation3 + $0x37] sm:$0xff]
      %v6539 = vld [vmem:[#allocation3 + $0x3f] sm:$0xff]
      %v6540 = vld [vmem:[#allocation3 + $0x47] sm:$0xff]
      %v6541 = vld [vmem:[#allocation3 + $0x4f] sm:$0xff]
      %v6542 = vld [vmem:[#allocation3 + $0x57] sm:$0xff]
      %v6543 = vld [vmem:[#allocation3 + $0x5f] sm:$0xff]
      %v6544 = vld [vmem:[#allocation3 + $0x67] sm:$0xff]
      %v6545 = vld [vmem:[#allocation3 + $0x6f] sm:$0xff]
      %v6546 = vld [vmem:[#allocation3 + $0x77] sm:$0xff]
      %v6547 = vld [vmem:[#allocation3 + $0x7f] sm:$0xff]
      %v6548 = vld [vmem:[#allocation3 + $0x87] sm:$0xff]
      %v6549 = vld [vmem:[#allocation3 + $0x8f] sm:$0xff]
      %v6550 = vld [vmem:[#allocation3 + $0x97] sm:$0xff]
      %v6551 = vld [vmem:[#allocation3 + $0x9f] sm:$0xff]
      %v6552 = vld [vmem:[#allocation3 + $0xa7] sm:$0xff]
      %v6553 = vld [vmem:[#allocation3 + $0xaf] sm:$0xff]
      %v6554 = vld [vmem:[#allocation3 + $0xb7] sm:$0xff]
      %v6555 = vld [vmem:[#allocation3 + $0xbf] sm:$0xff]
      %v6556 = vld [vmem:[#allocation3 + $0xc7] sm:$0xff]
      %v6557 = vld [vmem:[#allocation3 + $0xcf] sm:$0xff]
      %v6558 = vld [vmem:[#allocation3 + $0xd7] sm:$0xff]
      %v6559 = vld [vmem:[#allocation3 + $0xdf] sm:$0xff]
      %v6560 = vld [vmem:[#allocation3 + $0xe7] sm:$0xff]
      %v6561 = vld [vmem:[#allocation3 + $0xef] sm:$0xff]
      %v6562 = vld [vmem:[#allocation3 + $0xf7] sm:$0xff]
      %v6563 = vld [vmem:[#allocation3 + $0xff] sm:$0xff]
      %v6564 = vld [vmem:[#allocation3 + $0x107] sm:$0xff]
      %v6565 = vld [vmem:[#allocation3 + $0x10f] sm:$0xff]
      %v6566 = vld [vmem:[#allocation3 + $0x117] sm:$0xff]
      %v6567 = vld [vmem:[#allocation3 + $0x11f] sm:$0xff]
      %v6568 = vld [vmem:[#allocation3 + $0x127] sm:$0xff]
      %s6569 = scalar_lea.vmem %s4, 512
      %v6570 = vld [vmem:[%s6569] sm:$0xff]
      %v6571 = vld [vmem:[%s6569 + $0x8] sm:$0xff]
      %v6572 = vld [vmem:[%s6569 + $0x10] sm:$0xff]
      %v6573 = vld [vmem:[%s6569 + $0x18] sm:$0xff]
      %v6575 = vsel %vm1295, %v6538, 0
      %v6578 = vsel %vm1295, %v6539, 0
      %v6581 = vsel %vm1295, %v6540, 0
      %v6584 = vsel %vm1295, %v6541, 0
      %v6587 = vsel %vm1295, %v6542, 0
      %v6590 = vsel %vm1295, %v6543, 0
      %v6593 = vsel %vm1295, %v6544, 0
      %v6596 = vsel %vm1295, %v6545, 0
      %v6599 = vsel %vm1295, %v6546, 0
      %v6602 = vsel %vm1295, %v6547, 0
      %v6605 = vsel %vm1295, %v6548, 0
      %v6608 = vsel %vm1295, %v6549, 0
      %v6611 = vsel %vm1295, %v6550, 0
      %v6614 = vsel %vm1295, %v6551, 0
      %v6617 = vsel %vm1295, %v6552, 0
      %v6620 = vsel %vm1295, %v6553, 0
      %v6623 = vsel %vm1295, %v6554, 0
      %v6626 = vsel %vm1295, %v6555, 0
      %v6629 = vsel %vm1295, %v6556, 0
      %v6632 = vsel %vm1295, %v6557, 0
      %v6635 = vsel %vm1295, %v6558, 0
      %v6638 = vsel %vm1295, %v6559, 0
      %v6641 = vsel %vm1295, %v6560, 0
      %v6644 = vsel %vm1295, %v6561, 0
      %v6647 = vsel %vm1295, %v6562, 0
      %v6650 = vsel %vm1295, %v6563, 0
      %v6653 = vsel %vm1295, %v6564, 0
      %v6656 = vsel %vm1295, %v6565, 0
      %v6659 = vsel %vm1295, %v6566, 0
      %v6662 = vsel %vm1295, %v6567, 0
      %v6665 = vsel %vm1295, %v6568, 0
      %6667 = vmatpush.msra.mxu0 0.0
      %6668 = vmatpush.msra.mxu0 0.0
      %6669 = vmatpush.msra.mxu0 0.0
      %6670 = vmatpush.msra.mxu0 0.0
      %6671 = vmatpush.msra.mxu0 0.0
      %6672 = vmatpush.msra.mxu0 0.0
      %6673 = vmatpush.msra.mxu0 0.0
      %6674 = vmatpush.msra.mxu0 0.0
      %6675 = vmatpush.msra.mxu0 0.0
      %6676 = vmatpush.msra.mxu0 0.0
      %6677 = vmatpush.msra.mxu0 0.0
      %6678 = vmatpush.msra.mxu0 0.0
      %6679 = vmatpush.msra.mxu0 %v6573
      %6680 = vmatpush.msra.mxu0 %v6572
      %6681 = vmatpush.msra.mxu0 %v6571
      %6682 = vmatpush.msra.mxu0 %v6570
      %6683 = vmatmul.f32.gmra.mxu0 %v6575
      %v6684 = vpop.f32.mrf.mxu0
      %v6685 = vadd.f32 0.0, %v6684
      %6686 = vmatmul.f32.gmra.mxu0 %v6578
      %v6687 = vpop.f32.mrf.mxu0
      %v6688 = vadd.f32 0.0, %v6687
      %6689 = vmatmul.f32.gmra.mxu0 %v6581
      %v6690 = vpop.f32.mrf.mxu0
      %v6691 = vadd.f32 0.0, %v6690
      %6692 = vmatmul.f32.gmra.mxu0 %v6584
      %v6693 = vpop.f32.mrf.mxu0
      %v6694 = vadd.f32 0.0, %v6693
      %6695 = vmatmul.f32.gmra.mxu0 %v6587
      %v6696 = vpop.f32.mrf.mxu0
      %v6697 = vadd.f32 0.0, %v6696
      %6698 = vmatmul.f32.gmra.mxu0 %v6590
      %v6699 = vpop.f32.mrf.mxu0
      %v6700 = vadd.f32 0.0, %v6699
      %6701 = vmatmul.f32.gmra.mxu0 %v6593
      %v6702 = vpop.f32.mrf.mxu0
      %v6703 = vadd.f32 0.0, %v6702
      %6704 = vmatmul.f32.gmra.mxu0 %v6596
      %v6705 = vpop.f32.mrf.mxu0
      %v6706 = vadd.f32 0.0, %v6705
      %6707 = vmatmul.f32.gmra.mxu0 %v6599
      %v6708 = vpop.f32.mrf.mxu0
      %v6709 = vadd.f32 0.0, %v6708
      %6710 = vmatmul.f32.gmra.mxu0 %v6602
      %v6711 = vpop.f32.mrf.mxu0
      %v6712 = vadd.f32 0.0, %v6711
      %6713 = vmatmul.f32.gmra.mxu0 %v6605
      %v6714 = vpop.f32.mrf.mxu0
      %v6715 = vadd.f32 0.0, %v6714
      %6716 = vmatmul.f32.gmra.mxu0 %v6608
      %v6717 = vpop.f32.mrf.mxu0
      %v6718 = vadd.f32 0.0, %v6717
      %6719 = vmatmul.f32.gmra.mxu0 %v6611
      %v6720 = vpop.f32.mrf.mxu0
      %v6721 = vadd.f32 0.0, %v6720
      %6722 = vmatmul.f32.gmra.mxu0 %v6614
      %v6723 = vpop.f32.mrf.mxu0
      %v6724 = vadd.f32 0.0, %v6723
      %6725 = vmatmul.f32.gmra.mxu0 %v6617
      %v6726 = vpop.f32.mrf.mxu0
      %v6727 = vadd.f32 0.0, %v6726
      %6728 = vmatmul.f32.gmra.mxu0 %v6620
      %v6729 = vpop.f32.mrf.mxu0
      %v6730 = vadd.f32 0.0, %v6729
      %6731 = vmatmul.f32.gmra.mxu0 %v6623
      %v6732 = vpop.f32.mrf.mxu0
      %v6733 = vadd.f32 0.0, %v6732
      %6734 = vmatmul.f32.gmra.mxu0 %v6626
      %v6735 = vpop.f32.mrf.mxu0
      %v6736 = vadd.f32 0.0, %v6735
      %6737 = vmatmul.f32.gmra.mxu0 %v6629
      %v6738 = vpop.f32.mrf.mxu0
      %v6739 = vadd.f32 0.0, %v6738
      %6740 = vmatmul.f32.gmra.mxu0 %v6632
      %v6741 = vpop.f32.mrf.mxu0
      %v6742 = vadd.f32 0.0, %v6741
      %6743 = vmatmul.f32.gmra.mxu0 %v6635
      %v6744 = vpop.f32.mrf.mxu0
      %v6745 = vadd.f32 0.0, %v6744
      %6746 = vmatmul.f32.gmra.mxu0 %v6638
      %v6747 = vpop.f32.mrf.mxu0
      %v6748 = vadd.f32 0.0, %v6747
      %6749 = vmatmul.f32.gmra.mxu0 %v6641
      %v6750 = vpop.f32.mrf.mxu0
      %v6751 = vadd.f32 0.0, %v6750
      %6752 = vmatmul.f32.gmra.mxu0 %v6644
      %v6753 = vpop.f32.mrf.mxu0
      %v6754 = vadd.f32 0.0, %v6753
      %6755 = vmatmul.f32.gmra.mxu0 %v6647
      %v6756 = vpop.f32.mrf.mxu0
      %v6757 = vadd.f32 0.0, %v6756
      %6758 = vmatmul.f32.gmra.mxu0 %v6650
      %v6759 = vpop.f32.mrf.mxu0
      %v6760 = vadd.f32 0.0, %v6759
      %6761 = vmatmul.f32.gmra.mxu0 %v6653
      %v6762 = vpop.f32.mrf.mxu0
      %v6763 = vadd.f32 0.0, %v6762
      %6764 = vmatmul.f32.gmra.mxu0 %v6656
      %v6765 = vpop.f32.mrf.mxu0
      %v6766 = vadd.f32 0.0, %v6765
      %6767 = vmatmul.f32.gmra.mxu0 %v6659
      %v6768 = vpop.f32.mrf.mxu0
      %v6769 = vadd.f32 0.0, %v6768
      %6770 = vmatmul.f32.gmra.mxu0 %v6662
      %v6771 = vpop.f32.mrf.mxu0
      %v6772 = vadd.f32 0.0, %v6771
      %6773 = vmatmul.f32.gmra.mxu0 %v6665
      %v6774 = vpop.f32.mrf.mxu0
      %v6775 = vadd.f32 0.0, %v6774
      %6776 = vdwg.mxu0
      %v6777 = vadd.f32 %v6507, %v6685
      %v6778 = vadd.f32 %v6508, %v6688
      %v6779 = vadd.f32 %v6509, %v6691
      %v6780 = vadd.f32 %v6510, %v6694
      %v6781 = vadd.f32 %v6511, %v6697
      %v6782 = vadd.f32 %v6512, %v6700
      %v6783 = vadd.f32 %v6513, %v6703
      %v6784 = vadd.f32 %v6514, %v6706
      %v6785 = vadd.f32 %v6515, %v6709
      %v6786 = vadd.f32 %v6516, %v6712
      %v6787 = vadd.f32 %v6517, %v6715
      %v6788 = vadd.f32 %v6518, %v6718
      %v6789 = vadd.f32 %v6519, %v6721
      %v6790 = vadd.f32 %v6520, %v6724
      %v6791 = vadd.f32 %v6521, %v6727
      %v6792 = vadd.f32 %v6522, %v6730
      %v6793 = vadd.f32 %v6523, %v6733
      %v6794 = vadd.f32 %v6524, %v6736
      %v6795 = vadd.f32 %v6525, %v6739
      %v6796 = vadd.f32 %v6526, %v6742
      %v6797 = vadd.f32 %v6527, %v6745
      %v6798 = vadd.f32 %v6528, %v6748
      %v6799 = vadd.f32 %v6529, %v6751
      %v6800 = vadd.f32 %v6530, %v6754
      %v6801 = vadd.f32 %v6531, %v6757
      %v6802 = vadd.f32 %v6532, %v6760
      %v6803 = vadd.f32 %v6533, %v6763
      %v6804 = vadd.f32 %v6534, %v6766
      %v6805 = vadd.f32 %v6535, %v6769
      %v6806 = vadd.f32 %v6536, %v6772
      %v6807 = vadd.f32 %v6537, %v6775
      %v6808 = vld [vmem:[#allocation3 + $0x38] sm:$0xff]
      %v6809 = vld [vmem:[#allocation3 + $0x40] sm:$0xff]
      %v6810 = vld [vmem:[#allocation3 + $0x48] sm:$0xff]
      %v6811 = vld [vmem:[#allocation3 + $0x50] sm:$0xff]
      %v6812 = vld [vmem:[#allocation3 + $0x58] sm:$0xff]
      %v6813 = vld [vmem:[#allocation3 + $0x60] sm:$0xff]
      %v6814 = vld [vmem:[#allocation3 + $0x68] sm:$0xff]
      %v6815 = vld [vmem:[#allocation3 + $0x70] sm:$0xff]
      %v6816 = vld [vmem:[#allocation3 + $0x78] sm:$0xff]
      %v6817 = vld [vmem:[#allocation3 + $0x80] sm:$0xff]
      %v6818 = vld [vmem:[#allocation3 + $0x88] sm:$0xff]
      %v6819 = vld [vmem:[#allocation3 + $0x90] sm:$0xff]
      %v6820 = vld [vmem:[#allocation3 + $0x98] sm:$0xff]
      %v6821 = vld [vmem:[#allocation3 + $0xa0] sm:$0xff]
      %v6822 = vld [vmem:[#allocation3 + $0xa8] sm:$0xff]
      %v6823 = vld [vmem:[#allocation3 + $0xb0] sm:$0xff]
      %v6824 = vld [vmem:[#allocation3 + $0xb8] sm:$0xff]
      %v6825 = vld [vmem:[#allocation3 + $0xc0] sm:$0xff]
      %v6826 = vld [vmem:[#allocation3 + $0xc8] sm:$0xff]
      %v6827 = vld [vmem:[#allocation3 + $0xd0] sm:$0xff]
      %v6828 = vld [vmem:[#allocation3 + $0xd8] sm:$0xff]
      %v6829 = vld [vmem:[#allocation3 + $0xe0] sm:$0xff]
      %v6830 = vld [vmem:[#allocation3 + $0xe8] sm:$0xff]
      %v6831 = vld [vmem:[#allocation3 + $0xf0] sm:$0xff]
      %v6832 = vld [vmem:[#allocation3 + $0xf8] sm:$0xff]
      %v6833 = vld [vmem:[#allocation3 + $0x100] sm:$0xff]
      %v6834 = vld [vmem:[#allocation3 + $0x108] sm:$0xff]
      %v6835 = vld [vmem:[#allocation3 + $0x110] sm:$0xff]
      %v6836 = vld [vmem:[#allocation3 + $0x118] sm:$0xff]
      %v6837 = vld [vmem:[#allocation3 + $0x120] sm:$0xff]
      %v6838 = vld [vmem:[#allocation3 + $0x128] sm:$0xff]
      %s6839 = scalar_lea.vmem %s4, 544
      %v6840 = vld [vmem:[%s6839] sm:$0xff]
      %v6841 = vld [vmem:[%s6839 + $0x8] sm:$0xff]
      %v6842 = vld [vmem:[%s6839 + $0x10] sm:$0xff]
      %v6843 = vld [vmem:[%s6839 + $0x18] sm:$0xff]
      %v6845 = vsel %vm1295, %v6808, 0
      %v6848 = vsel %vm1295, %v6809, 0
      %v6851 = vsel %vm1295, %v6810, 0
      %v6854 = vsel %vm1295, %v6811, 0
      %v6857 = vsel %vm1295, %v6812, 0
      %v6860 = vsel %vm1295, %v6813, 0
      %v6863 = vsel %vm1295, %v6814, 0
      %v6866 = vsel %vm1295, %v6815, 0
      %v6869 = vsel %vm1295, %v6816, 0
      %v6872 = vsel %vm1295, %v6817, 0
      %v6875 = vsel %vm1295, %v6818, 0
      %v6878 = vsel %vm1295, %v6819, 0
      %v6881 = vsel %vm1295, %v6820, 0
      %v6884 = vsel %vm1295, %v6821, 0
      %v6887 = vsel %vm1295, %v6822, 0
      %v6890 = vsel %vm1295, %v6823, 0
      %v6893 = vsel %vm1295, %v6824, 0
      %v6896 = vsel %vm1295, %v6825, 0
      %v6899 = vsel %vm1295, %v6826, 0
      %v6902 = vsel %vm1295, %v6827, 0
      %v6905 = vsel %vm1295, %v6828, 0
      %v6908 = vsel %vm1295, %v6829, 0
      %v6911 = vsel %vm1295, %v6830, 0
      %v6914 = vsel %vm1295, %v6831, 0
      %v6917 = vsel %vm1295, %v6832, 0
      %v6920 = vsel %vm1295, %v6833, 0
      %v6923 = vsel %vm1295, %v6834, 0
      %v6926 = vsel %vm1295, %v6835, 0
      %v6929 = vsel %vm1295, %v6836, 0
      %v6932 = vsel %vm1295, %v6837, 0
      %v6935 = vsel %vm1295, %v6838, 0
      %6937 = vmatpush.msra.mxu0 0.0
      %6938 = vmatpush.msra.mxu0 0.0
      %6939 = vmatpush.msra.mxu0 0.0
      %6940 = vmatpush.msra.mxu0 0.0
      %6941 = vmatpush.msra.mxu0 0.0
      %6942 = vmatpush.msra.mxu0 0.0
      %6943 = vmatpush.msra.mxu0 0.0
      %6944 = vmatpush.msra.mxu0 0.0
      %6945 = vmatpush.msra.mxu0 0.0
      %6946 = vmatpush.msra.mxu0 0.0
      %6947 = vmatpush.msra.mxu0 0.0
      %6948 = vmatpush.msra.mxu0 0.0
      %6949 = vmatpush.msra.mxu0 %v6843
      %6950 = vmatpush.msra.mxu0 %v6842
      %6951 = vmatpush.msra.mxu0 %v6841
      %6952 = vmatpush.msra.mxu0 %v6840
      %6953 = vmatmul.f32.gmra.mxu0 %v6845
      %v6954 = vpop.f32.mrf.mxu0
      %v6955 = vadd.f32 0.0, %v6954
      %6956 = vmatmul.f32.gmra.mxu0 %v6848
      %v6957 = vpop.f32.mrf.mxu0
      %v6958 = vadd.f32 0.0, %v6957
      %6959 = vmatmul.f32.gmra.mxu0 %v6851
      %v6960 = vpop.f32.mrf.mxu0
      %v6961 = vadd.f32 0.0, %v6960
      %6962 = vmatmul.f32.gmra.mxu0 %v6854
      %v6963 = vpop.f32.mrf.mxu0
      %v6964 = vadd.f32 0.0, %v6963
      %6965 = vmatmul.f32.gmra.mxu0 %v6857
      %v6966 = vpop.f32.mrf.mxu0
      %v6967 = vadd.f32 0.0, %v6966
      %6968 = vmatmul.f32.gmra.mxu0 %v6860
      %v6969 = vpop.f32.mrf.mxu0
      %v6970 = vadd.f32 0.0, %v6969
      %6971 = vmatmul.f32.gmra.mxu0 %v6863
      %v6972 = vpop.f32.mrf.mxu0
      %v6973 = vadd.f32 0.0, %v6972
      %6974 = vmatmul.f32.gmra.mxu0 %v6866
      %v6975 = vpop.f32.mrf.mxu0
      %v6976 = vadd.f32 0.0, %v6975
      %6977 = vmatmul.f32.gmra.mxu0 %v6869
      %v6978 = vpop.f32.mrf.mxu0
      %v6979 = vadd.f32 0.0, %v6978
      %6980 = vmatmul.f32.gmra.mxu0 %v6872
      %v6981 = vpop.f32.mrf.mxu0
      %v6982 = vadd.f32 0.0, %v6981
      %6983 = vmatmul.f32.gmra.mxu0 %v6875
      %v6984 = vpop.f32.mrf.mxu0
      %v6985 = vadd.f32 0.0, %v6984
      %6986 = vmatmul.f32.gmra.mxu0 %v6878
      %v6987 = vpop.f32.mrf.mxu0
      %v6988 = vadd.f32 0.0, %v6987
      %6989 = vmatmul.f32.gmra.mxu0 %v6881
      %v6990 = vpop.f32.mrf.mxu0
      %v6991 = vadd.f32 0.0, %v6990
      %6992 = vmatmul.f32.gmra.mxu0 %v6884
      %v6993 = vpop.f32.mrf.mxu0
      %v6994 = vadd.f32 0.0, %v6993
      %6995 = vmatmul.f32.gmra.mxu0 %v6887
      %v6996 = vpop.f32.mrf.mxu0
      %v6997 = vadd.f32 0.0, %v6996
      %6998 = vmatmul.f32.gmra.mxu0 %v6890
      %v6999 = vpop.f32.mrf.mxu0
      %v7000 = vadd.f32 0.0, %v6999
      %7001 = vmatmul.f32.gmra.mxu0 %v6893
      %v7002 = vpop.f32.mrf.mxu0
      %v7003 = vadd.f32 0.0, %v7002
      %7004 = vmatmul.f32.gmra.mxu0 %v6896
      %v7005 = vpop.f32.mrf.mxu0
      %v7006 = vadd.f32 0.0, %v7005
      %7007 = vmatmul.f32.gmra.mxu0 %v6899
      %v7008 = vpop.f32.mrf.mxu0
      %v7009 = vadd.f32 0.0, %v7008
      %7010 = vmatmul.f32.gmra.mxu0 %v6902
      %v7011 = vpop.f32.mrf.mxu0
      %v7012 = vadd.f32 0.0, %v7011
      %7013 = vmatmul.f32.gmra.mxu0 %v6905
      %v7014 = vpop.f32.mrf.mxu0
      %v7015 = vadd.f32 0.0, %v7014
      %7016 = vmatmul.f32.gmra.mxu0 %v6908
      %v7017 = vpop.f32.mrf.mxu0
      %v7018 = vadd.f32 0.0, %v7017
      %7019 = vmatmul.f32.gmra.mxu0 %v6911
      %v7020 = vpop.f32.mrf.mxu0
      %v7021 = vadd.f32 0.0, %v7020
      %7022 = vmatmul.f32.gmra.mxu0 %v6914
      %v7023 = vpop.f32.mrf.mxu0
      %v7024 = vadd.f32 0.0, %v7023
      %7025 = vmatmul.f32.gmra.mxu0 %v6917
      %v7026 = vpop.f32.mrf.mxu0
      %v7027 = vadd.f32 0.0, %v7026
      %7028 = vmatmul.f32.gmra.mxu0 %v6920
      %v7029 = vpop.f32.mrf.mxu0
      %v7030 = vadd.f32 0.0, %v7029
      %7031 = vmatmul.f32.gmra.mxu0 %v6923
      %v7032 = vpop.f32.mrf.mxu0
      %v7033 = vadd.f32 0.0, %v7032
      %7034 = vmatmul.f32.gmra.mxu0 %v6926
      %v7035 = vpop.f32.mrf.mxu0
      %v7036 = vadd.f32 0.0, %v7035
      %7037 = vmatmul.f32.gmra.mxu0 %v6929
      %v7038 = vpop.f32.mrf.mxu0
      %v7039 = vadd.f32 0.0, %v7038
      %7040 = vmatmul.f32.gmra.mxu0 %v6932
      %v7041 = vpop.f32.mrf.mxu0
      %v7042 = vadd.f32 0.0, %v7041
      %7043 = vmatmul.f32.gmra.mxu0 %v6935
      %v7044 = vpop.f32.mrf.mxu0
      %v7045 = vadd.f32 0.0, %v7044
      %7046 = vdwg.mxu0
      %v7047 = vadd.f32 %v6777, %v6955
      %v7048 = vadd.f32 %v6778, %v6958
      %v7049 = vadd.f32 %v6779, %v6961
      %v7050 = vadd.f32 %v6780, %v6964
      %v7051 = vadd.f32 %v6781, %v6967
      %v7052 = vadd.f32 %v6782, %v6970
      %v7053 = vadd.f32 %v6783, %v6973
      %v7054 = vadd.f32 %v6784, %v6976
      %v7055 = vadd.f32 %v6785, %v6979
      %v7056 = vadd.f32 %v6786, %v6982
      %v7057 = vadd.f32 %v6787, %v6985
      %v7058 = vadd.f32 %v6788, %v6988
      %v7059 = vadd.f32 %v6789, %v6991
      %v7060 = vadd.f32 %v6790, %v6994
      %v7061 = vadd.f32 %v6791, %v6997
      %v7062 = vadd.f32 %v6792, %v7000
      %v7063 = vadd.f32 %v6793, %v7003
      %v7064 = vadd.f32 %v6794, %v7006
      %v7065 = vadd.f32 %v6795, %v7009
      %v7066 = vadd.f32 %v6796, %v7012
      %v7067 = vadd.f32 %v6797, %v7015
      %v7068 = vadd.f32 %v6798, %v7018
      %v7069 = vadd.f32 %v6799, %v7021
      %v7070 = vadd.f32 %v6800, %v7024
      %v7071 = vadd.f32 %v6801, %v7027
      %v7072 = vadd.f32 %v6802, %v7030
      %v7073 = vadd.f32 %v6803, %v7033
      %v7074 = vadd.f32 %v6804, %v7036
      %v7075 = vadd.f32 %v6805, %v7039
      %v7076 = vadd.f32 %v6806, %v7042
      %v7077 = vadd.f32 %v6807, %v7045
      %v7078 = vld [vmem:[#allocation3 + $0x39] sm:$0xff]
      %v7079 = vld [vmem:[#allocation3 + $0x41] sm:$0xff]
      %v7080 = vld [vmem:[#allocation3 + $0x49] sm:$0xff]
      %v7081 = vld [vmem:[#allocation3 + $0x51] sm:$0xff]
      %v7082 = vld [vmem:[#allocation3 + $0x59] sm:$0xff]
      %v7083 = vld [vmem:[#allocation3 + $0x61] sm:$0xff]
      %v7084 = vld [vmem:[#allocation3 + $0x69] sm:$0xff]
      %v7085 = vld [vmem:[#allocation3 + $0x71] sm:$0xff]
      %v7086 = vld [vmem:[#allocation3 + $0x79] sm:$0xff]
      %v7087 = vld [vmem:[#allocation3 + $0x81] sm:$0xff]
      %v7088 = vld [vmem:[#allocation3 + $0x89] sm:$0xff]
      %v7089 = vld [vmem:[#allocation3 + $0x91] sm:$0xff]
      %v7090 = vld [vmem:[#allocation3 + $0x99] sm:$0xff]
      %v7091 = vld [vmem:[#allocation3 + $0xa1] sm:$0xff]
      %v7092 = vld [vmem:[#allocation3 + $0xa9] sm:$0xff]
      %v7093 = vld [vmem:[#allocation3 + $0xb1] sm:$0xff]
      %v7094 = vld [vmem:[#allocation3 + $0xb9] sm:$0xff]
      %v7095 = vld [vmem:[#allocation3 + $0xc1] sm:$0xff]
      %v7096 = vld [vmem:[#allocation3 + $0xc9] sm:$0xff]
      %v7097 = vld [vmem:[#allocation3 + $0xd1] sm:$0xff]
      %v7098 = vld [vmem:[#allocation3 + $0xd9] sm:$0xff]
      %v7099 = vld [vmem:[#allocation3 + $0xe1] sm:$0xff]
      %v7100 = vld [vmem:[#allocation3 + $0xe9] sm:$0xff]
      %v7101 = vld [vmem:[#allocation3 + $0xf1] sm:$0xff]
      %v7102 = vld [vmem:[#allocation3 + $0xf9] sm:$0xff]
      %v7103 = vld [vmem:[#allocation3 + $0x101] sm:$0xff]
      %v7104 = vld [vmem:[#allocation3 + $0x109] sm:$0xff]
      %v7105 = vld [vmem:[#allocation3 + $0x111] sm:$0xff]
      %v7106 = vld [vmem:[#allocation3 + $0x119] sm:$0xff]
      %v7107 = vld [vmem:[#allocation3 + $0x121] sm:$0xff]
      %v7108 = vld [vmem:[#allocation3 + $0x129] sm:$0xff]
      %s7109 = scalar_lea.vmem %s4, 576
      %v7110 = vld [vmem:[%s7109] sm:$0xff]
      %v7111 = vld [vmem:[%s7109 + $0x8] sm:$0xff]
      %v7112 = vld [vmem:[%s7109 + $0x10] sm:$0xff]
      %v7113 = vld [vmem:[%s7109 + $0x18] sm:$0xff]
      %v7115 = vsel %vm1295, %v7078, 0
      %v7118 = vsel %vm1295, %v7079, 0
      %v7121 = vsel %vm1295, %v7080, 0
      %v7124 = vsel %vm1295, %v7081, 0
      %v7127 = vsel %vm1295, %v7082, 0
      %v7130 = vsel %vm1295, %v7083, 0
      %v7133 = vsel %vm1295, %v7084, 0
      %v7136 = vsel %vm1295, %v7085, 0
      %v7139 = vsel %vm1295, %v7086, 0
      %v7142 = vsel %vm1295, %v7087, 0
      %v7145 = vsel %vm1295, %v7088, 0
      %v7148 = vsel %vm1295, %v7089, 0
      %v7151 = vsel %vm1295, %v7090, 0
      %v7154 = vsel %vm1295, %v7091, 0
      %v7157 = vsel %vm1295, %v7092, 0
      %v7160 = vsel %vm1295, %v7093, 0
      %v7163 = vsel %vm1295, %v7094, 0
      %v7166 = vsel %vm1295, %v7095, 0
      %v7169 = vsel %vm1295, %v7096, 0
      %v7172 = vsel %vm1295, %v7097, 0
      %v7175 = vsel %vm1295, %v7098, 0
      %v7178 = vsel %vm1295, %v7099, 0
      %v7181 = vsel %vm1295, %v7100, 0
      %v7184 = vsel %vm1295, %v7101, 0
      %v7187 = vsel %vm1295, %v7102, 0
      %v7190 = vsel %vm1295, %v7103, 0
      %v7193 = vsel %vm1295, %v7104, 0
      %v7196 = vsel %vm1295, %v7105, 0
      %v7199 = vsel %vm1295, %v7106, 0
      %v7202 = vsel %vm1295, %v7107, 0
      %v7205 = vsel %vm1295, %v7108, 0
      %7207 = vmatpush.msra.mxu0 0.0
      %7208 = vmatpush.msra.mxu0 0.0
      %7209 = vmatpush.msra.mxu0 0.0
      %7210 = vmatpush.msra.mxu0 0.0
      %7211 = vmatpush.msra.mxu0 0.0
      %7212 = vmatpush.msra.mxu0 0.0
      %7213 = vmatpush.msra.mxu0 0.0
      %7214 = vmatpush.msra.mxu0 0.0
      %7215 = vmatpush.msra.mxu0 0.0
      %7216 = vmatpush.msra.mxu0 0.0
      %7217 = vmatpush.msra.mxu0 0.0
      %7218 = vmatpush.msra.mxu0 0.0
      %7219 = vmatpush.msra.mxu0 %v7113
      %7220 = vmatpush.msra.mxu0 %v7112
      %7221 = vmatpush.msra.mxu0 %v7111
      %7222 = vmatpush.msra.mxu0 %v7110
      %7223 = vmatmul.f32.gmra.mxu0 %v7115
      %v7224 = vpop.f32.mrf.mxu0
      %v7225 = vadd.f32 0.0, %v7224
      %7226 = vmatmul.f32.gmra.mxu0 %v7118
      %v7227 = vpop.f32.mrf.mxu0
      %v7228 = vadd.f32 0.0, %v7227
      %7229 = vmatmul.f32.gmra.mxu0 %v7121
      %v7230 = vpop.f32.mrf.mxu0
      %v7231 = vadd.f32 0.0, %v7230
      %7232 = vmatmul.f32.gmra.mxu0 %v7124
      %v7233 = vpop.f32.mrf.mxu0
      %v7234 = vadd.f32 0.0, %v7233
      %7235 = vmatmul.f32.gmra.mxu0 %v7127
      %v7236 = vpop.f32.mrf.mxu0
      %v7237 = vadd.f32 0.0, %v7236
      %7238 = vmatmul.f32.gmra.mxu0 %v7130
      %v7239 = vpop.f32.mrf.mxu0
      %v7240 = vadd.f32 0.0, %v7239
      %7241 = vmatmul.f32.gmra.mxu0 %v7133
      %v7242 = vpop.f32.mrf.mxu0
      %v7243 = vadd.f32 0.0, %v7242
      %7244 = vmatmul.f32.gmra.mxu0 %v7136
      %v7245 = vpop.f32.mrf.mxu0
      %v7246 = vadd.f32 0.0, %v7245
      %7247 = vmatmul.f32.gmra.mxu0 %v7139
      %v7248 = vpop.f32.mrf.mxu0
      %v7249 = vadd.f32 0.0, %v7248
      %7250 = vmatmul.f32.gmra.mxu0 %v7142
      %v7251 = vpop.f32.mrf.mxu0
      %v7252 = vadd.f32 0.0, %v7251
      %7253 = vmatmul.f32.gmra.mxu0 %v7145
      %v7254 = vpop.f32.mrf.mxu0
      %v7255 = vadd.f32 0.0, %v7254
      %7256 = vmatmul.f32.gmra.mxu0 %v7148
      %v7257 = vpop.f32.mrf.mxu0
      %v7258 = vadd.f32 0.0, %v7257
      %7259 = vmatmul.f32.gmra.mxu0 %v7151
      %v7260 = vpop.f32.mrf.mxu0
      %v7261 = vadd.f32 0.0, %v7260
      %7262 = vmatmul.f32.gmra.mxu0 %v7154
      %v7263 = vpop.f32.mrf.mxu0
      %v7264 = vadd.f32 0.0, %v7263
      %7265 = vmatmul.f32.gmra.mxu0 %v7157
      %v7266 = vpop.f32.mrf.mxu0
      %v7267 = vadd.f32 0.0, %v7266
      %7268 = vmatmul.f32.gmra.mxu0 %v7160
      %v7269 = vpop.f32.mrf.mxu0
      %v7270 = vadd.f32 0.0, %v7269
      %7271 = vmatmul.f32.gmra.mxu0 %v7163
      %v7272 = vpop.f32.mrf.mxu0
      %v7273 = vadd.f32 0.0, %v7272
      %7274 = vmatmul.f32.gmra.mxu0 %v7166
      %v7275 = vpop.f32.mrf.mxu0
      %v7276 = vadd.f32 0.0, %v7275
      %7277 = vmatmul.f32.gmra.mxu0 %v7169
      %v7278 = vpop.f32.mrf.mxu0
      %v7279 = vadd.f32 0.0, %v7278
      %7280 = vmatmul.f32.gmra.mxu0 %v7172
      %v7281 = vpop.f32.mrf.mxu0
      %v7282 = vadd.f32 0.0, %v7281
      %7283 = vmatmul.f32.gmra.mxu0 %v7175
      %v7284 = vpop.f32.mrf.mxu0
      %v7285 = vadd.f32 0.0, %v7284
      %7286 = vmatmul.f32.gmra.mxu0 %v7178
      %v7287 = vpop.f32.mrf.mxu0
      %v7288 = vadd.f32 0.0, %v7287
      %7289 = vmatmul.f32.gmra.mxu0 %v7181
      %v7290 = vpop.f32.mrf.mxu0
      %v7291 = vadd.f32 0.0, %v7290
      %7292 = vmatmul.f32.gmra.mxu0 %v7184
      %v7293 = vpop.f32.mrf.mxu0
      %v7294 = vadd.f32 0.0, %v7293
      %7295 = vmatmul.f32.gmra.mxu0 %v7187
      %v7296 = vpop.f32.mrf.mxu0
      %v7297 = vadd.f32 0.0, %v7296
      %7298 = vmatmul.f32.gmra.mxu0 %v7190
      %v7299 = vpop.f32.mrf.mxu0
      %v7300 = vadd.f32 0.0, %v7299
      %7301 = vmatmul.f32.gmra.mxu0 %v7193
      %v7302 = vpop.f32.mrf.mxu0
      %v7303 = vadd.f32 0.0, %v7302
      %7304 = vmatmul.f32.gmra.mxu0 %v7196
      %v7305 = vpop.f32.mrf.mxu0
      %v7306 = vadd.f32 0.0, %v7305
      %7307 = vmatmul.f32.gmra.mxu0 %v7199
      %v7308 = vpop.f32.mrf.mxu0
      %v7309 = vadd.f32 0.0, %v7308
      %7310 = vmatmul.f32.gmra.mxu0 %v7202
      %v7311 = vpop.f32.mrf.mxu0
      %v7312 = vadd.f32 0.0, %v7311
      %7313 = vmatmul.f32.gmra.mxu0 %v7205
      %v7314 = vpop.f32.mrf.mxu0
      %v7315 = vadd.f32 0.0, %v7314
      %7316 = vdwg.mxu0
      %v7317 = vadd.f32 %v7047, %v7225
      %v7318 = vadd.f32 %v7048, %v7228
      %v7319 = vadd.f32 %v7049, %v7231
      %v7320 = vadd.f32 %v7050, %v7234
      %v7321 = vadd.f32 %v7051, %v7237
      %v7322 = vadd.f32 %v7052, %v7240
      %v7323 = vadd.f32 %v7053, %v7243
      %v7324 = vadd.f32 %v7054, %v7246
      %v7325 = vadd.f32 %v7055, %v7249
      %v7326 = vadd.f32 %v7056, %v7252
      %v7327 = vadd.f32 %v7057, %v7255
      %v7328 = vadd.f32 %v7058, %v7258
      %v7329 = vadd.f32 %v7059, %v7261
      %v7330 = vadd.f32 %v7060, %v7264
      %v7331 = vadd.f32 %v7061, %v7267
      %v7332 = vadd.f32 %v7062, %v7270
      %v7333 = vadd.f32 %v7063, %v7273
      %v7334 = vadd.f32 %v7064, %v7276
      %v7335 = vadd.f32 %v7065, %v7279
      %v7336 = vadd.f32 %v7066, %v7282
      %v7337 = vadd.f32 %v7067, %v7285
      %v7338 = vadd.f32 %v7068, %v7288
      %v7339 = vadd.f32 %v7069, %v7291
      %v7340 = vadd.f32 %v7070, %v7294
      %v7341 = vadd.f32 %v7071, %v7297
      %v7342 = vadd.f32 %v7072, %v7300
      %v7343 = vadd.f32 %v7073, %v7303
      %v7344 = vadd.f32 %v7074, %v7306
      %v7345 = vadd.f32 %v7075, %v7309
      %v7346 = vadd.f32 %v7076, %v7312
      %v7347 = vadd.f32 %v7077, %v7315
      %v7348 = vld [vmem:[#allocation3 + $0x3a] sm:$0xff]
      %v7349 = vld [vmem:[#allocation3 + $0x42] sm:$0xff]
      %v7350 = vld [vmem:[#allocation3 + $0x4a] sm:$0xff]
      %v7351 = vld [vmem:[#allocation3 + $0x52] sm:$0xff]
      %v7352 = vld [vmem:[#allocation3 + $0x5a] sm:$0xff]
      %v7353 = vld [vmem:[#allocation3 + $0x62] sm:$0xff]
      %v7354 = vld [vmem:[#allocation3 + $0x6a] sm:$0xff]
      %v7355 = vld [vmem:[#allocation3 + $0x72] sm:$0xff]
      %v7356 = vld [vmem:[#allocation3 + $0x7a] sm:$0xff]
      %v7357 = vld [vmem:[#allocation3 + $0x82] sm:$0xff]
      %v7358 = vld [vmem:[#allocation3 + $0x8a] sm:$0xff]
      %v7359 = vld [vmem:[#allocation3 + $0x92] sm:$0xff]
      %v7360 = vld [vmem:[#allocation3 + $0x9a] sm:$0xff]
      %v7361 = vld [vmem:[#allocation3 + $0xa2] sm:$0xff]
      %v7362 = vld [vmem:[#allocation3 + $0xaa] sm:$0xff]
      %v7363 = vld [vmem:[#allocation3 + $0xb2] sm:$0xff]
      %v7364 = vld [vmem:[#allocation3 + $0xba] sm:$0xff]
      %v7365 = vld [vmem:[#allocation3 + $0xc2] sm:$0xff]
      %v7366 = vld [vmem:[#allocation3 + $0xca] sm:$0xff]
      %v7367 = vld [vmem:[#allocation3 + $0xd2] sm:$0xff]
      %v7368 = vld [vmem:[#allocation3 + $0xda] sm:$0xff]
      %v7369 = vld [vmem:[#allocation3 + $0xe2] sm:$0xff]
      %v7370 = vld [vmem:[#allocation3 + $0xea] sm:$0xff]
      %v7371 = vld [vmem:[#allocation3 + $0xf2] sm:$0xff]
      %v7372 = vld [vmem:[#allocation3 + $0xfa] sm:$0xff]
      %v7373 = vld [vmem:[#allocation3 + $0x102] sm:$0xff]
      %v7374 = vld [vmem:[#allocation3 + $0x10a] sm:$0xff]
      %v7375 = vld [vmem:[#allocation3 + $0x112] sm:$0xff]
      %v7376 = vld [vmem:[#allocation3 + $0x11a] sm:$0xff]
      %v7377 = vld [vmem:[#allocation3 + $0x122] sm:$0xff]
      %v7378 = vld [vmem:[#allocation3 + $0x12a] sm:$0xff]
      %s7379 = scalar_lea.vmem %s4, 608
      %v7380 = vld [vmem:[%s7379] sm:$0xff]
      %v7381 = vld [vmem:[%s7379 + $0x8] sm:$0xff]
      %v7382 = vld [vmem:[%s7379 + $0x10] sm:$0xff]
      %v7383 = vld [vmem:[%s7379 + $0x18] sm:$0xff]
      %v7385 = vsel %vm1295, %v7348, 0
      %v7388 = vsel %vm1295, %v7349, 0
      %v7391 = vsel %vm1295, %v7350, 0
      %v7394 = vsel %vm1295, %v7351, 0
      %v7397 = vsel %vm1295, %v7352, 0
      %v7400 = vsel %vm1295, %v7353, 0
      %v7403 = vsel %vm1295, %v7354, 0
      %v7406 = vsel %vm1295, %v7355, 0
      %v7409 = vsel %vm1295, %v7356, 0
      %v7412 = vsel %vm1295, %v7357, 0
      %v7415 = vsel %vm1295, %v7358, 0
      %v7418 = vsel %vm1295, %v7359, 0
      %v7421 = vsel %vm1295, %v7360, 0
      %v7424 = vsel %vm1295, %v7361, 0
      %v7427 = vsel %vm1295, %v7362, 0
      %v7430 = vsel %vm1295, %v7363, 0
      %v7433 = vsel %vm1295, %v7364, 0
      %v7436 = vsel %vm1295, %v7365, 0
      %v7439 = vsel %vm1295, %v7366, 0
      %v7442 = vsel %vm1295, %v7367, 0
      %v7445 = vsel %vm1295, %v7368, 0
      %v7448 = vsel %vm1295, %v7369, 0
      %v7451 = vsel %vm1295, %v7370, 0
      %v7454 = vsel %vm1295, %v7371, 0
      %v7457 = vsel %vm1295, %v7372, 0
      %v7460 = vsel %vm1295, %v7373, 0
      %v7463 = vsel %vm1295, %v7374, 0
      %v7466 = vsel %vm1295, %v7375, 0
      %v7469 = vsel %vm1295, %v7376, 0
      %v7472 = vsel %vm1295, %v7377, 0
      %v7475 = vsel %vm1295, %v7378, 0
      %7477 = vmatpush.msra.mxu0 0.0
      %7478 = vmatpush.msra.mxu0 0.0
      %7479 = vmatpush.msra.mxu0 0.0
      %7480 = vmatpush.msra.mxu0 0.0
      %7481 = vmatpush.msra.mxu0 0.0
      %7482 = vmatpush.msra.mxu0 0.0
      %7483 = vmatpush.msra.mxu0 0.0
      %7484 = vmatpush.msra.mxu0 0.0
      %7485 = vmatpush.msra.mxu0 0.0
      %7486 = vmatpush.msra.mxu0 0.0
      %7487 = vmatpush.msra.mxu0 0.0
      %7488 = vmatpush.msra.mxu0 0.0
      %7489 = vmatpush.msra.mxu0 %v7383
      %7490 = vmatpush.msra.mxu0 %v7382
      %7491 = vmatpush.msra.mxu0 %v7381
      %7492 = vmatpush.msra.mxu0 %v7380
      %7493 = vmatmul.f32.gmra.mxu0 %v7385
      %v7494 = vpop.f32.mrf.mxu0
      %v7495 = vadd.f32 0.0, %v7494
      %7496 = vmatmul.f32.gmra.mxu0 %v7388
      %v7497 = vpop.f32.mrf.mxu0
      %v7498 = vadd.f32 0.0, %v7497
      %7499 = vmatmul.f32.gmra.mxu0 %v7391
      %v7500 = vpop.f32.mrf.mxu0
      %v7501 = vadd.f32 0.0, %v7500
      %7502 = vmatmul.f32.gmra.mxu0 %v7394
      %v7503 = vpop.f32.mrf.mxu0
      %v7504 = vadd.f32 0.0, %v7503
      %7505 = vmatmul.f32.gmra.mxu0 %v7397
      %v7506 = vpop.f32.mrf.mxu0
      %v7507 = vadd.f32 0.0, %v7506
      %7508 = vmatmul.f32.gmra.mxu0 %v7400
      %v7509 = vpop.f32.mrf.mxu0
      %v7510 = vadd.f32 0.0, %v7509
      %7511 = vmatmul.f32.gmra.mxu0 %v7403
      %v7512 = vpop.f32.mrf.mxu0
      %v7513 = vadd.f32 0.0, %v7512
      %7514 = vmatmul.f32.gmra.mxu0 %v7406
      %v7515 = vpop.f32.mrf.mxu0
      %v7516 = vadd.f32 0.0, %v7515
      %7517 = vmatmul.f32.gmra.mxu0 %v7409
      %v7518 = vpop.f32.mrf.mxu0
      %v7519 = vadd.f32 0.0, %v7518
      %7520 = vmatmul.f32.gmra.mxu0 %v7412
      %v7521 = vpop.f32.mrf.mxu0
      %v7522 = vadd.f32 0.0, %v7521
      %7523 = vmatmul.f32.gmra.mxu0 %v7415
      %v7524 = vpop.f32.mrf.mxu0
      %v7525 = vadd.f32 0.0, %v7524
      %7526 = vmatmul.f32.gmra.mxu0 %v7418
      %v7527 = vpop.f32.mrf.mxu0
      %v7528 = vadd.f32 0.0, %v7527
      %7529 = vmatmul.f32.gmra.mxu0 %v7421
      %v7530 = vpop.f32.mrf.mxu0
      %v7531 = vadd.f32 0.0, %v7530
      %7532 = vmatmul.f32.gmra.mxu0 %v7424
      %v7533 = vpop.f32.mrf.mxu0
      %v7534 = vadd.f32 0.0, %v7533
      %7535 = vmatmul.f32.gmra.mxu0 %v7427
      %v7536 = vpop.f32.mrf.mxu0
      %v7537 = vadd.f32 0.0, %v7536
      %7538 = vmatmul.f32.gmra.mxu0 %v7430
      %v7539 = vpop.f32.mrf.mxu0
      %v7540 = vadd.f32 0.0, %v7539
      %7541 = vmatmul.f32.gmra.mxu0 %v7433
      %v7542 = vpop.f32.mrf.mxu0
      %v7543 = vadd.f32 0.0, %v7542
      %7544 = vmatmul.f32.gmra.mxu0 %v7436
      %v7545 = vpop.f32.mrf.mxu0
      %v7546 = vadd.f32 0.0, %v7545
      %7547 = vmatmul.f32.gmra.mxu0 %v7439
      %v7548 = vpop.f32.mrf.mxu0
      %v7549 = vadd.f32 0.0, %v7548
      %7550 = vmatmul.f32.gmra.mxu0 %v7442
      %v7551 = vpop.f32.mrf.mxu0
      %v7552 = vadd.f32 0.0, %v7551
      %7553 = vmatmul.f32.gmra.mxu0 %v7445
      %v7554 = vpop.f32.mrf.mxu0
      %v7555 = vadd.f32 0.0, %v7554
      %7556 = vmatmul.f32.gmra.mxu0 %v7448
      %v7557 = vpop.f32.mrf.mxu0
      %v7558 = vadd.f32 0.0, %v7557
      %7559 = vmatmul.f32.gmra.mxu0 %v7451
      %v7560 = vpop.f32.mrf.mxu0
      %v7561 = vadd.f32 0.0, %v7560
      %7562 = vmatmul.f32.gmra.mxu0 %v7454
      %v7563 = vpop.f32.mrf.mxu0
      %v7564 = vadd.f32 0.0, %v7563
      %7565 = vmatmul.f32.gmra.mxu0 %v7457
      %v7566 = vpop.f32.mrf.mxu0
      %v7567 = vadd.f32 0.0, %v7566
      %7568 = vmatmul.f32.gmra.mxu0 %v7460
      %v7569 = vpop.f32.mrf.mxu0
      %v7570 = vadd.f32 0.0, %v7569
      %7571 = vmatmul.f32.gmra.mxu0 %v7463
      %v7572 = vpop.f32.mrf.mxu0
      %v7573 = vadd.f32 0.0, %v7572
      %7574 = vmatmul.f32.gmra.mxu0 %v7466
      %v7575 = vpop.f32.mrf.mxu0
      %v7576 = vadd.f32 0.0, %v7575
      %7577 = vmatmul.f32.gmra.mxu0 %v7469
      %v7578 = vpop.f32.mrf.mxu0
      %v7579 = vadd.f32 0.0, %v7578
      %7580 = vmatmul.f32.gmra.mxu0 %v7472
      %v7581 = vpop.f32.mrf.mxu0
      %v7582 = vadd.f32 0.0, %v7581
      %7583 = vmatmul.f32.gmra.mxu0 %v7475
      %v7584 = vpop.f32.mrf.mxu0
      %v7585 = vadd.f32 0.0, %v7584
      %7586 = vdwg.mxu0
      %v7587 = vadd.f32 %v7317, %v7495
      %v7588 = vadd.f32 %v7318, %v7498
      %v7589 = vadd.f32 %v7319, %v7501
      %v7590 = vadd.f32 %v7320, %v7504
      %v7591 = vadd.f32 %v7321, %v7507
      %v7592 = vadd.f32 %v7322, %v7510
      %v7593 = vadd.f32 %v7323, %v7513
      %v7594 = vadd.f32 %v7324, %v7516
      %v7595 = vadd.f32 %v7325, %v7519
      %v7596 = vadd.f32 %v7326, %v7522
      %v7597 = vadd.f32 %v7327, %v7525
      %v7598 = vadd.f32 %v7328, %v7528
      %v7599 = vadd.f32 %v7329, %v7531
      %v7600 = vadd.f32 %v7330, %v7534
      %v7601 = vadd.f32 %v7331, %v7537
      %v7602 = vadd.f32 %v7332, %v7540
      %v7603 = vadd.f32 %v7333, %v7543
      %v7604 = vadd.f32 %v7334, %v7546
      %v7605 = vadd.f32 %v7335, %v7549
      %v7606 = vadd.f32 %v7336, %v7552
      %v7607 = vadd.f32 %v7337, %v7555
      %v7608 = vadd.f32 %v7338, %v7558
      %v7609 = vadd.f32 %v7339, %v7561
      %v7610 = vadd.f32 %v7340, %v7564
      %v7611 = vadd.f32 %v7341, %v7567
      %v7612 = vadd.f32 %v7342, %v7570
      %v7613 = vadd.f32 %v7343, %v7573
      %v7614 = vadd.f32 %v7344, %v7576
      %v7615 = vadd.f32 %v7345, %v7579
      %v7616 = vadd.f32 %v7346, %v7582
      %v7617 = vadd.f32 %v7347, %v7585
      %v7618 = vld [vmem:[#allocation3 + $0x48] sm:$0xff]
      %v7619 = vld [vmem:[#allocation3 + $0x50] sm:$0xff]
      %v7620 = vld [vmem:[#allocation3 + $0x58] sm:$0xff]
      %v7621 = vld [vmem:[#allocation3 + $0x60] sm:$0xff]
      %v7622 = vld [vmem:[#allocation3 + $0x68] sm:$0xff]
      %v7623 = vld [vmem:[#allocation3 + $0x70] sm:$0xff]
      %v7624 = vld [vmem:[#allocation3 + $0x78] sm:$0xff]
      %v7625 = vld [vmem:[#allocation3 + $0x80] sm:$0xff]
      %v7626 = vld [vmem:[#allocation3 + $0x88] sm:$0xff]
      %v7627 = vld [vmem:[#allocation3 + $0x90] sm:$0xff]
      %v7628 = vld [vmem:[#allocation3 + $0x98] sm:$0xff]
      %v7629 = vld [vmem:[#allocation3 + $0xa0] sm:$0xff]
      %v7630 = vld [vmem:[#allocation3 + $0xa8] sm:$0xff]
      %v7631 = vld [vmem:[#allocation3 + $0xb0] sm:$0xff]
      %v7632 = vld [vmem:[#allocation3 + $0xb8] sm:$0xff]
      %v7633 = vld [vmem:[#allocation3 + $0xc0] sm:$0xff]
      %v7634 = vld [vmem:[#allocation3 + $0xc8] sm:$0xff]
      %v7635 = vld [vmem:[#allocation3 + $0xd0] sm:$0xff]
      %v7636 = vld [vmem:[#allocation3 + $0xd8] sm:$0xff]
      %v7637 = vld [vmem:[#allocation3 + $0xe0] sm:$0xff]
      %v7638 = vld [vmem:[#allocation3 + $0xe8] sm:$0xff]
      %v7639 = vld [vmem:[#allocation3 + $0xf0] sm:$0xff]
      %v7640 = vld [vmem:[#allocation3 + $0xf8] sm:$0xff]
      %v7641 = vld [vmem:[#allocation3 + $0x100] sm:$0xff]
      %v7642 = vld [vmem:[#allocation3 + $0x108] sm:$0xff]
      %v7643 = vld [vmem:[#allocation3 + $0x110] sm:$0xff]
      %v7644 = vld [vmem:[#allocation3 + $0x118] sm:$0xff]
      %v7645 = vld [vmem:[#allocation3 + $0x120] sm:$0xff]
      %v7646 = vld [vmem:[#allocation3 + $0x128] sm:$0xff]
      %v7647 = vld [vmem:[#allocation3 + $0x130] sm:$0xff]
      %v7648 = vld [vmem:[#allocation3 + $0x138] sm:$0xff]
      %s7649 = scalar_lea.vmem %s4, 640
      %v7650 = vld [vmem:[%s7649] sm:$0xff]
      %v7651 = vld [vmem:[%s7649 + $0x8] sm:$0xff]
      %v7652 = vld [vmem:[%s7649 + $0x10] sm:$0xff]
      %v7653 = vld [vmem:[%s7649 + $0x18] sm:$0xff]
      %v7655 = vsel %vm1295, %v7618, 0
      %v7658 = vsel %vm1295, %v7619, 0
      %v7661 = vsel %vm1295, %v7620, 0
      %v7664 = vsel %vm1295, %v7621, 0
      %v7667 = vsel %vm1295, %v7622, 0
      %v7670 = vsel %vm1295, %v7623, 0
      %v7673 = vsel %vm1295, %v7624, 0
      %v7676 = vsel %vm1295, %v7625, 0
      %v7679 = vsel %vm1295, %v7626, 0
      %v7682 = vsel %vm1295, %v7627, 0
      %v7685 = vsel %vm1295, %v7628, 0
      %v7688 = vsel %vm1295, %v7629, 0
      %v7691 = vsel %vm1295, %v7630, 0
      %v7694 = vsel %vm1295, %v7631, 0
      %v7697 = vsel %vm1295, %v7632, 0
      %v7700 = vsel %vm1295, %v7633, 0
      %v7703 = vsel %vm1295, %v7634, 0
      %v7706 = vsel %vm1295, %v7635, 0
      %v7709 = vsel %vm1295, %v7636, 0
      %v7712 = vsel %vm1295, %v7637, 0
      %v7715 = vsel %vm1295, %v7638, 0
      %v7718 = vsel %vm1295, %v7639, 0
      %v7721 = vsel %vm1295, %v7640, 0
      %v7724 = vsel %vm1295, %v7641, 0
      %v7727 = vsel %vm1295, %v7642, 0
      %v7730 = vsel %vm1295, %v7643, 0
      %v7733 = vsel %vm1295, %v7644, 0
      %v7736 = vsel %vm1295, %v7645, 0
      %v7739 = vsel %vm1295, %v7646, 0
      %v7742 = vsel %vm1295, %v7647, 0
      %v7745 = vsel %vm1295, %v7648, 0
      %7747 = vmatpush.msra.mxu0 0.0
      %7748 = vmatpush.msra.mxu0 0.0
      %7749 = vmatpush.msra.mxu0 0.0
      %7750 = vmatpush.msra.mxu0 0.0
      %7751 = vmatpush.msra.mxu0 0.0
      %7752 = vmatpush.msra.mxu0 0.0
      %7753 = vmatpush.msra.mxu0 0.0
      %7754 = vmatpush.msra.mxu0 0.0
      %7755 = vmatpush.msra.mxu0 0.0
      %7756 = vmatpush.msra.mxu0 0.0
      %7757 = vmatpush.msra.mxu0 0.0
      %7758 = vmatpush.msra.mxu0 0.0
      %7759 = vmatpush.msra.mxu0 %v7653
      %7760 = vmatpush.msra.mxu0 %v7652
      %7761 = vmatpush.msra.mxu0 %v7651
      %7762 = vmatpush.msra.mxu0 %v7650
      %7763 = vmatmul.f32.gmra.mxu0 %v7655
      %v7764 = vpop.f32.mrf.mxu0
      %v7765 = vadd.f32 0.0, %v7764
      %7766 = vmatmul.f32.gmra.mxu0 %v7658
      %v7767 = vpop.f32.mrf.mxu0
      %v7768 = vadd.f32 0.0, %v7767
      %7769 = vmatmul.f32.gmra.mxu0 %v7661
      %v7770 = vpop.f32.mrf.mxu0
      %v7771 = vadd.f32 0.0, %v7770
      %7772 = vmatmul.f32.gmra.mxu0 %v7664
      %v7773 = vpop.f32.mrf.mxu0
      %v7774 = vadd.f32 0.0, %v7773
      %7775 = vmatmul.f32.gmra.mxu0 %v7667
      %v7776 = vpop.f32.mrf.mxu0
      %v7777 = vadd.f32 0.0, %v7776
      %7778 = vmatmul.f32.gmra.mxu0 %v7670
      %v7779 = vpop.f32.mrf.mxu0
      %v7780 = vadd.f32 0.0, %v7779
      %7781 = vmatmul.f32.gmra.mxu0 %v7673
      %v7782 = vpop.f32.mrf.mxu0
      %v7783 = vadd.f32 0.0, %v7782
      %7784 = vmatmul.f32.gmra.mxu0 %v7676
      %v7785 = vpop.f32.mrf.mxu0
      %v7786 = vadd.f32 0.0, %v7785
      %7787 = vmatmul.f32.gmra.mxu0 %v7679
      %v7788 = vpop.f32.mrf.mxu0
      %v7789 = vadd.f32 0.0, %v7788
      %7790 = vmatmul.f32.gmra.mxu0 %v7682
      %v7791 = vpop.f32.mrf.mxu0
      %v7792 = vadd.f32 0.0, %v7791
      %7793 = vmatmul.f32.gmra.mxu0 %v7685
      %v7794 = vpop.f32.mrf.mxu0
      %v7795 = vadd.f32 0.0, %v7794
      %7796 = vmatmul.f32.gmra.mxu0 %v7688
      %v7797 = vpop.f32.mrf.mxu0
      %v7798 = vadd.f32 0.0, %v7797
      %7799 = vmatmul.f32.gmra.mxu0 %v7691
      %v7800 = vpop.f32.mrf.mxu0
      %v7801 = vadd.f32 0.0, %v7800
      %7802 = vmatmul.f32.gmra.mxu0 %v7694
      %v7803 = vpop.f32.mrf.mxu0
      %v7804 = vadd.f32 0.0, %v7803
      %7805 = vmatmul.f32.gmra.mxu0 %v7697
      %v7806 = vpop.f32.mrf.mxu0
      %v7807 = vadd.f32 0.0, %v7806
      %7808 = vmatmul.f32.gmra.mxu0 %v7700
      %v7809 = vpop.f32.mrf.mxu0
      %v7810 = vadd.f32 0.0, %v7809
      %7811 = vmatmul.f32.gmra.mxu0 %v7703
      %v7812 = vpop.f32.mrf.mxu0
      %v7813 = vadd.f32 0.0, %v7812
      %7814 = vmatmul.f32.gmra.mxu0 %v7706
      %v7815 = vpop.f32.mrf.mxu0
      %v7816 = vadd.f32 0.0, %v7815
      %7817 = vmatmul.f32.gmra.mxu0 %v7709
      %v7818 = vpop.f32.mrf.mxu0
      %v7819 = vadd.f32 0.0, %v7818
      %7820 = vmatmul.f32.gmra.mxu0 %v7712
      %v7821 = vpop.f32.mrf.mxu0
      %v7822 = vadd.f32 0.0, %v7821
      %7823 = vmatmul.f32.gmra.mxu0 %v7715
      %v7824 = vpop.f32.mrf.mxu0
      %v7825 = vadd.f32 0.0, %v7824
      %7826 = vmatmul.f32.gmra.mxu0 %v7718
      %v7827 = vpop.f32.mrf.mxu0
      %v7828 = vadd.f32 0.0, %v7827
      %7829 = vmatmul.f32.gmra.mxu0 %v7721
      %v7830 = vpop.f32.mrf.mxu0
      %v7831 = vadd.f32 0.0, %v7830
      %7832 = vmatmul.f32.gmra.mxu0 %v7724
      %v7833 = vpop.f32.mrf.mxu0
      %v7834 = vadd.f32 0.0, %v7833
      %7835 = vmatmul.f32.gmra.mxu0 %v7727
      %v7836 = vpop.f32.mrf.mxu0
      %v7837 = vadd.f32 0.0, %v7836
      %7838 = vmatmul.f32.gmra.mxu0 %v7730
      %v7839 = vpop.f32.mrf.mxu0
      %v7840 = vadd.f32 0.0, %v7839
      %7841 = vmatmul.f32.gmra.mxu0 %v7733
      %v7842 = vpop.f32.mrf.mxu0
      %v7843 = vadd.f32 0.0, %v7842
      %7844 = vmatmul.f32.gmra.mxu0 %v7736
      %v7845 = vpop.f32.mrf.mxu0
      %v7846 = vadd.f32 0.0, %v7845
      %7847 = vmatmul.f32.gmra.mxu0 %v7739
      %v7848 = vpop.f32.mrf.mxu0
      %v7849 = vadd.f32 0.0, %v7848
      %7850 = vmatmul.f32.gmra.mxu0 %v7742
      %v7851 = vpop.f32.mrf.mxu0
      %v7852 = vadd.f32 0.0, %v7851
      %7853 = vmatmul.f32.gmra.mxu0 %v7745
      %v7854 = vpop.f32.mrf.mxu0
      %v7855 = vadd.f32 0.0, %v7854
      %7856 = vdwg.mxu0
      %v7857 = vadd.f32 %v7587, %v7765
      %v7858 = vadd.f32 %v7588, %v7768
      %v7859 = vadd.f32 %v7589, %v7771
      %v7860 = vadd.f32 %v7590, %v7774
      %v7861 = vadd.f32 %v7591, %v7777
      %v7862 = vadd.f32 %v7592, %v7780
      %v7863 = vadd.f32 %v7593, %v7783
      %v7864 = vadd.f32 %v7594, %v7786
      %v7865 = vadd.f32 %v7595, %v7789
      %v7866 = vadd.f32 %v7596, %v7792
      %v7867 = vadd.f32 %v7597, %v7795
      %v7868 = vadd.f32 %v7598, %v7798
      %v7869 = vadd.f32 %v7599, %v7801
      %v7870 = vadd.f32 %v7600, %v7804
      %v7871 = vadd.f32 %v7601, %v7807
      %v7872 = vadd.f32 %v7602, %v7810
      %v7873 = vadd.f32 %v7603, %v7813
      %v7874 = vadd.f32 %v7604, %v7816
      %v7875 = vadd.f32 %v7605, %v7819
      %v7876 = vadd.f32 %v7606, %v7822
      %v7877 = vadd.f32 %v7607, %v7825
      %v7878 = vadd.f32 %v7608, %v7828
      %v7879 = vadd.f32 %v7609, %v7831
      %v7880 = vadd.f32 %v7610, %v7834
      %v7881 = vadd.f32 %v7611, %v7837
      %v7882 = vadd.f32 %v7612, %v7840
      %v7883 = vadd.f32 %v7613, %v7843
      %v7884 = vadd.f32 %v7614, %v7846
      %v7885 = vadd.f32 %v7615, %v7849
      %v7886 = vadd.f32 %v7616, %v7852
      %v7887 = vadd.f32 %v7617, %v7855
      %v7888 = vld [vmem:[#allocation3 + $0x49] sm:$0xff]
      %v7889 = vld [vmem:[#allocation3 + $0x51] sm:$0xff]
      %v7890 = vld [vmem:[#allocation3 + $0x59] sm:$0xff]
      %v7891 = vld [vmem:[#allocation3 + $0x61] sm:$0xff]
      %v7892 = vld [vmem:[#allocation3 + $0x69] sm:$0xff]
      %v7893 = vld [vmem:[#allocation3 + $0x71] sm:$0xff]
      %v7894 = vld [vmem:[#allocation3 + $0x79] sm:$0xff]
      %v7895 = vld [vmem:[#allocation3 + $0x81] sm:$0xff]
      %v7896 = vld [vmem:[#allocation3 + $0x89] sm:$0xff]
      %v7897 = vld [vmem:[#allocation3 + $0x91] sm:$0xff]
      %v7898 = vld [vmem:[#allocation3 + $0x99] sm:$0xff]
      %v7899 = vld [vmem:[#allocation3 + $0xa1] sm:$0xff]
      %v7900 = vld [vmem:[#allocation3 + $0xa9] sm:$0xff]
      %v7901 = vld [vmem:[#allocation3 + $0xb1] sm:$0xff]
      %v7902 = vld [vmem:[#allocation3 + $0xb9] sm:$0xff]
      %v7903 = vld [vmem:[#allocation3 + $0xc1] sm:$0xff]
      %v7904 = vld [vmem:[#allocation3 + $0xc9] sm:$0xff]
      %v7905 = vld [vmem:[#allocation3 + $0xd1] sm:$0xff]
      %v7906 = vld [vmem:[#allocation3 + $0xd9] sm:$0xff]
      %v7907 = vld [vmem:[#allocation3 + $0xe1] sm:$0xff]
      %v7908 = vld [vmem:[#allocation3 + $0xe9] sm:$0xff]
      %v7909 = vld [vmem:[#allocation3 + $0xf1] sm:$0xff]
      %v7910 = vld [vmem:[#allocation3 + $0xf9] sm:$0xff]
      %v7911 = vld [vmem:[#allocation3 + $0x101] sm:$0xff]
      %v7912 = vld [vmem:[#allocation3 + $0x109] sm:$0xff]
      %v7913 = vld [vmem:[#allocation3 + $0x111] sm:$0xff]
      %v7914 = vld [vmem:[#allocation3 + $0x119] sm:$0xff]
      %v7915 = vld [vmem:[#allocation3 + $0x121] sm:$0xff]
      %v7916 = vld [vmem:[#allocation3 + $0x129] sm:$0xff]
      %v7917 = vld [vmem:[#allocation3 + $0x131] sm:$0xff]
      %v7918 = vld [vmem:[#allocation3 + $0x139] sm:$0xff]
      %s7919 = scalar_lea.vmem %s4, 672
      %v7920 = vld [vmem:[%s7919] sm:$0xff]
      %v7921 = vld [vmem:[%s7919 + $0x8] sm:$0xff]
      %v7922 = vld [vmem:[%s7919 + $0x10] sm:$0xff]
      %v7923 = vld [vmem:[%s7919 + $0x18] sm:$0xff]
      %v7925 = vsel %vm1295, %v7888, 0
      %v7928 = vsel %vm1295, %v7889, 0
      %v7931 = vsel %vm1295, %v7890, 0
      %v7934 = vsel %vm1295, %v7891, 0
      %v7937 = vsel %vm1295, %v7892, 0
      %v7940 = vsel %vm1295, %v7893, 0
      %v7943 = vsel %vm1295, %v7894, 0
      %v7946 = vsel %vm1295, %v7895, 0
      %v7949 = vsel %vm1295, %v7896, 0
      %v7952 = vsel %vm1295, %v7897, 0
      %v7955 = vsel %vm1295, %v7898, 0
      %v7958 = vsel %vm1295, %v7899, 0
      %v7961 = vsel %vm1295, %v7900, 0
      %v7964 = vsel %vm1295, %v7901, 0
      %v7967 = vsel %vm1295, %v7902, 0
      %v7970 = vsel %vm1295, %v7903, 0
      %v7973 = vsel %vm1295, %v7904, 0
      %v7976 = vsel %vm1295, %v7905, 0
      %v7979 = vsel %vm1295, %v7906, 0
      %v7982 = vsel %vm1295, %v7907, 0
      %v7985 = vsel %vm1295, %v7908, 0
      %v7988 = vsel %vm1295, %v7909, 0
      %v7991 = vsel %vm1295, %v7910, 0
      %v7994 = vsel %vm1295, %v7911, 0
      %v7997 = vsel %vm1295, %v7912, 0
      %v8000 = vsel %vm1295, %v7913, 0
      %v8003 = vsel %vm1295, %v7914, 0
      %v8006 = vsel %vm1295, %v7915, 0
      %v8009 = vsel %vm1295, %v7916, 0
      %v8012 = vsel %vm1295, %v7917, 0
      %v8015 = vsel %vm1295, %v7918, 0
      %8017 = vmatpush.msra.mxu0 0.0
      %8018 = vmatpush.msra.mxu0 0.0
      %8019 = vmatpush.msra.mxu0 0.0
      %8020 = vmatpush.msra.mxu0 0.0
      %8021 = vmatpush.msra.mxu0 0.0
      %8022 = vmatpush.msra.mxu0 0.0
      %8023 = vmatpush.msra.mxu0 0.0
      %8024 = vmatpush.msra.mxu0 0.0
      %8025 = vmatpush.msra.mxu0 0.0
      %8026 = vmatpush.msra.mxu0 0.0
      %8027 = vmatpush.msra.mxu0 0.0
      %8028 = vmatpush.msra.mxu0 0.0
      %8029 = vmatpush.msra.mxu0 %v7923
      %8030 = vmatpush.msra.mxu0 %v7922
      %8031 = vmatpush.msra.mxu0 %v7921
      %8032 = vmatpush.msra.mxu0 %v7920
      %8033 = vmatmul.f32.gmra.mxu0 %v7925
      %v8034 = vpop.f32.mrf.mxu0
      %v8035 = vadd.f32 0.0, %v8034
      %8036 = vmatmul.f32.gmra.mxu0 %v7928
      %v8037 = vpop.f32.mrf.mxu0
      %v8038 = vadd.f32 0.0, %v8037
      %8039 = vmatmul.f32.gmra.mxu0 %v7931
      %v8040 = vpop.f32.mrf.mxu0
      %v8041 = vadd.f32 0.0, %v8040
      %8042 = vmatmul.f32.gmra.mxu0 %v7934
      %v8043 = vpop.f32.mrf.mxu0
      %v8044 = vadd.f32 0.0, %v8043
      %8045 = vmatmul.f32.gmra.mxu0 %v7937
      %v8046 = vpop.f32.mrf.mxu0
      %v8047 = vadd.f32 0.0, %v8046
      %8048 = vmatmul.f32.gmra.mxu0 %v7940
      %v8049 = vpop.f32.mrf.mxu0
      %v8050 = vadd.f32 0.0, %v8049
      %8051 = vmatmul.f32.gmra.mxu0 %v7943
      %v8052 = vpop.f32.mrf.mxu0
      %v8053 = vadd.f32 0.0, %v8052
      %8054 = vmatmul.f32.gmra.mxu0 %v7946
      %v8055 = vpop.f32.mrf.mxu0
      %v8056 = vadd.f32 0.0, %v8055
      %8057 = vmatmul.f32.gmra.mxu0 %v7949
      %v8058 = vpop.f32.mrf.mxu0
      %v8059 = vadd.f32 0.0, %v8058
      %8060 = vmatmul.f32.gmra.mxu0 %v7952
      %v8061 = vpop.f32.mrf.mxu0
      %v8062 = vadd.f32 0.0, %v8061
      %8063 = vmatmul.f32.gmra.mxu0 %v7955
      %v8064 = vpop.f32.mrf.mxu0
      %v8065 = vadd.f32 0.0, %v8064
      %8066 = vmatmul.f32.gmra.mxu0 %v7958
      %v8067 = vpop.f32.mrf.mxu0
      %v8068 = vadd.f32 0.0, %v8067
      %8069 = vmatmul.f32.gmra.mxu0 %v7961
      %v8070 = vpop.f32.mrf.mxu0
      %v8071 = vadd.f32 0.0, %v8070
      %8072 = vmatmul.f32.gmra.mxu0 %v7964
      %v8073 = vpop.f32.mrf.mxu0
      %v8074 = vadd.f32 0.0, %v8073
      %8075 = vmatmul.f32.gmra.mxu0 %v7967
      %v8076 = vpop.f32.mrf.mxu0
      %v8077 = vadd.f32 0.0, %v8076
      %8078 = vmatmul.f32.gmra.mxu0 %v7970
      %v8079 = vpop.f32.mrf.mxu0
      %v8080 = vadd.f32 0.0, %v8079
      %8081 = vmatmul.f32.gmra.mxu0 %v7973
      %v8082 = vpop.f32.mrf.mxu0
      %v8083 = vadd.f32 0.0, %v8082
      %8084 = vmatmul.f32.gmra.mxu0 %v7976
      %v8085 = vpop.f32.mrf.mxu0
      %v8086 = vadd.f32 0.0, %v8085
      %8087 = vmatmul.f32.gmra.mxu0 %v7979
      %v8088 = vpop.f32.mrf.mxu0
      %v8089 = vadd.f32 0.0, %v8088
      %8090 = vmatmul.f32.gmra.mxu0 %v7982
      %v8091 = vpop.f32.mrf.mxu0
      %v8092 = vadd.f32 0.0, %v8091
      %8093 = vmatmul.f32.gmra.mxu0 %v7985
      %v8094 = vpop.f32.mrf.mxu0
      %v8095 = vadd.f32 0.0, %v8094
      %8096 = vmatmul.f32.gmra.mxu0 %v7988
      %v8097 = vpop.f32.mrf.mxu0
      %v8098 = vadd.f32 0.0, %v8097
      %8099 = vmatmul.f32.gmra.mxu0 %v7991
      %v8100 = vpop.f32.mrf.mxu0
      %v8101 = vadd.f32 0.0, %v8100
      %8102 = vmatmul.f32.gmra.mxu0 %v7994
      %v8103 = vpop.f32.mrf.mxu0
      %v8104 = vadd.f32 0.0, %v8103
      %8105 = vmatmul.f32.gmra.mxu0 %v7997
      %v8106 = vpop.f32.mrf.mxu0
      %v8107 = vadd.f32 0.0, %v8106
      %8108 = vmatmul.f32.gmra.mxu0 %v8000
      %v8109 = vpop.f32.mrf.mxu0
      %v8110 = vadd.f32 0.0, %v8109
      %8111 = vmatmul.f32.gmra.mxu0 %v8003
      %v8112 = vpop.f32.mrf.mxu0
      %v8113 = vadd.f32 0.0, %v8112
      %8114 = vmatmul.f32.gmra.mxu0 %v8006
      %v8115 = vpop.f32.mrf.mxu0
      %v8116 = vadd.f32 0.0, %v8115
      %8117 = vmatmul.f32.gmra.mxu0 %v8009
      %v8118 = vpop.f32.mrf.mxu0
      %v8119 = vadd.f32 0.0, %v8118
      %8120 = vmatmul.f32.gmra.mxu0 %v8012
      %v8121 = vpop.f32.mrf.mxu0
      %v8122 = vadd.f32 0.0, %v8121
      %8123 = vmatmul.f32.gmra.mxu0 %v8015
      %v8124 = vpop.f32.mrf.mxu0
      %v8125 = vadd.f32 0.0, %v8124
      %8126 = vdwg.mxu0
      %v8127 = vadd.f32 %v7857, %v8035
      %v8128 = vadd.f32 %v7858, %v8038
      %v8129 = vadd.f32 %v7859, %v8041
      %v8130 = vadd.f32 %v7860, %v8044
      %v8131 = vadd.f32 %v7861, %v8047
      %v8132 = vadd.f32 %v7862, %v8050
      %v8133 = vadd.f32 %v7863, %v8053
      %v8134 = vadd.f32 %v7864, %v8056
      %v8135 = vadd.f32 %v7865, %v8059
      %v8136 = vadd.f32 %v7866, %v8062
      %v8137 = vadd.f32 %v7867, %v8065
      %v8138 = vadd.f32 %v7868, %v8068
      %v8139 = vadd.f32 %v7869, %v8071
      %v8140 = vadd.f32 %v7870, %v8074
      %v8141 = vadd.f32 %v7871, %v8077
      %v8142 = vadd.f32 %v7872, %v8080
      %v8143 = vadd.f32 %v7873, %v8083
      %v8144 = vadd.f32 %v7874, %v8086
      %v8145 = vadd.f32 %v7875, %v8089
      %v8146 = vadd.f32 %v7876, %v8092
      %v8147 = vadd.f32 %v7877, %v8095
      %v8148 = vadd.f32 %v7878, %v8098
      %v8149 = vadd.f32 %v7879, %v8101
      %v8150 = vadd.f32 %v7880, %v8104
      %v8151 = vadd.f32 %v7881, %v8107
      %v8152 = vadd.f32 %v7882, %v8110
      %v8153 = vadd.f32 %v7883, %v8113
      %v8154 = vadd.f32 %v7884, %v8116
      %v8155 = vadd.f32 %v7885, %v8119
      %v8156 = vadd.f32 %v7886, %v8122
      %v8157 = vadd.f32 %v7887, %v8125
      %v8158 = vld [vmem:[#allocation3 + $0x4a] sm:$0xff]
      %v8159 = vld [vmem:[#allocation3 + $0x52] sm:$0xff]
      %v8160 = vld [vmem:[#allocation3 + $0x5a] sm:$0xff]
      %v8161 = vld [vmem:[#allocation3 + $0x62] sm:$0xff]
      %v8162 = vld [vmem:[#allocation3 + $0x6a] sm:$0xff]
      %v8163 = vld [vmem:[#allocation3 + $0x72] sm:$0xff]
      %v8164 = vld [vmem:[#allocation3 + $0x7a] sm:$0xff]
      %v8165 = vld [vmem:[#allocation3 + $0x82] sm:$0xff]
      %v8166 = vld [vmem:[#allocation3 + $0x8a] sm:$0xff]
      %v8167 = vld [vmem:[#allocation3 + $0x92] sm:$0xff]
      %v8168 = vld [vmem:[#allocation3 + $0x9a] sm:$0xff]
      %v8169 = vld [vmem:[#allocation3 + $0xa2] sm:$0xff]
      %v8170 = vld [vmem:[#allocation3 + $0xaa] sm:$0xff]
      %v8171 = vld [vmem:[#allocation3 + $0xb2] sm:$0xff]
      %v8172 = vld [vmem:[#allocation3 + $0xba] sm:$0xff]
      %v8173 = vld [vmem:[#allocation3 + $0xc2] sm:$0xff]
      %v8174 = vld [vmem:[#allocation3 + $0xca] sm:$0xff]
      %v8175 = vld [vmem:[#allocation3 + $0xd2] sm:$0xff]
      %v8176 = vld [vmem:[#allocation3 + $0xda] sm:$0xff]
      %v8177 = vld [vmem:[#allocation3 + $0xe2] sm:$0xff]
      %v8178 = vld [vmem:[#allocation3 + $0xea] sm:$0xff]
      %v8179 = vld [vmem:[#allocation3 + $0xf2] sm:$0xff]
      %v8180 = vld [vmem:[#allocation3 + $0xfa] sm:$0xff]
      %v8181 = vld [vmem:[#allocation3 + $0x102] sm:$0xff]
      %v8182 = vld [vmem:[#allocation3 + $0x10a] sm:$0xff]
      %v8183 = vld [vmem:[#allocation3 + $0x112] sm:$0xff]
      %v8184 = vld [vmem:[#allocation3 + $0x11a] sm:$0xff]
      %v8185 = vld [vmem:[#allocation3 + $0x122] sm:$0xff]
      %v8186 = vld [vmem:[#allocation3 + $0x12a] sm:$0xff]
      %v8187 = vld [vmem:[#allocation3 + $0x132] sm:$0xff]
      %v8188 = vld [vmem:[#allocation3 + $0x13a] sm:$0xff]
      %s8189 = scalar_lea.vmem %s4, 704
      %v8190 = vld [vmem:[%s8189] sm:$0xff]
      %v8191 = vld [vmem:[%s8189 + $0x8] sm:$0xff]
      %v8192 = vld [vmem:[%s8189 + $0x10] sm:$0xff]
      %v8193 = vld [vmem:[%s8189 + $0x18] sm:$0xff]
      %v8195 = vsel %vm1295, %v8158, 0
      %v8198 = vsel %vm1295, %v8159, 0
      %v8201 = vsel %vm1295, %v8160, 0
      %v8204 = vsel %vm1295, %v8161, 0
      %v8207 = vsel %vm1295, %v8162, 0
      %v8210 = vsel %vm1295, %v8163, 0
      %v8213 = vsel %vm1295, %v8164, 0
      %v8216 = vsel %vm1295, %v8165, 0
      %v8219 = vsel %vm1295, %v8166, 0
      %v8222 = vsel %vm1295, %v8167, 0
      %v8225 = vsel %vm1295, %v8168, 0
      %v8228 = vsel %vm1295, %v8169, 0
      %v8231 = vsel %vm1295, %v8170, 0
      %v8234 = vsel %vm1295, %v8171, 0
      %v8237 = vsel %vm1295, %v8172, 0
      %v8240 = vsel %vm1295, %v8173, 0
      %v8243 = vsel %vm1295, %v8174, 0
      %v8246 = vsel %vm1295, %v8175, 0
      %v8249 = vsel %vm1295, %v8176, 0
      %v8252 = vsel %vm1295, %v8177, 0
      %v8255 = vsel %vm1295, %v8178, 0
      %v8258 = vsel %vm1295, %v8179, 0
      %v8261 = vsel %vm1295, %v8180, 0
      %v8264 = vsel %vm1295, %v8181, 0
      %v8267 = vsel %vm1295, %v8182, 0
      %v8270 = vsel %vm1295, %v8183, 0
      %v8273 = vsel %vm1295, %v8184, 0
      %v8276 = vsel %vm1295, %v8185, 0
      %v8279 = vsel %vm1295, %v8186, 0
      %v8282 = vsel %vm1295, %v8187, 0
      %v8285 = vsel %vm1295, %v8188, 0
      %8287 = vmatpush.msra.mxu0 0.0
      %8288 = vmatpush.msra.mxu0 0.0
      %8289 = vmatpush.msra.mxu0 0.0
      %8290 = vmatpush.msra.mxu0 0.0
      %8291 = vmatpush.msra.mxu0 0.0
      %8292 = vmatpush.msra.mxu0 0.0
      %8293 = vmatpush.msra.mxu0 0.0
      %8294 = vmatpush.msra.mxu0 0.0
      %8295 = vmatpush.msra.mxu0 0.0
      %8296 = vmatpush.msra.mxu0 0.0
      %8297 = vmatpush.msra.mxu0 0.0
      %8298 = vmatpush.msra.mxu0 0.0
      %8299 = vmatpush.msra.mxu0 %v8193
      %8300 = vmatpush.msra.mxu0 %v8192
      %8301 = vmatpush.msra.mxu0 %v8191
      %8302 = vmatpush.msra.mxu0 %v8190
      %8303 = vmatmul.f32.gmra.mxu0 %v8195
      %v8304 = vpop.f32.mrf.mxu0
      %v8305 = vadd.f32 0.0, %v8304
      %8306 = vmatmul.f32.gmra.mxu0 %v8198
      %v8307 = vpop.f32.mrf.mxu0
      %v8308 = vadd.f32 0.0, %v8307
      %8309 = vmatmul.f32.gmra.mxu0 %v8201
      %v8310 = vpop.f32.mrf.mxu0
      %v8311 = vadd.f32 0.0, %v8310
      %8312 = vmatmul.f32.gmra.mxu0 %v8204
      %v8313 = vpop.f32.mrf.mxu0
      %v8314 = vadd.f32 0.0, %v8313
      %8315 = vmatmul.f32.gmra.mxu0 %v8207
      %v8316 = vpop.f32.mrf.mxu0
      %v8317 = vadd.f32 0.0, %v8316
      %8318 = vmatmul.f32.gmra.mxu0 %v8210
      %v8319 = vpop.f32.mrf.mxu0
      %v8320 = vadd.f32 0.0, %v8319
      %8321 = vmatmul.f32.gmra.mxu0 %v8213
      %v8322 = vpop.f32.mrf.mxu0
      %v8323 = vadd.f32 0.0, %v8322
      %8324 = vmatmul.f32.gmra.mxu0 %v8216
      %v8325 = vpop.f32.mrf.mxu0
      %v8326 = vadd.f32 0.0, %v8325
      %8327 = vmatmul.f32.gmra.mxu0 %v8219
      %v8328 = vpop.f32.mrf.mxu0
      %v8329 = vadd.f32 0.0, %v8328
      %8330 = vmatmul.f32.gmra.mxu0 %v8222
      %v8331 = vpop.f32.mrf.mxu0
      %v8332 = vadd.f32 0.0, %v8331
      %8333 = vmatmul.f32.gmra.mxu0 %v8225
      %v8334 = vpop.f32.mrf.mxu0
      %v8335 = vadd.f32 0.0, %v8334
      %8336 = vmatmul.f32.gmra.mxu0 %v8228
      %v8337 = vpop.f32.mrf.mxu0
      %v8338 = vadd.f32 0.0, %v8337
      %8339 = vmatmul.f32.gmra.mxu0 %v8231
      %v8340 = vpop.f32.mrf.mxu0
      %v8341 = vadd.f32 0.0, %v8340
      %8342 = vmatmul.f32.gmra.mxu0 %v8234
      %v8343 = vpop.f32.mrf.mxu0
      %v8344 = vadd.f32 0.0, %v8343
      %8345 = vmatmul.f32.gmra.mxu0 %v8237
      %v8346 = vpop.f32.mrf.mxu0
      %v8347 = vadd.f32 0.0, %v8346
      %8348 = vmatmul.f32.gmra.mxu0 %v8240
      %v8349 = vpop.f32.mrf.mxu0
      %v8350 = vadd.f32 0.0, %v8349
      %8351 = vmatmul.f32.gmra.mxu0 %v8243
      %v8352 = vpop.f32.mrf.mxu0
      %v8353 = vadd.f32 0.0, %v8352
      %8354 = vmatmul.f32.gmra.mxu0 %v8246
      %v8355 = vpop.f32.mrf.mxu0
      %v8356 = vadd.f32 0.0, %v8355
      %8357 = vmatmul.f32.gmra.mxu0 %v8249
      %v8358 = vpop.f32.mrf.mxu0
      %v8359 = vadd.f32 0.0, %v8358
      %8360 = vmatmul.f32.gmra.mxu0 %v8252
      %v8361 = vpop.f32.mrf.mxu0
      %v8362 = vadd.f32 0.0, %v8361
      %8363 = vmatmul.f32.gmra.mxu0 %v8255
      %v8364 = vpop.f32.mrf.mxu0
      %v8365 = vadd.f32 0.0, %v8364
      %8366 = vmatmul.f32.gmra.mxu0 %v8258
      %v8367 = vpop.f32.mrf.mxu0
      %v8368 = vadd.f32 0.0, %v8367
      %8369 = vmatmul.f32.gmra.mxu0 %v8261
      %v8370 = vpop.f32.mrf.mxu0
      %v8371 = vadd.f32 0.0, %v8370
      %8372 = vmatmul.f32.gmra.mxu0 %v8264
      %v8373 = vpop.f32.mrf.mxu0
      %v8374 = vadd.f32 0.0, %v8373
      %8375 = vmatmul.f32.gmra.mxu0 %v8267
      %v8376 = vpop.f32.mrf.mxu0
      %v8377 = vadd.f32 0.0, %v8376
      %8378 = vmatmul.f32.gmra.mxu0 %v8270
      %v8379 = vpop.f32.mrf.mxu0
      %v8380 = vadd.f32 0.0, %v8379
      %8381 = vmatmul.f32.gmra.mxu0 %v8273
      %v8382 = vpop.f32.mrf.mxu0
      %v8383 = vadd.f32 0.0, %v8382
      %8384 = vmatmul.f32.gmra.mxu0 %v8276
      %v8385 = vpop.f32.mrf.mxu0
      %v8386 = vadd.f32 0.0, %v8385
      %8387 = vmatmul.f32.gmra.mxu0 %v8279
      %v8388 = vpop.f32.mrf.mxu0
      %v8389 = vadd.f32 0.0, %v8388
      %8390 = vmatmul.f32.gmra.mxu0 %v8282
      %v8391 = vpop.f32.mrf.mxu0
      %v8392 = vadd.f32 0.0, %v8391
      %8393 = vmatmul.f32.gmra.mxu0 %v8285
      %v8394 = vpop.f32.mrf.mxu0
      %v8395 = vadd.f32 0.0, %v8394
      %8396 = vdwg.mxu0
      %v8397 = vadd.f32 %v8127, %v8305
      %v8398 = vadd.f32 %v8128, %v8308
      %v8399 = vadd.f32 %v8129, %v8311
      %v8400 = vadd.f32 %v8130, %v8314
      %v8401 = vadd.f32 %v8131, %v8317
      %v8402 = vadd.f32 %v8132, %v8320
      %v8403 = vadd.f32 %v8133, %v8323
      %v8404 = vadd.f32 %v8134, %v8326
      %v8405 = vadd.f32 %v8135, %v8329
      %v8406 = vadd.f32 %v8136, %v8332
      %v8407 = vadd.f32 %v8137, %v8335
      %v8408 = vadd.f32 %v8138, %v8338
      %v8409 = vadd.f32 %v8139, %v8341
      %v8410 = vadd.f32 %v8140, %v8344
      %v8411 = vadd.f32 %v8141, %v8347
      %v8412 = vadd.f32 %v8142, %v8350
      %v8413 = vadd.f32 %v8143, %v8353
      %v8414 = vadd.f32 %v8144, %v8356
      %v8415 = vadd.f32 %v8145, %v8359
      %v8416 = vadd.f32 %v8146, %v8362
      %v8417 = vadd.f32 %v8147, %v8365
      %v8418 = vadd.f32 %v8148, %v8368
      %v8419 = vadd.f32 %v8149, %v8371
      %v8420 = vadd.f32 %v8150, %v8374
      %v8421 = vadd.f32 %v8151, %v8377
      %v8422 = vadd.f32 %v8152, %v8380
      %v8423 = vadd.f32 %v8153, %v8383
      %v8424 = vadd.f32 %v8154, %v8386
      %v8425 = vadd.f32 %v8155, %v8389
      %v8426 = vadd.f32 %v8156, %v8392
      %v8427 = vadd.f32 %v8157, %v8395
      %v8428 = vld [vmem:[#allocation3 + $0x4b] sm:$0xff]
      %v8429 = vld [vmem:[#allocation3 + $0x53] sm:$0xff]
      %v8430 = vld [vmem:[#allocation3 + $0x5b] sm:$0xff]
      %v8431 = vld [vmem:[#allocation3 + $0x63] sm:$0xff]
      %v8432 = vld [vmem:[#allocation3 + $0x6b] sm:$0xff]
      %v8433 = vld [vmem:[#allocation3 + $0x73] sm:$0xff]
      %v8434 = vld [vmem:[#allocation3 + $0x7b] sm:$0xff]
      %v8435 = vld [vmem:[#allocation3 + $0x83] sm:$0xff]
      %v8436 = vld [vmem:[#allocation3 + $0x8b] sm:$0xff]
      %v8437 = vld [vmem:[#allocation3 + $0x93] sm:$0xff]
      %v8438 = vld [vmem:[#allocation3 + $0x9b] sm:$0xff]
      %v8439 = vld [vmem:[#allocation3 + $0xa3] sm:$0xff]
      %v8440 = vld [vmem:[#allocation3 + $0xab] sm:$0xff]
      %v8441 = vld [vmem:[#allocation3 + $0xb3] sm:$0xff]
      %v8442 = vld [vmem:[#allocation3 + $0xbb] sm:$0xff]
      %v8443 = vld [vmem:[#allocation3 + $0xc3] sm:$0xff]
      %v8444 = vld [vmem:[#allocation3 + $0xcb] sm:$0xff]
      %v8445 = vld [vmem:[#allocation3 + $0xd3] sm:$0xff]
      %v8446 = vld [vmem:[#allocation3 + $0xdb] sm:$0xff]
      %v8447 = vld [vmem:[#allocation3 + $0xe3] sm:$0xff]
      %v8448 = vld [vmem:[#allocation3 + $0xeb] sm:$0xff]
      %v8449 = vld [vmem:[#allocation3 + $0xf3] sm:$0xff]
      %v8450 = vld [vmem:[#allocation3 + $0xfb] sm:$0xff]
      %v8451 = vld [vmem:[#allocation3 + $0x103] sm:$0xff]
      %v8452 = vld [vmem:[#allocation3 + $0x10b] sm:$0xff]
      %v8453 = vld [vmem:[#allocation3 + $0x113] sm:$0xff]
      %v8454 = vld [vmem:[#allocation3 + $0x11b] sm:$0xff]
      %v8455 = vld [vmem:[#allocation3 + $0x123] sm:$0xff]
      %v8456 = vld [vmem:[#allocation3 + $0x12b] sm:$0xff]
      %v8457 = vld [vmem:[#allocation3 + $0x133] sm:$0xff]
      %v8458 = vld [vmem:[#allocation3 + $0x13b] sm:$0xff]
      %s8459 = scalar_lea.vmem %s4, 736
      %v8460 = vld [vmem:[%s8459] sm:$0xff]
      %v8461 = vld [vmem:[%s8459 + $0x8] sm:$0xff]
      %v8462 = vld [vmem:[%s8459 + $0x10] sm:$0xff]
      %v8463 = vld [vmem:[%s8459 + $0x18] sm:$0xff]
      %v8465 = vsel %vm1295, %v8428, 0
      %v8468 = vsel %vm1295, %v8429, 0
      %v8471 = vsel %vm1295, %v8430, 0
      %v8474 = vsel %vm1295, %v8431, 0
      %v8477 = vsel %vm1295, %v8432, 0
      %v8480 = vsel %vm1295, %v8433, 0
      %v8483 = vsel %vm1295, %v8434, 0
      %v8486 = vsel %vm1295, %v8435, 0
      %v8489 = vsel %vm1295, %v8436, 0
      %v8492 = vsel %vm1295, %v8437, 0
      %v8495 = vsel %vm1295, %v8438, 0
      %v8498 = vsel %vm1295, %v8439, 0
      %v8501 = vsel %vm1295, %v8440, 0
      %v8504 = vsel %vm1295, %v8441, 0
      %v8507 = vsel %vm1295, %v8442, 0
      %v8510 = vsel %vm1295, %v8443, 0
      %v8513 = vsel %vm1295, %v8444, 0
      %v8516 = vsel %vm1295, %v8445, 0
      %v8519 = vsel %vm1295, %v8446, 0
      %v8522 = vsel %vm1295, %v8447, 0
      %v8525 = vsel %vm1295, %v8448, 0
      %v8528 = vsel %vm1295, %v8449, 0
      %v8531 = vsel %vm1295, %v8450, 0
      %v8534 = vsel %vm1295, %v8451, 0
      %v8537 = vsel %vm1295, %v8452, 0
      %v8540 = vsel %vm1295, %v8453, 0
      %v8543 = vsel %vm1295, %v8454, 0
      %v8546 = vsel %vm1295, %v8455, 0
      %v8549 = vsel %vm1295, %v8456, 0
      %v8552 = vsel %vm1295, %v8457, 0
      %v8555 = vsel %vm1295, %v8458, 0
      %8557 = vmatpush.msra.mxu0 0.0
      %8558 = vmatpush.msra.mxu0 0.0
      %8559 = vmatpush.msra.mxu0 0.0
      %8560 = vmatpush.msra.mxu0 0.0
      %8561 = vmatpush.msra.mxu0 0.0
      %8562 = vmatpush.msra.mxu0 0.0
      %8563 = vmatpush.msra.mxu0 0.0
      %8564 = vmatpush.msra.mxu0 0.0
      %8565 = vmatpush.msra.mxu0 0.0
      %8566 = vmatpush.msra.mxu0 0.0
      %8567 = vmatpush.msra.mxu0 0.0
      %8568 = vmatpush.msra.mxu0 0.0
      %8569 = vmatpush.msra.mxu0 %v8463
      %8570 = vmatpush.msra.mxu0 %v8462
      %8571 = vmatpush.msra.mxu0 %v8461
      %8572 = vmatpush.msra.mxu0 %v8460
      %8573 = vmatmul.f32.gmra.mxu0 %v8465
      %v8574 = vpop.f32.mrf.mxu0
      %v8575 = vadd.f32 0.0, %v8574
      %8576 = vmatmul.f32.gmra.mxu0 %v8468
      %v8577 = vpop.f32.mrf.mxu0
      %v8578 = vadd.f32 0.0, %v8577
      %8579 = vmatmul.f32.gmra.mxu0 %v8471
      %v8580 = vpop.f32.mrf.mxu0
      %v8581 = vadd.f32 0.0, %v8580
      %8582 = vmatmul.f32.gmra.mxu0 %v8474
      %v8583 = vpop.f32.mrf.mxu0
      %v8584 = vadd.f32 0.0, %v8583
      %8585 = vmatmul.f32.gmra.mxu0 %v8477
      %v8586 = vpop.f32.mrf.mxu0
      %v8587 = vadd.f32 0.0, %v8586
      %8588 = vmatmul.f32.gmra.mxu0 %v8480
      %v8589 = vpop.f32.mrf.mxu0
      %v8590 = vadd.f32 0.0, %v8589
      %8591 = vmatmul.f32.gmra.mxu0 %v8483
      %v8592 = vpop.f32.mrf.mxu0
      %v8593 = vadd.f32 0.0, %v8592
      %8594 = vmatmul.f32.gmra.mxu0 %v8486
      %v8595 = vpop.f32.mrf.mxu0
      %v8596 = vadd.f32 0.0, %v8595
      %8597 = vmatmul.f32.gmra.mxu0 %v8489
      %v8598 = vpop.f32.mrf.mxu0
      %v8599 = vadd.f32 0.0, %v8598
      %8600 = vmatmul.f32.gmra.mxu0 %v8492
      %v8601 = vpop.f32.mrf.mxu0
      %v8602 = vadd.f32 0.0, %v8601
      %8603 = vmatmul.f32.gmra.mxu0 %v8495
      %v8604 = vpop.f32.mrf.mxu0
      %v8605 = vadd.f32 0.0, %v8604
      %8606 = vmatmul.f32.gmra.mxu0 %v8498
      %v8607 = vpop.f32.mrf.mxu0
      %v8608 = vadd.f32 0.0, %v8607
      %8609 = vmatmul.f32.gmra.mxu0 %v8501
      %v8610 = vpop.f32.mrf.mxu0
      %v8611 = vadd.f32 0.0, %v8610
      %8612 = vmatmul.f32.gmra.mxu0 %v8504
      %v8613 = vpop.f32.mrf.mxu0
      %v8614 = vadd.f32 0.0, %v8613
      %8615 = vmatmul.f32.gmra.mxu0 %v8507
      %v8616 = vpop.f32.mrf.mxu0
      %v8617 = vadd.f32 0.0, %v8616
      %8618 = vmatmul.f32.gmra.mxu0 %v8510
      %v8619 = vpop.f32.mrf.mxu0
      %v8620 = vadd.f32 0.0, %v8619
      %8621 = vmatmul.f32.gmra.mxu0 %v8513
      %v8622 = vpop.f32.mrf.mxu0
      %v8623 = vadd.f32 0.0, %v8622
      %8624 = vmatmul.f32.gmra.mxu0 %v8516
      %v8625 = vpop.f32.mrf.mxu0
      %v8626 = vadd.f32 0.0, %v8625
      %8627 = vmatmul.f32.gmra.mxu0 %v8519
      %v8628 = vpop.f32.mrf.mxu0
      %v8629 = vadd.f32 0.0, %v8628
      %8630 = vmatmul.f32.gmra.mxu0 %v8522
      %v8631 = vpop.f32.mrf.mxu0
      %v8632 = vadd.f32 0.0, %v8631
      %8633 = vmatmul.f32.gmra.mxu0 %v8525
      %v8634 = vpop.f32.mrf.mxu0
      %v8635 = vadd.f32 0.0, %v8634
      %8636 = vmatmul.f32.gmra.mxu0 %v8528
      %v8637 = vpop.f32.mrf.mxu0
      %v8638 = vadd.f32 0.0, %v8637
      %8639 = vmatmul.f32.gmra.mxu0 %v8531
      %v8640 = vpop.f32.mrf.mxu0
      %v8641 = vadd.f32 0.0, %v8640
      %8642 = vmatmul.f32.gmra.mxu0 %v8534
      %v8643 = vpop.f32.mrf.mxu0
      %v8644 = vadd.f32 0.0, %v8643
      %8645 = vmatmul.f32.gmra.mxu0 %v8537
      %v8646 = vpop.f32.mrf.mxu0
      %v8647 = vadd.f32 0.0, %v8646
      %8648 = vmatmul.f32.gmra.mxu0 %v8540
      %v8649 = vpop.f32.mrf.mxu0
      %v8650 = vadd.f32 0.0, %v8649
      %8651 = vmatmul.f32.gmra.mxu0 %v8543
      %v8652 = vpop.f32.mrf.mxu0
      %v8653 = vadd.f32 0.0, %v8652
      %8654 = vmatmul.f32.gmra.mxu0 %v8546
      %v8655 = vpop.f32.mrf.mxu0
      %v8656 = vadd.f32 0.0, %v8655
      %8657 = vmatmul.f32.gmra.mxu0 %v8549
      %v8658 = vpop.f32.mrf.mxu0
      %v8659 = vadd.f32 0.0, %v8658
      %8660 = vmatmul.f32.gmra.mxu0 %v8552
      %v8661 = vpop.f32.mrf.mxu0
      %v8662 = vadd.f32 0.0, %v8661
      %8663 = vmatmul.f32.gmra.mxu0 %v8555
      %v8664 = vpop.f32.mrf.mxu0
      %v8665 = vadd.f32 0.0, %v8664
      %8666 = vdwg.mxu0
      %v8667 = vadd.f32 %v8397, %v8575
      %v8668 = vadd.f32 %v8398, %v8578
      %v8669 = vadd.f32 %v8399, %v8581
      %v8670 = vadd.f32 %v8400, %v8584
      %v8671 = vadd.f32 %v8401, %v8587
      %v8672 = vadd.f32 %v8402, %v8590
      %v8673 = vadd.f32 %v8403, %v8593
      %v8674 = vadd.f32 %v8404, %v8596
      %v8675 = vadd.f32 %v8405, %v8599
      %v8676 = vadd.f32 %v8406, %v8602
      %v8677 = vadd.f32 %v8407, %v8605
      %v8678 = vadd.f32 %v8408, %v8608
      %v8679 = vadd.f32 %v8409, %v8611
      %v8680 = vadd.f32 %v8410, %v8614
      %v8681 = vadd.f32 %v8411, %v8617
      %v8682 = vadd.f32 %v8412, %v8620
      %v8683 = vadd.f32 %v8413, %v8623
      %v8684 = vadd.f32 %v8414, %v8626
      %v8685 = vadd.f32 %v8415, %v8629
      %v8686 = vadd.f32 %v8416, %v8632
      %v8687 = vadd.f32 %v8417, %v8635
      %v8688 = vadd.f32 %v8418, %v8638
      %v8689 = vadd.f32 %v8419, %v8641
      %v8690 = vadd.f32 %v8420, %v8644
      %v8691 = vadd.f32 %v8421, %v8647
      %v8692 = vadd.f32 %v8422, %v8650
      %v8693 = vadd.f32 %v8423, %v8653
      %v8694 = vadd.f32 %v8424, %v8656
      %v8695 = vadd.f32 %v8425, %v8659
      %v8696 = vadd.f32 %v8426, %v8662
      %v8697 = vadd.f32 %v8427, %v8665
      %v8698 = vld [vmem:[#allocation3 + $0x4c] sm:$0xff]
      %v8699 = vld [vmem:[#allocation3 + $0x54] sm:$0xff]
      %v8700 = vld [vmem:[#allocation3 + $0x5c] sm:$0xff]
      %v8701 = vld [vmem:[#allocation3 + $0x64] sm:$0xff]
      %v8702 = vld [vmem:[#allocation3 + $0x6c] sm:$0xff]
      %v8703 = vld [vmem:[#allocation3 + $0x74] sm:$0xff]
      %v8704 = vld [vmem:[#allocation3 + $0x7c] sm:$0xff]
      %v8705 = vld [vmem:[#allocation3 + $0x84] sm:$0xff]
      %v8706 = vld [vmem:[#allocation3 + $0x8c] sm:$0xff]
      %v8707 = vld [vmem:[#allocation3 + $0x94] sm:$0xff]
      %v8708 = vld [vmem:[#allocation3 + $0x9c] sm:$0xff]
      %v8709 = vld [vmem:[#allocation3 + $0xa4] sm:$0xff]
      %v8710 = vld [vmem:[#allocation3 + $0xac] sm:$0xff]
      %v8711 = vld [vmem:[#allocation3 + $0xb4] sm:$0xff]
      %v8712 = vld [vmem:[#allocation3 + $0xbc] sm:$0xff]
      %v8713 = vld [vmem:[#allocation3 + $0xc4] sm:$0xff]
      %v8714 = vld [vmem:[#allocation3 + $0xcc] sm:$0xff]
      %v8715 = vld [vmem:[#allocation3 + $0xd4] sm:$0xff]
      %v8716 = vld [vmem:[#allocation3 + $0xdc] sm:$0xff]
      %v8717 = vld [vmem:[#allocation3 + $0xe4] sm:$0xff]
      %v8718 = vld [vmem:[#allocation3 + $0xec] sm:$0xff]
      %v8719 = vld [vmem:[#allocation3 + $0xf4] sm:$0xff]
      %v8720 = vld [vmem:[#allocation3 + $0xfc] sm:$0xff]
      %v8721 = vld [vmem:[#allocation3 + $0x104] sm:$0xff]
      %v8722 = vld [vmem:[#allocation3 + $0x10c] sm:$0xff]
      %v8723 = vld [vmem:[#allocation3 + $0x114] sm:$0xff]
      %v8724 = vld [vmem:[#allocation3 + $0x11c] sm:$0xff]
      %v8725 = vld [vmem:[#allocation3 + $0x124] sm:$0xff]
      %v8726 = vld [vmem:[#allocation3 + $0x12c] sm:$0xff]
      %v8727 = vld [vmem:[#allocation3 + $0x134] sm:$0xff]
      %v8728 = vld [vmem:[#allocation3 + $0x13c] sm:$0xff]
      %s8729 = scalar_lea.vmem %s4, 768
      %v8730 = vld [vmem:[%s8729] sm:$0xff]
      %v8731 = vld [vmem:[%s8729 + $0x8] sm:$0xff]
      %v8732 = vld [vmem:[%s8729 + $0x10] sm:$0xff]
      %v8733 = vld [vmem:[%s8729 + $0x18] sm:$0xff]
      %v8735 = vsel %vm1295, %v8698, 0
      %v8738 = vsel %vm1295, %v8699, 0
      %v8741 = vsel %vm1295, %v8700, 0
      %v8744 = vsel %vm1295, %v8701, 0
      %v8747 = vsel %vm1295, %v8702, 0
      %v8750 = vsel %vm1295, %v8703, 0
      %v8753 = vsel %vm1295, %v8704, 0
      %v8756 = vsel %vm1295, %v8705, 0
      %v8759 = vsel %vm1295, %v8706, 0
      %v8762 = vsel %vm1295, %v8707, 0
      %v8765 = vsel %vm1295, %v8708, 0
      %v8768 = vsel %vm1295, %v8709, 0
      %v8771 = vsel %vm1295, %v8710, 0
      %v8774 = vsel %vm1295, %v8711, 0
      %v8777 = vsel %vm1295, %v8712, 0
      %v8780 = vsel %vm1295, %v8713, 0
      %v8783 = vsel %vm1295, %v8714, 0
      %v8786 = vsel %vm1295, %v8715, 0
      %v8789 = vsel %vm1295, %v8716, 0
      %v8792 = vsel %vm1295, %v8717, 0
      %v8795 = vsel %vm1295, %v8718, 0
      %v8798 = vsel %vm1295, %v8719, 0
      %v8801 = vsel %vm1295, %v8720, 0
      %v8804 = vsel %vm1295, %v8721, 0
      %v8807 = vsel %vm1295, %v8722, 0
      %v8810 = vsel %vm1295, %v8723, 0
      %v8813 = vsel %vm1295, %v8724, 0
      %v8816 = vsel %vm1295, %v8725, 0
      %v8819 = vsel %vm1295, %v8726, 0
      %v8822 = vsel %vm1295, %v8727, 0
      %v8825 = vsel %vm1295, %v8728, 0
      %8827 = vmatpush.msra.mxu0 0.0
      %8828 = vmatpush.msra.mxu0 0.0
      %8829 = vmatpush.msra.mxu0 0.0
      %8830 = vmatpush.msra.mxu0 0.0
      %8831 = vmatpush.msra.mxu0 0.0
      %8832 = vmatpush.msra.mxu0 0.0
      %8833 = vmatpush.msra.mxu0 0.0
      %8834 = vmatpush.msra.mxu0 0.0
      %8835 = vmatpush.msra.mxu0 0.0
      %8836 = vmatpush.msra.mxu0 0.0
      %8837 = vmatpush.msra.mxu0 0.0
      %8838 = vmatpush.msra.mxu0 0.0
      %8839 = vmatpush.msra.mxu0 %v8733
      %8840 = vmatpush.msra.mxu0 %v8732
      %8841 = vmatpush.msra.mxu0 %v8731
      %8842 = vmatpush.msra.mxu0 %v8730
      %8843 = vmatmul.f32.gmra.mxu0 %v8735
      %v8844 = vpop.f32.mrf.mxu0
      %v8845 = vadd.f32 0.0, %v8844
      %8846 = vmatmul.f32.gmra.mxu0 %v8738
      %v8847 = vpop.f32.mrf.mxu0
      %v8848 = vadd.f32 0.0, %v8847
      %8849 = vmatmul.f32.gmra.mxu0 %v8741
      %v8850 = vpop.f32.mrf.mxu0
      %v8851 = vadd.f32 0.0, %v8850
      %8852 = vmatmul.f32.gmra.mxu0 %v8744
      %v8853 = vpop.f32.mrf.mxu0
      %v8854 = vadd.f32 0.0, %v8853
      %8855 = vmatmul.f32.gmra.mxu0 %v8747
      %v8856 = vpop.f32.mrf.mxu0
      %v8857 = vadd.f32 0.0, %v8856
      %8858 = vmatmul.f32.gmra.mxu0 %v8750
      %v8859 = vpop.f32.mrf.mxu0
      %v8860 = vadd.f32 0.0, %v8859
      %8861 = vmatmul.f32.gmra.mxu0 %v8753
      %v8862 = vpop.f32.mrf.mxu0
      %v8863 = vadd.f32 0.0, %v8862
      %8864 = vmatmul.f32.gmra.mxu0 %v8756
      %v8865 = vpop.f32.mrf.mxu0
      %v8866 = vadd.f32 0.0, %v8865
      %8867 = vmatmul.f32.gmra.mxu0 %v8759
      %v8868 = vpop.f32.mrf.mxu0
      %v8869 = vadd.f32 0.0, %v8868
      %8870 = vmatmul.f32.gmra.mxu0 %v8762
      %v8871 = vpop.f32.mrf.mxu0
      %v8872 = vadd.f32 0.0, %v8871
      %8873 = vmatmul.f32.gmra.mxu0 %v8765
      %v8874 = vpop.f32.mrf.mxu0
      %v8875 = vadd.f32 0.0, %v8874
      %8876 = vmatmul.f32.gmra.mxu0 %v8768
      %v8877 = vpop.f32.mrf.mxu0
      %v8878 = vadd.f32 0.0, %v8877
      %8879 = vmatmul.f32.gmra.mxu0 %v8771
      %v8880 = vpop.f32.mrf.mxu0
      %v8881 = vadd.f32 0.0, %v8880
      %8882 = vmatmul.f32.gmra.mxu0 %v8774
      %v8883 = vpop.f32.mrf.mxu0
      %v8884 = vadd.f32 0.0, %v8883
      %8885 = vmatmul.f32.gmra.mxu0 %v8777
      %v8886 = vpop.f32.mrf.mxu0
      %v8887 = vadd.f32 0.0, %v8886
      %8888 = vmatmul.f32.gmra.mxu0 %v8780
      %v8889 = vpop.f32.mrf.mxu0
      %v8890 = vadd.f32 0.0, %v8889
      %8891 = vmatmul.f32.gmra.mxu0 %v8783
      %v8892 = vpop.f32.mrf.mxu0
      %v8893 = vadd.f32 0.0, %v8892
      %8894 = vmatmul.f32.gmra.mxu0 %v8786
      %v8895 = vpop.f32.mrf.mxu0
      %v8896 = vadd.f32 0.0, %v8895
      %8897 = vmatmul.f32.gmra.mxu0 %v8789
      %v8898 = vpop.f32.mrf.mxu0
      %v8899 = vadd.f32 0.0, %v8898
      %8900 = vmatmul.f32.gmra.mxu0 %v8792
      %v8901 = vpop.f32.mrf.mxu0
      %v8902 = vadd.f32 0.0, %v8901
      %8903 = vmatmul.f32.gmra.mxu0 %v8795
      %v8904 = vpop.f32.mrf.mxu0
      %v8905 = vadd.f32 0.0, %v8904
      %8906 = vmatmul.f32.gmra.mxu0 %v8798
      %v8907 = vpop.f32.mrf.mxu0
      %v8908 = vadd.f32 0.0, %v8907
      %8909 = vmatmul.f32.gmra.mxu0 %v8801
      %v8910 = vpop.f32.mrf.mxu0
      %v8911 = vadd.f32 0.0, %v8910
      %8912 = vmatmul.f32.gmra.mxu0 %v8804
      %v8913 = vpop.f32.mrf.mxu0
      %v8914 = vadd.f32 0.0, %v8913
      %8915 = vmatmul.f32.gmra.mxu0 %v8807
      %v8916 = vpop.f32.mrf.mxu0
      %v8917 = vadd.f32 0.0, %v8916
      %8918 = vmatmul.f32.gmra.mxu0 %v8810
      %v8919 = vpop.f32.mrf.mxu0
      %v8920 = vadd.f32 0.0, %v8919
      %8921 = vmatmul.f32.gmra.mxu0 %v8813
      %v8922 = vpop.f32.mrf.mxu0
      %v8923 = vadd.f32 0.0, %v8922
      %8924 = vmatmul.f32.gmra.mxu0 %v8816
      %v8925 = vpop.f32.mrf.mxu0
      %v8926 = vadd.f32 0.0, %v8925
      %8927 = vmatmul.f32.gmra.mxu0 %v8819
      %v8928 = vpop.f32.mrf.mxu0
      %v8929 = vadd.f32 0.0, %v8928
      %8930 = vmatmul.f32.gmra.mxu0 %v8822
      %v8931 = vpop.f32.mrf.mxu0
      %v8932 = vadd.f32 0.0, %v8931
      %8933 = vmatmul.f32.gmra.mxu0 %v8825
      %v8934 = vpop.f32.mrf.mxu0
      %v8935 = vadd.f32 0.0, %v8934
      %8936 = vdwg.mxu0
      %v8937 = vadd.f32 %v8667, %v8845
      %v8938 = vadd.f32 %v8668, %v8848
      %v8939 = vadd.f32 %v8669, %v8851
      %v8940 = vadd.f32 %v8670, %v8854
      %v8941 = vadd.f32 %v8671, %v8857
      %v8942 = vadd.f32 %v8672, %v8860
      %v8943 = vadd.f32 %v8673, %v8863
      %v8944 = vadd.f32 %v8674, %v8866
      %v8945 = vadd.f32 %v8675, %v8869
      %v8946 = vadd.f32 %v8676, %v8872
      %v8947 = vadd.f32 %v8677, %v8875
      %v8948 = vadd.f32 %v8678, %v8878
      %v8949 = vadd.f32 %v8679, %v8881
      %v8950 = vadd.f32 %v8680, %v8884
      %v8951 = vadd.f32 %v8681, %v8887
      %v8952 = vadd.f32 %v8682, %v8890
      %v8953 = vadd.f32 %v8683, %v8893
      %v8954 = vadd.f32 %v8684, %v8896
      %v8955 = vadd.f32 %v8685, %v8899
      %v8956 = vadd.f32 %v8686, %v8902
      %v8957 = vadd.f32 %v8687, %v8905
      %v8958 = vadd.f32 %v8688, %v8908
      %v8959 = vadd.f32 %v8689, %v8911
      %v8960 = vadd.f32 %v8690, %v8914
      %v8961 = vadd.f32 %v8691, %v8917
      %v8962 = vadd.f32 %v8692, %v8920
      %v8963 = vadd.f32 %v8693, %v8923
      %v8964 = vadd.f32 %v8694, %v8926
      %v8965 = vadd.f32 %v8695, %v8929
      %v8966 = vadd.f32 %v8696, %v8932
      %v8967 = vadd.f32 %v8697, %v8935
      %v8968 = vld [vmem:[%s5] sm:$0x1]
      %v8970 = vperm.slane %v8968, 0
      %v8972 = vmul.f32 %v8937, %v8970
      %v8973 = vmul.f32 %v8938, %v8970
      %v8974 = vmul.f32 %v8939, %v8970
      %v8975 = vmul.f32 %v8940, %v8970
      %v8976 = vmul.f32 %v8941, %v8970
      %v8977 = vmul.f32 %v8942, %v8970
      %v8978 = vmul.f32 %v8943, %v8970
      %v8979 = vmul.f32 %v8944, %v8970
      %v8980 = vmul.f32 %v8945, %v8970
      %v8981 = vmul.f32 %v8946, %v8970
      %v8982 = vmul.f32 %v8947, %v8970
      %v8983 = vmul.f32 %v8948, %v8970
      %v8984 = vmul.f32 %v8949, %v8970
      %v8985 = vmul.f32 %v8950, %v8970
      %v8986 = vmul.f32 %v8951, %v8970
      %v8987 = vmul.f32 %v8952, %v8970
      %v8988 = vmul.f32 %v8953, %v8970
      %v8989 = vmul.f32 %v8954, %v8970
      %v8990 = vmul.f32 %v8955, %v8970
      %v8991 = vmul.f32 %v8956, %v8970
      %v8992 = vmul.f32 %v8957, %v8970
      %v8993 = vmul.f32 %v8958, %v8970
      %v8994 = vmul.f32 %v8959, %v8970
      %v8995 = vmul.f32 %v8960, %v8970
      %v8996 = vmul.f32 %v8961, %v8970
      %v8997 = vmul.f32 %v8962, %v8970
      %v8998 = vmul.f32 %v8963, %v8970
      %v8999 = vmul.f32 %v8964, %v8970
      %v9000 = vmul.f32 %v8965, %v8970
      %v9001 = vmul.f32 %v8966, %v8970
      %v9002 = vmul.f32 %v8967, %v8970
      %v9003 = vld [vmem:[%s6] sm:$0x1]
      %v9005 = vperm.slane %v9003, 0
      %v9007 = vadd.f32 %v8972, %v9005
      %v9008 = vadd.f32 %v8973, %v9005
      %v9009 = vadd.f32 %v8974, %v9005
      %v9010 = vadd.f32 %v8975, %v9005
      %v9011 = vadd.f32 %v8976, %v9005
      %v9012 = vadd.f32 %v8977, %v9005
      %v9013 = vadd.f32 %v8978, %v9005
      %v9014 = vadd.f32 %v8979, %v9005
      %v9015 = vadd.f32 %v8980, %v9005
      %v9016 = vadd.f32 %v8981, %v9005
      %v9017 = vadd.f32 %v8982, %v9005
      %v9018 = vadd.f32 %v8983, %v9005
      %v9019 = vadd.f32 %v8984, %v9005
      %v9020 = vadd.f32 %v8985, %v9005
      %v9021 = vadd.f32 %v8986, %v9005
      %v9022 = vadd.f32 %v8987, %v9005
      %v9023 = vadd.f32 %v8988, %v9005
      %v9024 = vadd.f32 %v8989, %v9005
      %v9025 = vadd.f32 %v8990, %v9005
      %v9026 = vadd.f32 %v8991, %v9005
      %v9027 = vadd.f32 %v8992, %v9005
      %v9028 = vadd.f32 %v8993, %v9005
      %v9029 = vadd.f32 %v8994, %v9005
      %v9030 = vadd.f32 %v8995, %v9005
      %v9031 = vadd.f32 %v8996, %v9005
      %v9032 = vadd.f32 %v8997, %v9005
      %v9033 = vadd.f32 %v8998, %v9005
      %v9034 = vadd.f32 %v8999, %v9005
      %v9035 = vadd.f32 %v9000, %v9005
      %v9036 = vadd.f32 %v9001, %v9005
      %v9037 = vadd.f32 %v9002, %v9005
      %v9038 = vmax.f32 %v9007, 0.0
      %v9039 = vmax.f32 %v9008, 0.0
      %v9040 = vmax.f32 %v9009, 0.0
      %v9041 = vmax.f32 %v9010, 0.0
      %v9042 = vmax.f32 %v9011, 0.0
      %v9043 = vmax.f32 %v9012, 0.0
      %v9044 = vmax.f32 %v9013, 0.0
      %v9045 = vmax.f32 %v9014, 0.0
      %v9046 = vmax.f32 %v9015, 0.0
      %v9047 = vmax.f32 %v9016, 0.0
      %v9048 = vmax.f32 %v9017, 0.0
      %v9049 = vmax.f32 %v9018, 0.0
      %v9050 = vmax.f32 %v9019, 0.0
      %v9051 = vmax.f32 %v9020, 0.0
      %v9052 = vmax.f32 %v9021, 0.0
      %v9053 = vmax.f32 %v9022, 0.0
      %v9054 = vmax.f32 %v9023, 0.0
      %v9055 = vmax.f32 %v9024, 0.0
      %v9056 = vmax.f32 %v9025, 0.0
      %v9057 = vmax.f32 %v9026, 0.0
      %v9058 = vmax.f32 %v9027, 0.0
      %v9059 = vmax.f32 %v9028, 0.0
      %v9060 = vmax.f32 %v9029, 0.0
      %v9061 = vmax.f32 %v9030, 0.0
      %v9062 = vmax.f32 %v9031, 0.0
      %v9063 = vmax.f32 %v9032, 0.0
      %v9064 = vmax.f32 %v9033, 0.0
      %v9065 = vmax.f32 %v9034, 0.0
      %v9066 = vmax.f32 %v9035, 0.0
      %v9067 = vmax.f32 %v9036, 0.0
      %v9068 = vmax.f32 %v9037, 0.0
      %vm9069 = vcmask 523264
      %9070 = vst.msk [vmem:[#allocation4] sm:$0xff] %vm9069, %v9038
      %9071 = vst.msk [vmem:[#allocation4 + $0x8] sm:$0xff] %vm9069, %v9039
      %9072 = vst.msk [vmem:[#allocation4 + $0x10] sm:$0xff] %vm9069, %v9040
      %9073 = vst.msk [vmem:[#allocation4 + $0x18] sm:$0xff] %vm9069, %v9041
      %9074 = vst.msk [vmem:[#allocation4 + $0x20] sm:$0xff] %vm9069, %v9042
      %9075 = vst.msk [vmem:[#allocation4 + $0x28] sm:$0xff] %vm9069, %v9043
      %9076 = vst.msk [vmem:[#allocation4 + $0x30] sm:$0xff] %vm9069, %v9044
      %9077 = vst.msk [vmem:[#allocation4 + $0x38] sm:$0xff] %vm9069, %v9045
      %9078 = vst.msk [vmem:[#allocation4 + $0x40] sm:$0xff] %vm9069, %v9046
      %9079 = vst.msk [vmem:[#allocation4 + $0x48] sm:$0xff] %vm9069, %v9047
      %9080 = vst.msk [vmem:[#allocation4 + $0x50] sm:$0xff] %vm9069, %v9048
      %9081 = vst.msk [vmem:[#allocation4 + $0x58] sm:$0xff] %vm9069, %v9049
      %9082 = vst.msk [vmem:[#allocation4 + $0x60] sm:$0xff] %vm9069, %v9050
      %9083 = vst.msk [vmem:[#allocation4 + $0x68] sm:$0xff] %vm9069, %v9051
      %9084 = vst.msk [vmem:[#allocation4 + $0x70] sm:$0xff] %vm9069, %v9052
      %9085 = vst.msk [vmem:[#allocation4 + $0x78] sm:$0xff] %vm9069, %v9053
      %9086 = vst.msk [vmem:[#allocation4 + $0x80] sm:$0xff] %vm9069, %v9054
      %9087 = vst.msk [vmem:[#allocation4 + $0x88] sm:$0xff] %vm9069, %v9055
      %9088 = vst.msk [vmem:[#allocation4 + $0x90] sm:$0xff] %vm9069, %v9056
      %9089 = vst.msk [vmem:[#allocation4 + $0x98] sm:$0xff] %vm9069, %v9057
      %9090 = vst.msk [vmem:[#allocation4 + $0xa0] sm:$0xff] %vm9069, %v9058
      %9091 = vst.msk [vmem:[#allocation4 + $0xa8] sm:$0xff] %vm9069, %v9059
      %9092 = vst.msk [vmem:[#allocation4 + $0xb0] sm:$0xff] %vm9069, %v9060
      %9093 = vst.msk [vmem:[#allocation4 + $0xb8] sm:$0xff] %vm9069, %v9061
      %9094 = vst.msk [vmem:[#allocation4 + $0xc0] sm:$0xff] %vm9069, %v9062
      %9095 = vst.msk [vmem:[#allocation4 + $0xc8] sm:$0xff] %vm9069, %v9063
      %9096 = vst.msk [vmem:[#allocation4 + $0xd0] sm:$0xff] %vm9069, %v9064
      %9097 = vst.msk [vmem:[#allocation4 + $0xd8] sm:$0xff] %vm9069, %v9065
      %9098 = vst.msk [vmem:[#allocation4 + $0xe0] sm:$0xff] %vm9069, %v9066
      %9099 = vst.msk [vmem:[#allocation4 + $0xe8] sm:$0xff] %vm9069, %v9067
      %9100 = vst.msk [vmem:[#allocation4 + $0xf0] sm:$0xff] %vm9069, %v9068
      %v9101 = vld [vmem:[#allocation4] sm:$0xff]
      %v9102 = vld [vmem:[#allocation4 + $0x8] sm:$0xff]
      %v9103 = vld [vmem:[#allocation4 + $0x10] sm:$0xff]
      %v9104 = vld [vmem:[#allocation4 + $0x18] sm:$0xff]
      %v9105 = vld [vmem:[#allocation4 + $0x20] sm:$0xff]
      %v9106 = vld [vmem:[#allocation4 + $0x28] sm:$0xff]
      %v9107 = vld [vmem:[#allocation4 + $0x30] sm:$0xff]
      %v9108 = vld [vmem:[#allocation4 + $0x38] sm:$0xff]
      %v9109 = vld [vmem:[#allocation4 + $0x40] sm:$0xff]
      %v9110 = vld [vmem:[#allocation4 + $0x48] sm:$0xff]
      %v9111 = vld [vmem:[#allocation4 + $0x50] sm:$0xff]
      %v9112 = vld [vmem:[#allocation4 + $0x58] sm:$0xff]
      %v9113 = vld [vmem:[#allocation4 + $0x60] sm:$0xff]
      %v9114 = vld [vmem:[#allocation4 + $0x68] sm:$0xff]
      %v9115 = vld [vmem:[#allocation4 + $0x70] sm:$0xff]
      %v9116 = vld [vmem:[#allocation4 + $0x78] sm:$0xff]
      %v9117 = vld [vmem:[#allocation4 + $0x80] sm:$0xff]
      %v9118 = vld [vmem:[#allocation4 + $0x88] sm:$0xff]
      %v9119 = vld [vmem:[#allocation4 + $0x90] sm:$0xff]
      %v9120 = vld [vmem:[#allocation4 + $0x98] sm:$0xff]
      %v9121 = vld [vmem:[#allocation4 + $0xa0] sm:$0xff]
      %v9122 = vld [vmem:[#allocation4 + $0xa8] sm:$0xff]
      %v9123 = vld [vmem:[#allocation4 + $0xb0] sm:$0xff]
      %v9124 = vld [vmem:[#allocation4 + $0xb8] sm:$0xff]
      %v9125 = vld [vmem:[#allocation4 + $0xc0] sm:$0xff]
      %v9126 = vld [vmem:[#allocation4 + $0xc8] sm:$0xff]
      %v9127 = vld [vmem:[#allocation4 + $0xd0] sm:$0xff]
      %v9128 = vld [vmem:[#allocation4 + $0xd8] sm:$0xff]
      %v9129 = vld [vmem:[#allocation4 + $0xe0] sm:$0x3f]
      %v9130 = vld [vmem:[#allocation4 + $0x12] sm:$0xff]
      %v9131 = vld [vmem:[#allocation4 + $0x1a] sm:$0xff]
      %v9132 = vld [vmem:[#allocation4 + $0x22] sm:$0xff]
      %v9133 = vld [vmem:[#allocation4 + $0x2a] sm:$0xff]
      %v9134 = vld [vmem:[#allocation4 + $0x32] sm:$0xff]
      %v9135 = vld [vmem:[#allocation4 + $0x3a] sm:$0xff]
      %v9136 = vld [vmem:[#allocation4 + $0x42] sm:$0xff]
      %v9137 = vld [vmem:[#allocation4 + $0x4a] sm:$0xff]
      %v9138 = vld [vmem:[#allocation4 + $0x52] sm:$0xff]
      %v9139 = vld [vmem:[#allocation4 + $0x5a] sm:$0xff]
      %v9140 = vld [vmem:[#allocation4 + $0x62] sm:$0xff]
      %v9141 = vld [vmem:[#allocation4 + $0x6a] sm:$0xff]
      %v9142 = vld [vmem:[#allocation4 + $0x72] sm:$0xff]
      %v9143 = vld [vmem:[#allocation4 + $0x7a] sm:$0xff]
      %v9144 = vld [vmem:[#allocation4 + $0x82] sm:$0xff]
      %v9145 = vld [vmem:[#allocation4 + $0x8a] sm:$0xff]
      %v9146 = vld [vmem:[#allocation4 + $0x92] sm:$0xff]
      %v9147 = vld [vmem:[#allocation4 + $0x9a] sm:$0xff]
      %v9148 = vld [vmem:[#allocation4 + $0xa2] sm:$0xff]
      %v9149 = vld [vmem:[#allocation4 + $0xaa] sm:$0xff]
      %v9150 = vld [vmem:[#allocation4 + $0xb2] sm:$0xff]
      %v9151 = vld [vmem:[#allocation4 + $0xba] sm:$0xff]
      %v9152 = vld [vmem:[#allocation4 + $0xc2] sm:$0xff]
      %v9153 = vld [vmem:[#allocation4 + $0xca] sm:$0xff]
      %v9154 = vld [vmem:[#allocation4 + $0xd2] sm:$0xff]
      %v9155 = vld [vmem:[#allocation4 + $0xda] sm:$0xff]
      %v9156 = vld [vmem:[#allocation4 + $0xe2] sm:$0xff]
      %v9157 = vld [vmem:[#allocation4 + $0xea] sm:$0xff]
      %v9158 = vld [vmem:[#allocation4 + $0xf2] sm:$0x3f]
      %v9159 = vmax.f32 %v9101, %v9130
      %v9160 = vmax.f32 %v9102, %v9131
      %v9161 = vmax.f32 %v9103, %v9132
      %v9162 = vmax.f32 %v9104, %v9133
      %v9163 = vmax.f32 %v9105, %v9134
      %v9164 = vmax.f32 %v9106, %v9135
      %v9165 = vmax.f32 %v9107, %v9136
      %v9166 = vmax.f32 %v9108, %v9137
      %v9167 = vmax.f32 %v9109, %v9138
      %v9168 = vmax.f32 %v9110, %v9139
      %v9169 = vmax.f32 %v9111, %v9140
      %v9170 = vmax.f32 %v9112, %v9141
      %v9171 = vmax.f32 %v9113, %v9142
      %v9172 = vmax.f32 %v9114, %v9143
      %v9173 = vmax.f32 %v9115, %v9144
      %v9174 = vmax.f32 %v9116, %v9145
      %v9175 = vmax.f32 %v9117, %v9146
      %v9176 = vmax.f32 %v9118, %v9147
      %v9177 = vmax.f32 %v9119, %v9148
      %v9178 = vmax.f32 %v9120, %v9149
      %v9179 = vmax.f32 %v9121, %v9150
      %v9180 = vmax.f32 %v9122, %v9151
      %v9181 = vmax.f32 %v9123, %v9152
      %v9182 = vmax.f32 %v9124, %v9153
      %v9183 = vmax.f32 %v9125, %v9154
      %v9184 = vmax.f32 %v9126, %v9155
      %v9185 = vmax.f32 %v9127, %v9156
      %v9186 = vmax.f32 %v9128, %v9157
      %v9187 = vmax.f32 %v9129, %v9158
      %9188 = vst.msk [vmem:[#allocation4] sm:$0xff] %vm9069, %v9159
      %9189 = vst.msk [vmem:[#allocation4 + $0x8] sm:$0xff] %vm9069, %v9160
      %9190 = vst.msk [vmem:[#allocation4 + $0x10] sm:$0xff] %vm9069, %v9161
      %9191 = vst.msk [vmem:[#allocation4 + $0x18] sm:$0xff] %vm9069, %v9162
      %9192 = vst.msk [vmem:[#allocation4 + $0x20] sm:$0xff] %vm9069, %v9163
      %9193 = vst.msk [vmem:[#allocation4 + $0x28] sm:$0xff] %vm9069, %v9164
      %9194 = vst.msk [vmem:[#allocation4 + $0x30] sm:$0xff] %vm9069, %v9165
      %9195 = vst.msk [vmem:[#allocation4 + $0x38] sm:$0xff] %vm9069, %v9166
      %9196 = vst.msk [vmem:[#allocation4 + $0x40] sm:$0xff] %vm9069, %v9167
      %9197 = vst.msk [vmem:[#allocation4 + $0x48] sm:$0xff] %vm9069, %v9168
      %9198 = vst.msk [vmem:[#allocation4 + $0x50] sm:$0xff] %vm9069, %v9169
      %9199 = vst.msk [vmem:[#allocation4 + $0x58] sm:$0xff] %vm9069, %v9170
      %9200 = vst.msk [vmem:[#allocation4 + $0x60] sm:$0xff] %vm9069, %v9171
      %9201 = vst.msk [vmem:[#allocation4 + $0x68] sm:$0xff] %vm9069, %v9172
      %9202 = vst.msk [vmem:[#allocation4 + $0x70] sm:$0xff] %vm9069, %v9173
      %9203 = vst.msk [vmem:[#allocation4 + $0x78] sm:$0xff] %vm9069, %v9174
      %9204 = vst.msk [vmem:[#allocation4 + $0x80] sm:$0xff] %vm9069, %v9175
      %9205 = vst.msk [vmem:[#allocation4 + $0x88] sm:$0xff] %vm9069, %v9176
      %9206 = vst.msk [vmem:[#allocation4 + $0x90] sm:$0xff] %vm9069, %v9177
      %9207 = vst.msk [vmem:[#allocation4 + $0x98] sm:$0xff] %vm9069, %v9178
      %9208 = vst.msk [vmem:[#allocation4 + $0xa0] sm:$0xff] %vm9069, %v9179
      %9209 = vst.msk [vmem:[#allocation4 + $0xa8] sm:$0xff] %vm9069, %v9180
      %9210 = vst.msk [vmem:[#allocation4 + $0xb0] sm:$0xff] %vm9069, %v9181
      %9211 = vst.msk [vmem:[#allocation4 + $0xb8] sm:$0xff] %vm9069, %v9182
      %9212 = vst.msk [vmem:[#allocation4 + $0xc0] sm:$0xff] %vm9069, %v9183
      %9213 = vst.msk [vmem:[#allocation4 + $0xc8] sm:$0xff] %vm9069, %v9184
      %9214 = vst.msk [vmem:[#allocation4 + $0xd0] sm:$0xff] %vm9069, %v9185
      %9215 = vst.msk [vmem:[#allocation4 + $0xd8] sm:$0xff] %vm9069, %v9186
      %vm9216 = vcmask 521216
      %9217 = vst.msk [vmem:[#allocation4 + $0xe0] sm:$0x3f] %vm9216, %v9187
      %v9218 = vld [vmem:[#allocation4] sm:$0xff]
      %v9219 = vld [vmem:[#allocation4 + $0x8] sm:$0xff]
      %v9220 = vld [vmem:[#allocation4 + $0x10] sm:$0xff]
      %v9221 = vld [vmem:[#allocation4 + $0x18] sm:$0xff]
      %v9222 = vld [vmem:[#allocation4 + $0x20] sm:$0xff]
      %v9223 = vld [vmem:[#allocation4 + $0x28] sm:$0xff]
      %v9224 = vld [vmem:[#allocation4 + $0x30] sm:$0xff]
      %v9225 = vld [vmem:[#allocation4 + $0x38] sm:$0xff]
      %v9226 = vld [vmem:[#allocation4 + $0x40] sm:$0xff]
      %v9227 = vld [vmem:[#allocation4 + $0x48] sm:$0xff]
      %v9228 = vld [vmem:[#allocation4 + $0x50] sm:$0xff]
      %v9229 = vld [vmem:[#allocation4 + $0x58] sm:$0xff]
      %v9230 = vld [vmem:[#allocation4 + $0x60] sm:$0xff]
      %v9231 = vld [vmem:[#allocation4 + $0x68] sm:$0xff]
      %v9232 = vld [vmem:[#allocation4 + $0x70] sm:$0xff]
      %v9233 = vld [vmem:[#allocation4 + $0x78] sm:$0xff]
      %v9234 = vld [vmem:[#allocation4 + $0x80] sm:$0xff]
      %v9235 = vld [vmem:[#allocation4 + $0x88] sm:$0xff]
      %v9236 = vld [vmem:[#allocation4 + $0x90] sm:$0xff]
      %v9237 = vld [vmem:[#allocation4 + $0x98] sm:$0xff]
      %v9238 = vld [vmem:[#allocation4 + $0xa0] sm:$0xff]
      %v9239 = vld [vmem:[#allocation4 + $0xa8] sm:$0xff]
      %v9240 = vld [vmem:[#allocation4 + $0xb0] sm:$0xff]
      %v9241 = vld [vmem:[#allocation4 + $0xb8] sm:$0xff]
      %v9242 = vld [vmem:[#allocation4 + $0xc0] sm:$0xff]
      %v9243 = vld [vmem:[#allocation4 + $0xc8] sm:$0xff]
      %v9244 = vld [vmem:[#allocation4 + $0xd0] sm:$0xff]
      %v9245 = vld [vmem:[#allocation4 + $0xd8] sm:$0xff]
      %v9246 = vld [vmem:[#allocation4 + $0xe0] sm:$0x1f]
      %v9247 = vld [vmem:[#allocation4 + $0x1] sm:$0xff]
      %v9248 = vld [vmem:[#allocation4 + $0x9] sm:$0xff]
      %v9249 = vld [vmem:[#allocation4 + $0x11] sm:$0xff]
      %v9250 = vld [vmem:[#allocation4 + $0x19] sm:$0xff]
      %v9251 = vld [vmem:[#allocation4 + $0x21] sm:$0xff]
      %v9252 = vld [vmem:[#allocation4 + $0x29] sm:$0xff]
      %v9253 = vld [vmem:[#allocation4 + $0x31] sm:$0xff]
      %v9254 = vld [vmem:[#allocation4 + $0x39] sm:$0xff]
      %v9255 = vld [vmem:[#allocation4 + $0x41] sm:$0xff]
      %v9256 = vld [vmem:[#allocation4 + $0x49] sm:$0xff]
      %v9257 = vld [vmem:[#allocation4 + $0x51] sm:$0xff]
      %v9258 = vld [vmem:[#allocation4 + $0x59] sm:$0xff]
      %v9259 = vld [vmem:[#allocation4 + $0x61] sm:$0xff]
      %v9260 = vld [vmem:[#allocation4 + $0x69] sm:$0xff]
      %v9261 = vld [vmem:[#allocation4 + $0x71] sm:$0xff]
      %v9262 = vld [vmem:[#allocation4 + $0x79] sm:$0xff]
      %v9263 = vld [vmem:[#allocation4 + $0x81] sm:$0xff]
      %v9264 = vld [vmem:[#allocation4 + $0x89] sm:$0xff]
      %v9265 = vld [vmem:[#allocation4 + $0x91] sm:$0xff]
      %v9266 = vld [vmem:[#allocation4 + $0x99] sm:$0xff]
      %v9267 = vld [vmem:[#allocation4 + $0xa1] sm:$0xff]
      %v9268 = vld [vmem:[#allocation4 + $0xa9] sm:$0xff]
      %v9269 = vld [vmem:[#allocation4 + $0xb1] sm:$0xff]
      %v9270 = vld [vmem:[#allocation4 + $0xb9] sm:$0xff]
      %v9271 = vld [vmem:[#allocation4 + $0xc1] sm:$0xff]
      %v9272 = vld [vmem:[#allocation4 + $0xc9] sm:$0xff]
      %v9273 = vld [vmem:[#allocation4 + $0xd1] sm:$0xff]
      %v9274 = vld [vmem:[#allocation4 + $0xd9] sm:$0xff]
      %v9275 = vld [vmem:[#allocation4 + $0xe1] sm:$0x1f]
      %v9276 = vmax.f32 %v9218, %v9247
      %v9277 = vmax.f32 %v9219, %v9248
      %v9278 = vmax.f32 %v9220, %v9249
      %v9279 = vmax.f32 %v9221, %v9250
      %v9280 = vmax.f32 %v9222, %v9251
      %v9281 = vmax.f32 %v9223, %v9252
      %v9282 = vmax.f32 %v9224, %v9253
      %v9283 = vmax.f32 %v9225, %v9254
      %v9284 = vmax.f32 %v9226, %v9255
      %v9285 = vmax.f32 %v9227, %v9256
      %v9286 = vmax.f32 %v9228, %v9257
      %v9287 = vmax.f32 %v9229, %v9258
      %v9288 = vmax.f32 %v9230, %v9259
      %v9289 = vmax.f32 %v9231, %v9260
      %v9290 = vmax.f32 %v9232, %v9261
      %v9291 = vmax.f32 %v9233, %v9262
      %v9292 = vmax.f32 %v9234, %v9263
      %v9293 = vmax.f32 %v9235, %v9264
      %v9294 = vmax.f32 %v9236, %v9265
      %v9295 = vmax.f32 %v9237, %v9266
      %v9296 = vmax.f32 %v9238, %v9267
      %v9297 = vmax.f32 %v9239, %v9268
      %v9298 = vmax.f32 %v9240, %v9269
      %v9299 = vmax.f32 %v9241, %v9270
      %v9300 = vmax.f32 %v9242, %v9271
      %v9301 = vmax.f32 %v9243, %v9272
      %v9302 = vmax.f32 %v9244, %v9273
      %v9303 = vmax.f32 %v9245, %v9274
      %v9304 = vmax.f32 %v9246, %v9275
      %9305 = vst.msk [vmem:[#allocation4] sm:$0xff] %vm9069, %v9276
      %9306 = vst.msk [vmem:[#allocation4 + $0x8] sm:$0xff] %vm9069, %v9277
      %9307 = vst.msk [vmem:[#allocation4 + $0x10] sm:$0xff] %vm9069, %v9278
      %9308 = vst.msk [vmem:[#allocation4 + $0x18] sm:$0xff] %vm9069, %v9279
      %9309 = vst.msk [vmem:[#allocation4 + $0x20] sm:$0xff] %vm9069, %v9280
      %9310 = vst.msk [vmem:[#allocation4 + $0x28] sm:$0xff] %vm9069, %v9281
      %9311 = vst.msk [vmem:[#allocation4 + $0x30] sm:$0xff] %vm9069, %v9282
      %9312 = vst.msk [vmem:[#allocation4 + $0x38] sm:$0xff] %vm9069, %v9283
      %9313 = vst.msk [vmem:[#allocation4 + $0x40] sm:$0xff] %vm9069, %v9284
      %9314 = vst.msk [vmem:[#allocation4 + $0x48] sm:$0xff] %vm9069, %v9285
      %9315 = vst.msk [vmem:[#allocation4 + $0x50] sm:$0xff] %vm9069, %v9286
      %9316 = vst.msk [vmem:[#allocation4 + $0x58] sm:$0xff] %vm9069, %v9287
      %9317 = vst.msk [vmem:[#allocation4 + $0x60] sm:$0xff] %vm9069, %v9288
      %9318 = vst.msk [vmem:[#allocation4 + $0x68] sm:$0xff] %vm9069, %v9289
      %9319 = vst.msk [vmem:[#allocation4 + $0x70] sm:$0xff] %vm9069, %v9290
      %9320 = vst.msk [vmem:[#allocation4 + $0x78] sm:$0xff] %vm9069, %v9291
      %9321 = vst.msk [vmem:[#allocation4 + $0x80] sm:$0xff] %vm9069, %v9292
      %9322 = vst.msk [vmem:[#allocation4 + $0x88] sm:$0xff] %vm9069, %v9293
      %9323 = vst.msk [vmem:[#allocation4 + $0x90] sm:$0xff] %vm9069, %v9294
      %9324 = vst.msk [vmem:[#allocation4 + $0x98] sm:$0xff] %vm9069, %v9295
      %9325 = vst.msk [vmem:[#allocation4 + $0xa0] sm:$0xff] %vm9069, %v9296
      %9326 = vst.msk [vmem:[#allocation4 + $0xa8] sm:$0xff] %vm9069, %v9297
      %9327 = vst.msk [vmem:[#allocation4 + $0xb0] sm:$0xff] %vm9069, %v9298
      %9328 = vst.msk [vmem:[#allocation4 + $0xb8] sm:$0xff] %vm9069, %v9299
      %9329 = vst.msk [vmem:[#allocation4 + $0xc0] sm:$0xff] %vm9069, %v9300
      %9330 = vst.msk [vmem:[#allocation4 + $0xc8] sm:$0xff] %vm9069, %v9301
      %9331 = vst.msk [vmem:[#allocation4 + $0xd0] sm:$0xff] %vm9069, %v9302
      %9332 = vst.msk [vmem:[#allocation4 + $0xd8] sm:$0xff] %vm9069, %v9303
      %vm9333 = vcmask 520192
      %9334 = vst.msk [vmem:[#allocation4 + $0xe0] sm:$0x1f] %vm9333, %v9304
      %v9335 = vld [vmem:[#allocation4] ss:$2 sm:$0x7f]
      %vm9336 = vcmask 522240
      %9337 = vst.msk [vmem:[%s280] sm:$0x7f] %vm9336, %v9335
      %s9338 = scalar_lea.vmem [#allocation4], 36
      %v9339 = vld [vmem:[%s9338] ss:$2 sm:$0x7f]
      %s9340 = scalar_lea.vmem %s280, 8
      %9341 = vst.msk [vmem:[%s9340] sm:$0x7f] %vm9336, %v9339
      %s9342 = scalar_lea.vmem [#allocation4], 72
      %v9343 = vld [vmem:[%s9342] ss:$2 sm:$0x7f]
      %s9344 = scalar_lea.vmem %s280, 16
      %9345 = vst.msk [vmem:[%s9344] sm:$0x7f] %vm9336, %v9343
      %s9346 = scalar_lea.vmem [#allocation4], 108
      %v9347 = vld [vmem:[%s9346] ss:$2 sm:$0x7f]
      %s9348 = scalar_lea.vmem %s280, 24
      %9349 = vst.msk [vmem:[%s9348] sm:$0x7f] %vm9336, %v9347
      %s9350 = scalar_lea.vmem [#allocation4], 144
      %v9351 = vld [vmem:[%s9350] ss:$2 sm:$0x7f]
      %s9352 = scalar_lea.vmem %s280, 32
      %9353 = vst.msk [vmem:[%s9352] sm:$0x7f] %vm9336, %v9351
      %s9354 = scalar_lea.vmem [#allocation4], 180
      %v9355 = vld [vmem:[%s9354] ss:$2 sm:$0x7f]
      %s9356 = scalar_lea.vmem %s280, 40
      %9357 = vst.msk [vmem:[%s9356] sm:$0x7f] %vm9336, %v9355
      %s9358 = scalar_lea.vmem [#allocation4], 216
      %v9359 = vld [vmem:[%s9358] ss:$2 sm:$0x7f]
      %s9360 = scalar_lea.vmem %s280, 48
      %9361 = vst.msk [vmem:[%s9360] sm:$0x7f] %vm9336, %v9359
      %p9362 = scmp.lt.s32.totalorder %s18, 1
      %s9363 = scalar_select %p9362, %s18, 1
      %s9364 = smul.addr %s9363, 7
      %s9365 = smul.addr %s9364, 8
      %s9366 = scalar_lea.vmem %s7, %s9365
      // Predicated region
      $region49: #{fed_emnist_cnn_pallas.2} parent=47 // pred_check
        %p9367 = pneg %p188
      $region50: #{fed_emnist_cnn_pallas.2} parent=47 // pred_check_branch
        %9369 = sbr.rel (%p9367) target = $region52
      $region51: #{fed_emnist_cnn_pallas.2} parent=47 // pred_region
        _
      $region52: #{fed_emnist_cnn_pallas.2} parent=47 // pred_fallthru
        _
    $region48: #{fed_emnist_cnn_pallas.2} parent=5 // pred_fallthru
      _
    %p9370 = scmp.le.s32.totalorder 2, %s13
    // Predicated region
    $region53: #{fed_emnist_cnn_pallas.2} parent=5 // pred_check
      %p9371 = pneg %p9370
    $region54: #{fed_emnist_cnn_pallas.2} parent=5 // pred_check_branch
      %9373 = sbr.rel (%p9371) target = $region56
    $region55: #{fed_emnist_cnn_pallas.2} parent=5 // pred_region
      %s9374 = ssub.s32 %s13, 2
      // Predicated region
      $region57: #{fed_emnist_cnn_pallas.2} parent=55 // pred_check
        %p9375 = pneg %p194
      $region58: #{fed_emnist_cnn_pallas.2} parent=55 // pred_check_branch
        %9377 = sbr.rel (%p9375) target = $region60
      $region59: #{fed_emnist_cnn_pallas.2} parent=55 // pred_region
        %p9378 = scmp.lt.s32.totalorder %s19, 1
        %s9379 = scalar_select %p9378, %s19, 1
        %s9380 = smul.addr %s9379, 7
        %s9381 = smul.addr %s9380, 8
        %s9382 = scalar_lea.vmem %s7, %s9381
      $region60: #{fed_emnist_cnn_pallas.2} parent=55 // pred_fallthru
        _
    $region56: #{fed_emnist_cnn_pallas.2} parent=5 // pred_fallthru
      _
  $region6: #{fed_emnist_cnn_pallas.2} parent=0 // loop_footer
    %s17 = sadd.s32 1, %s13
  $region7: #{fed_emnist_cnn_pallas.2} parent=0 // loop_footer_branch
    %12 = sbr.rel target = $region3
  $region8: #{fed_emnist_cnn_pallas.2} parent=0 // loop_exit
    _

</llo_original>
